<compile_context>
chip_gen: v7x
topology: tpu7x:2x2x1
jax: 0.10.0
libtpu: 0.0.40
codegen_flags: <defaults>
</compile_context>

<pallas_src>
import functools

import jax
import jax.numpy as jnp
from jax.experimental import pallas as pl
from jax.experimental.pallas import tpu as pltpu


def _affine_warp_kernel(D, H, W, with_label, mat_ref, base_ref, img_ref, *refs):
    """One (batch, output-voxel-tile) grid step."""
    if with_label:
        lbl_ref, oimg_ref, olbl_ref = refs
    else:
        lbl_ref = olbl_ref = None
        (oimg_ref,) = refs

    P_pad = img_ref.shape[2]      # padded source-voxel count (sublane axis of S)
    tile_p = oimg_ref.shape[2]    # output-voxel tile (lane axis)
    HW = H * W

    # Affine matrix for this batch element: 12 scalars in flat 1-D SMEM.
    b = pl.program_id(0)
    m = b * 12
    m00 = mat_ref[m + 0];  m01 = mat_ref[m + 1];  m02 = mat_ref[m + 2];  m03 = mat_ref[m + 3]
    m10 = mat_ref[m + 4];  m11 = mat_ref[m + 5];  m12 = mat_ref[m + 6];  m13 = mat_ref[m + 7]
    m20 = mat_ref[m + 8];  m21 = mat_ref[m + 9];  m22 = mat_ref[m + 10]; m23 = mat_ref[m + 11]

    # Normalized base grid for this output tile (precomputed in wrapper; padded
    # to 8 sublanes so the per-tile load is an unmasked sublane tile).
    xs = base_ref[0:1, :]
    ys = base_ref[1:2, :]
    zs = base_ref[2:3, :]

    # affine_grid: g = theta @ (x, y, z, 1)
    gx = m00 * xs + m01 * ys + m02 * zs + m03
    gy = m10 * xs + m11 * ys + m12 * zs + m13
    gz = m20 * xs + m21 * ys + m22 * zs + m23

    # grid_sample unnormalization (align_corners=True): ((c + 1) / 2) * (size - 1)
    ix = (gx + 1.0) * (0.5 * (W - 1))
    iy = (gy + 1.0) * (0.5 * (H - 1))
    iz = (gz + 1.0) * (0.5 * (D - 1))

    # Clip to [-1, size]: outside that range the sample is zero either way (all
    # corners out of bounds -> weight 0); the clip bounds the flattened base
    # index so the sublane wrap below is exact and int32-safe.
    ix = jnp.clip(ix, -1.0, float(W))
    iy = jnp.clip(iy, -1.0, float(H))
    iz = jnp.clip(iz, -1.0, float(D))

    ix0f = jnp.floor(ix); iy0f = jnp.floor(iy); iz0f = jnp.floor(iz)
    fx = ix - ix0f; fy = iy - iy0f; fz = iz - iz0f
    ix0 = ix0f.astype(jnp.int32)
    iy0 = iy0f.astype(jnp.int32)
    iz0 = iz0f.astype(jnp.int32)

    # qiota[q, p] = q : source voxel on sublanes, output voxel on lanes.
    qiota = jax.lax.broadcasted_iota(jnp.int32, (P_pad, tile_p), 0)

    # --- (0,0,0)-corner one-hot: the ONLY full-slab compare/select in the build.
    # Wrap negative base indices into [0, P_pad) so circular sublane rolls land
    # the valid corners on the right rows (out-of-range corners carry weight 0,
    # so wrapped "ghost" rows are harmless).
    q000 = iz0 * HW + iy0 * W + ix0                     # (1, T), >= -(HW+W+1)
    q000w = jnp.where(q000 < 0, q000 + P_pad, q000)
    onehot = jnp.where(qiota == q000w, 1.0, 0.0)        # (P_pad, T) f32

    wx = (1.0 - fx, fx)
    wy = (1.0 - fy, fy)
    wz = (1.0 - fz, fz)

    # --- trilinear interpolation slab (P_pad x TILE_P), padding_mode='zeros' ---
    # Remaining 7 corners come from static sublane rolls of the base one-hot
    # (XLU slot); per corner only one slab multiply + one slab add remain on the
    # VALU.  Pairwise/depth-3 tree sum keeps the add critical path short.
    partials = []
    for dz in (0, 1):
        zc = iz0 + dz
        vz = (zc >= 0) & (zc < D)
        for dy in (0, 1):
            yc = iy0 + dy
            vzy = vz & (yc >= 0) & (yc < H)
            wzy = wz[dz] * wy[dy]
            pair = None
            for dx in (0, 1):
                xc = ix0 + dx
                valid = vzy & (xc >= 0) & (xc < W)
                wt = jnp.where(valid, wzy * wx[dx], 0.0)          # (1, T)
                shift = dz * HW + dy * W + dx                     # static int
                oh = onehot if shift == 0 else pltpu.roll(onehot, shift=shift, axis=0)
                term = oh * wt                                    # (P_pad, T)
                pair = term if pair is None else pair + term
            partials.append(pair)
    s_t = (partials[0] + partials[1]) + (partials[2] + partials[3])

    # Image matmul issued before the label-path build so the MXU drain overlaps
    # the remaining VPU work.  No per-tile input cast: the resident block is fed
    # to the MXU in its stored dtype with an f32 accumulator.
    oimg_ref[0] = jnp.dot(img_ref[0], s_t,
                          preferred_element_type=jnp.float32).astype(oimg_ref.dtype)

    if with_label:
        # --- nearest-neighbour one-hot slab for the label ---
        # TODO(synk): jnp.round is half-to-even; torch may differ at exact .5 ties.
        xn = jnp.round(ix).astype(jnp.int32)
        yn = jnp.round(iy).astype(jnp.int32)
        zn = jnp.round(iz).astype(jnp.int32)
        validn = ((zn >= 0) & (zn < D) & (yn >= 0) & (yn < H)
                  & (xn >= 0) & (xn < W))
        qn = zn * HW + yn * W + xn
        sn_t = jnp.where((qiota == qn) & validn, 1.0, 0.0)
        olbl_ref[0] = jnp.dot(lbl_ref[0], sn_t,
                              preferred_element_type=jnp.float32).astype(olbl_ref.dtype)


def _vmem_capacity_bytes():
    """Per-core VMEM capacity; conservative (v7x) fallback if the query fails."""
    try:
        return int(pltpu.get_tpu_info().vmem_capacity_bytes)
    except Exception:
        return 64 << 20


def _estimate_vmem(P_pad, tile_p, C, Cl, img_itemsize, out_itemsize, with_label):
    """Rough peak-VMEM model: live f32 slabs + double-buffered blocks + slack."""
    slab = P_pad * tile_p * 4
    n_slabs = 6                                           # onehot + rolled/term + tree partials
    resident = 2 * (C * P_pad * img_itemsize + Cl * P_pad * 4 + 8 * tile_p * 4)
    out_tiles = 2 * (C * tile_p * out_itemsize + Cl * tile_p * 4)
    lbl_extra = slab if with_label else 0
    return n_slabs * slab + lbl_extra + resident + out_tiles + (2 << 20)


def affine_transform(image, label, mat, need_moved_label=True, tile_p=None):
    """Pallas equivalent of AffineTransform.forward (image/label NCDHW, mat (N,3,4))."""
    N, C, D, H, W = image.shape
    P = D * H * W
    Cl = label.shape[1] if need_moved_label else 0

    # grid_sample operates on floating inputs; keep native float dtypes.
    if not jnp.issubdtype(image.dtype, jnp.floating):
        image = image.astype(jnp.float32)
    img_itemsize = jnp.dtype(image.dtype).itemsize
    out_itemsize = img_itemsize

    # Lane-dense padding: output/matrix lane axis is a multiple of 128.
    P128 = ((P + 127) // 128) * 128

    # Generation-aware tile sizing: pick the widest lane-dense tile whose
    # estimated VMEM footprint fits a fraction of this device's VMEM capacity
    # (64 MiB/core on v7x, 128 MiB on v5e/v6e).  Shrinking the tile — not the
    # vmem_limit — is what actually reduces usage.
    cap = _vmem_capacity_bytes()
    budget = int(cap * 0.6)
    if tile_p is None:
        tile_p = 128
        for cand in (1024, 768, 512, 384, 256, 128):
            cand = min(cand, P128)
            P_pad_c = ((P128 + cand - 1) // cand) * cand
            if _estimate_vmem(P_pad_c, cand, C, Cl, img_itemsize, out_itemsize,
                              need_moved_label) <= budget:
                tile_p = cand
                break
    else:
        tile_p = max(128, min((int(tile_p) // 128) * 128, P128))

    P_pad = ((P128 + tile_p - 1) // tile_p) * tile_p
    n_tiles = P_pad // tile_p
    # Needed so the negative-side sublane wrap of the base-corner index is exact.
    assert H * W + W + 1 <= P_pad, "volume too degenerate for the roll-based build"

    est = _estimate_vmem(P_pad, tile_p, C, Cl, img_itemsize, out_itemsize,
                         need_moved_label)
    vmem_limit = int(min(max(est, 16 << 20), int(cap * 0.9)))

    img2 = jnp.pad(image.reshape(N, C, P), ((0, 0), (0, 0), (0, P_pad - P)))
    mat1d = mat.astype(jnp.float32).reshape(N * 12)   # 1-D SMEM: avoids 2-D SMEM padding

    # Base normalized sampling grid (align_corners=True), flattened (d, h, w)-major,
    # padded to 8 sublanes so per-tile loads are unmasked sublane tiles.
    xs = jnp.linspace(-1.0, 1.0, W, dtype=jnp.float32)
    ys = jnp.linspace(-1.0, 1.0, H, dtype=jnp.float32)
    zs = jnp.linspace(-1.0, 1.0, D, dtype=jnp.float32)
    Z, Y, X = jnp.meshgrid(zs, ys, xs, indexing="ij")
    base = jnp.stack([X.reshape(-1), Y.reshape(-1), Z.reshape(-1)], axis=0)  # (3, P)
    base = jnp.pad(base, ((0, 5), (0, P_pad - P)))                           # (8, P_pad)

    kernel = functools.partial(_affine_warp_kernel, D, H, W, need_moved_label)

    in_specs = [
        pl.BlockSpec(memory_space=pltpu.MemorySpace.SMEM),          # mat, flat (N*12,)
        pl.BlockSpec((8, tile_p), lambda n, t: (0, t)),             # base grid tile
        pl.BlockSpec((1, C, P_pad), lambda n, t: (n, 0, 0)),        # image (resident over t)
    ]
    operands = [mat1d, base, img2]

    if need_moved_label:
        lbl2 = jnp.pad(label.astype(jnp.float32).reshape(N, Cl, P),
                       ((0, 0), (0, 0), (0, P_pad - P)))
        in_specs.append(pl.BlockSpec((1, Cl, P_pad), lambda n, t: (n, 0, 0)))
        operands.append(lbl2)
        out_specs = (pl.BlockSpec((1, C, tile_p), lambda n, t: (n, 0, t)),
                     pl.BlockSpec((1, Cl, tile_p), lambda n, t: (n, 0, t)))
        out_shape = (jax.ShapeDtypeStruct((N, C, P_pad), image.dtype),
                     jax.ShapeDtypeStruct((N, Cl, P_pad), jnp.float32))
    else:
        out_specs = pl.BlockSpec((1, C, tile_p), lambda n, t: (n, 0, t))
        out_shape = jax.ShapeDtypeStruct((N, C, P_pad), image.dtype)

    outs = pl.pallas_call(
        kernel,
        grid=(N, n_tiles),
        in_specs=in_specs,
        out_specs=out_specs,
        out_shape=out_shape,
        compiler_params=pltpu.CompilerParams(
            # Both axes write disjoint output blocks and carry no accumulator, so
            # both are parallel -> v7x's second TensorCore is used even for N=1.
            dimension_semantics=("parallel", "parallel"),
            vmem_limit_bytes=vmem_limit,
        ),
    )(*operands)

    if need_moved_label:
        out_img, out_lbl = outs
        warp_label = out_lbl[:, :, :P].reshape(N, Cl, D, H, W)
    else:
        out_img = outs
        warp_label = None
    warp_image = out_img[:, :, :P].reshape(N, C, D, H, W)
    return warp_image, warp_label


def reference_affine_transform(image, label, mat):
    """Pure-JAX reference reproducing torch affine_grid + grid_sample semantics."""
    N, C, D, H, W = image.shape
    P = D * H * W
    xs = jnp.linspace(-1.0, 1.0, W)
    ys = jnp.linspace(-1.0, 1.0, H)
    zs = jnp.linspace(-1.0, 1.0, D)
    Z, Y, X = jnp.meshgrid(zs, ys, xs, indexing="ij")
    base = jnp.stack([X.reshape(-1), Y.reshape(-1), Z.reshape(-1),
                      jnp.ones((P,), jnp.float32)], axis=0)            # (4, P)
    g = jnp.einsum("nkj,jp->nkp", mat.astype(jnp.float32), base)        # (N, 3, P)
    ix = (g[:, 0] + 1.0) * 0.5 * (W - 1)
    iy = (g[:, 1] + 1.0) * 0.5 * (H - 1)
    iz = (g[:, 2] + 1.0) * 0.5 * (D - 1)

    img_flat = image.reshape(N, C, P)
    lbl_flat = label.astype(jnp.float32).reshape(N, -1, P)

    ix0f = jnp.floor(ix); iy0f = jnp.floor(iy); iz0f = jnp.floor(iz)
    fx = ix - ix0f; fy = iy - iy0f; fz = iz - iz0f
    ix0 = ix0f.astype(jnp.int32); iy0 = iy0f.astype(jnp.int32); iz0 = iz0f.astype(jnp.int32)

    out_img = jnp.zeros((N, C, P), jnp.float32)
    for dz in (0, 1):
        for dy in (0, 1):
            for dx in (0, 1):
                zc = iz0 + dz; yc = iy0 + dy; xc = ix0 + dx
                wt = ((fz if dz else 1.0 - fz)
                      * (fy if dy else 1.0 - fy)
                      * (fx if dx else 1.0 - fx))
                valid = ((zc >= 0) & (zc < D) & (yc >= 0) & (yc < H)
                         & (xc >= 0) & (xc < W))
                q = (jnp.clip(zc, 0, D - 1) * (H * W)
                     + jnp.clip(yc, 0, H - 1) * W
                     + jnp.clip(xc, 0, W - 1))                         # (N, P)
                vals = jnp.take_along_axis(
                    img_flat, jnp.broadcast_to(q[:, None, :], img_flat.shape), axis=2)
                out_img = out_img + jnp.where(valid, wt, 0.0)[:, None, :] * vals

    xn = jnp.round(ix).astype(jnp.int32)
    yn = jnp.round(iy).astype(jnp.int32)
    zn = jnp.round(iz).astype(jnp.int32)
    validn = ((zn >= 0) & (zn < D) & (yn >= 0) & (yn < H) & (xn >= 0) & (xn < W))
    qn = (jnp.clip(zn, 0, D - 1) * (H * W)
          + jnp.clip(yn, 0, H - 1) * W
          + jnp.clip(xn, 0, W - 1))
    lvals = jnp.take_along_axis(
        lbl_flat, jnp.broadcast_to(qn[:, None, :], lbl_flat.shape), axis=2)
    out_lbl = jnp.where(validn, 1.0, 0.0)[:, None, :] * lvals

    return out_img.reshape(N, C, D, H, W), out_lbl.reshape(N, -1, D, H, W)


if __name__ == "__main__":
    # W=10 makes P = 640 (not a multiple of 128) to exercise lane padding, and
    # tile_p=256 gives a multi-tile grid (3 output tiles) per batch element.
    N, C, Cl, D, H, W = 2, 2, 1, 8, 8, 10
    key = jax.random.PRNGKey(0)
    k_img, k_lbl, k_mat = jax.random.split(key, 3)

    image = jax.random.normal(k_img, (N, C, D, H, W), dtype=jnp.float32)
    label = jax.random.randint(k_lbl, (N, Cl, D, H, W), 0, 5).astype(jnp.int32)
    eye34 = jnp.concatenate([jnp.eye(3, dtype=jnp.float32),
                             jnp.zeros((3, 1), jnp.float32)], axis=1)
    mat = eye34[None, :, :] + 0.05 * jax.random.normal(k_mat, (N, 3, 4), dtype=jnp.float32)

    warp_img, warp_lbl = affine_transform(image, label, mat,
                                          need_moved_label=True, tile_p=256)
    (warp_img, warp_lbl) = jax.block_until_ready((warp_img, warp_lbl))
    assert warp_img.shape == (N, C, D, H, W)
    assert warp_lbl.shape == (N, Cl, D, H, W)

    ref_img, ref_lbl = reference_affine_transform(image, label, mat)
    img_err = float(jnp.max(jnp.abs(warp_img - ref_img)))
    lbl_err = float(jnp.max(jnp.abs(warp_lbl - ref_lbl)))
    assert jnp.allclose(warp_img, ref_img, atol=2e-3, rtol=2e-3), img_err
    assert jnp.allclose(warp_lbl, ref_lbl, atol=1e-4), lbl_err

    # need_moved_label=False + auto tile size: skips label input/matmul/output and
    # exercises the VMEM-budget-driven tile selection (single tile here).
    warp_img2, no_lbl = affine_transform(image, label, mat, need_moved_label=False)
    warp_img2 = jax.block_until_ready(warp_img2)
    assert no_lbl is None
    assert jnp.allclose(warp_img2, ref_img, atol=2e-3, rtol=2e-3)

    print("KERNEL_OK")
</pallas_src>

<mosaic_0001>
module attributes {stable_mosaic.version = 11 : i64} {
  func.func @_affine_warp_kernel(%arg0: i32, %arg1: i32, %arg2: memref<24xf32, #tpu.memory_space<smem>>, %arg3: memref<8x256xf32, #tpu.memory_space<vmem>>, %arg4: memref<1x2x768xf32, #tpu.memory_space<vmem>>, %arg5: memref<1x1x768xf32, #tpu.memory_space<vmem>>, %arg6: memref<1x2x256xf32, #tpu.memory_space<vmem>>, %arg7: memref<1x1x256xf32, #tpu.memory_space<vmem>>) attributes {dimension_semantics = [#tpu.dimension_semantics<parallel>, #tpu.dimension_semantics<parallel>], iteration_bounds = array<i64: 2, 3>, scalar_prefetch = 0 : i64, scratch_operands = 0 : i64, tpu.core_type = #tpu.core_type<tc>, window_params = [{transform_indices = @transform_0, window_bounds = array<i64: 24>}, {transform_indices = @transform_1, window_bounds = array<i64: 8, 256>}, {transform_indices = @transform_2, window_bounds = array<i64: 1, 2, 768>}, {transform_indices = @transform_3, window_bounds = array<i64: 1, 1, 768>}, {transform_indices = @transform_4, window_bounds = array<i64: 1, 2, 256>}, {transform_indices = @transform_5, window_bounds = array<i64: 1, 1, 256>}]} {
    %c12_i32 = arith.constant 12 : i32
    %0 = arith.muli %arg0, %c12_i32 : i32
    %c0_i32 = arith.constant 0 : i32
    %1 = arith.addi %0, %c0_i32 : i32
    %2 = arith.index_cast %1 : i32 to index
    %3 = memref.load %arg2[%2] : memref<24xf32, #tpu.memory_space<smem>>
    %c1_i32 = arith.constant 1 : i32
    %4 = arith.addi %0, %c1_i32 : i32
    %5 = arith.index_cast %4 : i32 to index
    %6 = memref.load %arg2[%5] : memref<24xf32, #tpu.memory_space<smem>>
    %c2_i32 = arith.constant 2 : i32
    %7 = arith.addi %0, %c2_i32 : i32
    %8 = arith.index_cast %7 : i32 to index
    %9 = memref.load %arg2[%8] : memref<24xf32, #tpu.memory_space<smem>>
    %c3_i32 = arith.constant 3 : i32
    %10 = arith.addi %0, %c3_i32 : i32
    %11 = arith.index_cast %10 : i32 to index
    %12 = memref.load %arg2[%11] : memref<24xf32, #tpu.memory_space<smem>>
    %c4_i32 = arith.constant 4 : i32
    %13 = arith.addi %0, %c4_i32 : i32
    %14 = arith.index_cast %13 : i32 to index
    %15 = memref.load %arg2[%14] : memref<24xf32, #tpu.memory_space<smem>>
    %c5_i32 = arith.constant 5 : i32
    %16 = arith.addi %0, %c5_i32 : i32
    %17 = arith.index_cast %16 : i32 to index
    %18 = memref.load %arg2[%17] : memref<24xf32, #tpu.memory_space<smem>>
    %c6_i32 = arith.constant 6 : i32
    %19 = arith.addi %0, %c6_i32 : i32
    %20 = arith.index_cast %19 : i32 to index
    %21 = memref.load %arg2[%20] : memref<24xf32, #tpu.memory_space<smem>>
    %c7_i32 = arith.constant 7 : i32
    %22 = arith.addi %0, %c7_i32 : i32
    %23 = arith.index_cast %22 : i32 to index
    %24 = memref.load %arg2[%23] : memref<24xf32, #tpu.memory_space<smem>>
    %c8_i32 = arith.constant 8 : i32
    %25 = arith.addi %0, %c8_i32 : i32
    %26 = arith.index_cast %25 : i32 to index
    %27 = memref.load %arg2[%26] : memref<24xf32, #tpu.memory_space<smem>>
    %c9_i32 = arith.constant 9 : i32
    %28 = arith.addi %0, %c9_i32 : i32
    %29 = arith.index_cast %28 : i32 to index
    %30 = memref.load %arg2[%29] : memref<24xf32, #tpu.memory_space<smem>>
    %c10_i32 = arith.constant 10 : i32
    %31 = arith.addi %0, %c10_i32 : i32
    %32 = arith.index_cast %31 : i32 to index
    %33 = memref.load %arg2[%32] : memref<24xf32, #tpu.memory_space<smem>>
    %c11_i32 = arith.constant 11 : i32
    %34 = arith.addi %0, %c11_i32 : i32
    %35 = arith.index_cast %34 : i32 to index
    %36 = memref.load %arg2[%35] : memref<24xf32, #tpu.memory_space<smem>>
    %c0 = arith.constant 0 : index
    %c0_0 = arith.constant 0 : index
    %37 = vector.load %arg3[%c0, %c0_0] : memref<8x256xf32, #tpu.memory_space<vmem>>, vector<1x256xf32>
    %c1 = arith.constant 1 : index
    %c0_1 = arith.constant 0 : index
    %38 = vector.load %arg3[%c1, %c0_1] : memref<8x256xf32, #tpu.memory_space<vmem>>, vector<1x256xf32>
    %c2 = arith.constant 2 : index
    %c0_2 = arith.constant 0 : index
    %39 = vector.load %arg3[%c2, %c0_2] : memref<8x256xf32, #tpu.memory_space<vmem>>, vector<1x256xf32>
    %40 = vector.broadcast %3 : f32 to vector<1x256xf32>
    %41 = arith.mulf %40, %37 : vector<1x256xf32>
    %42 = vector.broadcast %6 : f32 to vector<1x256xf32>
    %43 = arith.mulf %42, %38 : vector<1x256xf32>
    %44 = arith.addf %41, %43 : vector<1x256xf32>
    %45 = vector.broadcast %9 : f32 to vector<1x256xf32>
    %46 = arith.mulf %45, %39 : vector<1x256xf32>
    %47 = arith.addf %44, %46 : vector<1x256xf32>
    %48 = vector.broadcast %12 : f32 to vector<1x256xf32>
    %49 = arith.addf %47, %48 : vector<1x256xf32>
    %50 = vector.broadcast %15 : f32 to vector<1x256xf32>
    %51 = arith.mulf %50, %37 : vector<1x256xf32>
    %52 = vector.broadcast %18 : f32 to vector<1x256xf32>
    %53 = arith.mulf %52, %38 : vector<1x256xf32>
    %54 = arith.addf %51, %53 : vector<1x256xf32>
    %55 = vector.broadcast %21 : f32 to vector<1x256xf32>
    %56 = arith.mulf %55, %39 : vector<1x256xf32>
    %57 = arith.addf %54, %56 : vector<1x256xf32>
    %58 = vector.broadcast %24 : f32 to vector<1x256xf32>
    %59 = arith.addf %57, %58 : vector<1x256xf32>
    %60 = vector.broadcast %27 : f32 to vector<1x256xf32>
    %61 = arith.mulf %60, %37 : vector<1x256xf32>
    %62 = vector.broadcast %30 : f32 to vector<1x256xf32>
    %63 = arith.mulf %62, %38 : vector<1x256xf32>
    %64 = arith.addf %61, %63 : vector<1x256xf32>
    %65 = vector.broadcast %33 : f32 to vector<1x256xf32>
    %66 = arith.mulf %65, %39 : vector<1x256xf32>
    %67 = arith.addf %64, %66 : vector<1x256xf32>
    %68 = vector.broadcast %36 : f32 to vector<1x256xf32>
    %69 = arith.addf %67, %68 : vector<1x256xf32>
    %cst = arith.constant 1.000000e+00 : f32
    %70 = vector.broadcast %cst : f32 to vector<1x256xf32>
    %71 = arith.addf %49, %70 : vector<1x256xf32>
    %cst_3 = arith.constant 4.500000e+00 : f32
    %72 = vector.broadcast %cst_3 : f32 to vector<1x256xf32>
    %73 = arith.mulf %71, %72 : vector<1x256xf32>
    %cst_4 = arith.constant 1.000000e+00 : f32
    %74 = vector.broadcast %cst_4 : f32 to vector<1x256xf32>
    %75 = arith.addf %59, %74 : vector<1x256xf32>
    %cst_5 = arith.constant 3.500000e+00 : f32
    %76 = vector.broadcast %cst_5 : f32 to vector<1x256xf32>
    %77 = arith.mulf %75, %76 : vector<1x256xf32>
    %cst_6 = arith.constant 1.000000e+00 : f32
    %78 = vector.broadcast %cst_6 : f32 to vector<1x256xf32>
    %79 = arith.addf %69, %78 : vector<1x256xf32>
    %cst_7 = arith.constant 3.500000e+00 : f32
    %80 = vector.broadcast %cst_7 : f32 to vector<1x256xf32>
    %81 = arith.mulf %79, %80 : vector<1x256xf32>
    %cst_8 = arith.constant -1.000000e+00 : f32
    %cst_9 = arith.constant 1.000000e+01 : f32
    %82 = vector.broadcast %cst_8 : f32 to vector<1x256xf32>
    %83 = arith.maximumf %82, %73 : vector<1x256xf32>
    %84 = vector.broadcast %cst_9 : f32 to vector<1x256xf32>
    %85 = arith.minimumf %84, %83 : vector<1x256xf32>
    %cst_10 = arith.constant -1.000000e+00 : f32
    %cst_11 = arith.constant 8.000000e+00 : f32
    %86 = vector.broadcast %cst_10 : f32 to vector<1x256xf32>
    %87 = arith.maximumf %86, %77 : vector<1x256xf32>
    %88 = vector.broadcast %cst_11 : f32 to vector<1x256xf32>
    %89 = arith.minimumf %88, %87 : vector<1x256xf32>
    %cst_12 = arith.constant -1.000000e+00 : f32
    %cst_13 = arith.constant 8.000000e+00 : f32
    %90 = vector.broadcast %cst_12 : f32 to vector<1x256xf32>
    %91 = arith.maximumf %90, %81 : vector<1x256xf32>
    %92 = vector.broadcast %cst_13 : f32 to vector<1x256xf32>
    %93 = arith.minimumf %92, %91 : vector<1x256xf32>
    %94 = math.floor %85 : vector<1x256xf32>
    %95 = math.floor %89 : vector<1x256xf32>
    %96 = math.floor %93 : vector<1x256xf32>
    %97 = arith.subf %85, %94 : vector<1x256xf32>
    %98 = arith.subf %89, %95 : vector<1x256xf32>
    %99 = arith.subf %93, %96 : vector<1x256xf32>
    %100 = arith.fptosi %94 : vector<1x256xf32> to vector<1x256xi32>
    %101 = arith.fptosi %95 : vector<1x256xf32> to vector<1x256xi32>
    %102 = arith.fptosi %96 : vector<1x256xf32> to vector<1x256xi32>
    %103 = tpu.iota {dimensions = array<i32: 0>} : vector<768x256xi32>
    %c80_i32 = arith.constant 80 : i32
    %104 = vector.broadcast %c80_i32 : i32 to vector<1x256xi32>
    %105 = arith.muli %102, %104 : vector<1x256xi32>
    %c10_i32_14 = arith.constant 10 : i32
    %106 = vector.broadcast %c10_i32_14 : i32 to vector<1x256xi32>
    %107 = arith.muli %101, %106 : vector<1x256xi32>
    %108 = arith.addi %105, %107 : vector<1x256xi32>
    %109 = arith.addi %108, %100 : vector<1x256xi32>
    %c0_i32_15 = arith.constant 0 : i32
    %110 = vector.broadcast %c0_i32_15 : i32 to vector<1x256xi32>
    %111 = arith.cmpi slt, %109, %110 : vector<1x256xi32>
    %c768_i32 = arith.constant 768 : i32
    %112 = vector.broadcast %c768_i32 : i32 to vector<1x256xi32>
    %113 = arith.addi %109, %112 : vector<1x256xi32>
    %114 = arith.select %111, %113, %109 : vector<1x256xi1>, vector<1x256xi32>
    %115 = vector.broadcast %114 : vector<1x256xi32> to vector<768x256xi32>
    %116 = arith.cmpi eq, %103, %115 : vector<768x256xi32>
    %cst_16 = arith.constant 1.000000e+00 : f32
    %cst_17 = arith.constant 0.000000e+00 : f32
    %117 = vector.broadcast %cst_16 : f32 to vector<768x256xf32>
    %118 = vector.broadcast %cst_17 : f32 to vector<768x256xf32>
    %119 = arith.select %116, %117, %118 : vector<768x256xi1>, vector<768x256xf32>
    %cst_18 = arith.constant 1.000000e+00 : f32
    %120 = vector.broadcast %cst_18 : f32 to vector<1x256xf32>
    %121 = arith.subf %120, %97 : vector<1x256xf32>
    %cst_19 = arith.constant 1.000000e+00 : f32
    %122 = vector.broadcast %cst_19 : f32 to vector<1x256xf32>
    %123 = arith.subf %122, %98 : vector<1x256xf32>
    %cst_20 = arith.constant 1.000000e+00 : f32
    %124 = vector.broadcast %cst_20 : f32 to vector<1x256xf32>
    %125 = arith.subf %124, %99 : vector<1x256xf32>
    %c0_i32_21 = arith.constant 0 : i32
    %126 = vector.broadcast %c0_i32_21 : i32 to vector<1x256xi32>
    %127 = arith.addi %102, %126 : vector<1x256xi32>
    %c0_i32_22 = arith.constant 0 : i32
    %128 = vector.broadcast %c0_i32_22 : i32 to vector<1x256xi32>
    %129 = arith.cmpi sge, %127, %128 : vector<1x256xi32>
    %c8_i32_23 = arith.constant 8 : i32
    %130 = vector.broadcast %c8_i32_23 : i32 to vector<1x256xi32>
    %131 = arith.cmpi slt, %127, %130 : vector<1x256xi32>
    %132 = arith.andi %129, %131 : vector<1x256xi1>
    %c0_i32_24 = arith.constant 0 : i32
    %133 = vector.broadcast %c0_i32_24 : i32 to vector<1x256xi32>
    %134 = arith.addi %101, %133 : vector<1x256xi32>
    %c0_i32_25 = arith.constant 0 : i32
    %135 = vector.broadcast %c0_i32_25 : i32 to vector<1x256xi32>
    %136 = arith.cmpi sge, %134, %135 : vector<1x256xi32>
    %137 = arith.andi %132, %136 : vector<1x256xi1>
    %c8_i32_26 = arith.constant 8 : i32
    %138 = vector.broadcast %c8_i32_26 : i32 to vector<1x256xi32>
    %139 = arith.cmpi slt, %134, %138 : vector<1x256xi32>
    %140 = arith.andi %137, %139 : vector<1x256xi1>
    %141 = arith.mulf %125, %123 : vector<1x256xf32>
    %c0_i32_27 = arith.constant 0 : i32
    %142 = vector.broadcast %c0_i32_27 : i32 to vector<1x256xi32>
    %143 = arith.addi %100, %142 : vector<1x256xi32>
    %c0_i32_28 = arith.constant 0 : i32
    %144 = vector.broadcast %c0_i32_28 : i32 to vector<1x256xi32>
    %145 = arith.cmpi sge, %143, %144 : vector<1x256xi32>
    %146 = arith.andi %140, %145 : vector<1x256xi1>
    %c10_i32_29 = arith.constant 10 : i32
    %147 = vector.broadcast %c10_i32_29 : i32 to vector<1x256xi32>
    %148 = arith.cmpi slt, %143, %147 : vector<1x256xi32>
    %149 = arith.andi %146, %148 : vector<1x256xi1>
    %150 = arith.mulf %141, %121 : vector<1x256xf32>
    %cst_30 = arith.constant 0.000000e+00 : f32
    %151 = vector.broadcast %cst_30 : f32 to vector<1x256xf32>
    %152 = arith.select %149, %150, %151 : vector<1x256xi1>, vector<1x256xf32>
    %153 = vector.broadcast %152 : vector<1x256xf32> to vector<768x256xf32>
    %154 = arith.mulf %119, %153 : vector<768x256xf32>
    %c1_i32_31 = arith.constant 1 : i32
    %155 = vector.broadcast %c1_i32_31 : i32 to vector<1x256xi32>
    %156 = arith.addi %100, %155 : vector<1x256xi32>
    %c0_i32_32 = arith.constant 0 : i32
    %157 = vector.broadcast %c0_i32_32 : i32 to vector<1x256xi32>
    %158 = arith.cmpi sge, %156, %157 : vector<1x256xi32>
    %159 = arith.andi %140, %158 : vector<1x256xi1>
    %c10_i32_33 = arith.constant 10 : i32
    %160 = vector.broadcast %c10_i32_33 : i32 to vector<1x256xi32>
    %161 = arith.cmpi slt, %156, %160 : vector<1x256xi32>
    %162 = arith.andi %159, %161 : vector<1x256xi1>
    %163 = arith.mulf %141, %97 : vector<1x256xf32>
    %cst_34 = arith.constant 0.000000e+00 : f32
    %164 = vector.broadcast %cst_34 : f32 to vector<1x256xf32>
    %165 = arith.select %162, %163, %164 : vector<1x256xi1>, vector<1x256xf32>
    %c1_i32_35 = arith.constant 1 : i32
    %166 = tpu.dynamic_rotate %119 by %c1_i32_35 dim 0 : vector<768x256xf32>, i32 -> vector<768x256xf32>
    %167 = vector.broadcast %165 : vector<1x256xf32> to vector<768x256xf32>
    %168 = arith.mulf %166, %167 : vector<768x256xf32>
    %169 = arith.addf %154, %168 : vector<768x256xf32>
    %c1_i32_36 = arith.constant 1 : i32
    %170 = vector.broadcast %c1_i32_36 : i32 to vector<1x256xi32>
    %171 = arith.addi %101, %170 : vector<1x256xi32>
    %c0_i32_37 = arith.constant 0 : i32
    %172 = vector.broadcast %c0_i32_37 : i32 to vector<1x256xi32>
    %173 = arith.cmpi sge, %171, %172 : vector<1x256xi32>
    %174 = arith.andi %132, %173 : vector<1x256xi1>
    %c8_i32_38 = arith.constant 8 : i32
    %175 = vector.broadcast %c8_i32_38 : i32 to vector<1x256xi32>
    %176 = arith.cmpi slt, %171, %175 : vector<1x256xi32>
    %177 = arith.andi %174, %176 : vector<1x256xi1>
    %178 = arith.mulf %125, %98 : vector<1x256xf32>
    %c0_i32_39 = arith.constant 0 : i32
    %179 = vector.broadcast %c0_i32_39 : i32 to vector<1x256xi32>
    %180 = arith.addi %100, %179 : vector<1x256xi32>
    %c0_i32_40 = arith.constant 0 : i32
    %181 = vector.broadcast %c0_i32_40 : i32 to vector<1x256xi32>
    %182 = arith.cmpi sge, %180, %181 : vector<1x256xi32>
    %183 = arith.andi %177, %182 : vector<1x256xi1>
    %c10_i32_41 = arith.constant 10 : i32
    %184 = vector.broadcast %c10_i32_41 : i32 to vector<1x256xi32>
    %185 = arith.cmpi slt, %180, %184 : vector<1x256xi32>
    %186 = arith.andi %183, %185 : vector<1x256xi1>
    %187 = arith.mulf %178, %121 : vector<1x256xf32>
    %cst_42 = arith.constant 0.000000e+00 : f32
    %188 = vector.broadcast %cst_42 : f32 to vector<1x256xf32>
    %189 = arith.select %186, %187, %188 : vector<1x256xi1>, vector<1x256xf32>
    %c10_i32_43 = arith.constant 10 : i32
    %190 = tpu.dynamic_rotate %119 by %c10_i32_43 dim 0 : vector<768x256xf32>, i32 -> vector<768x256xf32>
    %191 = vector.broadcast %189 : vector<1x256xf32> to vector<768x256xf32>
    %192 = arith.mulf %190, %191 : vector<768x256xf32>
    %c1_i32_44 = arith.constant 1 : i32
    %193 = vector.broadcast %c1_i32_44 : i32 to vector<1x256xi32>
    %194 = arith.addi %100, %193 : vector<1x256xi32>
    %c0_i32_45 = arith.constant 0 : i32
    %195 = vector.broadcast %c0_i32_45 : i32 to vector<1x256xi32>
    %196 = arith.cmpi sge, %194, %195 : vector<1x256xi32>
    %197 = arith.andi %177, %196 : vector<1x256xi1>
    %c10_i32_46 = arith.constant 10 : i32
    %198 = vector.broadcast %c10_i32_46 : i32 to vector<1x256xi32>
    %199 = arith.cmpi slt, %194, %198 : vector<1x256xi32>
    %200 = arith.andi %197, %199 : vector<1x256xi1>
    %201 = arith.mulf %178, %97 : vector<1x256xf32>
    %cst_47 = arith.constant 0.000000e+00 : f32
    %202 = vector.broadcast %cst_47 : f32 to vector<1x256xf32>
    %203 = arith.select %200, %201, %202 : vector<1x256xi1>, vector<1x256xf32>
    %c11_i32_48 = arith.constant 11 : i32
    %204 = tpu.dynamic_rotate %119 by %c11_i32_48 dim 0 : vector<768x256xf32>, i32 -> vector<768x256xf32>
    %205 = vector.broadcast %203 : vector<1x256xf32> to vector<768x256xf32>
    %206 = arith.mulf %204, %205 : vector<768x256xf32>
    %207 = arith.addf %192, %206 : vector<768x256xf32>
    %c1_i32_49 = arith.constant 1 : i32
    %208 = vector.broadcast %c1_i32_49 : i32 to vector<1x256xi32>
    %209 = arith.addi %102, %208 : vector<1x256xi32>
    %c0_i32_50 = arith.constant 0 : i32
    %210 = vector.broadcast %c0_i32_50 : i32 to vector<1x256xi32>
    %211 = arith.cmpi sge, %209, %210 : vector<1x256xi32>
    %c8_i32_51 = arith.constant 8 : i32
    %212 = vector.broadcast %c8_i32_51 : i32 to vector<1x256xi32>
    %213 = arith.cmpi slt, %209, %212 : vector<1x256xi32>
    %214 = arith.andi %211, %213 : vector<1x256xi1>
    %c0_i32_52 = arith.constant 0 : i32
    %215 = vector.broadcast %c0_i32_52 : i32 to vector<1x256xi32>
    %216 = arith.addi %101, %215 : vector<1x256xi32>
    %c0_i32_53 = arith.constant 0 : i32
    %217 = vector.broadcast %c0_i32_53 : i32 to vector<1x256xi32>
    %218 = arith.cmpi sge, %216, %217 : vector<1x256xi32>
    %219 = arith.andi %214, %218 : vector<1x256xi1>
    %c8_i32_54 = arith.constant 8 : i32
    %220 = vector.broadcast %c8_i32_54 : i32 to vector<1x256xi32>
    %221 = arith.cmpi slt, %216, %220 : vector<1x256xi32>
    %222 = arith.andi %219, %221 : vector<1x256xi1>
    %223 = arith.mulf %99, %123 : vector<1x256xf32>
    %c0_i32_55 = arith.constant 0 : i32
    %224 = vector.broadcast %c0_i32_55 : i32 to vector<1x256xi32>
    %225 = arith.addi %100, %224 : vector<1x256xi32>
    %c0_i32_56 = arith.constant 0 : i32
    %226 = vector.broadcast %c0_i32_56 : i32 to vector<1x256xi32>
    %227 = arith.cmpi sge, %225, %226 : vector<1x256xi32>
    %228 = arith.andi %222, %227 : vector<1x256xi1>
    %c10_i32_57 = arith.constant 10 : i32
    %229 = vector.broadcast %c10_i32_57 : i32 to vector<1x256xi32>
    %230 = arith.cmpi slt, %225, %229 : vector<1x256xi32>
    %231 = arith.andi %228, %230 : vector<1x256xi1>
    %232 = arith.mulf %223, %121 : vector<1x256xf32>
    %cst_58 = arith.constant 0.000000e+00 : f32
    %233 = vector.broadcast %cst_58 : f32 to vector<1x256xf32>
    %234 = arith.select %231, %232, %233 : vector<1x256xi1>, vector<1x256xf32>
    %c80_i32_59 = arith.constant 80 : i32
    %235 = tpu.dynamic_rotate %119 by %c80_i32_59 dim 0 : vector<768x256xf32>, i32 -> vector<768x256xf32>
    %236 = vector.broadcast %234 : vector<1x256xf32> to vector<768x256xf32>
    %237 = arith.mulf %235, %236 : vector<768x256xf32>
    %c1_i32_60 = arith.constant 1 : i32
    %238 = vector.broadcast %c1_i32_60 : i32 to vector<1x256xi32>
    %239 = arith.addi %100, %238 : vector<1x256xi32>
    %c0_i32_61 = arith.constant 0 : i32
    %240 = vector.broadcast %c0_i32_61 : i32 to vector<1x256xi32>
    %241 = arith.cmpi sge, %239, %240 : vector<1x256xi32>
    %242 = arith.andi %222, %241 : vector<1x256xi1>
    %c10_i32_62 = arith.constant 10 : i32
    %243 = vector.broadcast %c10_i32_62 : i32 to vector<1x256xi32>
    %244 = arith.cmpi slt, %239, %243 : vector<1x256xi32>
    %245 = arith.andi %242, %244 : vector<1x256xi1>
    %246 = arith.mulf %223, %97 : vector<1x256xf32>
    %cst_63 = arith.constant 0.000000e+00 : f32
    %247 = vector.broadcast %cst_63 : f32 to vector<1x256xf32>
    %248 = arith.select %245, %246, %247 : vector<1x256xi1>, vector<1x256xf32>
    %c81_i32 = arith.constant 81 : i32
    %249 = tpu.dynamic_rotate %119 by %c81_i32 dim 0 : vector<768x256xf32>, i32 -> vector<768x256xf32>
    %250 = vector.broadcast %248 : vector<1x256xf32> to vector<768x256xf32>
    %251 = arith.mulf %249, %250 : vector<768x256xf32>
    %252 = arith.addf %237, %251 : vector<768x256xf32>
    %c1_i32_64 = arith.constant 1 : i32
    %253 = vector.broadcast %c1_i32_64 : i32 to vector<1x256xi32>
    %254 = arith.addi %101, %253 : vector<1x256xi32>
    %c0_i32_65 = arith.constant 0 : i32
    %255 = vector.broadcast %c0_i32_65 : i32 to vector<1x256xi32>
    %256 = arith.cmpi sge, %254, %255 : vector<1x256xi32>
    %257 = arith.andi %214, %256 : vector<1x256xi1>
    %c8_i32_66 = arith.constant 8 : i32
    %258 = vector.broadcast %c8_i32_66 : i32 to vector<1x256xi32>
    %259 = arith.cmpi slt, %254, %258 : vector<1x256xi32>
    %260 = arith.andi %257, %259 : vector<1x256xi1>
    %261 = arith.mulf %99, %98 : vector<1x256xf32>
    %c0_i32_67 = arith.constant 0 : i32
    %262 = vector.broadcast %c0_i32_67 : i32 to vector<1x256xi32>
    %263 = arith.addi %100, %262 : vector<1x256xi32>
    %c0_i32_68 = arith.constant 0 : i32
    %264 = vector.broadcast %c0_i32_68 : i32 to vector<1x256xi32>
    %265 = arith.cmpi sge, %263, %264 : vector<1x256xi32>
    %266 = arith.andi %260, %265 : vector<1x256xi1>
    %c10_i32_69 = arith.constant 10 : i32
    %267 = vector.broadcast %c10_i32_69 : i32 to vector<1x256xi32>
    %268 = arith.cmpi slt, %263, %267 : vector<1x256xi32>
    %269 = arith.andi %266, %268 : vector<1x256xi1>
    %270 = arith.mulf %261, %121 : vector<1x256xf32>
    %cst_70 = arith.constant 0.000000e+00 : f32
    %271 = vector.broadcast %cst_70 : f32 to vector<1x256xf32>
    %272 = arith.select %269, %270, %271 : vector<1x256xi1>, vector<1x256xf32>
    %c90_i32 = arith.constant 90 : i32
    %273 = tpu.dynamic_rotate %119 by %c90_i32 dim 0 : vector<768x256xf32>, i32 -> vector<768x256xf32>
    %274 = vector.broadcast %272 : vector<1x256xf32> to vector<768x256xf32>
    %275 = arith.mulf %273, %274 : vector<768x256xf32>
    %c1_i32_71 = arith.constant 1 : i32
    %276 = vector.broadcast %c1_i32_71 : i32 to vector<1x256xi32>
    %277 = arith.addi %100, %276 : vector<1x256xi32>
    %c0_i32_72 = arith.constant 0 : i32
    %278 = vector.broadcast %c0_i32_72 : i32 to vector<1x256xi32>
    %279 = arith.cmpi sge, %277, %278 : vector<1x256xi32>
    %280 = arith.andi %260, %279 : vector<1x256xi1>
    %c10_i32_73 = arith.constant 10 : i32
    %281 = vector.broadcast %c10_i32_73 : i32 to vector<1x256xi32>
    %282 = arith.cmpi slt, %277, %281 : vector<1x256xi32>
    %283 = arith.andi %280, %282 : vector<1x256xi1>
    %284 = arith.mulf %261, %97 : vector<1x256xf32>
    %cst_74 = arith.constant 0.000000e+00 : f32
    %285 = vector.broadcast %cst_74 : f32 to vector<1x256xf32>
    %286 = arith.select %283, %284, %285 : vector<1x256xi1>, vector<1x256xf32>
    %c91_i32 = arith.constant 91 : i32
    %287 = tpu.dynamic_rotate %119 by %c91_i32 dim 0 : vector<768x256xf32>, i32 -> vector<768x256xf32>
    %288 = vector.broadcast %286 : vector<1x256xf32> to vector<768x256xf32>
    %289 = arith.mulf %287, %288 : vector<768x256xf32>
    %290 = arith.addf %275, %289 : vector<768x256xf32>
    %291 = arith.addf %169, %207 : vector<768x256xf32>
    %292 = arith.addf %252, %290 : vector<768x256xf32>
    %293 = arith.addf %291, %292 : vector<768x256xf32>
    %c0_75 = arith.constant 0 : index
    %c0_76 = arith.constant 0 : index
    %c0_77 = arith.constant 0 : index
    %294 = vector.load %arg4[%c0_75, %c0_76, %c0_77] : memref<1x2x768xf32, #tpu.memory_space<vmem>>, vector<1x2x768xf32>
    %295 = vector.shape_cast %294 : vector<1x2x768xf32> to vector<2x768xf32>
    %cst_78 = arith.constant dense<0.000000e+00> : vector<2x256xf32>
    %296 = tpu.matmul %295, %293, %cst_78 {dimension_numbers = #tpu.dot_dimension_numbers<[1], [0], [0], [1], [0, 0, 1, 1], [], []>} : vector<2x768xf32>, vector<768x256xf32>, vector<2x256xf32> -> vector<2x256xf32>
    %c0_79 = arith.constant 0 : index
    %c0_80 = arith.constant 0 : index
    %c0_81 = arith.constant 0 : index
    %297 = vector.load %arg6[%c0_79, %c0_80, %c0_81] : memref<1x2x256xf32, #tpu.memory_space<vmem>>, vector<1x2x256xf32>
    %298 = vector.shape_cast %297 : vector<1x2x256xf32> to vector<2x256xf32>
    %299 = vector.shape_cast %296 : vector<2x256xf32> to vector<1x2x256xf32>
    tpu.vector_store %arg6[%c0_79, %c0_80, %c0_81], %299 {strides = array<i32>} : memref<1x2x256xf32, #tpu.memory_space<vmem>>, vector<1x2x256xf32>,
    %300 = math.roundeven %85 : vector<1x256xf32>
    %301 = arith.fptosi %300 : vector<1x256xf32> to vector<1x256xi32>
    %302 = math.roundeven %89 : vector<1x256xf32>
    %303 = arith.fptosi %302 : vector<1x256xf32> to vector<1x256xi32>
    %304 = math.roundeven %93 : vector<1x256xf32>
    %305 = arith.fptosi %304 : vector<1x256xf32> to vector<1x256xi32>
    %c0_i32_82 = arith.constant 0 : i32
    %306 = vector.broadcast %c0_i32_82 : i32 to vector<1x256xi32>
    %307 = arith.cmpi sge, %305, %306 : vector<1x256xi32>
    %c8_i32_83 = arith.constant 8 : i32
    %308 = vector.broadcast %c8_i32_83 : i32 to vector<1x256xi32>
    %309 = arith.cmpi slt, %305, %308 : vector<1x256xi32>
    %310 = arith.andi %307, %309 : vector<1x256xi1>
    %c0_i32_84 = arith.constant 0 : i32
    %311 = vector.broadcast %c0_i32_84 : i32 to vector<1x256xi32>
    %312 = arith.cmpi sge, %303, %311 : vector<1x256xi32>
    %313 = arith.andi %310, %312 : vector<1x256xi1>
    %c8_i32_85 = arith.constant 8 : i32
    %314 = vector.broadcast %c8_i32_85 : i32 to vector<1x256xi32>
    %315 = arith.cmpi slt, %303, %314 : vector<1x256xi32>
    %316 = arith.andi %313, %315 : vector<1x256xi1>
    %c0_i32_86 = arith.constant 0 : i32
    %317 = vector.broadcast %c0_i32_86 : i32 to vector<1x256xi32>
    %318 = arith.cmpi sge, %301, %317 : vector<1x256xi32>
    %319 = arith.andi %316, %318 : vector<1x256xi1>
    %c10_i32_87 = arith.constant 10 : i32
    %320 = vector.broadcast %c10_i32_87 : i32 to vector<1x256xi32>
    %321 = arith.cmpi slt, %301, %320 : vector<1x256xi32>
    %322 = arith.andi %319, %321 : vector<1x256xi1>
    %c80_i32_88 = arith.constant 80 : i32
    %323 = vector.broadcast %c80_i32_88 : i32 to vector<1x256xi32>
    %324 = arith.muli %305, %323 : vector<1x256xi32>
    %c10_i32_89 = arith.constant 10 : i32
    %325 = vector.broadcast %c10_i32_89 : i32 to vector<1x256xi32>
    %326 = arith.muli %303, %325 : vector<1x256xi32>
    %327 = arith.addi %324, %326 : vector<1x256xi32>
    %328 = arith.addi %327, %301 : vector<1x256xi32>
    %329 = vector.broadcast %328 : vector<1x256xi32> to vector<768x256xi32>
    %330 = arith.cmpi eq, %103, %329 : vector<768x256xi32>
    %331 = vector.broadcast %322 : vector<1x256xi1> to vector<768x256xi1>
    %332 = arith.andi %330, %331 : vector<768x256xi1>
    %cst_90 = arith.constant 1.000000e+00 : f32
    %cst_91 = arith.constant 0.000000e+00 : f32
    %333 = vector.broadcast %cst_90 : f32 to vector<768x256xf32>
    %334 = vector.broadcast %cst_91 : f32 to vector<768x256xf32>
    %335 = arith.select %332, %333, %334 : vector<768x256xi1>, vector<768x256xf32>
    %c0_92 = arith.constant 0 : index
    %c0_93 = arith.constant 0 : index
    %c0_94 = arith.constant 0 : index
    %336 = vector.load %arg5[%c0_92, %c0_93, %c0_94] : memref<1x1x768xf32, #tpu.memory_space<vmem>>, vector<1x1x768xf32>
    %337 = vector.shape_cast %336 : vector<1x1x768xf32> to vector<1x768xf32>
    %cst_95 = arith.constant dense<0.000000e+00> : vector<1x256xf32>
    %338 = tpu.matmul %337, %335, %cst_95 {dimension_numbers = #tpu.dot_dimension_numbers<[1], [0], [0], [1], [0, 0, 1, 1], [], []>} : vector<1x768xf32>, vector<768x256xf32>, vector<1x256xf32> -> vector<1x256xf32>
    %c0_96 = arith.constant 0 : index
    %c0_97 = arith.constant 0 : index
    %c0_98 = arith.constant 0 : index
    %339 = vector.load %arg7[%c0_96, %c0_97, %c0_98] : memref<1x1x256xf32, #tpu.memory_space<vmem>>, vector<1x1x256xf32>
    %340 = vector.shape_cast %339 : vector<1x1x256xf32> to vector<1x256xf32>
    %341 = vector.shape_cast %338 : vector<1x256xf32> to vector<1x1x256xf32>
    tpu.vector_store %arg7[%c0_96, %c0_97, %c0_98], %341 {strides = array<i32>} : memref<1x1x256xf32, #tpu.memory_space<vmem>>, vector<1x1x256xf32>,
    return
  }
  func.func @transform_0(%arg0: i32, %arg1: i32) -> i32 {
    %c0_i32 = arith.constant 0 : i32
    %c0_i32_0 = arith.constant 0 : i32
    return %c0_i32 : i32
  }
  func.func @transform_1(%arg0: i32, %arg1: i32) -> (i32, i32) {
    %c0_i32 = arith.constant 0 : i32
    %c0_i32_0 = arith.constant 0 : i32
    return %c0_i32, %arg1 : i32, i32
  }
  func.func @transform_2(%arg0: i32, %arg1: i32) -> (i32, i32, i32) {
    %c0_i32 = arith.constant 0 : i32
    %c0_i32_0 = arith.constant 0 : i32
    %c0_i32_1 = arith.constant 0 : i32
    return %arg0, %c0_i32, %c0_i32_0 : i32, i32, i32
  }
  func.func @transform_3(%arg0: i32, %arg1: i32) -> (i32, i32, i32) {
    %c0_i32 = arith.constant 0 : i32
    %c0_i32_0 = arith.constant 0 : i32
    %c0_i32_1 = arith.constant 0 : i32
    return %arg0, %c0_i32, %c0_i32_0 : i32, i32, i32
  }
  func.func @transform_4(%arg0: i32, %arg1: i32) -> (i32, i32, i32) {
    %c0_i32 = arith.constant 0 : i32
    %c0_i32_0 = arith.constant 0 : i32
    return %arg0, %c0_i32, %arg1 : i32, i32, i32
  }
  func.func @transform_5(%arg0: i32, %arg1: i32) -> (i32, i32, i32) {
    %c0_i32 = arith.constant 0 : i32
    %c0_i32_0 = arith.constant 0 : i32
    return %arg0, %c0_i32, %arg1 : i32, i32, i32
  }
}

</mosaic_0001>

<llo_original>
// kernel: tpu_custom_call.1
$region0: #{tpu_custom_call.1}
  #allocation0 [shape = 'u32[]', space=smem, size = 0x4, offset = 0x4, fixed_abs, tag = 'smem constant byte address 0x4 - core index']
  #allocation1 [shape = 'u32[144,128]{1,0:T(1,128)}', space=vmem, size = 0x12000, scoped, tag = 'internal scratch']
  %s0 = inlined_call_operand.hbm [shape: f32[24], index: 0, kind: input, shape index: {}]
  %s1 = inlined_call_operand.hbm [shape: f32[8,768], index: 1, kind: input, shape index: {}]
  %s2 = inlined_call_operand.hbm [shape: f32[2,2,768], index: 2, kind: input, shape index: {}]
  %s3 = inlined_call_operand.hbm [shape: f32[2,1,768], index: 3, kind: input, shape index: {}]
  %s4 = inlined_call_operand.hbm [shape: f32[2,2,768], index: 4, kind: output, shape index: {0}]
  %s5 = inlined_call_operand.hbm [shape: f32[2,1,768], index: 5, kind: output, shape index: {1}]
  %6 = xla_tuple %s4, %s5
  %s7 = sld [smem:[#allocation0]]
  $region73: #{tpu_custom_call.1} parent=0
    _
  %s9 = ssub.s32 1, %s7
  %s10 = scalar_select 0, %s9, %s7
  $region1: #{tpu_custom_call.1} parent=0
    #allocation2 [shape = 'u8[512]{0}', space=smem, size = 0x200, scoped, tag = 'input window, operand 0, single buffered']
    #allocation3 [shape = 's32[2]{0}', space=sflag, size = 0x8, scoped, tag = 'scoped memory for tpu_custom_call.1']
    #allocation4 [shape = 's32[2]{0}', space=sflag, size = 0x8, scoped, tag = 'scoped memory for tpu_custom_call.1']
    #allocation5 [shape = 's32[2]{0}', space=sflag, size = 0x8, scoped, tag = 'scoped memory for tpu_custom_call.1']
    #allocation6 [shape = 'u8[16384]{0}', space=vmem, size = 0x4000, scoped, tag = 'input window, operand 1']
    #allocation7 [shape = 'u8[12288]{0}', space=vmem, size = 0x3000, scoped, tag = 'input window, operand 2']
    #allocation8 [shape = 's32[2]{0}', space=sflag, size = 0x8, scoped, tag = 'scoped memory for tpu_custom_call.1']
    #allocation9 [shape = 'u8[6144]{0}', space=vmem, size = 0x1800, scoped, tag = 'input window, operand 3']
    #allocation10 [shape = 'u8[4096]{0}', space=vmem, size = 0x1000, scoped, tag = 'output window, operand 0']
    #allocation11 [shape = 'u8[2048]{0}', space=vmem, size = 0x800, scoped, tag = 'output window, operand 1']
    #allocation12 [shape = 's32[2]{0}', space=sflag, size = 0x8, scoped, tag = 'scoped memory for tpu_custom_call.1']
    %11 = vsyncpa [#allocation5], 0
    %12 = vsyncpa [#allocation3], 0
    %s13 = scalar_lea.sflag [#allocation3], 1
    %14 = vsyncpa %s13, 0
    %15 = vsyncpa [#allocation8], 0
    %s16 = scalar_lea.sflag [#allocation8], 1
    %17 = vsyncpa %s16, 0
    %18 = vsyncpa [#allocation4], 0
    %s19 = scalar_lea.sflag [#allocation4], 1
    %20 = vsyncpa %s19, 0
    %21 = vsyncpa [#allocation12], 0
    %s22 = scalar_lea.sflag [#allocation12], 1
    %23 = vsyncpa %s22, 0
    loop: start=0, step=1, limit=8
    $region2: #{tpu_custom_call.1} parent=1 // loop_pre_header
      _
    $region3: #{tpu_custom_call.1} parent=1 // loop_header
      %s25 = sphi 0, %s29
      %p26 = scmp.ge.s32.totalorder %s25, 8
      %s32 = sphi 0, %s44
      %s33 = sphi 0, %s40
      %s34 = sphi 0, %s32
      %s35 = sphi 0, %s33
      %s36 = sphi 0, %s34
      %s37 = sphi 0, %s35
      %s45 = sphi 0, %s45
      %s47 = sphi 0, %s45
      %s48 = sphi 0, %s47
      %s62 = sphi 0, %s48
      %s68 = sphi 0, %s70
      %s71 = sphi 0, %s68
      %s72 = sphi 0, %s71
      %s88 = sphi 0, %s72
      %s94 = sphi 0, %s96
      %s97 = sphi 0, %s94
      %s98 = sphi 0, %s97
      %s114 = sphi 0, %s98
      %s120 = sphi 0, %s122
      %s123 = sphi 0, %s120
      %s124 = sphi 0, %s123
      %s140 = sphi 0, %s124
      %s148 = sphi 0, %s150
      %s151 = sphi 0, %s148
      %s152 = sphi 0, %s151
      %s168 = sphi 0, %s152
      %s176 = sphi 0, %s178
      %s179 = sphi 0, %s176
      %s180 = sphi 0, %s179
      %s196 = sphi 0, %s180
    $region4: #{tpu_custom_call.1} parent=1 // loop_header_branch
      %28 = sbr.rel (%p26) target = $region8
    $region5: #{tpu_custom_call.1} parent=1 // loop_body
      %s30 = ssub.s32 %s25, 1
      %s31 = ssub.s32 %s25, 2
      %s38 = sadd.s32 1, %s33
      %p39 = scmp.ge.s32.totalorder %s38, 3
      %s40 = scalar_select %p39, 0, %s38
      %s41 = sadd.s32 1, %s32
      %s42 = scalar_select %p39, %s41, %s32
      %p43 = scmp.ge.s32.totalorder %s42, 2
      %s44 = scalar_select %p43, 0, %s42
      %s46 = sadd.s32 %s45, 1
      %p49 = scmp.eq.s32.totalorder %s25, 5
      %p50 = scmp.ne.s32.totalorder %s45, %s47
      %p51 = scmp.eq.s32.totalorder %s25, 0
      %p52 = por %p50, %p51
      %p53 = scmp.ne.s32.totalorder %s45, %s47
      %p54 = scmp.eq.s32.totalorder %s30, 5
      %p55 = por %p53, %p54
      %p56 = scmp.ne.s32.totalorder %s47, %s48
      %p57 = scmp.eq.s32.totalorder %s30, 0
      %p58 = por %p56, %p57
      %p59 = scmp.ne.s32.totalorder %s47, %s48
      %p60 = scmp.eq.s32.totalorder %s31, 5
      %p61 = por %p59, %p60
      %p63 = scmp.ne.s32.totalorder %s48, %s62
      %p64 = scmp.eq.s32.totalorder %s31, 0
      %p65 = por %p63, %p64
      %s66 = ssub.s32 %s33, %s40
      %p67 = scmp.eq.s32.totalorder %s66, 0
      %s69 = sadd.s32 %s68, 1
      %s70 = scalar_select %p67, %s68, %s69
      %p73 = pneg %p67
      %p74 = scmp.eq.s32.totalorder %s25, 5
      %p75 = por %p73, %p74
      %p76 = scmp.ne.s32.totalorder %s68, %s71
      %p77 = scmp.eq.s32.totalorder %s25, 0
      %p78 = por %p76, %p77
      %p79 = scmp.ne.s32.totalorder %s68, %s71
      %p80 = scmp.eq.s32.totalorder %s30, 5
      %p81 = por %p79, %p80
      %p82 = scmp.ne.s32.totalorder %s71, %s72
      %p83 = scmp.eq.s32.totalorder %s30, 0
      %p84 = por %p82, %p83
      %p85 = scmp.ne.s32.totalorder %s71, %s72
      %p86 = scmp.eq.s32.totalorder %s31, 5
      %p87 = por %p85, %p86
      %p89 = scmp.ne.s32.totalorder %s72, %s88
      %p90 = scmp.eq.s32.totalorder %s31, 0
      %p91 = por %p89, %p90
      %s92 = ssub.s32 %s32, %s44
      %p93 = scmp.eq.s32.totalorder %s92, 0
      %s95 = sadd.s32 %s94, 1
      %s96 = scalar_select %p93, %s94, %s95
      %p99 = pneg %p93
      %p100 = scmp.eq.s32.totalorder %s25, 5
      %p101 = por %p99, %p100
      %p102 = scmp.ne.s32.totalorder %s94, %s97
      %p103 = scmp.eq.s32.totalorder %s25, 0
      %p104 = por %p102, %p103
      %p105 = scmp.ne.s32.totalorder %s94, %s97
      %p106 = scmp.eq.s32.totalorder %s30, 5
      %p107 = por %p105, %p106
      %p108 = scmp.ne.s32.totalorder %s97, %s98
      %p109 = scmp.eq.s32.totalorder %s30, 0
      %p110 = por %p108, %p109
      %p111 = scmp.ne.s32.totalorder %s97, %s98
      %p112 = scmp.eq.s32.totalorder %s31, 5
      %p113 = por %p111, %p112
      %p115 = scmp.ne.s32.totalorder %s98, %s114
      %p116 = scmp.eq.s32.totalorder %s31, 0
      %p117 = por %p115, %p116
      %s118 = ssub.s32 %s32, %s44
      %p119 = scmp.eq.s32.totalorder %s118, 0
      %s121 = sadd.s32 %s120, 1
      %s122 = scalar_select %p119, %s120, %s121
      %p125 = pneg %p119
      %p126 = scmp.eq.s32.totalorder %s25, 5
      %p127 = por %p125, %p126
      %p128 = scmp.ne.s32.totalorder %s120, %s123
      %p129 = scmp.eq.s32.totalorder %s25, 0
      %p130 = por %p128, %p129
      %p131 = scmp.ne.s32.totalorder %s120, %s123
      %p132 = scmp.eq.s32.totalorder %s30, 5
      %p133 = por %p131, %p132
      %p134 = scmp.ne.s32.totalorder %s123, %s124
      %p135 = scmp.eq.s32.totalorder %s30, 0
      %p136 = por %p134, %p135
      %p137 = scmp.ne.s32.totalorder %s123, %s124
      %p138 = scmp.eq.s32.totalorder %s31, 5
      %p139 = por %p137, %p138
      %p141 = scmp.ne.s32.totalorder %s124, %s140
      %p142 = scmp.eq.s32.totalorder %s31, 0
      %p143 = por %p141, %p142
      %s144 = ssub.s32 %s32, %s44
      %s145 = ssub.s32 %s33, %s40
      %s146 = sor.u32 %s144, %s145
      %p147 = scmp.eq.s32.totalorder %s146, 0
      %s149 = sadd.s32 %s148, 1
      %s150 = scalar_select %p147, %s148, %s149
      %p153 = pneg %p147
      %p154 = scmp.eq.s32.totalorder %s25, 5
      %p155 = por %p153, %p154
      %p156 = scmp.ne.s32.totalorder %s148, %s151
      %p157 = scmp.eq.s32.totalorder %s25, 0
      %p158 = por %p156, %p157
      %p159 = scmp.ne.s32.totalorder %s148, %s151
      %p160 = scmp.eq.s32.totalorder %s30, 5
      %p161 = por %p159, %p160
      %p162 = scmp.ne.s32.totalorder %s151, %s152
      %p163 = scmp.eq.s32.totalorder %s30, 0
      %p164 = por %p162, %p163
      %p165 = scmp.ne.s32.totalorder %s151, %s152
      %p166 = scmp.eq.s32.totalorder %s31, 5
      %p167 = por %p165, %p166
      %p169 = scmp.ne.s32.totalorder %s152, %s168
      %p170 = scmp.eq.s32.totalorder %s31, 0
      %p171 = por %p169, %p170
      %s172 = ssub.s32 %s32, %s44
      %s173 = ssub.s32 %s33, %s40
      %s174 = sor.u32 %s172, %s173
      %p175 = scmp.eq.s32.totalorder %s174, 0
      %s177 = sadd.s32 %s176, 1
      %s178 = scalar_select %p175, %s176, %s177
      %p181 = pneg %p175
      %p182 = scmp.eq.s32.totalorder %s25, 5
      %p183 = por %p181, %p182
      %p184 = scmp.ne.s32.totalorder %s176, %s179
      %p185 = scmp.eq.s32.totalorder %s25, 0
      %p186 = por %p184, %p185
      %p187 = scmp.ne.s32.totalorder %s176, %s179
      %p188 = scmp.eq.s32.totalorder %s30, 5
      %p189 = por %p187, %p188
      %p190 = scmp.ne.s32.totalorder %s179, %s180
      %p191 = scmp.eq.s32.totalorder %s30, 0
      %p192 = por %p190, %p191
      %p193 = scmp.ne.s32.totalorder %s179, %s180
      %p194 = scmp.eq.s32.totalorder %s31, 5
      %p195 = por %p193, %p194
      %p197 = scmp.ne.s32.totalorder %s180, %s196
      %p198 = scmp.eq.s32.totalorder %s31, 0
      %p199 = por %p197, %p198
      %p200 = scmp.le.s32.totalorder 1, %s25
      %p201 = scmp.lt.s32.totalorder %s25, 7
      %p202 = pnand %p200, %p201
      %p203 = pneg %p202
      // Predicated region
      $region9: #{tpu_custom_call.1} parent=5 // pred_check
        _
      $region10: #{tpu_custom_call.1} parent=5 // pred_check_branch
        %205 = sbr.rel (%p202) target = $region12
      $region11: #{tpu_custom_call.1} parent=5 // pred_region
        %s206 = ssub.s32 %s25, 1
        // Predicated region
        $region13: #{tpu_custom_call.1} parent=11 // pred_check
          %p207 = pneg %p58
        $region14: #{tpu_custom_call.1} parent=11 // pred_check_branch
          %209 = sbr.rel (%p207) target = $region16
        $region15: #{tpu_custom_call.1} parent=11 // pred_region
          %s211 = ssub.s32 16, 16
          %212 = vsyncadd [#allocation5], %s211
          %215 = dma.hbm_to_smem %s0, 16, [#allocation2], [#allocation5]
        $region16: #{tpu_custom_call.1} parent=11 // pred_fallthru
          _
      $region12: #{tpu_custom_call.1} parent=5 // pred_fallthru
        _
      %p216 = scmp.lt.s32.totalorder %s25, 6
      // Predicated region
      $region17: #{tpu_custom_call.1} parent=5 // pred_check
        %p217 = pneg %p216
      $region18: #{tpu_custom_call.1} parent=5 // pred_check_branch
        %219 = sbr.rel (%p217) target = $region20
      $region19: #{tpu_custom_call.1} parent=5 // pred_region
        // Predicated region
        $region21: #{tpu_custom_call.1} parent=19 // pred_check
          %p220 = pneg %p78
        $region22: #{tpu_custom_call.1} parent=19 // pred_check_branch
          %222 = sbr.rel (%p220) target = $region24
        $region23: #{tpu_custom_call.1} parent=19 // pred_region
          %s223 = sand.u32 %s68, 1
          %s224 = scalar_lea.sflag [#allocation3], %s223
          %s225 = sand.u32 %s68, 1
          %s226 = smul.addr %s225, 16
          %s227 = scalar_lea.vmem [#allocation6], %s226
          %s228 = smul.u32 2, %s33
          %s230 = ssub.s32 256, 256
          %231 = vsyncadd %s224, %s230
          %s232 = smul.addr %s228, 128
          %s233 = scalar_lea.hbm %s1, %s232
          %s235 = sshll.u32 %s227, 4
          %s236 = int_to_ptr.vmem [resolvable:$true] %s235
          %238 = dma.hbm_to_vmem [thread:$0]  %s233, 256, %s236, %s224
        $region24: #{tpu_custom_call.1} parent=19 // pred_fallthru
          _
        // Predicated region
        $region25: #{tpu_custom_call.1} parent=19 // pred_check
          %p239 = pneg %p104
        $region26: #{tpu_custom_call.1} parent=19 // pred_check_branch
          %241 = sbr.rel (%p239) target = $region28
        $region27: #{tpu_custom_call.1} parent=19 // pred_region
          %s242 = sand.u32 %s25, 1
          %s243 = scalar_lea.sflag [#allocation8], %s242
          %s244 = sand.u32 %s94, 1
          %s245 = smul.addr %s244, 12
          %s246 = scalar_lea.vmem [#allocation7], %s245
          %s248 = ssub.s32 192, 192
          %249 = vsyncadd %s243, %s248
          %s250 = smul.addr %s32, 6
          %s251 = smul.addr %s250, 32
          %s252 = scalar_lea.hbm %s2, %s251
          %s254 = sshll.u32 %s246, 4
          %s255 = int_to_ptr.vmem [resolvable:$true] %s254
          %257 = dma.hbm_to_vmem [thread:$0]  %s252, 192, %s255, %s243
        $region28: #{tpu_custom_call.1} parent=19 // pred_fallthru
          _
        // Predicated region
        $region29: #{tpu_custom_call.1} parent=19 // pred_check
          %p258 = pneg %p130
        $region30: #{tpu_custom_call.1} parent=19 // pred_check_branch
          %260 = sbr.rel (%p258) target = $region32
        $region31: #{tpu_custom_call.1} parent=19 // pred_region
          %s261 = sand.u32 %s25, 1
          %s262 = scalar_lea.sflag [#allocation8], %s261
          %s263 = sand.u32 %s120, 1
          %s264 = smul.addr %s263, 6
          %s265 = scalar_lea.vmem [#allocation9], %s264
          %s267 = ssub.s32 96, 96
          %268 = vsyncadd %s262, %s267
          %s269 = smul.addr %s32, 6
          %s270 = smul.addr %s269, 16
          %s271 = scalar_lea.hbm %s3, %s270
          %s273 = sshll.u32 %s265, 4
          %s274 = int_to_ptr.vmem [resolvable:$true] %s273
          %276 = dma.hbm_to_vmem [thread:$0]  %s271, 96, %s274, %s262
        $region32: #{tpu_custom_call.1} parent=19 // pred_fallthru
          _
      $region20: #{tpu_custom_call.1} parent=5 // pred_fallthru
        _
      %p277 = scmp.le.s32.totalorder 1, %s25
      %p278 = scmp.lt.s32.totalorder %s25, 7
      %p279 = pnand %p277, %p278
      %p280 = pneg %p279
      // Predicated region
      $region33: #{tpu_custom_call.1} parent=5 // pred_check
        _
      $region34: #{tpu_custom_call.1} parent=5 // pred_check_branch
        %282 = sbr.rel (%p279) target = $region36
      $region35: #{tpu_custom_call.1} parent=5 // pred_region
        %s283 = ssub.s32 %s25, 1
        // Predicated region
        $region37: #{tpu_custom_call.1} parent=35 // pred_check
          %p284 = pneg %p58
        $region38: #{tpu_custom_call.1} parent=35 // pred_check_branch
          %286 = sbr.rel (%p284) target = $region40
        $region39: #{tpu_custom_call.1} parent=35 // pred_region
          %287 = dma.done [#allocation5], 16
        $region40: #{tpu_custom_call.1} parent=35 // pred_fallthru
          _
        %s288 = sand.u32 %s71, 1
        %s289 = scalar_lea.sflag [#allocation3], %s288
        %s290 = sand.u32 %s71, 1
        %s291 = smul.addr %s290, 16
        %s292 = scalar_lea.vmem [#allocation6], %s291
        // Predicated region
        $region41: #{tpu_custom_call.1} parent=35 // pred_check
          %p293 = pneg %p84
        $region42: #{tpu_custom_call.1} parent=35 // pred_check_branch
          %295 = sbr.rel (%p293) target = $region44
        $region43: #{tpu_custom_call.1} parent=35 // pred_region
          %296 = dma.done %s289, 256
        $region44: #{tpu_custom_call.1} parent=35 // pred_fallthru
          _
        %s297 = sand.u32 %s30, 1
        %s298 = scalar_lea.sflag [#allocation8], %s297
        %s299 = sand.u32 %s97, 1
        %s300 = smul.addr %s299, 12
        %s301 = scalar_lea.vmem [#allocation7], %s300
        // Predicated region
        $region45: #{tpu_custom_call.1} parent=35 // pred_check
          %p302 = pneg %p110
        $region46: #{tpu_custom_call.1} parent=35 // pred_check_branch
          %304 = sbr.rel (%p302) target = $region48
        $region47: #{tpu_custom_call.1} parent=35 // pred_region
          %305 = dma.done %s298, 192
        $region48: #{tpu_custom_call.1} parent=35 // pred_fallthru
          _
        %s306 = sand.u32 %s30, 1
        %s307 = scalar_lea.sflag [#allocation8], %s306
        %s308 = sand.u32 %s123, 1
        %s309 = smul.addr %s308, 6
        %s310 = scalar_lea.vmem [#allocation9], %s309
        // Predicated region
        $region49: #{tpu_custom_call.1} parent=35 // pred_check
          %p311 = pneg %p136
        $region50: #{tpu_custom_call.1} parent=35 // pred_check_branch
          %313 = sbr.rel (%p311) target = $region52
        $region51: #{tpu_custom_call.1} parent=35 // pred_region
          %314 = dma.done %s307, 96
        $region52: #{tpu_custom_call.1} parent=35 // pred_fallthru
          _
        %315 = sfence
        %p316 = pneg %p58
        %p317 = pneg %p55
        %s318 = sand.u32 %s71, 1
        %s319 = scalar_lea.sflag [#allocation3], %s318
        %s320 = sand.u32 %s71, 1
        %s321 = smul.addr %s320, 16
        %s322 = scalar_lea.vmem [#allocation6], %s321
        %p323 = pneg %p84
        %p324 = pneg %p81
        %s325 = sand.u32 %s30, 1
        %s326 = scalar_lea.sflag [#allocation8], %s325
        %s327 = sand.u32 %s97, 1
        %s328 = smul.addr %s327, 12
        %s329 = scalar_lea.vmem [#allocation7], %s328
        %p330 = pneg %p110
        %p331 = pneg %p107
        %s332 = sand.u32 %s30, 1
        %s333 = scalar_lea.sflag [#allocation8], %s332
        %s334 = sand.u32 %s123, 1
        %s335 = smul.addr %s334, 6
        %s336 = scalar_lea.vmem [#allocation9], %s335
        %p337 = pneg %p136
        %p338 = pneg %p133
        %p339 = pneg %p164
        %p340 = pneg %p161
        %s341 = sand.u32 %s151, 1
        %s342 = scalar_lea.sflag [#allocation4], %s341
        %s343 = sand.u32 %s151, 1
        %s344 = smul.addr %s343, 4
        %s345 = scalar_lea.vmem [#allocation10], %s344
        %p346 = pneg %p192
        %p347 = pneg %p189
        %s348 = sand.u32 %s179, 1
        %s349 = scalar_lea.sflag [#allocation12], %s348
        %s350 = sand.u32 %s179, 1
        %s351 = smul.addr %s350, 2
        %s352 = scalar_lea.vmem [#allocation11], %s351
        %s353 = smul.u32 2, %s35
        %s354 = smul.u32 2, %s35
        %s355 = smul.u32 2, %s35
        %s356 = smul.u32 %s34, 12
        %s357 = sld [smem:[#allocation2 + %s356]]
        %s358 = sadd.s32 %s356, 1
        %s359 = sld [smem:[#allocation2 + %s358]]
        %s360 = sadd.s32 %s356, 2
        %s361 = sld [smem:[#allocation2 + %s360]]
        %s362 = sadd.s32 %s356, 3
        %s363 = sld [smem:[#allocation2 + %s362]]
        %s364 = sadd.s32 %s356, 4
        %s365 = sld [smem:[#allocation2 + %s364]]
        %s366 = sadd.s32 %s356, 5
        %s367 = sld [smem:[#allocation2 + %s366]]
        %s368 = sadd.s32 %s356, 6
        %s369 = sld [smem:[#allocation2 + %s368]]
        %s370 = sadd.s32 %s356, 7
        %s371 = sld [smem:[#allocation2 + %s370]]
        %s372 = sadd.s32 %s356, 8
        %s373 = sld [smem:[#allocation2 + %s372]]
        %s374 = sadd.s32 %s356, 9
        %s375 = sld [smem:[#allocation2 + %s374]]
        %s376 = sadd.s32 %s356, 10
        %s377 = sld [smem:[#allocation2 + %s376]]
        %s378 = sadd.s32 %s356, 11
        %s379 = sld [smem:[#allocation2 + %s378]]
        %v380 = vld [vmem:[%s292] ss:$8 sm:$0x3]
        %s381 = scalar_lea.vmem %s292, 1 [#allocation6]
        %v382 = vld [vmem:[%s381] ss:$8 sm:$0x3]
        %s383 = scalar_lea.vmem %s292, 2 [#allocation6]
        %v384 = vld [vmem:[%s383] ss:$8 sm:$0x3]
        %v385 = vstv %s357
        %v386 = vmul.f32 %v385, %v380
        %v387 = vstv %s359
        %v388 = vmul.f32 %v387, %v382
        %v389 = vadd.f32 %v386, %v388
        %v390 = vstv %s361
        %v391 = vmul.f32 %v390, %v384
        %v392 = vadd.f32 %v389, %v391
        %v393 = vstv %s363
        %v394 = vadd.f32 %v392, %v393
        %v395 = vstv %s365
        %v396 = vmul.f32 %v395, %v380
        %v397 = vstv %s367
        %v398 = vmul.f32 %v397, %v382
        %v399 = vadd.f32 %v396, %v398
        %v400 = vstv %s369
        %v401 = vmul.f32 %v400, %v384
        %v402 = vadd.f32 %v399, %v401
        %v403 = vstv %s371
        %v404 = vadd.f32 %v402, %v403
        %v405 = vstv %s373
        %v406 = vmul.f32 %v405, %v380
        %v407 = vstv %s375
        %v408 = vmul.f32 %v407, %v382
        %v409 = vadd.f32 %v406, %v408
        %v410 = vstv %s377
        %v411 = vmul.f32 %v410, %v384
        %v412 = vadd.f32 %v409, %v411
        %v413 = vstv %s379
        %v414 = vadd.f32 %v412, %v413
        %v415 = vadd.f32 %v394, 1.0
        %v416 = vmul.f32 %v415, 4.5
        %v417 = vadd.f32 %v404, 1.0
        %v418 = vmul.f32 %v417, 3.5
        %v419 = vadd.f32 %v414, 1.0
        %v420 = vmul.f32 %v419, 3.5
        %v421 = vmax.f32 %v416, -1.0
        %v422 = vmin.f32 %v421, 10.0
        %v423 = vmax.f32 %v418, -1.0
        %v424 = vmin.f32 %v423, 8.0
        %v425 = vmax.f32 %v420, -1.0
        %v426 = vmin.f32 %v425, 8.0
        %v427 = vfloor.f32 %v422
        %v428 = vfloor.f32 %v424
        %v429 = vfloor.f32 %v426
        %v430 = vsub.f32 %v422, %v427
        %v431 = vsub.f32 %v424, %v428
        %v432 = vsub.f32 %v426, %v429
        %v433 = vcvt.f32.s32.to.zero.pseudo %v427
        %v434 = vcvt.f32.s32.to.zero.pseudo %v428
        %v435 = vcvt.f32.s32.to.zero.pseudo %v429
        %v436 = vlaneseq
        %v437 = vshrl.u32 %v436, 7
        %v438 = vadd.s32 %v437, 8
        %v439 = vadd.s32 %v437, 16
        %v440 = vadd.s32 %v437, 24
        %v441 = vadd.s32 %v437, 32
        %v442 = vadd.s32 %v437, 40
        %v443 = vadd.s32 %v437, 48
        %v444 = vadd.s32 %v437, 56
        %v445 = vadd.s32 %v437, 64
        %v446 = vadd.s32 %v437, 72
        %v447 = vadd.s32 %v437, 80
        %v448 = vadd.s32 %v437, 88
        %v449 = vadd.s32 %v437, 96
        %v450 = vadd.s32 %v437, 104
        %v451 = vadd.s32 %v437, 112
        %v452 = vadd.s32 %v437, 120
        %v453 = vadd.s32 %v437, 128
        %v454 = vadd.s32 %v437, 136
        %v455 = vadd.s32 %v437, 144
        %v456 = vadd.s32 %v437, 152
        %v457 = vadd.s32 %v437, 160
        %v458 = vadd.s32 %v437, 168
        %v459 = vadd.s32 %v437, 176
        %v460 = vadd.s32 %v437, 184
        %v461 = vadd.s32 %v437, 192
        %v462 = vadd.s32 %v437, 200
        %v463 = vadd.s32 %v437, 208
        %v464 = vadd.s32 %v437, 216
        %v465 = vadd.s32 %v437, 224
        %v466 = vadd.s32 %v437, 232
        %v467 = vadd.s32 %v437, 240
        %v468 = vadd.s32 %v437, 248
        %v469 = vadd.s32 %v437, 256
        %v470 = vadd.s32 %v437, 264
        %v471 = vadd.s32 %v437, 272
        %v472 = vadd.s32 %v437, 280
        %v473 = vadd.s32 %v437, 288
        %v474 = vadd.s32 %v437, 296
        %v475 = vadd.s32 %v437, 304
        %v476 = vadd.s32 %v437, 312
        %v477 = vadd.s32 %v437, 320
        %v478 = vadd.s32 %v437, 328
        %v479 = vadd.s32 %v437, 336
        %v480 = vadd.s32 %v437, 344
        %v481 = vadd.s32 %v437, 352
        %v482 = vadd.s32 %v437, 360
        %v483 = vadd.s32 %v437, 368
        %v484 = vadd.s32 %v437, 376
        %v485 = vadd.s32 %v437, 384
        %v486 = vadd.s32 %v437, 392
        %v487 = vadd.s32 %v437, 400
        %v488 = vadd.s32 %v437, 408
        %v489 = vadd.s32 %v437, 416
        %v490 = vadd.s32 %v437, 424
        %v491 = vadd.s32 %v437, 432
        %v492 = vadd.s32 %v437, 440
        %v493 = vadd.s32 %v437, 448
        %v494 = vadd.s32 %v437, 456
        %v495 = vadd.s32 %v437, 464
        %v496 = vadd.s32 %v437, 472
        %v497 = vadd.s32 %v437, 480
        %v498 = vadd.s32 %v437, 488
        %v499 = vadd.s32 %v437, 496
        %v500 = vadd.s32 %v437, 504
        %v501 = vadd.s32 %v437, 512
        %v502 = vadd.s32 %v437, 520
        %v503 = vadd.s32 %v437, 528
        %v504 = vadd.s32 %v437, 536
        %v505 = vadd.s32 %v437, 544
        %v506 = vadd.s32 %v437, 552
        %v507 = vadd.s32 %v437, 560
        %v508 = vadd.s32 %v437, 568
        %v509 = vadd.s32 %v437, 576
        %v510 = vadd.s32 %v437, 584
        %v511 = vadd.s32 %v437, 592
        %v512 = vadd.s32 %v437, 600
        %v513 = vadd.s32 %v437, 608
        %v514 = vadd.s32 %v437, 616
        %v515 = vadd.s32 %v437, 624
        %v516 = vadd.s32 %v437, 632
        %v517 = vadd.s32 %v437, 640
        %v518 = vadd.s32 %v437, 648
        %v519 = vadd.s32 %v437, 656
        %v520 = vadd.s32 %v437, 664
        %v521 = vadd.s32 %v437, 672
        %v522 = vadd.s32 %v437, 680
        %v523 = vadd.s32 %v437, 688
        %v524 = vadd.s32 %v437, 696
        %v525 = vadd.s32 %v437, 704
        %v526 = vadd.s32 %v437, 712
        %v527 = vadd.s32 %v437, 720
        %v528 = vadd.s32 %v437, 728
        %v529 = vadd.s32 %v437, 736
        %v530 = vadd.s32 %v437, 744
        %v531 = vadd.s32 %v437, 752
        %v532 = vadd.s32 %v437, 760
        %v533 = vmul.u32 %v435, 80
        %v534 = vmul.u32 %v434, 10
        %v535 = vadd.s32 %v533, %v534
        %v536 = vadd.s32 %v535, %v433
        %vm537 = vcmp.lt.s32.totalorder %v536, 0
        %v538 = vadd.s32 %v536, 768
        %v539 = vsel %vm537, %v538, %v536
        %v540 = vlaneseq
        %v541 = vshrl.u32 %v540, 7
        %v542 = vsub.s32 0, %v541
        %v543 = vrot.slane %v539, %v542
        %v544 = vlaneseq
        %v545 = vshrl.u32 %v544, 7
        %v546 = vsub.s32 1, %v545
        %v547 = vrot.slane %v539, %v546
        %vm548 = vcmp.eq.s32.totalorder %v437, %v543
        %vm549 = vcmp.eq.s32.totalorder %v437, %v547
        %vm550 = vcmp.eq.s32.totalorder %v438, %v543
        %vm551 = vcmp.eq.s32.totalorder %v438, %v547
        %vm552 = vcmp.eq.s32.totalorder %v439, %v543
        %vm553 = vcmp.eq.s32.totalorder %v439, %v547
        %vm554 = vcmp.eq.s32.totalorder %v440, %v543
        %vm555 = vcmp.eq.s32.totalorder %v440, %v547
        %vm556 = vcmp.eq.s32.totalorder %v441, %v543
        %vm557 = vcmp.eq.s32.totalorder %v441, %v547
        %vm558 = vcmp.eq.s32.totalorder %v442, %v543
        %vm559 = vcmp.eq.s32.totalorder %v442, %v547
        %vm560 = vcmp.eq.s32.totalorder %v443, %v543
        %vm561 = vcmp.eq.s32.totalorder %v443, %v547
        %vm562 = vcmp.eq.s32.totalorder %v444, %v543
        %vm563 = vcmp.eq.s32.totalorder %v444, %v547
        %vm564 = vcmp.eq.s32.totalorder %v445, %v543
        %vm565 = vcmp.eq.s32.totalorder %v445, %v547
        %vm566 = vcmp.eq.s32.totalorder %v446, %v543
        %vm567 = vcmp.eq.s32.totalorder %v446, %v547
        %vm568 = vcmp.eq.s32.totalorder %v447, %v543
        %vm569 = vcmp.eq.s32.totalorder %v447, %v547
        %vm570 = vcmp.eq.s32.totalorder %v448, %v543
        %vm571 = vcmp.eq.s32.totalorder %v448, %v547
        %vm572 = vcmp.eq.s32.totalorder %v449, %v543
        %vm573 = vcmp.eq.s32.totalorder %v449, %v547
        %vm574 = vcmp.eq.s32.totalorder %v450, %v543
        %vm575 = vcmp.eq.s32.totalorder %v450, %v547
        %vm576 = vcmp.eq.s32.totalorder %v451, %v543
        %vm577 = vcmp.eq.s32.totalorder %v451, %v547
        %vm578 = vcmp.eq.s32.totalorder %v452, %v543
        %vm579 = vcmp.eq.s32.totalorder %v452, %v547
        %vm580 = vcmp.eq.s32.totalorder %v453, %v543
        %vm581 = vcmp.eq.s32.totalorder %v453, %v547
        %vm582 = vcmp.eq.s32.totalorder %v454, %v543
        %vm583 = vcmp.eq.s32.totalorder %v454, %v547
        %vm584 = vcmp.eq.s32.totalorder %v455, %v543
        %vm585 = vcmp.eq.s32.totalorder %v455, %v547
        %vm586 = vcmp.eq.s32.totalorder %v456, %v543
        %vm587 = vcmp.eq.s32.totalorder %v456, %v547
        %vm588 = vcmp.eq.s32.totalorder %v457, %v543
        %vm589 = vcmp.eq.s32.totalorder %v457, %v547
        %vm590 = vcmp.eq.s32.totalorder %v458, %v543
        %vm591 = vcmp.eq.s32.totalorder %v458, %v547
        %vm592 = vcmp.eq.s32.totalorder %v459, %v543
        %vm593 = vcmp.eq.s32.totalorder %v459, %v547
        %vm594 = vcmp.eq.s32.totalorder %v460, %v543
        %vm595 = vcmp.eq.s32.totalorder %v460, %v547
        %vm596 = vcmp.eq.s32.totalorder %v461, %v543
        %vm597 = vcmp.eq.s32.totalorder %v461, %v547
        %vm598 = vcmp.eq.s32.totalorder %v462, %v543
        %vm599 = vcmp.eq.s32.totalorder %v462, %v547
        %vm600 = vcmp.eq.s32.totalorder %v463, %v543
        %vm601 = vcmp.eq.s32.totalorder %v463, %v547
        %vm602 = vcmp.eq.s32.totalorder %v464, %v543
        %vm603 = vcmp.eq.s32.totalorder %v464, %v547
        %vm604 = vcmp.eq.s32.totalorder %v465, %v543
        %vm605 = vcmp.eq.s32.totalorder %v465, %v547
        %vm606 = vcmp.eq.s32.totalorder %v466, %v543
        %vm607 = vcmp.eq.s32.totalorder %v466, %v547
        %vm608 = vcmp.eq.s32.totalorder %v467, %v543
        %vm609 = vcmp.eq.s32.totalorder %v467, %v547
        %vm610 = vcmp.eq.s32.totalorder %v468, %v543
        %vm611 = vcmp.eq.s32.totalorder %v468, %v547
        %vm612 = vcmp.eq.s32.totalorder %v469, %v543
        %vm613 = vcmp.eq.s32.totalorder %v469, %v547
        %vm614 = vcmp.eq.s32.totalorder %v470, %v543
        %vm615 = vcmp.eq.s32.totalorder %v470, %v547
        %vm616 = vcmp.eq.s32.totalorder %v471, %v543
        %vm617 = vcmp.eq.s32.totalorder %v471, %v547
        %vm618 = vcmp.eq.s32.totalorder %v472, %v543
        %vm619 = vcmp.eq.s32.totalorder %v472, %v547
        %vm620 = vcmp.eq.s32.totalorder %v473, %v543
        %vm621 = vcmp.eq.s32.totalorder %v473, %v547
        %vm622 = vcmp.eq.s32.totalorder %v474, %v543
        %vm623 = vcmp.eq.s32.totalorder %v474, %v547
        %vm624 = vcmp.eq.s32.totalorder %v475, %v543
        %vm625 = vcmp.eq.s32.totalorder %v475, %v547
        %vm626 = vcmp.eq.s32.totalorder %v476, %v543
        %vm627 = vcmp.eq.s32.totalorder %v476, %v547
        %vm628 = vcmp.eq.s32.totalorder %v477, %v543
        %vm629 = vcmp.eq.s32.totalorder %v477, %v547
        %vm630 = vcmp.eq.s32.totalorder %v478, %v543
        %vm631 = vcmp.eq.s32.totalorder %v478, %v547
        %vm632 = vcmp.eq.s32.totalorder %v479, %v543
        %vm633 = vcmp.eq.s32.totalorder %v479, %v547
        %vm634 = vcmp.eq.s32.totalorder %v480, %v543
        %vm635 = vcmp.eq.s32.totalorder %v480, %v547
        %vm636 = vcmp.eq.s32.totalorder %v481, %v543
        %vm637 = vcmp.eq.s32.totalorder %v481, %v547
        %vm638 = vcmp.eq.s32.totalorder %v482, %v543
        %vm639 = vcmp.eq.s32.totalorder %v482, %v547
        %vm640 = vcmp.eq.s32.totalorder %v483, %v543
        %vm641 = vcmp.eq.s32.totalorder %v483, %v547
        %vm642 = vcmp.eq.s32.totalorder %v484, %v543
        %vm643 = vcmp.eq.s32.totalorder %v484, %v547
        %vm644 = vcmp.eq.s32.totalorder %v485, %v543
        %vm645 = vcmp.eq.s32.totalorder %v485, %v547
        %vm646 = vcmp.eq.s32.totalorder %v486, %v543
        %vm647 = vcmp.eq.s32.totalorder %v486, %v547
        %vm648 = vcmp.eq.s32.totalorder %v487, %v543
        %vm649 = vcmp.eq.s32.totalorder %v487, %v547
        %vm650 = vcmp.eq.s32.totalorder %v488, %v543
        %vm651 = vcmp.eq.s32.totalorder %v488, %v547
        %vm652 = vcmp.eq.s32.totalorder %v489, %v543
        %vm653 = vcmp.eq.s32.totalorder %v489, %v547
        %vm654 = vcmp.eq.s32.totalorder %v490, %v543
        %vm655 = vcmp.eq.s32.totalorder %v490, %v547
        %vm656 = vcmp.eq.s32.totalorder %v491, %v543
        %vm657 = vcmp.eq.s32.totalorder %v491, %v547
        %vm658 = vcmp.eq.s32.totalorder %v492, %v543
        %vm659 = vcmp.eq.s32.totalorder %v492, %v547
        %vm660 = vcmp.eq.s32.totalorder %v493, %v543
        %vm661 = vcmp.eq.s32.totalorder %v493, %v547
        %vm662 = vcmp.eq.s32.totalorder %v494, %v543
        %vm663 = vcmp.eq.s32.totalorder %v494, %v547
        %vm664 = vcmp.eq.s32.totalorder %v495, %v543
        %vm665 = vcmp.eq.s32.totalorder %v495, %v547
        %vm666 = vcmp.eq.s32.totalorder %v496, %v543
        %vm667 = vcmp.eq.s32.totalorder %v496, %v547
        %vm668 = vcmp.eq.s32.totalorder %v497, %v543
        %vm669 = vcmp.eq.s32.totalorder %v497, %v547
        %vm670 = vcmp.eq.s32.totalorder %v498, %v543
        %vm671 = vcmp.eq.s32.totalorder %v498, %v547
        %vm672 = vcmp.eq.s32.totalorder %v499, %v543
        %vm673 = vcmp.eq.s32.totalorder %v499, %v547
        %vm674 = vcmp.eq.s32.totalorder %v500, %v543
        %vm675 = vcmp.eq.s32.totalorder %v500, %v547
        %vm676 = vcmp.eq.s32.totalorder %v501, %v543
        %vm677 = vcmp.eq.s32.totalorder %v501, %v547
        %vm678 = vcmp.eq.s32.totalorder %v502, %v543
        %vm679 = vcmp.eq.s32.totalorder %v502, %v547
        %vm680 = vcmp.eq.s32.totalorder %v503, %v543
        %vm681 = vcmp.eq.s32.totalorder %v503, %v547
        %vm682 = vcmp.eq.s32.totalorder %v504, %v543
        %vm683 = vcmp.eq.s32.totalorder %v504, %v547
        %vm684 = vcmp.eq.s32.totalorder %v505, %v543
        %vm685 = vcmp.eq.s32.totalorder %v505, %v547
        %vm686 = vcmp.eq.s32.totalorder %v506, %v543
        %vm687 = vcmp.eq.s32.totalorder %v506, %v547
        %vm688 = vcmp.eq.s32.totalorder %v507, %v543
        %vm689 = vcmp.eq.s32.totalorder %v507, %v547
        %vm690 = vcmp.eq.s32.totalorder %v508, %v543
        %vm691 = vcmp.eq.s32.totalorder %v508, %v547
        %vm692 = vcmp.eq.s32.totalorder %v509, %v543
        %vm693 = vcmp.eq.s32.totalorder %v509, %v547
        %vm694 = vcmp.eq.s32.totalorder %v510, %v543
        %vm695 = vcmp.eq.s32.totalorder %v510, %v547
        %vm696 = vcmp.eq.s32.totalorder %v511, %v543
        %vm697 = vcmp.eq.s32.totalorder %v511, %v547
        %vm698 = vcmp.eq.s32.totalorder %v512, %v543
        %vm699 = vcmp.eq.s32.totalorder %v512, %v547
        %vm700 = vcmp.eq.s32.totalorder %v513, %v543
        %vm701 = vcmp.eq.s32.totalorder %v513, %v547
        %vm702 = vcmp.eq.s32.totalorder %v514, %v543
        %vm703 = vcmp.eq.s32.totalorder %v514, %v547
        %vm704 = vcmp.eq.s32.totalorder %v515, %v543
        %vm705 = vcmp.eq.s32.totalorder %v515, %v547
        %vm706 = vcmp.eq.s32.totalorder %v516, %v543
        %vm707 = vcmp.eq.s32.totalorder %v516, %v547
        %vm708 = vcmp.eq.s32.totalorder %v517, %v543
        %vm709 = vcmp.eq.s32.totalorder %v517, %v547
        %vm710 = vcmp.eq.s32.totalorder %v518, %v543
        %vm711 = vcmp.eq.s32.totalorder %v518, %v547
        %vm712 = vcmp.eq.s32.totalorder %v519, %v543
        %vm713 = vcmp.eq.s32.totalorder %v519, %v547
        %vm714 = vcmp.eq.s32.totalorder %v520, %v543
        %vm715 = vcmp.eq.s32.totalorder %v520, %v547
        %vm716 = vcmp.eq.s32.totalorder %v521, %v543
        %vm717 = vcmp.eq.s32.totalorder %v521, %v547
        %vm718 = vcmp.eq.s32.totalorder %v522, %v543
        %vm719 = vcmp.eq.s32.totalorder %v522, %v547
        %vm720 = vcmp.eq.s32.totalorder %v523, %v543
        %vm721 = vcmp.eq.s32.totalorder %v523, %v547
        %vm722 = vcmp.eq.s32.totalorder %v524, %v543
        %vm723 = vcmp.eq.s32.totalorder %v524, %v547
        %vm724 = vcmp.eq.s32.totalorder %v525, %v543
        %vm725 = vcmp.eq.s32.totalorder %v525, %v547
        %vm726 = vcmp.eq.s32.totalorder %v526, %v543
        %vm727 = vcmp.eq.s32.totalorder %v526, %v547
        %vm728 = vcmp.eq.s32.totalorder %v527, %v543
        %vm729 = vcmp.eq.s32.totalorder %v527, %v547
        %vm730 = vcmp.eq.s32.totalorder %v528, %v543
        %vm731 = vcmp.eq.s32.totalorder %v528, %v547
        %vm732 = vcmp.eq.s32.totalorder %v529, %v543
        %vm733 = vcmp.eq.s32.totalorder %v529, %v547
        %vm734 = vcmp.eq.s32.totalorder %v530, %v543
        %vm735 = vcmp.eq.s32.totalorder %v530, %v547
        %vm736 = vcmp.eq.s32.totalorder %v531, %v543
        %vm737 = vcmp.eq.s32.totalorder %v531, %v547
        %vm738 = vcmp.eq.s32.totalorder %v532, %v543
        %vm739 = vcmp.eq.s32.totalorder %v532, %v547
        %v740 = vsel %vm548, 1.0, 0.0
        %v741 = vsel %vm549, 1.0, 0.0
        %v742 = vsel %vm550, 1.0, 0.0
        %v743 = vsel %vm551, 1.0, 0.0
        %v744 = vsel %vm552, 1.0, 0.0
        %v745 = vsel %vm553, 1.0, 0.0
        %v746 = vsel %vm554, 1.0, 0.0
        %v747 = vsel %vm555, 1.0, 0.0
        %v748 = vsel %vm556, 1.0, 0.0
        %v749 = vsel %vm557, 1.0, 0.0
        %v750 = vsel %vm558, 1.0, 0.0
        %v751 = vsel %vm559, 1.0, 0.0
        %v752 = vsel %vm560, 1.0, 0.0
        %v753 = vsel %vm561, 1.0, 0.0
        %v754 = vsel %vm562, 1.0, 0.0
        %v755 = vsel %vm563, 1.0, 0.0
        %v756 = vsel %vm564, 1.0, 0.0
        %v757 = vsel %vm565, 1.0, 0.0
        %v758 = vsel %vm566, 1.0, 0.0
        %v759 = vsel %vm567, 1.0, 0.0
        %v760 = vsel %vm568, 1.0, 0.0
        %v761 = vsel %vm569, 1.0, 0.0
        %v762 = vsel %vm570, 1.0, 0.0
        %v763 = vsel %vm571, 1.0, 0.0
        %v764 = vsel %vm572, 1.0, 0.0
        %v765 = vsel %vm573, 1.0, 0.0
        %v766 = vsel %vm574, 1.0, 0.0
        %v767 = vsel %vm575, 1.0, 0.0
        %v768 = vsel %vm576, 1.0, 0.0
        %v769 = vsel %vm577, 1.0, 0.0
        %v770 = vsel %vm578, 1.0, 0.0
        %v771 = vsel %vm579, 1.0, 0.0
        %v772 = vsel %vm580, 1.0, 0.0
        %v773 = vsel %vm581, 1.0, 0.0
        %v774 = vsel %vm582, 1.0, 0.0
        %v775 = vsel %vm583, 1.0, 0.0
        %v776 = vsel %vm584, 1.0, 0.0
        %v777 = vsel %vm585, 1.0, 0.0
        %v778 = vsel %vm586, 1.0, 0.0
        %v779 = vsel %vm587, 1.0, 0.0
        %v780 = vsel %vm588, 1.0, 0.0
        %v781 = vsel %vm589, 1.0, 0.0
        %v782 = vsel %vm590, 1.0, 0.0
        %v783 = vsel %vm591, 1.0, 0.0
        %v784 = vsel %vm592, 1.0, 0.0
        %v785 = vsel %vm593, 1.0, 0.0
        %v786 = vsel %vm594, 1.0, 0.0
        %v787 = vsel %vm595, 1.0, 0.0
        %v788 = vsel %vm596, 1.0, 0.0
        %v789 = vsel %vm597, 1.0, 0.0
        %v790 = vsel %vm598, 1.0, 0.0
        %v791 = vsel %vm599, 1.0, 0.0
        %v792 = vsel %vm600, 1.0, 0.0
        %v793 = vsel %vm601, 1.0, 0.0
        %v794 = vsel %vm602, 1.0, 0.0
        %v795 = vsel %vm603, 1.0, 0.0
        %v796 = vsel %vm604, 1.0, 0.0
        %v797 = vsel %vm605, 1.0, 0.0
        %v798 = vsel %vm606, 1.0, 0.0
        %v799 = vsel %vm607, 1.0, 0.0
        %v800 = vsel %vm608, 1.0, 0.0
        %v801 = vsel %vm609, 1.0, 0.0
        %v802 = vsel %vm610, 1.0, 0.0
        %v803 = vsel %vm611, 1.0, 0.0
        %v804 = vsel %vm612, 1.0, 0.0
        %v805 = vsel %vm613, 1.0, 0.0
        %v806 = vsel %vm614, 1.0, 0.0
        %v807 = vsel %vm615, 1.0, 0.0
        %v808 = vsel %vm616, 1.0, 0.0
        %v809 = vsel %vm617, 1.0, 0.0
        %v810 = vsel %vm618, 1.0, 0.0
        %v811 = vsel %vm619, 1.0, 0.0
        %v812 = vsel %vm620, 1.0, 0.0
        %v813 = vsel %vm621, 1.0, 0.0
        %v814 = vsel %vm622, 1.0, 0.0
        %v815 = vsel %vm623, 1.0, 0.0
        %v816 = vsel %vm624, 1.0, 0.0
        %v817 = vsel %vm625, 1.0, 0.0
        %v818 = vsel %vm626, 1.0, 0.0
        %v819 = vsel %vm627, 1.0, 0.0
        %v820 = vsel %vm628, 1.0, 0.0
        %v821 = vsel %vm629, 1.0, 0.0
        %v822 = vsel %vm630, 1.0, 0.0
        %v823 = vsel %vm631, 1.0, 0.0
        %v824 = vsel %vm632, 1.0, 0.0
        %v825 = vsel %vm633, 1.0, 0.0
        %v826 = vsel %vm634, 1.0, 0.0
        %v827 = vsel %vm635, 1.0, 0.0
        %v828 = vsel %vm636, 1.0, 0.0
        %v829 = vsel %vm637, 1.0, 0.0
        %v830 = vsel %vm638, 1.0, 0.0
        %v831 = vsel %vm639, 1.0, 0.0
        %v832 = vsel %vm640, 1.0, 0.0
        %v833 = vsel %vm641, 1.0, 0.0
        %v834 = vsel %vm642, 1.0, 0.0
        %v835 = vsel %vm643, 1.0, 0.0
        %v836 = vsel %vm644, 1.0, 0.0
        %v837 = vsel %vm645, 1.0, 0.0
        %v838 = vsel %vm646, 1.0, 0.0
        %v839 = vsel %vm647, 1.0, 0.0
        %v840 = vsel %vm648, 1.0, 0.0
        %v841 = vsel %vm649, 1.0, 0.0
        %v842 = vsel %vm650, 1.0, 0.0
        %v843 = vsel %vm651, 1.0, 0.0
        %v844 = vsel %vm652, 1.0, 0.0
        %v845 = vsel %vm653, 1.0, 0.0
        %v846 = vsel %vm654, 1.0, 0.0
        %v847 = vsel %vm655, 1.0, 0.0
        %v848 = vsel %vm656, 1.0, 0.0
        %v849 = vsel %vm657, 1.0, 0.0
        %v850 = vsel %vm658, 1.0, 0.0
        %v851 = vsel %vm659, 1.0, 0.0
        %v852 = vsel %vm660, 1.0, 0.0
        %v853 = vsel %vm661, 1.0, 0.0
        %v854 = vsel %vm662, 1.0, 0.0
        %v855 = vsel %vm663, 1.0, 0.0
        %v856 = vsel %vm664, 1.0, 0.0
        %v857 = vsel %vm665, 1.0, 0.0
        %v858 = vsel %vm666, 1.0, 0.0
        %v859 = vsel %vm667, 1.0, 0.0
        %v860 = vsel %vm668, 1.0, 0.0
        %v861 = vsel %vm669, 1.0, 0.0
        %v862 = vsel %vm670, 1.0, 0.0
        %v863 = vsel %vm671, 1.0, 0.0
        %v864 = vsel %vm672, 1.0, 0.0
        %v865 = vsel %vm673, 1.0, 0.0
        %v866 = vsel %vm674, 1.0, 0.0
        %v867 = vsel %vm675, 1.0, 0.0
        %v868 = vsel %vm676, 1.0, 0.0
        %v869 = vsel %vm677, 1.0, 0.0
        %v870 = vsel %vm678, 1.0, 0.0
        %v871 = vsel %vm679, 1.0, 0.0
        %v872 = vsel %vm680, 1.0, 0.0
        %v873 = vsel %vm681, 1.0, 0.0
        %v874 = vsel %vm682, 1.0, 0.0
        %v875 = vsel %vm683, 1.0, 0.0
        %v876 = vsel %vm684, 1.0, 0.0
        %v877 = vsel %vm685, 1.0, 0.0
        %v878 = vsel %vm686, 1.0, 0.0
        %v879 = vsel %vm687, 1.0, 0.0
        %v880 = vsel %vm688, 1.0, 0.0
        %v881 = vsel %vm689, 1.0, 0.0
        %v882 = vsel %vm690, 1.0, 0.0
        %v883 = vsel %vm691, 1.0, 0.0
        %v884 = vsel %vm692, 1.0, 0.0
        %v885 = vsel %vm693, 1.0, 0.0
        %v886 = vsel %vm694, 1.0, 0.0
        %v887 = vsel %vm695, 1.0, 0.0
        %v888 = vsel %vm696, 1.0, 0.0
        %v889 = vsel %vm697, 1.0, 0.0
        %v890 = vsel %vm698, 1.0, 0.0
        %v891 = vsel %vm699, 1.0, 0.0
        %v892 = vsel %vm700, 1.0, 0.0
        %v893 = vsel %vm701, 1.0, 0.0
        %v894 = vsel %vm702, 1.0, 0.0
        %v895 = vsel %vm703, 1.0, 0.0
        %v896 = vsel %vm704, 1.0, 0.0
        %v897 = vsel %vm705, 1.0, 0.0
        %v898 = vsel %vm706, 1.0, 0.0
        %v899 = vsel %vm707, 1.0, 0.0
        %v900 = vsel %vm708, 1.0, 0.0
        %v901 = vsel %vm709, 1.0, 0.0
        %v902 = vsel %vm710, 1.0, 0.0
        %v903 = vsel %vm711, 1.0, 0.0
        %v904 = vsel %vm712, 1.0, 0.0
        %v905 = vsel %vm713, 1.0, 0.0
        %v906 = vsel %vm714, 1.0, 0.0
        %v907 = vsel %vm715, 1.0, 0.0
        %v908 = vsel %vm716, 1.0, 0.0
        %v909 = vsel %vm717, 1.0, 0.0
        %v910 = vsel %vm718, 1.0, 0.0
        %v911 = vsel %vm719, 1.0, 0.0
        %v912 = vsel %vm720, 1.0, 0.0
        %v913 = vsel %vm721, 1.0, 0.0
        %v914 = vsel %vm722, 1.0, 0.0
        %v915 = vsel %vm723, 1.0, 0.0
        %v916 = vsel %vm724, 1.0, 0.0
        %v917 = vsel %vm725, 1.0, 0.0
        %v918 = vsel %vm726, 1.0, 0.0
        %v919 = vsel %vm727, 1.0, 0.0
        %v920 = vsel %vm728, 1.0, 0.0
        %v921 = vsel %vm729, 1.0, 0.0
        %v922 = vsel %vm730, 1.0, 0.0
        %v923 = vsel %vm731, 1.0, 0.0
        %v924 = vsel %vm732, 1.0, 0.0
        %v925 = vsel %vm733, 1.0, 0.0
        %v926 = vsel %vm734, 1.0, 0.0
        %v927 = vsel %vm735, 1.0, 0.0
        %v928 = vsel %vm736, 1.0, 0.0
        %v929 = vsel %vm737, 1.0, 0.0
        %v930 = vsel %vm738, 1.0, 0.0
        %v931 = vsel %vm739, 1.0, 0.0
        %v932 = vsub.f32 1.0, %v430
        %v933 = vsub.f32 1.0, %v431
        %v934 = vsub.f32 1.0, %v432
        %vm935 = vcmp.ge.s32.totalorder %v435, 0
        %vm936 = vcmp.lt.s32.totalorder %v435, 8
        %vm937 = vmand %vm935, %vm936
        %vm938 = vcmp.ge.s32.totalorder %v434, 0
        %vm939 = vmand %vm937, %vm938
        %vm940 = vcmp.lt.s32.totalorder %v434, 8
        %vm941 = vmand %vm939, %vm940
        %v942 = vmul.f32 %v934, %v933
        %vm943 = vcmp.ge.s32.totalorder %v433, 0
        %vm944 = vmand %vm941, %vm943
        %vm945 = vcmp.lt.s32.totalorder %v433, 10
        %vm946 = vmand %vm944, %vm945
        %v947 = vmul.f32 %v942, %v932
        %v948 = vsel %vm946, %v947, 0.0
        %v950 = vlaneseq
        %v951 = vshrl.u32 %v950, 7
        %v952 = vsub.s32 0, %v951
        %v953 = vrot.slane %v948, %v952
        %v954 = vlaneseq
        %v955 = vshrl.u32 %v954, 7
        %v956 = vsub.s32 1, %v955
        %v957 = vrot.slane %v948, %v956
        %v960 = vmul.f32 %v740, %v953
        %v961 = vmul.f32 %v741, %v957
        %v962 = vmul.f32 %v742, %v953
        %v963 = vmul.f32 %v743, %v957
        %v964 = vmul.f32 %v744, %v953
        %v965 = vmul.f32 %v745, %v957
        %v966 = vmul.f32 %v746, %v953
        %v967 = vmul.f32 %v747, %v957
        %v968 = vmul.f32 %v748, %v953
        %v969 = vmul.f32 %v749, %v957
        %v970 = vmul.f32 %v750, %v953
        %v971 = vmul.f32 %v751, %v957
        %v972 = vmul.f32 %v752, %v953
        %v973 = vmul.f32 %v753, %v957
        %v974 = vmul.f32 %v754, %v953
        %v975 = vmul.f32 %v755, %v957
        %v976 = vmul.f32 %v756, %v953
        %v977 = vmul.f32 %v757, %v957
        %v978 = vmul.f32 %v758, %v953
        %v979 = vmul.f32 %v759, %v957
        %v980 = vmul.f32 %v760, %v953
        %v981 = vmul.f32 %v761, %v957
        %v982 = vmul.f32 %v762, %v953
        %v983 = vmul.f32 %v763, %v957
        %v984 = vmul.f32 %v764, %v953
        %v985 = vmul.f32 %v765, %v957
        %v986 = vmul.f32 %v766, %v953
        %v987 = vmul.f32 %v767, %v957
        %v988 = vmul.f32 %v768, %v953
        %v989 = vmul.f32 %v769, %v957
        %v990 = vmul.f32 %v770, %v953
        %v991 = vmul.f32 %v771, %v957
        %v992 = vmul.f32 %v772, %v953
        %v993 = vmul.f32 %v773, %v957
        %v994 = vmul.f32 %v774, %v953
        %v995 = vmul.f32 %v775, %v957
        %v996 = vmul.f32 %v776, %v953
        %v997 = vmul.f32 %v777, %v957
        %v998 = vmul.f32 %v778, %v953
        %v999 = vmul.f32 %v779, %v957
        %v1000 = vmul.f32 %v780, %v953
        %v1001 = vmul.f32 %v781, %v957
        %v1002 = vmul.f32 %v782, %v953
        %v1003 = vmul.f32 %v783, %v957
        %v1004 = vmul.f32 %v784, %v953
        %v1005 = vmul.f32 %v785, %v957
        %v1006 = vmul.f32 %v786, %v953
        %v1007 = vmul.f32 %v787, %v957
        %v1008 = vmul.f32 %v788, %v953
        %v1009 = vmul.f32 %v789, %v957
        %v1010 = vmul.f32 %v790, %v953
        %v1011 = vmul.f32 %v791, %v957
        %v1012 = vmul.f32 %v792, %v953
        %v1013 = vmul.f32 %v793, %v957
        %v1014 = vmul.f32 %v794, %v953
        %v1015 = vmul.f32 %v795, %v957
        %v1016 = vmul.f32 %v796, %v953
        %v1017 = vmul.f32 %v797, %v957
        %v1018 = vmul.f32 %v798, %v953
        %v1019 = vmul.f32 %v799, %v957
        %v1020 = vmul.f32 %v800, %v953
        %v1021 = vmul.f32 %v801, %v957
        %v1022 = vmul.f32 %v802, %v953
        %v1023 = vmul.f32 %v803, %v957
        %v1024 = vmul.f32 %v804, %v953
        %v1025 = vmul.f32 %v805, %v957
        %v1026 = vmul.f32 %v806, %v953
        %v1027 = vmul.f32 %v807, %v957
        %v1028 = vmul.f32 %v808, %v953
        %v1029 = vmul.f32 %v809, %v957
        %v1030 = vmul.f32 %v810, %v953
        %v1031 = vmul.f32 %v811, %v957
        %v1032 = vmul.f32 %v812, %v953
        %v1033 = vmul.f32 %v813, %v957
        %v1034 = vmul.f32 %v814, %v953
        %v1035 = vmul.f32 %v815, %v957
        %v1036 = vmul.f32 %v816, %v953
        %v1037 = vmul.f32 %v817, %v957
        %v1038 = vmul.f32 %v818, %v953
        %v1039 = vmul.f32 %v819, %v957
        %v1040 = vmul.f32 %v820, %v953
        %v1041 = vmul.f32 %v821, %v957
        %v1042 = vmul.f32 %v822, %v953
        %v1043 = vmul.f32 %v823, %v957
        %v1044 = vmul.f32 %v824, %v953
        %v1045 = vmul.f32 %v825, %v957
        %v1046 = vmul.f32 %v826, %v953
        %v1047 = vmul.f32 %v827, %v957
        %v1048 = vmul.f32 %v828, %v953
        %v1049 = vmul.f32 %v829, %v957
        %v1050 = vmul.f32 %v830, %v953
        %v1051 = vmul.f32 %v831, %v957
        %v1052 = vmul.f32 %v832, %v953
        %v1053 = vmul.f32 %v833, %v957
        %v1054 = vmul.f32 %v834, %v953
        %v1055 = vmul.f32 %v835, %v957
        %v1056 = vmul.f32 %v836, %v953
        %v1057 = vmul.f32 %v837, %v957
        %v1058 = vmul.f32 %v838, %v953
        %v1059 = vmul.f32 %v839, %v957
        %v1060 = vmul.f32 %v840, %v953
        %v1061 = vmul.f32 %v841, %v957
        %v1062 = vmul.f32 %v842, %v953
        %v1063 = vmul.f32 %v843, %v957
        %v1064 = vmul.f32 %v844, %v953
        %v1065 = vmul.f32 %v845, %v957
        %v1066 = vmul.f32 %v846, %v953
        %v1067 = vmul.f32 %v847, %v957
        %v1068 = vmul.f32 %v848, %v953
        %v1069 = vmul.f32 %v849, %v957
        %v1070 = vmul.f32 %v850, %v953
        %v1071 = vmul.f32 %v851, %v957
        %v1072 = vmul.f32 %v852, %v953
        %v1073 = vmul.f32 %v853, %v957
        %v1074 = vmul.f32 %v854, %v953
        %v1075 = vmul.f32 %v855, %v957
        %v1076 = vmul.f32 %v856, %v953
        %v1077 = vmul.f32 %v857, %v957
        %v1078 = vmul.f32 %v858, %v953
        %v1079 = vmul.f32 %v859, %v957
        %v1080 = vmul.f32 %v860, %v953
        %v1081 = vmul.f32 %v861, %v957
        %v1082 = vmul.f32 %v862, %v953
        %v1083 = vmul.f32 %v863, %v957
        %v1084 = vmul.f32 %v864, %v953
        %v1085 = vmul.f32 %v865, %v957
        %v1086 = vmul.f32 %v866, %v953
        %v1087 = vmul.f32 %v867, %v957
        %v1088 = vmul.f32 %v868, %v953
        %v1089 = vmul.f32 %v869, %v957
        %v1090 = vmul.f32 %v870, %v953
        %v1091 = vmul.f32 %v871, %v957
        %v1092 = vmul.f32 %v872, %v953
        %v1093 = vmul.f32 %v873, %v957
        %v1094 = vmul.f32 %v874, %v953
        %v1095 = vmul.f32 %v875, %v957
        %v1096 = vmul.f32 %v876, %v953
        %v1097 = vmul.f32 %v877, %v957
        %v1098 = vmul.f32 %v878, %v953
        %v1099 = vmul.f32 %v879, %v957
        %v1100 = vmul.f32 %v880, %v953
        %v1101 = vmul.f32 %v881, %v957
        %v1102 = vmul.f32 %v882, %v953
        %v1103 = vmul.f32 %v883, %v957
        %v1104 = vmul.f32 %v884, %v953
        %v1105 = vmul.f32 %v885, %v957
        %v1106 = vmul.f32 %v886, %v953
        %v1107 = vmul.f32 %v887, %v957
        %v1108 = vmul.f32 %v888, %v953
        %v1109 = vmul.f32 %v889, %v957
        %v1110 = vmul.f32 %v890, %v953
        %v1111 = vmul.f32 %v891, %v957
        %v1112 = vmul.f32 %v892, %v953
        %v1113 = vmul.f32 %v893, %v957
        %v1114 = vmul.f32 %v894, %v953
        %v1115 = vmul.f32 %v895, %v957
        %v1116 = vmul.f32 %v896, %v953
        %v1117 = vmul.f32 %v897, %v957
        %v1118 = vmul.f32 %v898, %v953
        %v1119 = vmul.f32 %v899, %v957
        %v1120 = vmul.f32 %v900, %v953
        %v1121 = vmul.f32 %v901, %v957
        %v1122 = vmul.f32 %v902, %v953
        %v1123 = vmul.f32 %v903, %v957
        %v1124 = vmul.f32 %v904, %v953
        %v1125 = vmul.f32 %v905, %v957
        %v1126 = vmul.f32 %v906, %v953
        %v1127 = vmul.f32 %v907, %v957
        %v1128 = vmul.f32 %v908, %v953
        %v1129 = vmul.f32 %v909, %v957
        %v1130 = vmul.f32 %v910, %v953
        %v1131 = vmul.f32 %v911, %v957
        %v1132 = vmul.f32 %v912, %v953
        %v1133 = vmul.f32 %v913, %v957
        %v1134 = vmul.f32 %v914, %v953
        %v1135 = vmul.f32 %v915, %v957
        %v1136 = vmul.f32 %v916, %v953
        %v1137 = vmul.f32 %v917, %v957
        %v1138 = vmul.f32 %v918, %v953
        %v1139 = vmul.f32 %v919, %v957
        %v1140 = vmul.f32 %v920, %v953
        %v1141 = vmul.f32 %v921, %v957
        %v1142 = vmul.f32 %v922, %v953
        %v1143 = vmul.f32 %v923, %v957
        %v1144 = vmul.f32 %v924, %v953
        %v1145 = vmul.f32 %v925, %v957
        %v1146 = vmul.f32 %v926, %v953
        %v1147 = vmul.f32 %v927, %v957
        %v1148 = vmul.f32 %v928, %v953
        %v1149 = vmul.f32 %v929, %v957
        %v1150 = vmul.f32 %v930, %v953
        %v1151 = vmul.f32 %v931, %v957
        %v1152 = vadd.s32 %v433, 1
        %vm1153 = vcmp.ge.s32.totalorder %v1152, 0
        %vm1154 = vmand %vm941, %vm1153
        %vm1155 = vcmp.lt.s32.totalorder %v1152, 10
        %vm1156 = vmand %vm1154, %vm1155
        %v1157 = vmul.f32 %v942, %v430
        %v1158 = vsel %vm1156, %v1157, 0.0
        %v1159 = vrot.slane %v740, 7
        %v1160 = vrot.slane %v741, 7
        %v1161 = vrot.slane %v742, 7
        %v1162 = vrot.slane %v743, 7
        %v1163 = vrot.slane %v744, 7
        %v1164 = vrot.slane %v745, 7
        %v1165 = vrot.slane %v746, 7
        %v1166 = vrot.slane %v747, 7
        %v1167 = vrot.slane %v748, 7
        %v1168 = vrot.slane %v749, 7
        %v1169 = vrot.slane %v750, 7
        %v1170 = vrot.slane %v751, 7
        %v1171 = vrot.slane %v752, 7
        %v1172 = vrot.slane %v753, 7
        %v1173 = vrot.slane %v754, 7
        %v1174 = vrot.slane %v755, 7
        %v1175 = vrot.slane %v756, 7
        %v1176 = vrot.slane %v757, 7
        %v1177 = vrot.slane %v758, 7
        %v1178 = vrot.slane %v759, 7
        %v1179 = vrot.slane %v760, 7
        %v1180 = vrot.slane %v761, 7
        %v1181 = vrot.slane %v762, 7
        %v1182 = vrot.slane %v763, 7
        %v1183 = vrot.slane %v764, 7
        %v1184 = vrot.slane %v765, 7
        %v1185 = vrot.slane %v766, 7
        %v1186 = vrot.slane %v767, 7
        %v1187 = vrot.slane %v768, 7
        %v1188 = vrot.slane %v769, 7
        %v1189 = vrot.slane %v770, 7
        %v1190 = vrot.slane %v771, 7
        %v1191 = vrot.slane %v772, 7
        %v1192 = vrot.slane %v773, 7
        %v1193 = vrot.slane %v774, 7
        %v1194 = vrot.slane %v775, 7
        %v1195 = vrot.slane %v776, 7
        %v1196 = vrot.slane %v777, 7
        %v1197 = vrot.slane %v778, 7
        %v1198 = vrot.slane %v779, 7
        %v1199 = vrot.slane %v780, 7
        %v1200 = vrot.slane %v781, 7
        %v1201 = vrot.slane %v782, 7
        %v1202 = vrot.slane %v783, 7
        %v1203 = vrot.slane %v784, 7
        %v1204 = vrot.slane %v785, 7
        %v1205 = vrot.slane %v786, 7
        %v1206 = vrot.slane %v787, 7
        %v1207 = vrot.slane %v788, 7
        %v1208 = vrot.slane %v789, 7
        %v1209 = vrot.slane %v790, 7
        %v1210 = vrot.slane %v791, 7
        %v1211 = vrot.slane %v792, 7
        %v1212 = vrot.slane %v793, 7
        %v1213 = vrot.slane %v794, 7
        %v1214 = vrot.slane %v795, 7
        %v1215 = vrot.slane %v796, 7
        %v1216 = vrot.slane %v797, 7
        %v1217 = vrot.slane %v798, 7
        %v1218 = vrot.slane %v799, 7
        %v1219 = vrot.slane %v800, 7
        %v1220 = vrot.slane %v801, 7
        %v1221 = vrot.slane %v802, 7
        %v1222 = vrot.slane %v803, 7
        %v1223 = vrot.slane %v804, 7
        %v1224 = vrot.slane %v805, 7
        %v1225 = vrot.slane %v806, 7
        %v1226 = vrot.slane %v807, 7
        %v1227 = vrot.slane %v808, 7
        %v1228 = vrot.slane %v809, 7
        %v1229 = vrot.slane %v810, 7
        %v1230 = vrot.slane %v811, 7
        %v1231 = vrot.slane %v812, 7
        %v1232 = vrot.slane %v813, 7
        %v1233 = vrot.slane %v814, 7
        %v1234 = vrot.slane %v815, 7
        %v1235 = vrot.slane %v816, 7
        %v1236 = vrot.slane %v817, 7
        %v1237 = vrot.slane %v818, 7
        %v1238 = vrot.slane %v819, 7
        %v1239 = vrot.slane %v820, 7
        %v1240 = vrot.slane %v821, 7
        %v1241 = vrot.slane %v822, 7
        %v1242 = vrot.slane %v823, 7
        %v1243 = vrot.slane %v824, 7
        %v1244 = vrot.slane %v825, 7
        %v1245 = vrot.slane %v826, 7
        %v1246 = vrot.slane %v827, 7
        %v1247 = vrot.slane %v828, 7
        %v1248 = vrot.slane %v829, 7
        %v1249 = vrot.slane %v830, 7
        %v1250 = vrot.slane %v831, 7
        %v1251 = vrot.slane %v832, 7
        %v1252 = vrot.slane %v833, 7
        %v1253 = vrot.slane %v834, 7
        %v1254 = vrot.slane %v835, 7
        %v1255 = vrot.slane %v836, 7
        %v1256 = vrot.slane %v837, 7
        %v1257 = vrot.slane %v838, 7
        %v1258 = vrot.slane %v839, 7
        %v1259 = vrot.slane %v840, 7
        %v1260 = vrot.slane %v841, 7
        %v1261 = vrot.slane %v842, 7
        %v1262 = vrot.slane %v843, 7
        %v1263 = vrot.slane %v844, 7
        %v1264 = vrot.slane %v845, 7
        %v1265 = vrot.slane %v846, 7
        %v1266 = vrot.slane %v847, 7
        %v1267 = vrot.slane %v848, 7
        %v1268 = vrot.slane %v849, 7
        %v1269 = vrot.slane %v850, 7
        %v1270 = vrot.slane %v851, 7
        %v1271 = vrot.slane %v852, 7
        %v1272 = vrot.slane %v853, 7
        %v1273 = vrot.slane %v854, 7
        %v1274 = vrot.slane %v855, 7
        %v1275 = vrot.slane %v856, 7
        %v1276 = vrot.slane %v857, 7
        %v1277 = vrot.slane %v858, 7
        %v1278 = vrot.slane %v859, 7
        %v1279 = vrot.slane %v860, 7
        %v1280 = vrot.slane %v861, 7
        %v1281 = vrot.slane %v862, 7
        %v1282 = vrot.slane %v863, 7
        %v1283 = vrot.slane %v864, 7
        %v1284 = vrot.slane %v865, 7
        %v1285 = vrot.slane %v866, 7
        %v1286 = vrot.slane %v867, 7
        %v1287 = vrot.slane %v868, 7
        %v1288 = vrot.slane %v869, 7
        %v1289 = vrot.slane %v870, 7
        %v1290 = vrot.slane %v871, 7
        %v1291 = vrot.slane %v872, 7
        %v1292 = vrot.slane %v873, 7
        %v1293 = vrot.slane %v874, 7
        %v1294 = vrot.slane %v875, 7
        %v1295 = vrot.slane %v876, 7
        %v1296 = vrot.slane %v877, 7
        %v1297 = vrot.slane %v878, 7
        %v1298 = vrot.slane %v879, 7
        %v1299 = vrot.slane %v880, 7
        %v1300 = vrot.slane %v881, 7
        %v1301 = vrot.slane %v882, 7
        %v1302 = vrot.slane %v883, 7
        %v1303 = vrot.slane %v884, 7
        %v1304 = vrot.slane %v885, 7
        %v1305 = vrot.slane %v886, 7
        %v1306 = vrot.slane %v887, 7
        %v1307 = vrot.slane %v888, 7
        %v1308 = vrot.slane %v889, 7
        %v1309 = vrot.slane %v890, 7
        %v1310 = vrot.slane %v891, 7
        %v1311 = vrot.slane %v892, 7
        %v1312 = vrot.slane %v893, 7
        %v1313 = vrot.slane %v894, 7
        %v1314 = vrot.slane %v895, 7
        %v1315 = vrot.slane %v896, 7
        %v1316 = vrot.slane %v897, 7
        %v1317 = vrot.slane %v898, 7
        %v1318 = vrot.slane %v899, 7
        %v1319 = vrot.slane %v900, 7
        %v1320 = vrot.slane %v901, 7
        %v1321 = vrot.slane %v902, 7
        %v1322 = vrot.slane %v903, 7
        %v1323 = vrot.slane %v904, 7
        %v1324 = vrot.slane %v905, 7
        %v1325 = vrot.slane %v906, 7
        %v1326 = vrot.slane %v907, 7
        %v1327 = vrot.slane %v908, 7
        %v1328 = vrot.slane %v909, 7
        %v1329 = vrot.slane %v910, 7
        %v1330 = vrot.slane %v911, 7
        %v1331 = vrot.slane %v912, 7
        %v1332 = vrot.slane %v913, 7
        %v1333 = vrot.slane %v914, 7
        %v1334 = vrot.slane %v915, 7
        %v1335 = vrot.slane %v916, 7
        %v1336 = vrot.slane %v917, 7
        %v1337 = vrot.slane %v918, 7
        %v1338 = vrot.slane %v919, 7
        %v1339 = vrot.slane %v920, 7
        %v1340 = vrot.slane %v921, 7
        %v1341 = vrot.slane %v922, 7
        %v1342 = vrot.slane %v923, 7
        %v1343 = vrot.slane %v924, 7
        %v1344 = vrot.slane %v925, 7
        %v1345 = vrot.slane %v926, 7
        %v1346 = vrot.slane %v927, 7
        %v1347 = vrot.slane %v928, 7
        %v1348 = vrot.slane %v929, 7
        %v1349 = vrot.slane %v930, 7
        %v1350 = vrot.slane %v931, 7
        %vm1351 = vcmp.lt.s32.totalorder %v437, 1
        %v1352 = vsel %vm1351, %v1347, %v1349
        %v1353 = vsel %vm1351, %v1348, %v1350
        %v1354 = vsel %vm1351, %v1345, %v1347
        %v1355 = vsel %vm1351, %v1346, %v1348
        %v1356 = vsel %vm1351, %v1343, %v1345
        %v1357 = vsel %vm1351, %v1344, %v1346
        %v1358 = vsel %vm1351, %v1341, %v1343
        %v1359 = vsel %vm1351, %v1342, %v1344
        %v1360 = vsel %vm1351, %v1339, %v1341
        %v1361 = vsel %vm1351, %v1340, %v1342
        %v1362 = vsel %vm1351, %v1337, %v1339
        %v1363 = vsel %vm1351, %v1338, %v1340
        %v1364 = vsel %vm1351, %v1335, %v1337
        %v1365 = vsel %vm1351, %v1336, %v1338
        %v1366 = vsel %vm1351, %v1333, %v1335
        %v1367 = vsel %vm1351, %v1334, %v1336
        %v1368 = vsel %vm1351, %v1331, %v1333
        %v1369 = vsel %vm1351, %v1332, %v1334
        %v1370 = vsel %vm1351, %v1329, %v1331
        %v1371 = vsel %vm1351, %v1330, %v1332
        %v1372 = vsel %vm1351, %v1327, %v1329
        %v1373 = vsel %vm1351, %v1328, %v1330
        %v1374 = vsel %vm1351, %v1325, %v1327
        %v1375 = vsel %vm1351, %v1326, %v1328
        %v1376 = vsel %vm1351, %v1323, %v1325
        %v1377 = vsel %vm1351, %v1324, %v1326
        %v1378 = vsel %vm1351, %v1321, %v1323
        %v1379 = vsel %vm1351, %v1322, %v1324
        %v1380 = vsel %vm1351, %v1319, %v1321
        %v1381 = vsel %vm1351, %v1320, %v1322
        %v1382 = vsel %vm1351, %v1317, %v1319
        %v1383 = vsel %vm1351, %v1318, %v1320
        %v1384 = vsel %vm1351, %v1315, %v1317
        %v1385 = vsel %vm1351, %v1316, %v1318
        %v1386 = vsel %vm1351, %v1313, %v1315
        %v1387 = vsel %vm1351, %v1314, %v1316
        %v1388 = vsel %vm1351, %v1311, %v1313
        %v1389 = vsel %vm1351, %v1312, %v1314
        %v1390 = vsel %vm1351, %v1309, %v1311
        %v1391 = vsel %vm1351, %v1310, %v1312
        %v1392 = vsel %vm1351, %v1307, %v1309
        %v1393 = vsel %vm1351, %v1308, %v1310
        %v1394 = vsel %vm1351, %v1305, %v1307
        %v1395 = vsel %vm1351, %v1306, %v1308
        %v1396 = vsel %vm1351, %v1303, %v1305
        %v1397 = vsel %vm1351, %v1304, %v1306
        %v1398 = vsel %vm1351, %v1301, %v1303
        %v1399 = vsel %vm1351, %v1302, %v1304
        %v1400 = vsel %vm1351, %v1299, %v1301
        %v1401 = vsel %vm1351, %v1300, %v1302
        %v1402 = vsel %vm1351, %v1297, %v1299
        %v1403 = vsel %vm1351, %v1298, %v1300
        %v1404 = vsel %vm1351, %v1295, %v1297
        %v1405 = vsel %vm1351, %v1296, %v1298
        %v1406 = vsel %vm1351, %v1293, %v1295
        %v1407 = vsel %vm1351, %v1294, %v1296
        %v1408 = vsel %vm1351, %v1291, %v1293
        %v1409 = vsel %vm1351, %v1292, %v1294
        %v1410 = vsel %vm1351, %v1289, %v1291
        %v1411 = vsel %vm1351, %v1290, %v1292
        %v1412 = vsel %vm1351, %v1287, %v1289
        %v1413 = vsel %vm1351, %v1288, %v1290
        %v1414 = vsel %vm1351, %v1285, %v1287
        %v1415 = vsel %vm1351, %v1286, %v1288
        %v1416 = vsel %vm1351, %v1283, %v1285
        %v1417 = vsel %vm1351, %v1284, %v1286
        %v1418 = vsel %vm1351, %v1281, %v1283
        %v1419 = vsel %vm1351, %v1282, %v1284
        %v1420 = vsel %vm1351, %v1279, %v1281
        %v1421 = vsel %vm1351, %v1280, %v1282
        %v1422 = vsel %vm1351, %v1277, %v1279
        %v1423 = vsel %vm1351, %v1278, %v1280
        %v1424 = vsel %vm1351, %v1275, %v1277
        %v1425 = vsel %vm1351, %v1276, %v1278
        %v1426 = vsel %vm1351, %v1273, %v1275
        %v1427 = vsel %vm1351, %v1274, %v1276
        %v1428 = vsel %vm1351, %v1271, %v1273
        %v1429 = vsel %vm1351, %v1272, %v1274
        %v1430 = vsel %vm1351, %v1269, %v1271
        %v1431 = vsel %vm1351, %v1270, %v1272
        %v1432 = vsel %vm1351, %v1267, %v1269
        %v1433 = vsel %vm1351, %v1268, %v1270
        %v1434 = vsel %vm1351, %v1265, %v1267
        %v1435 = vsel %vm1351, %v1266, %v1268
        %v1436 = vsel %vm1351, %v1263, %v1265
        %v1437 = vsel %vm1351, %v1264, %v1266
        %v1438 = vsel %vm1351, %v1261, %v1263
        %v1439 = vsel %vm1351, %v1262, %v1264
        %v1440 = vsel %vm1351, %v1259, %v1261
        %v1441 = vsel %vm1351, %v1260, %v1262
        %v1442 = vsel %vm1351, %v1257, %v1259
        %v1443 = vsel %vm1351, %v1258, %v1260
        %v1444 = vsel %vm1351, %v1255, %v1257
        %v1445 = vsel %vm1351, %v1256, %v1258
        %v1446 = vsel %vm1351, %v1253, %v1255
        %v1447 = vsel %vm1351, %v1254, %v1256
        %v1448 = vsel %vm1351, %v1251, %v1253
        %v1449 = vsel %vm1351, %v1252, %v1254
        %v1450 = vsel %vm1351, %v1249, %v1251
        %v1451 = vsel %vm1351, %v1250, %v1252
        %v1452 = vsel %vm1351, %v1247, %v1249
        %v1453 = vsel %vm1351, %v1248, %v1250
        %v1454 = vsel %vm1351, %v1245, %v1247
        %v1455 = vsel %vm1351, %v1246, %v1248
        %v1456 = vsel %vm1351, %v1243, %v1245
        %v1457 = vsel %vm1351, %v1244, %v1246
        %v1458 = vsel %vm1351, %v1241, %v1243
        %v1459 = vsel %vm1351, %v1242, %v1244
        %v1460 = vsel %vm1351, %v1239, %v1241
        %v1461 = vsel %vm1351, %v1240, %v1242
        %v1462 = vsel %vm1351, %v1237, %v1239
        %v1463 = vsel %vm1351, %v1238, %v1240
        %v1464 = vsel %vm1351, %v1235, %v1237
        %v1465 = vsel %vm1351, %v1236, %v1238
        %v1466 = vsel %vm1351, %v1233, %v1235
        %v1467 = vsel %vm1351, %v1234, %v1236
        %v1468 = vsel %vm1351, %v1231, %v1233
        %v1469 = vsel %vm1351, %v1232, %v1234
        %v1470 = vsel %vm1351, %v1229, %v1231
        %v1471 = vsel %vm1351, %v1230, %v1232
        %v1472 = vsel %vm1351, %v1227, %v1229
        %v1473 = vsel %vm1351, %v1228, %v1230
        %v1474 = vsel %vm1351, %v1225, %v1227
        %v1475 = vsel %vm1351, %v1226, %v1228
        %v1476 = vsel %vm1351, %v1223, %v1225
        %v1477 = vsel %vm1351, %v1224, %v1226
        %v1478 = vsel %vm1351, %v1221, %v1223
        %v1479 = vsel %vm1351, %v1222, %v1224
        %v1480 = vsel %vm1351, %v1219, %v1221
        %v1481 = vsel %vm1351, %v1220, %v1222
        %v1482 = vsel %vm1351, %v1217, %v1219
        %v1483 = vsel %vm1351, %v1218, %v1220
        %v1484 = vsel %vm1351, %v1215, %v1217
        %v1485 = vsel %vm1351, %v1216, %v1218
        %v1486 = vsel %vm1351, %v1213, %v1215
        %v1487 = vsel %vm1351, %v1214, %v1216
        %v1488 = vsel %vm1351, %v1211, %v1213
        %v1489 = vsel %vm1351, %v1212, %v1214
        %v1490 = vsel %vm1351, %v1209, %v1211
        %v1491 = vsel %vm1351, %v1210, %v1212
        %v1492 = vsel %vm1351, %v1207, %v1209
        %v1493 = vsel %vm1351, %v1208, %v1210
        %v1494 = vsel %vm1351, %v1205, %v1207
        %v1495 = vsel %vm1351, %v1206, %v1208
        %v1496 = vsel %vm1351, %v1203, %v1205
        %v1497 = vsel %vm1351, %v1204, %v1206
        %v1498 = vsel %vm1351, %v1201, %v1203
        %v1499 = vsel %vm1351, %v1202, %v1204
        %v1500 = vsel %vm1351, %v1199, %v1201
        %v1501 = vsel %vm1351, %v1200, %v1202
        %v1502 = vsel %vm1351, %v1197, %v1199
        %v1503 = vsel %vm1351, %v1198, %v1200
        %v1504 = vsel %vm1351, %v1195, %v1197
        %v1505 = vsel %vm1351, %v1196, %v1198
        %v1506 = vsel %vm1351, %v1193, %v1195
        %v1507 = vsel %vm1351, %v1194, %v1196
        %v1508 = vsel %vm1351, %v1191, %v1193
        %v1509 = vsel %vm1351, %v1192, %v1194
        %v1510 = vsel %vm1351, %v1189, %v1191
        %v1511 = vsel %vm1351, %v1190, %v1192
        %v1512 = vsel %vm1351, %v1187, %v1189
        %v1513 = vsel %vm1351, %v1188, %v1190
        %v1514 = vsel %vm1351, %v1185, %v1187
        %v1515 = vsel %vm1351, %v1186, %v1188
        %v1516 = vsel %vm1351, %v1183, %v1185
        %v1517 = vsel %vm1351, %v1184, %v1186
        %v1518 = vsel %vm1351, %v1181, %v1183
        %v1519 = vsel %vm1351, %v1182, %v1184
        %v1520 = vsel %vm1351, %v1179, %v1181
        %v1521 = vsel %vm1351, %v1180, %v1182
        %v1522 = vsel %vm1351, %v1177, %v1179
        %v1523 = vsel %vm1351, %v1178, %v1180
        %v1524 = vsel %vm1351, %v1175, %v1177
        %v1525 = vsel %vm1351, %v1176, %v1178
        %v1526 = vsel %vm1351, %v1173, %v1175
        %v1527 = vsel %vm1351, %v1174, %v1176
        %v1528 = vsel %vm1351, %v1171, %v1173
        %v1529 = vsel %vm1351, %v1172, %v1174
        %v1530 = vsel %vm1351, %v1169, %v1171
        %v1531 = vsel %vm1351, %v1170, %v1172
        %v1532 = vsel %vm1351, %v1167, %v1169
        %v1533 = vsel %vm1351, %v1168, %v1170
        %v1534 = vsel %vm1351, %v1165, %v1167
        %v1535 = vsel %vm1351, %v1166, %v1168
        %v1536 = vsel %vm1351, %v1163, %v1165
        %v1537 = vsel %vm1351, %v1164, %v1166
        %v1538 = vsel %vm1351, %v1161, %v1163
        %v1539 = vsel %vm1351, %v1162, %v1164
        %v1540 = vsel %vm1351, %v1159, %v1161
        %v1541 = vsel %vm1351, %v1160, %v1162
        %v1542 = vsel %vm1351, %v1349, %v1159
        %v1543 = vsel %vm1351, %v1350, %v1160
        %v1545 = vlaneseq
        %v1546 = vshrl.u32 %v1545, 7
        %v1547 = vsub.s32 0, %v1546
        %v1548 = vrot.slane %v1158, %v1547
        %v1549 = vlaneseq
        %v1550 = vshrl.u32 %v1549, 7
        %v1551 = vsub.s32 1, %v1550
        %v1552 = vrot.slane %v1158, %v1551
        %v1555 = vmul.f32 %v1542, %v1548
        %v1556 = vmul.f32 %v1543, %v1552
        %v1557 = vmul.f32 %v1540, %v1548
        %v1558 = vmul.f32 %v1541, %v1552
        %v1559 = vmul.f32 %v1538, %v1548
        %v1560 = vmul.f32 %v1539, %v1552
        %v1561 = vmul.f32 %v1536, %v1548
        %v1562 = vmul.f32 %v1537, %v1552
        %v1563 = vmul.f32 %v1534, %v1548
        %v1564 = vmul.f32 %v1535, %v1552
        %v1565 = vmul.f32 %v1532, %v1548
        %v1566 = vmul.f32 %v1533, %v1552
        %v1567 = vmul.f32 %v1530, %v1548
        %v1568 = vmul.f32 %v1531, %v1552
        %v1569 = vmul.f32 %v1528, %v1548
        %v1570 = vmul.f32 %v1529, %v1552
        %v1571 = vmul.f32 %v1526, %v1548
        %v1572 = vmul.f32 %v1527, %v1552
        %v1573 = vmul.f32 %v1524, %v1548
        %v1574 = vmul.f32 %v1525, %v1552
        %v1575 = vmul.f32 %v1522, %v1548
        %v1576 = vmul.f32 %v1523, %v1552
        %v1577 = vmul.f32 %v1520, %v1548
        %v1578 = vmul.f32 %v1521, %v1552
        %v1579 = vmul.f32 %v1518, %v1548
        %v1580 = vmul.f32 %v1519, %v1552
        %v1581 = vmul.f32 %v1516, %v1548
        %v1582 = vmul.f32 %v1517, %v1552
        %v1583 = vmul.f32 %v1514, %v1548
        %v1584 = vmul.f32 %v1515, %v1552
        %v1585 = vmul.f32 %v1512, %v1548
        %v1586 = vmul.f32 %v1513, %v1552
        %v1587 = vmul.f32 %v1510, %v1548
        %v1588 = vmul.f32 %v1511, %v1552
        %v1589 = vmul.f32 %v1508, %v1548
        %v1590 = vmul.f32 %v1509, %v1552
        %v1591 = vmul.f32 %v1506, %v1548
        %v1592 = vmul.f32 %v1507, %v1552
        %v1593 = vmul.f32 %v1504, %v1548
        %v1594 = vmul.f32 %v1505, %v1552
        %v1595 = vmul.f32 %v1502, %v1548
        %v1596 = vmul.f32 %v1503, %v1552
        %v1597 = vmul.f32 %v1500, %v1548
        %v1598 = vmul.f32 %v1501, %v1552
        %v1599 = vmul.f32 %v1498, %v1548
        %v1600 = vmul.f32 %v1499, %v1552
        %v1601 = vmul.f32 %v1496, %v1548
        %v1602 = vmul.f32 %v1497, %v1552
        %v1603 = vmul.f32 %v1494, %v1548
        %v1604 = vmul.f32 %v1495, %v1552
        %v1605 = vmul.f32 %v1492, %v1548
        %v1606 = vmul.f32 %v1493, %v1552
        %v1607 = vmul.f32 %v1490, %v1548
        %v1608 = vmul.f32 %v1491, %v1552
        %v1609 = vmul.f32 %v1488, %v1548
        %v1610 = vmul.f32 %v1489, %v1552
        %v1611 = vmul.f32 %v1486, %v1548
        %v1612 = vmul.f32 %v1487, %v1552
        %v1613 = vmul.f32 %v1484, %v1548
        %v1614 = vmul.f32 %v1485, %v1552
        %v1615 = vmul.f32 %v1482, %v1548
        %v1616 = vmul.f32 %v1483, %v1552
        %v1617 = vmul.f32 %v1480, %v1548
        %v1618 = vmul.f32 %v1481, %v1552
        %v1619 = vmul.f32 %v1478, %v1548
        %v1620 = vmul.f32 %v1479, %v1552
        %v1621 = vmul.f32 %v1476, %v1548
        %v1622 = vmul.f32 %v1477, %v1552
        %v1623 = vmul.f32 %v1474, %v1548
        %v1624 = vmul.f32 %v1475, %v1552
        %v1625 = vmul.f32 %v1472, %v1548
        %v1626 = vmul.f32 %v1473, %v1552
        %v1627 = vmul.f32 %v1470, %v1548
        %v1628 = vmul.f32 %v1471, %v1552
        %v1629 = vmul.f32 %v1468, %v1548
        %v1630 = vmul.f32 %v1469, %v1552
        %v1631 = vmul.f32 %v1466, %v1548
        %v1632 = vmul.f32 %v1467, %v1552
        %v1633 = vmul.f32 %v1464, %v1548
        %v1634 = vmul.f32 %v1465, %v1552
        %v1635 = vmul.f32 %v1462, %v1548
        %v1636 = vmul.f32 %v1463, %v1552
        %v1637 = vmul.f32 %v1460, %v1548
        %v1638 = vmul.f32 %v1461, %v1552
        %v1639 = vmul.f32 %v1458, %v1548
        %v1640 = vmul.f32 %v1459, %v1552
        %v1641 = vmul.f32 %v1456, %v1548
        %v1642 = vmul.f32 %v1457, %v1552
        %v1643 = vmul.f32 %v1454, %v1548
        %v1644 = vmul.f32 %v1455, %v1552
        %v1645 = vmul.f32 %v1452, %v1548
        %v1646 = vmul.f32 %v1453, %v1552
        %v1647 = vmul.f32 %v1450, %v1548
        %v1648 = vmul.f32 %v1451, %v1552
        %v1649 = vmul.f32 %v1448, %v1548
        %v1650 = vmul.f32 %v1449, %v1552
        %v1651 = vmul.f32 %v1446, %v1548
        %v1652 = vmul.f32 %v1447, %v1552
        %v1653 = vmul.f32 %v1444, %v1548
        %v1654 = vmul.f32 %v1445, %v1552
        %v1655 = vmul.f32 %v1442, %v1548
        %v1656 = vmul.f32 %v1443, %v1552
        %v1657 = vmul.f32 %v1440, %v1548
        %v1658 = vmul.f32 %v1441, %v1552
        %v1659 = vmul.f32 %v1438, %v1548
        %v1660 = vmul.f32 %v1439, %v1552
        %v1661 = vmul.f32 %v1436, %v1548
        %v1662 = vmul.f32 %v1437, %v1552
        %v1663 = vmul.f32 %v1434, %v1548
        %v1664 = vmul.f32 %v1435, %v1552
        %v1665 = vmul.f32 %v1432, %v1548
        %v1666 = vmul.f32 %v1433, %v1552
        %v1667 = vmul.f32 %v1430, %v1548
        %v1668 = vmul.f32 %v1431, %v1552
        %v1669 = vmul.f32 %v1428, %v1548
        %v1670 = vmul.f32 %v1429, %v1552
        %v1671 = vmul.f32 %v1426, %v1548
        %v1672 = vmul.f32 %v1427, %v1552
        %v1673 = vmul.f32 %v1424, %v1548
        %v1674 = vmul.f32 %v1425, %v1552
        %v1675 = vmul.f32 %v1422, %v1548
        %v1676 = vmul.f32 %v1423, %v1552
        %v1677 = vmul.f32 %v1420, %v1548
        %v1678 = vmul.f32 %v1421, %v1552
        %v1679 = vmul.f32 %v1418, %v1548
        %v1680 = vmul.f32 %v1419, %v1552
        %v1681 = vmul.f32 %v1416, %v1548
        %v1682 = vmul.f32 %v1417, %v1552
        %v1683 = vmul.f32 %v1414, %v1548
        %v1684 = vmul.f32 %v1415, %v1552
        %v1685 = vmul.f32 %v1412, %v1548
        %v1686 = vmul.f32 %v1413, %v1552
        %v1687 = vmul.f32 %v1410, %v1548
        %v1688 = vmul.f32 %v1411, %v1552
        %v1689 = vmul.f32 %v1408, %v1548
        %v1690 = vmul.f32 %v1409, %v1552
        %v1691 = vmul.f32 %v1406, %v1548
        %v1692 = vmul.f32 %v1407, %v1552
        %v1693 = vmul.f32 %v1404, %v1548
        %v1694 = vmul.f32 %v1405, %v1552
        %v1695 = vmul.f32 %v1402, %v1548
        %v1696 = vmul.f32 %v1403, %v1552
        %v1697 = vmul.f32 %v1400, %v1548
        %v1698 = vmul.f32 %v1401, %v1552
        %v1699 = vmul.f32 %v1398, %v1548
        %v1700 = vmul.f32 %v1399, %v1552
        %v1701 = vmul.f32 %v1396, %v1548
        %v1702 = vmul.f32 %v1397, %v1552
        %v1703 = vmul.f32 %v1394, %v1548
        %v1704 = vmul.f32 %v1395, %v1552
        %v1705 = vmul.f32 %v1392, %v1548
        %v1706 = vmul.f32 %v1393, %v1552
        %v1707 = vmul.f32 %v1390, %v1548
        %v1708 = vmul.f32 %v1391, %v1552
        %v1709 = vmul.f32 %v1388, %v1548
        %v1710 = vmul.f32 %v1389, %v1552
        %v1711 = vmul.f32 %v1386, %v1548
        %v1712 = vmul.f32 %v1387, %v1552
        %v1713 = vmul.f32 %v1384, %v1548
        %v1714 = vmul.f32 %v1385, %v1552
        %v1715 = vmul.f32 %v1382, %v1548
        %v1716 = vmul.f32 %v1383, %v1552
        %v1717 = vmul.f32 %v1380, %v1548
        %v1718 = vmul.f32 %v1381, %v1552
        %v1719 = vmul.f32 %v1378, %v1548
        %v1720 = vmul.f32 %v1379, %v1552
        %v1721 = vmul.f32 %v1376, %v1548
        %v1722 = vmul.f32 %v1377, %v1552
        %v1723 = vmul.f32 %v1374, %v1548
        %v1724 = vmul.f32 %v1375, %v1552
        %v1725 = vmul.f32 %v1372, %v1548
        %v1726 = vmul.f32 %v1373, %v1552
        %v1727 = vmul.f32 %v1370, %v1548
        %v1728 = vmul.f32 %v1371, %v1552
        %v1729 = vmul.f32 %v1368, %v1548
        %v1730 = vmul.f32 %v1369, %v1552
        %v1731 = vmul.f32 %v1366, %v1548
        %v1732 = vmul.f32 %v1367, %v1552
        %v1733 = vmul.f32 %v1364, %v1548
        %v1734 = vmul.f32 %v1365, %v1552
        %v1735 = vmul.f32 %v1362, %v1548
        %v1736 = vmul.f32 %v1363, %v1552
        %v1737 = vmul.f32 %v1360, %v1548
        %v1738 = vmul.f32 %v1361, %v1552
        %v1739 = vmul.f32 %v1358, %v1548
        %v1740 = vmul.f32 %v1359, %v1552
        %v1741 = vmul.f32 %v1356, %v1548
        %v1742 = vmul.f32 %v1357, %v1552
        %v1743 = vmul.f32 %v1354, %v1548
        %v1744 = vmul.f32 %v1355, %v1552
        %v1745 = vmul.f32 %v1352, %v1548
        %v1746 = vmul.f32 %v1353, %v1552
        %v1747 = vadd.f32 %v960, %v1555
        %v1748 = vadd.f32 %v961, %v1556
        %v1749 = vadd.f32 %v962, %v1557
        %v1750 = vadd.f32 %v963, %v1558
        %v1751 = vadd.f32 %v964, %v1559
        %v1752 = vadd.f32 %v965, %v1560
        %v1753 = vadd.f32 %v966, %v1561
        %v1754 = vadd.f32 %v967, %v1562
        %v1755 = vadd.f32 %v968, %v1563
        %v1756 = vadd.f32 %v969, %v1564
        %v1757 = vadd.f32 %v970, %v1565
        %v1758 = vadd.f32 %v971, %v1566
        %v1759 = vadd.f32 %v972, %v1567
        %v1760 = vadd.f32 %v973, %v1568
        %v1761 = vadd.f32 %v974, %v1569
        %v1762 = vadd.f32 %v975, %v1570
        %v1763 = vadd.f32 %v976, %v1571
        %v1764 = vadd.f32 %v977, %v1572
        %v1765 = vadd.f32 %v978, %v1573
        %v1766 = vadd.f32 %v979, %v1574
        %v1767 = vadd.f32 %v980, %v1575
        %v1768 = vadd.f32 %v981, %v1576
        %v1769 = vadd.f32 %v982, %v1577
        %v1770 = vadd.f32 %v983, %v1578
        %v1771 = vadd.f32 %v984, %v1579
        %v1772 = vadd.f32 %v985, %v1580
        %v1773 = vadd.f32 %v986, %v1581
        %v1774 = vadd.f32 %v987, %v1582
        %v1775 = vadd.f32 %v988, %v1583
        %v1776 = vadd.f32 %v989, %v1584
        %v1777 = vadd.f32 %v990, %v1585
        %v1778 = vadd.f32 %v991, %v1586
        %v1779 = vadd.f32 %v992, %v1587
        %v1780 = vadd.f32 %v993, %v1588
        %v1781 = vadd.f32 %v994, %v1589
        %v1782 = vadd.f32 %v995, %v1590
        %v1783 = vadd.f32 %v996, %v1591
        %v1784 = vadd.f32 %v997, %v1592
        %v1785 = vadd.f32 %v998, %v1593
        %v1786 = vadd.f32 %v999, %v1594
        %v1787 = vadd.f32 %v1000, %v1595
        %v1788 = vadd.f32 %v1001, %v1596
        %v1789 = vadd.f32 %v1002, %v1597
        %v1790 = vadd.f32 %v1003, %v1598
        %v1791 = vadd.f32 %v1004, %v1599
        %v1792 = vadd.f32 %v1005, %v1600
        %v1793 = vadd.f32 %v1006, %v1601
        %v1794 = vadd.f32 %v1007, %v1602
        %v1795 = vadd.f32 %v1008, %v1603
        %v1796 = vadd.f32 %v1009, %v1604
        %v1797 = vadd.f32 %v1010, %v1605
        %v1798 = vadd.f32 %v1011, %v1606
        %v1799 = vadd.f32 %v1012, %v1607
        %v1800 = vadd.f32 %v1013, %v1608
        %v1801 = vadd.f32 %v1014, %v1609
        %v1802 = vadd.f32 %v1015, %v1610
        %v1803 = vadd.f32 %v1016, %v1611
        %v1804 = vadd.f32 %v1017, %v1612
        %v1805 = vadd.f32 %v1018, %v1613
        %v1806 = vadd.f32 %v1019, %v1614
        %v1807 = vadd.f32 %v1020, %v1615
        %v1808 = vadd.f32 %v1021, %v1616
        %v1809 = vadd.f32 %v1022, %v1617
        %v1810 = vadd.f32 %v1023, %v1618
        %v1811 = vadd.f32 %v1024, %v1619
        %v1812 = vadd.f32 %v1025, %v1620
        %v1813 = vadd.f32 %v1026, %v1621
        %v1814 = vadd.f32 %v1027, %v1622
        %v1815 = vadd.f32 %v1028, %v1623
        %v1816 = vadd.f32 %v1029, %v1624
        %v1817 = vadd.f32 %v1030, %v1625
        %v1818 = vadd.f32 %v1031, %v1626
        %v1819 = vadd.f32 %v1032, %v1627
        %v1820 = vadd.f32 %v1033, %v1628
        %v1821 = vadd.f32 %v1034, %v1629
        %v1822 = vadd.f32 %v1035, %v1630
        %v1823 = vadd.f32 %v1036, %v1631
        %v1824 = vadd.f32 %v1037, %v1632
        %v1825 = vadd.f32 %v1038, %v1633
        %v1826 = vadd.f32 %v1039, %v1634
        %v1827 = vadd.f32 %v1040, %v1635
        %v1828 = vadd.f32 %v1041, %v1636
        %v1829 = vadd.f32 %v1042, %v1637
        %v1830 = vadd.f32 %v1043, %v1638
        %v1831 = vadd.f32 %v1044, %v1639
        %v1832 = vadd.f32 %v1045, %v1640
        %v1833 = vadd.f32 %v1046, %v1641
        %v1834 = vadd.f32 %v1047, %v1642
        %v1835 = vadd.f32 %v1048, %v1643
        %v1836 = vadd.f32 %v1049, %v1644
        %v1837 = vadd.f32 %v1050, %v1645
        %v1838 = vadd.f32 %v1051, %v1646
        %v1839 = vadd.f32 %v1052, %v1647
        %v1840 = vadd.f32 %v1053, %v1648
        %v1841 = vadd.f32 %v1054, %v1649
        %v1842 = vadd.f32 %v1055, %v1650
        %v1843 = vadd.f32 %v1056, %v1651
        %v1844 = vadd.f32 %v1057, %v1652
        %v1845 = vadd.f32 %v1058, %v1653
        %v1846 = vadd.f32 %v1059, %v1654
        %v1847 = vadd.f32 %v1060, %v1655
        %v1848 = vadd.f32 %v1061, %v1656
        %v1849 = vadd.f32 %v1062, %v1657
        %v1850 = vadd.f32 %v1063, %v1658
        %v1851 = vadd.f32 %v1064, %v1659
        %v1852 = vadd.f32 %v1065, %v1660
        %v1853 = vadd.f32 %v1066, %v1661
        %v1854 = vadd.f32 %v1067, %v1662
        %v1855 = vadd.f32 %v1068, %v1663
        %v1856 = vadd.f32 %v1069, %v1664
        %v1857 = vadd.f32 %v1070, %v1665
        %v1858 = vadd.f32 %v1071, %v1666
        %v1859 = vadd.f32 %v1072, %v1667
        %v1860 = vadd.f32 %v1073, %v1668
        %v1861 = vadd.f32 %v1074, %v1669
        %v1862 = vadd.f32 %v1075, %v1670
        %v1863 = vadd.f32 %v1076, %v1671
        %v1864 = vadd.f32 %v1077, %v1672
        %v1865 = vadd.f32 %v1078, %v1673
        %v1866 = vadd.f32 %v1079, %v1674
        %v1867 = vadd.f32 %v1080, %v1675
        %v1868 = vadd.f32 %v1081, %v1676
        %v1869 = vadd.f32 %v1082, %v1677
        %v1870 = vadd.f32 %v1083, %v1678
        %v1871 = vadd.f32 %v1084, %v1679
        %v1872 = vadd.f32 %v1085, %v1680
        %v1873 = vadd.f32 %v1086, %v1681
        %v1874 = vadd.f32 %v1087, %v1682
        %v1875 = vadd.f32 %v1088, %v1683
        %v1876 = vadd.f32 %v1089, %v1684
        %v1877 = vadd.f32 %v1090, %v1685
        %v1878 = vadd.f32 %v1091, %v1686
        %v1879 = vadd.f32 %v1092, %v1687
        %v1880 = vadd.f32 %v1093, %v1688
        %v1881 = vadd.f32 %v1094, %v1689
        %v1882 = vadd.f32 %v1095, %v1690
        %v1883 = vadd.f32 %v1096, %v1691
        %v1884 = vadd.f32 %v1097, %v1692
        %v1885 = vadd.f32 %v1098, %v1693
        %v1886 = vadd.f32 %v1099, %v1694
        %v1887 = vadd.f32 %v1100, %v1695
        %v1888 = vadd.f32 %v1101, %v1696
        %v1889 = vadd.f32 %v1102, %v1697
        %v1890 = vadd.f32 %v1103, %v1698
        %v1891 = vadd.f32 %v1104, %v1699
        %v1892 = vadd.f32 %v1105, %v1700
        %v1893 = vadd.f32 %v1106, %v1701
        %v1894 = vadd.f32 %v1107, %v1702
        %v1895 = vadd.f32 %v1108, %v1703
        %v1896 = vadd.f32 %v1109, %v1704
        %v1897 = vadd.f32 %v1110, %v1705
        %v1898 = vadd.f32 %v1111, %v1706
        %v1899 = vadd.f32 %v1112, %v1707
        %v1900 = vadd.f32 %v1113, %v1708
        %v1901 = vadd.f32 %v1114, %v1709
        %v1902 = vadd.f32 %v1115, %v1710
        %v1903 = vadd.f32 %v1116, %v1711
        %v1904 = vadd.f32 %v1117, %v1712
        %v1905 = vadd.f32 %v1118, %v1713
        %v1906 = vadd.f32 %v1119, %v1714
        %v1907 = vadd.f32 %v1120, %v1715
        %v1908 = vadd.f32 %v1121, %v1716
        %v1909 = vadd.f32 %v1122, %v1717
        %v1910 = vadd.f32 %v1123, %v1718
        %v1911 = vadd.f32 %v1124, %v1719
        %v1912 = vadd.f32 %v1125, %v1720
        %v1913 = vadd.f32 %v1126, %v1721
        %v1914 = vadd.f32 %v1127, %v1722
        %v1915 = vadd.f32 %v1128, %v1723
        %v1916 = vadd.f32 %v1129, %v1724
        %v1917 = vadd.f32 %v1130, %v1725
        %v1918 = vadd.f32 %v1131, %v1726
        %v1919 = vadd.f32 %v1132, %v1727
        %v1920 = vadd.f32 %v1133, %v1728
        %v1921 = vadd.f32 %v1134, %v1729
        %v1922 = vadd.f32 %v1135, %v1730
        %v1923 = vadd.f32 %v1136, %v1731
        %v1924 = vadd.f32 %v1137, %v1732
        %v1925 = vadd.f32 %v1138, %v1733
        %v1926 = vadd.f32 %v1139, %v1734
        %v1927 = vadd.f32 %v1140, %v1735
        %v1928 = vadd.f32 %v1141, %v1736
        %v1929 = vadd.f32 %v1142, %v1737
        %v1930 = vadd.f32 %v1143, %v1738
        %v1931 = vadd.f32 %v1144, %v1739
        %v1932 = vadd.f32 %v1145, %v1740
        %v1933 = vadd.f32 %v1146, %v1741
        %v1934 = vadd.f32 %v1147, %v1742
        %v1935 = vadd.f32 %v1148, %v1743
        %v1936 = vadd.f32 %v1149, %v1744
        %v1937 = vadd.f32 %v1150, %v1745
        %v1938 = vadd.f32 %v1151, %v1746
        %v1939 = vadd.s32 %v434, 1
        %vm1940 = vcmp.ge.s32.totalorder %v1939, 0
        %vm1941 = vmand %vm937, %vm1940
        %vm1942 = vcmp.lt.s32.totalorder %v1939, 8
        %vm1943 = vmand %vm1941, %vm1942
        %v1944 = vmul.f32 %v934, %v431
        %vm1945 = vmand %vm1943, %vm943
        %vm1946 = vmand %vm1945, %vm945
        %v1947 = vmul.f32 %v1944, %v932
        %v1948 = vsel %vm1946, %v1947, 0.0
        %v1949 = vrot.slane %v740, 6
        %v1950 = vrot.slane %v741, 6
        %v1951 = vrot.slane %v742, 6
        %v1952 = vrot.slane %v743, 6
        %v1953 = vrot.slane %v744, 6
        %v1954 = vrot.slane %v745, 6
        %v1955 = vrot.slane %v746, 6
        %v1956 = vrot.slane %v747, 6
        %v1957 = vrot.slane %v748, 6
        %v1958 = vrot.slane %v749, 6
        %v1959 = vrot.slane %v750, 6
        %v1960 = vrot.slane %v751, 6
        %v1961 = vrot.slane %v752, 6
        %v1962 = vrot.slane %v753, 6
        %v1963 = vrot.slane %v754, 6
        %v1964 = vrot.slane %v755, 6
        %v1965 = vrot.slane %v756, 6
        %v1966 = vrot.slane %v757, 6
        %v1967 = vrot.slane %v758, 6
        %v1968 = vrot.slane %v759, 6
        %v1969 = vrot.slane %v760, 6
        %v1970 = vrot.slane %v761, 6
        %v1971 = vrot.slane %v762, 6
        %v1972 = vrot.slane %v763, 6
        %v1973 = vrot.slane %v764, 6
        %v1974 = vrot.slane %v765, 6
        %v1975 = vrot.slane %v766, 6
        %v1976 = vrot.slane %v767, 6
        %v1977 = vrot.slane %v768, 6
        %v1978 = vrot.slane %v769, 6
        %v1979 = vrot.slane %v770, 6
        %v1980 = vrot.slane %v771, 6
        %v1981 = vrot.slane %v772, 6
        %v1982 = vrot.slane %v773, 6
        %v1983 = vrot.slane %v774, 6
        %v1984 = vrot.slane %v775, 6
        %v1985 = vrot.slane %v776, 6
        %v1986 = vrot.slane %v777, 6
        %v1987 = vrot.slane %v778, 6
        %v1988 = vrot.slane %v779, 6
        %v1989 = vrot.slane %v780, 6
        %v1990 = vrot.slane %v781, 6
        %v1991 = vrot.slane %v782, 6
        %v1992 = vrot.slane %v783, 6
        %v1993 = vrot.slane %v784, 6
        %v1994 = vrot.slane %v785, 6
        %v1995 = vrot.slane %v786, 6
        %v1996 = vrot.slane %v787, 6
        %v1997 = vrot.slane %v788, 6
        %v1998 = vrot.slane %v789, 6
        %v1999 = vrot.slane %v790, 6
        %v2000 = vrot.slane %v791, 6
        %v2001 = vrot.slane %v792, 6
        %v2002 = vrot.slane %v793, 6
        %v2003 = vrot.slane %v794, 6
        %v2004 = vrot.slane %v795, 6
        %v2005 = vrot.slane %v796, 6
        %v2006 = vrot.slane %v797, 6
        %v2007 = vrot.slane %v798, 6
        %v2008 = vrot.slane %v799, 6
        %v2009 = vrot.slane %v800, 6
        %v2010 = vrot.slane %v801, 6
        %v2011 = vrot.slane %v802, 6
        %v2012 = vrot.slane %v803, 6
        %v2013 = vrot.slane %v804, 6
        %v2014 = vrot.slane %v805, 6
        %v2015 = vrot.slane %v806, 6
        %v2016 = vrot.slane %v807, 6
        %v2017 = vrot.slane %v808, 6
        %v2018 = vrot.slane %v809, 6
        %v2019 = vrot.slane %v810, 6
        %v2020 = vrot.slane %v811, 6
        %v2021 = vrot.slane %v812, 6
        %v2022 = vrot.slane %v813, 6
        %v2023 = vrot.slane %v814, 6
        %v2024 = vrot.slane %v815, 6
        %v2025 = vrot.slane %v816, 6
        %v2026 = vrot.slane %v817, 6
        %v2027 = vrot.slane %v818, 6
        %v2028 = vrot.slane %v819, 6
        %v2029 = vrot.slane %v820, 6
        %v2030 = vrot.slane %v821, 6
        %v2031 = vrot.slane %v822, 6
        %v2032 = vrot.slane %v823, 6
        %v2033 = vrot.slane %v824, 6
        %v2034 = vrot.slane %v825, 6
        %v2035 = vrot.slane %v826, 6
        %v2036 = vrot.slane %v827, 6
        %v2037 = vrot.slane %v828, 6
        %v2038 = vrot.slane %v829, 6
        %v2039 = vrot.slane %v830, 6
        %v2040 = vrot.slane %v831, 6
        %v2041 = vrot.slane %v832, 6
        %v2042 = vrot.slane %v833, 6
        %v2043 = vrot.slane %v834, 6
        %v2044 = vrot.slane %v835, 6
        %v2045 = vrot.slane %v836, 6
        %v2046 = vrot.slane %v837, 6
        %v2047 = vrot.slane %v838, 6
        %v2048 = vrot.slane %v839, 6
        %v2049 = vrot.slane %v840, 6
        %v2050 = vrot.slane %v841, 6
        %v2051 = vrot.slane %v842, 6
        %v2052 = vrot.slane %v843, 6
        %v2053 = vrot.slane %v844, 6
        %v2054 = vrot.slane %v845, 6
        %v2055 = vrot.slane %v846, 6
        %v2056 = vrot.slane %v847, 6
        %v2057 = vrot.slane %v848, 6
        %v2058 = vrot.slane %v849, 6
        %v2059 = vrot.slane %v850, 6
        %v2060 = vrot.slane %v851, 6
        %v2061 = vrot.slane %v852, 6
        %v2062 = vrot.slane %v853, 6
        %v2063 = vrot.slane %v854, 6
        %v2064 = vrot.slane %v855, 6
        %v2065 = vrot.slane %v856, 6
        %v2066 = vrot.slane %v857, 6
        %v2067 = vrot.slane %v858, 6
        %v2068 = vrot.slane %v859, 6
        %v2069 = vrot.slane %v860, 6
        %v2070 = vrot.slane %v861, 6
        %v2071 = vrot.slane %v862, 6
        %v2072 = vrot.slane %v863, 6
        %v2073 = vrot.slane %v864, 6
        %v2074 = vrot.slane %v865, 6
        %v2075 = vrot.slane %v866, 6
        %v2076 = vrot.slane %v867, 6
        %v2077 = vrot.slane %v868, 6
        %v2078 = vrot.slane %v869, 6
        %v2079 = vrot.slane %v870, 6
        %v2080 = vrot.slane %v871, 6
        %v2081 = vrot.slane %v872, 6
        %v2082 = vrot.slane %v873, 6
        %v2083 = vrot.slane %v874, 6
        %v2084 = vrot.slane %v875, 6
        %v2085 = vrot.slane %v876, 6
        %v2086 = vrot.slane %v877, 6
        %v2087 = vrot.slane %v878, 6
        %v2088 = vrot.slane %v879, 6
        %v2089 = vrot.slane %v880, 6
        %v2090 = vrot.slane %v881, 6
        %v2091 = vrot.slane %v882, 6
        %v2092 = vrot.slane %v883, 6
        %v2093 = vrot.slane %v884, 6
        %v2094 = vrot.slane %v885, 6
        %v2095 = vrot.slane %v886, 6
        %v2096 = vrot.slane %v887, 6
        %v2097 = vrot.slane %v888, 6
        %v2098 = vrot.slane %v889, 6
        %v2099 = vrot.slane %v890, 6
        %v2100 = vrot.slane %v891, 6
        %v2101 = vrot.slane %v892, 6
        %v2102 = vrot.slane %v893, 6
        %v2103 = vrot.slane %v894, 6
        %v2104 = vrot.slane %v895, 6
        %v2105 = vrot.slane %v896, 6
        %v2106 = vrot.slane %v897, 6
        %v2107 = vrot.slane %v898, 6
        %v2108 = vrot.slane %v899, 6
        %v2109 = vrot.slane %v900, 6
        %v2110 = vrot.slane %v901, 6
        %v2111 = vrot.slane %v902, 6
        %v2112 = vrot.slane %v903, 6
        %v2113 = vrot.slane %v904, 6
        %v2114 = vrot.slane %v905, 6
        %v2115 = vrot.slane %v906, 6
        %v2116 = vrot.slane %v907, 6
        %v2117 = vrot.slane %v908, 6
        %v2118 = vrot.slane %v909, 6
        %v2119 = vrot.slane %v910, 6
        %v2120 = vrot.slane %v911, 6
        %v2121 = vrot.slane %v912, 6
        %v2122 = vrot.slane %v913, 6
        %v2123 = vrot.slane %v914, 6
        %v2124 = vrot.slane %v915, 6
        %v2125 = vrot.slane %v916, 6
        %v2126 = vrot.slane %v917, 6
        %v2127 = vrot.slane %v918, 6
        %v2128 = vrot.slane %v919, 6
        %v2129 = vrot.slane %v920, 6
        %v2130 = vrot.slane %v921, 6
        %v2131 = vrot.slane %v922, 6
        %v2132 = vrot.slane %v923, 6
        %v2133 = vrot.slane %v924, 6
        %v2134 = vrot.slane %v925, 6
        %v2135 = vrot.slane %v926, 6
        %v2136 = vrot.slane %v927, 6
        %v2137 = vrot.slane %v928, 6
        %v2138 = vrot.slane %v929, 6
        %v2139 = vrot.slane %v930, 6
        %v2140 = vrot.slane %v931, 6
        %vm2141 = vcmp.lt.s32.totalorder %v437, 2
        %v2142 = vsel %vm2141, %v2137, %v2139
        %v2143 = vsel %vm2141, %v2138, %v2140
        %v2144 = vsel %vm2141, %v2135, %v2137
        %v2145 = vsel %vm2141, %v2136, %v2138
        %v2146 = vsel %vm2141, %v2133, %v2135
        %v2147 = vsel %vm2141, %v2134, %v2136
        %v2148 = vsel %vm2141, %v2131, %v2133
        %v2149 = vsel %vm2141, %v2132, %v2134
        %v2150 = vsel %vm2141, %v2129, %v2131
        %v2151 = vsel %vm2141, %v2130, %v2132
        %v2152 = vsel %vm2141, %v2127, %v2129
        %v2153 = vsel %vm2141, %v2128, %v2130
        %v2154 = vsel %vm2141, %v2125, %v2127
        %v2155 = vsel %vm2141, %v2126, %v2128
        %v2156 = vsel %vm2141, %v2123, %v2125
        %v2157 = vsel %vm2141, %v2124, %v2126
        %v2158 = vsel %vm2141, %v2121, %v2123
        %v2159 = vsel %vm2141, %v2122, %v2124
        %v2160 = vsel %vm2141, %v2119, %v2121
        %v2161 = vsel %vm2141, %v2120, %v2122
        %v2162 = vsel %vm2141, %v2117, %v2119
        %v2163 = vsel %vm2141, %v2118, %v2120
        %v2164 = vsel %vm2141, %v2115, %v2117
        %v2165 = vsel %vm2141, %v2116, %v2118
        %v2166 = vsel %vm2141, %v2113, %v2115
        %v2167 = vsel %vm2141, %v2114, %v2116
        %v2168 = vsel %vm2141, %v2111, %v2113
        %v2169 = vsel %vm2141, %v2112, %v2114
        %v2170 = vsel %vm2141, %v2109, %v2111
        %v2171 = vsel %vm2141, %v2110, %v2112
        %v2172 = vsel %vm2141, %v2107, %v2109
        %v2173 = vsel %vm2141, %v2108, %v2110
        %v2174 = vsel %vm2141, %v2105, %v2107
        %v2175 = vsel %vm2141, %v2106, %v2108
        %v2176 = vsel %vm2141, %v2103, %v2105
        %v2177 = vsel %vm2141, %v2104, %v2106
        %v2178 = vsel %vm2141, %v2101, %v2103
        %v2179 = vsel %vm2141, %v2102, %v2104
        %v2180 = vsel %vm2141, %v2099, %v2101
        %v2181 = vsel %vm2141, %v2100, %v2102
        %v2182 = vsel %vm2141, %v2097, %v2099
        %v2183 = vsel %vm2141, %v2098, %v2100
        %v2184 = vsel %vm2141, %v2095, %v2097
        %v2185 = vsel %vm2141, %v2096, %v2098
        %v2186 = vsel %vm2141, %v2093, %v2095
        %v2187 = vsel %vm2141, %v2094, %v2096
        %v2188 = vsel %vm2141, %v2091, %v2093
        %v2189 = vsel %vm2141, %v2092, %v2094
        %v2190 = vsel %vm2141, %v2089, %v2091
        %v2191 = vsel %vm2141, %v2090, %v2092
        %v2192 = vsel %vm2141, %v2087, %v2089
        %v2193 = vsel %vm2141, %v2088, %v2090
        %v2194 = vsel %vm2141, %v2085, %v2087
        %v2195 = vsel %vm2141, %v2086, %v2088
        %v2196 = vsel %vm2141, %v2083, %v2085
        %v2197 = vsel %vm2141, %v2084, %v2086
        %v2198 = vsel %vm2141, %v2081, %v2083
        %v2199 = vsel %vm2141, %v2082, %v2084
        %v2200 = vsel %vm2141, %v2079, %v2081
        %v2201 = vsel %vm2141, %v2080, %v2082
        %v2202 = vsel %vm2141, %v2077, %v2079
        %v2203 = vsel %vm2141, %v2078, %v2080
        %v2204 = vsel %vm2141, %v2075, %v2077
        %v2205 = vsel %vm2141, %v2076, %v2078
        %v2206 = vsel %vm2141, %v2073, %v2075
        %v2207 = vsel %vm2141, %v2074, %v2076
        %v2208 = vsel %vm2141, %v2071, %v2073
        %v2209 = vsel %vm2141, %v2072, %v2074
        %v2210 = vsel %vm2141, %v2069, %v2071
        %v2211 = vsel %vm2141, %v2070, %v2072
        %v2212 = vsel %vm2141, %v2067, %v2069
        %v2213 = vsel %vm2141, %v2068, %v2070
        %v2214 = vsel %vm2141, %v2065, %v2067
        %v2215 = vsel %vm2141, %v2066, %v2068
        %v2216 = vsel %vm2141, %v2063, %v2065
        %v2217 = vsel %vm2141, %v2064, %v2066
        %v2218 = vsel %vm2141, %v2061, %v2063
        %v2219 = vsel %vm2141, %v2062, %v2064
        %v2220 = vsel %vm2141, %v2059, %v2061
        %v2221 = vsel %vm2141, %v2060, %v2062
        %v2222 = vsel %vm2141, %v2057, %v2059
        %v2223 = vsel %vm2141, %v2058, %v2060
        %v2224 = vsel %vm2141, %v2055, %v2057
        %v2225 = vsel %vm2141, %v2056, %v2058
        %v2226 = vsel %vm2141, %v2053, %v2055
        %v2227 = vsel %vm2141, %v2054, %v2056
        %v2228 = vsel %vm2141, %v2051, %v2053
        %v2229 = vsel %vm2141, %v2052, %v2054
        %v2230 = vsel %vm2141, %v2049, %v2051
        %v2231 = vsel %vm2141, %v2050, %v2052
        %v2232 = vsel %vm2141, %v2047, %v2049
        %v2233 = vsel %vm2141, %v2048, %v2050
        %v2234 = vsel %vm2141, %v2045, %v2047
        %v2235 = vsel %vm2141, %v2046, %v2048
        %v2236 = vsel %vm2141, %v2043, %v2045
        %v2237 = vsel %vm2141, %v2044, %v2046
        %v2238 = vsel %vm2141, %v2041, %v2043
        %v2239 = vsel %vm2141, %v2042, %v2044
        %v2240 = vsel %vm2141, %v2039, %v2041
        %v2241 = vsel %vm2141, %v2040, %v2042
        %v2242 = vsel %vm2141, %v2037, %v2039
        %v2243 = vsel %vm2141, %v2038, %v2040
        %v2244 = vsel %vm2141, %v2035, %v2037
        %v2245 = vsel %vm2141, %v2036, %v2038
        %v2246 = vsel %vm2141, %v2033, %v2035
        %v2247 = vsel %vm2141, %v2034, %v2036
        %v2248 = vsel %vm2141, %v2031, %v2033
        %v2249 = vsel %vm2141, %v2032, %v2034
        %v2250 = vsel %vm2141, %v2029, %v2031
        %v2251 = vsel %vm2141, %v2030, %v2032
        %v2252 = vsel %vm2141, %v2027, %v2029
        %v2253 = vsel %vm2141, %v2028, %v2030
        %v2254 = vsel %vm2141, %v2025, %v2027
        %v2255 = vsel %vm2141, %v2026, %v2028
        %v2256 = vsel %vm2141, %v2023, %v2025
        %v2257 = vsel %vm2141, %v2024, %v2026
        %v2258 = vsel %vm2141, %v2021, %v2023
        %v2259 = vsel %vm2141, %v2022, %v2024
        %v2260 = vsel %vm2141, %v2019, %v2021
        %v2261 = vsel %vm2141, %v2020, %v2022
        %v2262 = vsel %vm2141, %v2017, %v2019
        %v2263 = vsel %vm2141, %v2018, %v2020
        %v2264 = vsel %vm2141, %v2015, %v2017
        %v2265 = vsel %vm2141, %v2016, %v2018
        %v2266 = vsel %vm2141, %v2013, %v2015
        %v2267 = vsel %vm2141, %v2014, %v2016
        %v2268 = vsel %vm2141, %v2011, %v2013
        %v2269 = vsel %vm2141, %v2012, %v2014
        %v2270 = vsel %vm2141, %v2009, %v2011
        %v2271 = vsel %vm2141, %v2010, %v2012
        %v2272 = vsel %vm2141, %v2007, %v2009
        %v2273 = vsel %vm2141, %v2008, %v2010
        %v2274 = vsel %vm2141, %v2005, %v2007
        %v2275 = vsel %vm2141, %v2006, %v2008
        %v2276 = vsel %vm2141, %v2003, %v2005
        %v2277 = vsel %vm2141, %v2004, %v2006
        %v2278 = vsel %vm2141, %v2001, %v2003
        %v2279 = vsel %vm2141, %v2002, %v2004
        %v2280 = vsel %vm2141, %v1999, %v2001
        %v2281 = vsel %vm2141, %v2000, %v2002
        %v2282 = vsel %vm2141, %v1997, %v1999
        %v2283 = vsel %vm2141, %v1998, %v2000
        %v2284 = vsel %vm2141, %v1995, %v1997
        %v2285 = vsel %vm2141, %v1996, %v1998
        %v2286 = vsel %vm2141, %v1993, %v1995
        %v2287 = vsel %vm2141, %v1994, %v1996
        %v2288 = vsel %vm2141, %v1991, %v1993
        %v2289 = vsel %vm2141, %v1992, %v1994
        %v2290 = vsel %vm2141, %v1989, %v1991
        %v2291 = vsel %vm2141, %v1990, %v1992
        %v2292 = vsel %vm2141, %v1987, %v1989
        %v2293 = vsel %vm2141, %v1988, %v1990
        %v2294 = vsel %vm2141, %v1985, %v1987
        %v2295 = vsel %vm2141, %v1986, %v1988
        %v2296 = vsel %vm2141, %v1983, %v1985
        %v2297 = vsel %vm2141, %v1984, %v1986
        %v2298 = vsel %vm2141, %v1981, %v1983
        %v2299 = vsel %vm2141, %v1982, %v1984
        %v2300 = vsel %vm2141, %v1979, %v1981
        %v2301 = vsel %vm2141, %v1980, %v1982
        %v2302 = vsel %vm2141, %v1977, %v1979
        %v2303 = vsel %vm2141, %v1978, %v1980
        %v2304 = vsel %vm2141, %v1975, %v1977
        %v2305 = vsel %vm2141, %v1976, %v1978
        %v2306 = vsel %vm2141, %v1973, %v1975
        %v2307 = vsel %vm2141, %v1974, %v1976
        %v2308 = vsel %vm2141, %v1971, %v1973
        %v2309 = vsel %vm2141, %v1972, %v1974
        %v2310 = vsel %vm2141, %v1969, %v1971
        %v2311 = vsel %vm2141, %v1970, %v1972
        %v2312 = vsel %vm2141, %v1967, %v1969
        %v2313 = vsel %vm2141, %v1968, %v1970
        %v2314 = vsel %vm2141, %v1965, %v1967
        %v2315 = vsel %vm2141, %v1966, %v1968
        %v2316 = vsel %vm2141, %v1963, %v1965
        %v2317 = vsel %vm2141, %v1964, %v1966
        %v2318 = vsel %vm2141, %v1961, %v1963
        %v2319 = vsel %vm2141, %v1962, %v1964
        %v2320 = vsel %vm2141, %v1959, %v1961
        %v2321 = vsel %vm2141, %v1960, %v1962
        %v2322 = vsel %vm2141, %v1957, %v1959
        %v2323 = vsel %vm2141, %v1958, %v1960
        %v2324 = vsel %vm2141, %v1955, %v1957
        %v2325 = vsel %vm2141, %v1956, %v1958
        %v2326 = vsel %vm2141, %v1953, %v1955
        %v2327 = vsel %vm2141, %v1954, %v1956
        %v2328 = vsel %vm2141, %v1951, %v1953
        %v2329 = vsel %vm2141, %v1952, %v1954
        %v2330 = vsel %vm2141, %v1949, %v1951
        %v2331 = vsel %vm2141, %v1950, %v1952
        %v2332 = vsel %vm2141, %v2139, %v1949
        %v2333 = vsel %vm2141, %v2140, %v1950
        %v2335 = vlaneseq
        %v2336 = vshrl.u32 %v2335, 7
        %v2337 = vsub.s32 0, %v2336
        %v2338 = vrot.slane %v1948, %v2337
        %v2339 = vlaneseq
        %v2340 = vshrl.u32 %v2339, 7
        %v2341 = vsub.s32 1, %v2340
        %v2342 = vrot.slane %v1948, %v2341
        %v2345 = vmul.f32 %v2142, %v2338
        %v2346 = vmul.f32 %v2143, %v2342
        %v2347 = vmul.f32 %v2332, %v2338
        %v2348 = vmul.f32 %v2333, %v2342
        %v2349 = vmul.f32 %v2330, %v2338
        %v2350 = vmul.f32 %v2331, %v2342
        %v2351 = vmul.f32 %v2328, %v2338
        %v2352 = vmul.f32 %v2329, %v2342
        %v2353 = vmul.f32 %v2326, %v2338
        %v2354 = vmul.f32 %v2327, %v2342
        %v2355 = vmul.f32 %v2324, %v2338
        %v2356 = vmul.f32 %v2325, %v2342
        %v2357 = vmul.f32 %v2322, %v2338
        %v2358 = vmul.f32 %v2323, %v2342
        %v2359 = vmul.f32 %v2320, %v2338
        %v2360 = vmul.f32 %v2321, %v2342
        %v2361 = vmul.f32 %v2318, %v2338
        %v2362 = vmul.f32 %v2319, %v2342
        %v2363 = vmul.f32 %v2316, %v2338
        %v2364 = vmul.f32 %v2317, %v2342
        %v2365 = vmul.f32 %v2314, %v2338
        %v2366 = vmul.f32 %v2315, %v2342
        %v2367 = vmul.f32 %v2312, %v2338
        %v2368 = vmul.f32 %v2313, %v2342
        %v2369 = vmul.f32 %v2310, %v2338
        %v2370 = vmul.f32 %v2311, %v2342
        %v2371 = vmul.f32 %v2308, %v2338
        %v2372 = vmul.f32 %v2309, %v2342
        %v2373 = vmul.f32 %v2306, %v2338
        %v2374 = vmul.f32 %v2307, %v2342
        %v2375 = vmul.f32 %v2304, %v2338
        %v2376 = vmul.f32 %v2305, %v2342
        %v2377 = vmul.f32 %v2302, %v2338
        %v2378 = vmul.f32 %v2303, %v2342
        %v2379 = vmul.f32 %v2300, %v2338
        %v2380 = vmul.f32 %v2301, %v2342
        %v2381 = vmul.f32 %v2298, %v2338
        %v2382 = vmul.f32 %v2299, %v2342
        %v2383 = vmul.f32 %v2296, %v2338
        %v2384 = vmul.f32 %v2297, %v2342
        %v2385 = vmul.f32 %v2294, %v2338
        %v2386 = vmul.f32 %v2295, %v2342
        %v2387 = vmul.f32 %v2292, %v2338
        %v2388 = vmul.f32 %v2293, %v2342
        %v2389 = vmul.f32 %v2290, %v2338
        %v2390 = vmul.f32 %v2291, %v2342
        %v2391 = vmul.f32 %v2288, %v2338
        %v2392 = vmul.f32 %v2289, %v2342
        %v2393 = vmul.f32 %v2286, %v2338
        %v2394 = vmul.f32 %v2287, %v2342
        %v2395 = vmul.f32 %v2284, %v2338
        %v2396 = vmul.f32 %v2285, %v2342
        %v2397 = vmul.f32 %v2282, %v2338
        %v2398 = vmul.f32 %v2283, %v2342
        %v2399 = vmul.f32 %v2280, %v2338
        %v2400 = vmul.f32 %v2281, %v2342
        %v2401 = vmul.f32 %v2278, %v2338
        %v2402 = vmul.f32 %v2279, %v2342
        %v2403 = vmul.f32 %v2276, %v2338
        %v2404 = vmul.f32 %v2277, %v2342
        %v2405 = vmul.f32 %v2274, %v2338
        %v2406 = vmul.f32 %v2275, %v2342
        %v2407 = vmul.f32 %v2272, %v2338
        %v2408 = vmul.f32 %v2273, %v2342
        %v2409 = vmul.f32 %v2270, %v2338
        %v2410 = vmul.f32 %v2271, %v2342
        %v2411 = vmul.f32 %v2268, %v2338
        %v2412 = vmul.f32 %v2269, %v2342
        %v2413 = vmul.f32 %v2266, %v2338
        %v2414 = vmul.f32 %v2267, %v2342
        %v2415 = vmul.f32 %v2264, %v2338
        %v2416 = vmul.f32 %v2265, %v2342
        %v2417 = vmul.f32 %v2262, %v2338
        %v2418 = vmul.f32 %v2263, %v2342
        %v2419 = vmul.f32 %v2260, %v2338
        %v2420 = vmul.f32 %v2261, %v2342
        %v2421 = vmul.f32 %v2258, %v2338
        %v2422 = vmul.f32 %v2259, %v2342
        %v2423 = vmul.f32 %v2256, %v2338
        %v2424 = vmul.f32 %v2257, %v2342
        %v2425 = vmul.f32 %v2254, %v2338
        %v2426 = vmul.f32 %v2255, %v2342
        %v2427 = vmul.f32 %v2252, %v2338
        %v2428 = vmul.f32 %v2253, %v2342
        %v2429 = vmul.f32 %v2250, %v2338
        %v2430 = vmul.f32 %v2251, %v2342
        %v2431 = vmul.f32 %v2248, %v2338
        %v2432 = vmul.f32 %v2249, %v2342
        %v2433 = vmul.f32 %v2246, %v2338
        %v2434 = vmul.f32 %v2247, %v2342
        %v2435 = vmul.f32 %v2244, %v2338
        %v2436 = vmul.f32 %v2245, %v2342
        %v2437 = vmul.f32 %v2242, %v2338
        %v2438 = vmul.f32 %v2243, %v2342
        %v2439 = vmul.f32 %v2240, %v2338
        %v2440 = vmul.f32 %v2241, %v2342
        %v2441 = vmul.f32 %v2238, %v2338
        %v2442 = vmul.f32 %v2239, %v2342
        %v2443 = vmul.f32 %v2236, %v2338
        %v2444 = vmul.f32 %v2237, %v2342
        %v2445 = vmul.f32 %v2234, %v2338
        %v2446 = vmul.f32 %v2235, %v2342
        %v2447 = vmul.f32 %v2232, %v2338
        %v2448 = vmul.f32 %v2233, %v2342
        %v2449 = vmul.f32 %v2230, %v2338
        %v2450 = vmul.f32 %v2231, %v2342
        %v2451 = vmul.f32 %v2228, %v2338
        %v2452 = vmul.f32 %v2229, %v2342
        %v2453 = vmul.f32 %v2226, %v2338
        %v2454 = vmul.f32 %v2227, %v2342
        %v2455 = vmul.f32 %v2224, %v2338
        %v2456 = vmul.f32 %v2225, %v2342
        %v2457 = vmul.f32 %v2222, %v2338
        %v2458 = vmul.f32 %v2223, %v2342
        %v2459 = vmul.f32 %v2220, %v2338
        %v2460 = vmul.f32 %v2221, %v2342
        %v2461 = vmul.f32 %v2218, %v2338
        %v2462 = vmul.f32 %v2219, %v2342
        %v2463 = vmul.f32 %v2216, %v2338
        %v2464 = vmul.f32 %v2217, %v2342
        %v2465 = vmul.f32 %v2214, %v2338
        %v2466 = vmul.f32 %v2215, %v2342
        %v2467 = vmul.f32 %v2212, %v2338
        %v2468 = vmul.f32 %v2213, %v2342
        %v2469 = vmul.f32 %v2210, %v2338
        %v2470 = vmul.f32 %v2211, %v2342
        %v2471 = vmul.f32 %v2208, %v2338
        %v2472 = vmul.f32 %v2209, %v2342
        %v2473 = vmul.f32 %v2206, %v2338
        %v2474 = vmul.f32 %v2207, %v2342
        %v2475 = vmul.f32 %v2204, %v2338
        %v2476 = vmul.f32 %v2205, %v2342
        %v2477 = vmul.f32 %v2202, %v2338
        %v2478 = vmul.f32 %v2203, %v2342
        %v2479 = vmul.f32 %v2200, %v2338
        %v2480 = vmul.f32 %v2201, %v2342
        %v2481 = vmul.f32 %v2198, %v2338
        %v2482 = vmul.f32 %v2199, %v2342
        %v2483 = vmul.f32 %v2196, %v2338
        %v2484 = vmul.f32 %v2197, %v2342
        %v2485 = vmul.f32 %v2194, %v2338
        %v2486 = vmul.f32 %v2195, %v2342
        %v2487 = vmul.f32 %v2192, %v2338
        %v2488 = vmul.f32 %v2193, %v2342
        %v2489 = vmul.f32 %v2190, %v2338
        %v2490 = vmul.f32 %v2191, %v2342
        %v2491 = vmul.f32 %v2188, %v2338
        %v2492 = vmul.f32 %v2189, %v2342
        %v2493 = vmul.f32 %v2186, %v2338
        %v2494 = vmul.f32 %v2187, %v2342
        %v2495 = vmul.f32 %v2184, %v2338
        %v2496 = vmul.f32 %v2185, %v2342
        %v2497 = vmul.f32 %v2182, %v2338
        %v2498 = vmul.f32 %v2183, %v2342
        %v2499 = vmul.f32 %v2180, %v2338
        %v2500 = vmul.f32 %v2181, %v2342
        %v2501 = vmul.f32 %v2178, %v2338
        %v2502 = vmul.f32 %v2179, %v2342
        %v2503 = vmul.f32 %v2176, %v2338
        %v2504 = vmul.f32 %v2177, %v2342
        %v2505 = vmul.f32 %v2174, %v2338
        %v2506 = vmul.f32 %v2175, %v2342
        %v2507 = vmul.f32 %v2172, %v2338
        %v2508 = vmul.f32 %v2173, %v2342
        %v2509 = vmul.f32 %v2170, %v2338
        %v2510 = vmul.f32 %v2171, %v2342
        %v2511 = vmul.f32 %v2168, %v2338
        %v2512 = vmul.f32 %v2169, %v2342
        %v2513 = vmul.f32 %v2166, %v2338
        %v2514 = vmul.f32 %v2167, %v2342
        %v2515 = vmul.f32 %v2164, %v2338
        %v2516 = vmul.f32 %v2165, %v2342
        %v2517 = vmul.f32 %v2162, %v2338
        %v2518 = vmul.f32 %v2163, %v2342
        %v2519 = vmul.f32 %v2160, %v2338
        %v2520 = vmul.f32 %v2161, %v2342
        %v2521 = vmul.f32 %v2158, %v2338
        %v2522 = vmul.f32 %v2159, %v2342
        %v2523 = vmul.f32 %v2156, %v2338
        %v2524 = vmul.f32 %v2157, %v2342
        %v2525 = vmul.f32 %v2154, %v2338
        %v2526 = vmul.f32 %v2155, %v2342
        %v2527 = vmul.f32 %v2152, %v2338
        %v2528 = vmul.f32 %v2153, %v2342
        %v2529 = vmul.f32 %v2150, %v2338
        %v2530 = vmul.f32 %v2151, %v2342
        %v2531 = vmul.f32 %v2148, %v2338
        %v2532 = vmul.f32 %v2149, %v2342
        %v2533 = vmul.f32 %v2146, %v2338
        %v2534 = vmul.f32 %v2147, %v2342
        %v2535 = vmul.f32 %v2144, %v2338
        %v2536 = vmul.f32 %v2145, %v2342
        %vm2537 = vmand %vm1943, %vm1153
        %vm2538 = vmand %vm2537, %vm1155
        %v2539 = vmul.f32 %v1944, %v430
        %v2540 = vsel %vm2538, %v2539, 0.0
        %v2541 = vrot.slane %v740, 5
        %v2542 = vrot.slane %v741, 5
        %v2543 = vrot.slane %v742, 5
        %v2544 = vrot.slane %v743, 5
        %v2545 = vrot.slane %v744, 5
        %v2546 = vrot.slane %v745, 5
        %v2547 = vrot.slane %v746, 5
        %v2548 = vrot.slane %v747, 5
        %v2549 = vrot.slane %v748, 5
        %v2550 = vrot.slane %v749, 5
        %v2551 = vrot.slane %v750, 5
        %v2552 = vrot.slane %v751, 5
        %v2553 = vrot.slane %v752, 5
        %v2554 = vrot.slane %v753, 5
        %v2555 = vrot.slane %v754, 5
        %v2556 = vrot.slane %v755, 5
        %v2557 = vrot.slane %v756, 5
        %v2558 = vrot.slane %v757, 5
        %v2559 = vrot.slane %v758, 5
        %v2560 = vrot.slane %v759, 5
        %v2561 = vrot.slane %v760, 5
        %v2562 = vrot.slane %v761, 5
        %v2563 = vrot.slane %v762, 5
        %v2564 = vrot.slane %v763, 5
        %v2565 = vrot.slane %v764, 5
        %v2566 = vrot.slane %v765, 5
        %v2567 = vrot.slane %v766, 5
        %v2568 = vrot.slane %v767, 5
        %v2569 = vrot.slane %v768, 5
        %v2570 = vrot.slane %v769, 5
        %v2571 = vrot.slane %v770, 5
        %v2572 = vrot.slane %v771, 5
        %v2573 = vrot.slane %v772, 5
        %v2574 = vrot.slane %v773, 5
        %v2575 = vrot.slane %v774, 5
        %v2576 = vrot.slane %v775, 5
        %v2577 = vrot.slane %v776, 5
        %v2578 = vrot.slane %v777, 5
        %v2579 = vrot.slane %v778, 5
        %v2580 = vrot.slane %v779, 5
        %v2581 = vrot.slane %v780, 5
        %v2582 = vrot.slane %v781, 5
        %v2583 = vrot.slane %v782, 5
        %v2584 = vrot.slane %v783, 5
        %v2585 = vrot.slane %v784, 5
        %v2586 = vrot.slane %v785, 5
        %v2587 = vrot.slane %v786, 5
        %v2588 = vrot.slane %v787, 5
        %v2589 = vrot.slane %v788, 5
        %v2590 = vrot.slane %v789, 5
        %v2591 = vrot.slane %v790, 5
        %v2592 = vrot.slane %v791, 5
        %v2593 = vrot.slane %v792, 5
        %v2594 = vrot.slane %v793, 5
        %v2595 = vrot.slane %v794, 5
        %v2596 = vrot.slane %v795, 5
        %v2597 = vrot.slane %v796, 5
        %v2598 = vrot.slane %v797, 5
        %v2599 = vrot.slane %v798, 5
        %v2600 = vrot.slane %v799, 5
        %v2601 = vrot.slane %v800, 5
        %v2602 = vrot.slane %v801, 5
        %v2603 = vrot.slane %v802, 5
        %v2604 = vrot.slane %v803, 5
        %v2605 = vrot.slane %v804, 5
        %v2606 = vrot.slane %v805, 5
        %v2607 = vrot.slane %v806, 5
        %v2608 = vrot.slane %v807, 5
        %v2609 = vrot.slane %v808, 5
        %v2610 = vrot.slane %v809, 5
        %v2611 = vrot.slane %v810, 5
        %v2612 = vrot.slane %v811, 5
        %v2613 = vrot.slane %v812, 5
        %v2614 = vrot.slane %v813, 5
        %v2615 = vrot.slane %v814, 5
        %v2616 = vrot.slane %v815, 5
        %v2617 = vrot.slane %v816, 5
        %v2618 = vrot.slane %v817, 5
        %v2619 = vrot.slane %v818, 5
        %v2620 = vrot.slane %v819, 5
        %v2621 = vrot.slane %v820, 5
        %v2622 = vrot.slane %v821, 5
        %v2623 = vrot.slane %v822, 5
        %v2624 = vrot.slane %v823, 5
        %v2625 = vrot.slane %v824, 5
        %v2626 = vrot.slane %v825, 5
        %v2627 = vrot.slane %v826, 5
        %v2628 = vrot.slane %v827, 5
        %v2629 = vrot.slane %v828, 5
        %v2630 = vrot.slane %v829, 5
        %v2631 = vrot.slane %v830, 5
        %v2632 = vrot.slane %v831, 5
        %v2633 = vrot.slane %v832, 5
        %v2634 = vrot.slane %v833, 5
        %v2635 = vrot.slane %v834, 5
        %v2636 = vrot.slane %v835, 5
        %v2637 = vrot.slane %v836, 5
        %v2638 = vrot.slane %v837, 5
        %v2639 = vrot.slane %v838, 5
        %v2640 = vrot.slane %v839, 5
        %v2641 = vrot.slane %v840, 5
        %v2642 = vrot.slane %v841, 5
        %v2643 = vrot.slane %v842, 5
        %v2644 = vrot.slane %v843, 5
        %v2645 = vrot.slane %v844, 5
        %v2646 = vrot.slane %v845, 5
        %v2647 = vrot.slane %v846, 5
        %v2648 = vrot.slane %v847, 5
        %v2649 = vrot.slane %v848, 5
        %v2650 = vrot.slane %v849, 5
        %v2651 = vrot.slane %v850, 5
        %v2652 = vrot.slane %v851, 5
        %v2653 = vrot.slane %v852, 5
        %v2654 = vrot.slane %v853, 5
        %v2655 = vrot.slane %v854, 5
        %v2656 = vrot.slane %v855, 5
        %v2657 = vrot.slane %v856, 5
        %v2658 = vrot.slane %v857, 5
        %v2659 = vrot.slane %v858, 5
        %v2660 = vrot.slane %v859, 5
        %v2661 = vrot.slane %v860, 5
        %v2662 = vrot.slane %v861, 5
        %v2663 = vrot.slane %v862, 5
        %v2664 = vrot.slane %v863, 5
        %v2665 = vrot.slane %v864, 5
        %v2666 = vrot.slane %v865, 5
        %v2667 = vrot.slane %v866, 5
        %v2668 = vrot.slane %v867, 5
        %v2669 = vrot.slane %v868, 5
        %v2670 = vrot.slane %v869, 5
        %v2671 = vrot.slane %v870, 5
        %v2672 = vrot.slane %v871, 5
        %v2673 = vrot.slane %v872, 5
        %v2674 = vrot.slane %v873, 5
        %v2675 = vrot.slane %v874, 5
        %v2676 = vrot.slane %v875, 5
        %v2677 = vrot.slane %v876, 5
        %v2678 = vrot.slane %v877, 5
        %v2679 = vrot.slane %v878, 5
        %v2680 = vrot.slane %v879, 5
        %v2681 = vrot.slane %v880, 5
        %v2682 = vrot.slane %v881, 5
        %v2683 = vrot.slane %v882, 5
        %v2684 = vrot.slane %v883, 5
        %v2685 = vrot.slane %v884, 5
        %v2686 = vrot.slane %v885, 5
        %v2687 = vrot.slane %v886, 5
        %v2688 = vrot.slane %v887, 5
        %v2689 = vrot.slane %v888, 5
        %v2690 = vrot.slane %v889, 5
        %v2691 = vrot.slane %v890, 5
        %v2692 = vrot.slane %v891, 5
        %v2693 = vrot.slane %v892, 5
        %v2694 = vrot.slane %v893, 5
        %v2695 = vrot.slane %v894, 5
        %v2696 = vrot.slane %v895, 5
        %v2697 = vrot.slane %v896, 5
        %v2698 = vrot.slane %v897, 5
        %v2699 = vrot.slane %v898, 5
        %v2700 = vrot.slane %v899, 5
        %v2701 = vrot.slane %v900, 5
        %v2702 = vrot.slane %v901, 5
        %v2703 = vrot.slane %v902, 5
        %v2704 = vrot.slane %v903, 5
        %v2705 = vrot.slane %v904, 5
        %v2706 = vrot.slane %v905, 5
        %v2707 = vrot.slane %v906, 5
        %v2708 = vrot.slane %v907, 5
        %v2709 = vrot.slane %v908, 5
        %v2710 = vrot.slane %v909, 5
        %v2711 = vrot.slane %v910, 5
        %v2712 = vrot.slane %v911, 5
        %v2713 = vrot.slane %v912, 5
        %v2714 = vrot.slane %v913, 5
        %v2715 = vrot.slane %v914, 5
        %v2716 = vrot.slane %v915, 5
        %v2717 = vrot.slane %v916, 5
        %v2718 = vrot.slane %v917, 5
        %v2719 = vrot.slane %v918, 5
        %v2720 = vrot.slane %v919, 5
        %v2721 = vrot.slane %v920, 5
        %v2722 = vrot.slane %v921, 5
        %v2723 = vrot.slane %v922, 5
        %v2724 = vrot.slane %v923, 5
        %v2725 = vrot.slane %v924, 5
        %v2726 = vrot.slane %v925, 5
        %v2727 = vrot.slane %v926, 5
        %v2728 = vrot.slane %v927, 5
        %v2729 = vrot.slane %v928, 5
        %v2730 = vrot.slane %v929, 5
        %v2731 = vrot.slane %v930, 5
        %v2732 = vrot.slane %v931, 5
        %vm2733 = vcmp.lt.s32.totalorder %v437, 3
        %v2734 = vsel %vm2733, %v2729, %v2731
        %v2735 = vsel %vm2733, %v2730, %v2732
        %v2736 = vsel %vm2733, %v2727, %v2729
        %v2737 = vsel %vm2733, %v2728, %v2730
        %v2738 = vsel %vm2733, %v2725, %v2727
        %v2739 = vsel %vm2733, %v2726, %v2728
        %v2740 = vsel %vm2733, %v2723, %v2725
        %v2741 = vsel %vm2733, %v2724, %v2726
        %v2742 = vsel %vm2733, %v2721, %v2723
        %v2743 = vsel %vm2733, %v2722, %v2724
        %v2744 = vsel %vm2733, %v2719, %v2721
        %v2745 = vsel %vm2733, %v2720, %v2722
        %v2746 = vsel %vm2733, %v2717, %v2719
        %v2747 = vsel %vm2733, %v2718, %v2720
        %v2748 = vsel %vm2733, %v2715, %v2717
        %v2749 = vsel %vm2733, %v2716, %v2718
        %v2750 = vsel %vm2733, %v2713, %v2715
        %v2751 = vsel %vm2733, %v2714, %v2716
        %v2752 = vsel %vm2733, %v2711, %v2713
        %v2753 = vsel %vm2733, %v2712, %v2714
        %v2754 = vsel %vm2733, %v2709, %v2711
        %v2755 = vsel %vm2733, %v2710, %v2712
        %v2756 = vsel %vm2733, %v2707, %v2709
        %v2757 = vsel %vm2733, %v2708, %v2710
        %v2758 = vsel %vm2733, %v2705, %v2707
        %v2759 = vsel %vm2733, %v2706, %v2708
        %v2760 = vsel %vm2733, %v2703, %v2705
        %v2761 = vsel %vm2733, %v2704, %v2706
        %v2762 = vsel %vm2733, %v2701, %v2703
        %v2763 = vsel %vm2733, %v2702, %v2704
        %v2764 = vsel %vm2733, %v2699, %v2701
        %v2765 = vsel %vm2733, %v2700, %v2702
        %v2766 = vsel %vm2733, %v2697, %v2699
        %v2767 = vsel %vm2733, %v2698, %v2700
        %v2768 = vsel %vm2733, %v2695, %v2697
        %v2769 = vsel %vm2733, %v2696, %v2698
        %v2770 = vsel %vm2733, %v2693, %v2695
        %v2771 = vsel %vm2733, %v2694, %v2696
        %v2772 = vsel %vm2733, %v2691, %v2693
        %v2773 = vsel %vm2733, %v2692, %v2694
        %v2774 = vsel %vm2733, %v2689, %v2691
        %v2775 = vsel %vm2733, %v2690, %v2692
        %v2776 = vsel %vm2733, %v2687, %v2689
        %v2777 = vsel %vm2733, %v2688, %v2690
        %v2778 = vsel %vm2733, %v2685, %v2687
        %v2779 = vsel %vm2733, %v2686, %v2688
        %v2780 = vsel %vm2733, %v2683, %v2685
        %v2781 = vsel %vm2733, %v2684, %v2686
        %v2782 = vsel %vm2733, %v2681, %v2683
        %v2783 = vsel %vm2733, %v2682, %v2684
        %v2784 = vsel %vm2733, %v2679, %v2681
        %v2785 = vsel %vm2733, %v2680, %v2682
        %v2786 = vsel %vm2733, %v2677, %v2679
        %v2787 = vsel %vm2733, %v2678, %v2680
        %v2788 = vsel %vm2733, %v2675, %v2677
        %v2789 = vsel %vm2733, %v2676, %v2678
        %v2790 = vsel %vm2733, %v2673, %v2675
        %v2791 = vsel %vm2733, %v2674, %v2676
        %v2792 = vsel %vm2733, %v2671, %v2673
        %v2793 = vsel %vm2733, %v2672, %v2674
        %v2794 = vsel %vm2733, %v2669, %v2671
        %v2795 = vsel %vm2733, %v2670, %v2672
        %v2796 = vsel %vm2733, %v2667, %v2669
        %v2797 = vsel %vm2733, %v2668, %v2670
        %v2798 = vsel %vm2733, %v2665, %v2667
        %v2799 = vsel %vm2733, %v2666, %v2668
        %v2800 = vsel %vm2733, %v2663, %v2665
        %v2801 = vsel %vm2733, %v2664, %v2666
        %v2802 = vsel %vm2733, %v2661, %v2663
        %v2803 = vsel %vm2733, %v2662, %v2664
        %v2804 = vsel %vm2733, %v2659, %v2661
        %v2805 = vsel %vm2733, %v2660, %v2662
        %v2806 = vsel %vm2733, %v2657, %v2659
        %v2807 = vsel %vm2733, %v2658, %v2660
        %v2808 = vsel %vm2733, %v2655, %v2657
        %v2809 = vsel %vm2733, %v2656, %v2658
        %v2810 = vsel %vm2733, %v2653, %v2655
        %v2811 = vsel %vm2733, %v2654, %v2656
        %v2812 = vsel %vm2733, %v2651, %v2653
        %v2813 = vsel %vm2733, %v2652, %v2654
        %v2814 = vsel %vm2733, %v2649, %v2651
        %v2815 = vsel %vm2733, %v2650, %v2652
        %v2816 = vsel %vm2733, %v2647, %v2649
        %v2817 = vsel %vm2733, %v2648, %v2650
        %v2818 = vsel %vm2733, %v2645, %v2647
        %v2819 = vsel %vm2733, %v2646, %v2648
        %v2820 = vsel %vm2733, %v2643, %v2645
        %v2821 = vsel %vm2733, %v2644, %v2646
        %v2822 = vsel %vm2733, %v2641, %v2643
        %v2823 = vsel %vm2733, %v2642, %v2644
        %v2824 = vsel %vm2733, %v2639, %v2641
        %v2825 = vsel %vm2733, %v2640, %v2642
        %v2826 = vsel %vm2733, %v2637, %v2639
        %v2827 = vsel %vm2733, %v2638, %v2640
        %v2828 = vsel %vm2733, %v2635, %v2637
        %v2829 = vsel %vm2733, %v2636, %v2638
        %v2830 = vsel %vm2733, %v2633, %v2635
        %v2831 = vsel %vm2733, %v2634, %v2636
        %v2832 = vsel %vm2733, %v2631, %v2633
        %v2833 = vsel %vm2733, %v2632, %v2634
        %v2834 = vsel %vm2733, %v2629, %v2631
        %v2835 = vsel %vm2733, %v2630, %v2632
        %v2836 = vsel %vm2733, %v2627, %v2629
        %v2837 = vsel %vm2733, %v2628, %v2630
        %v2838 = vsel %vm2733, %v2625, %v2627
        %v2839 = vsel %vm2733, %v2626, %v2628
        %v2840 = vsel %vm2733, %v2623, %v2625
        %v2841 = vsel %vm2733, %v2624, %v2626
        %v2842 = vsel %vm2733, %v2621, %v2623
        %v2843 = vsel %vm2733, %v2622, %v2624
        %v2844 = vsel %vm2733, %v2619, %v2621
        %v2845 = vsel %vm2733, %v2620, %v2622
        %v2846 = vsel %vm2733, %v2617, %v2619
        %v2847 = vsel %vm2733, %v2618, %v2620
        %v2848 = vsel %vm2733, %v2615, %v2617
        %v2849 = vsel %vm2733, %v2616, %v2618
        %v2850 = vsel %vm2733, %v2613, %v2615
        %v2851 = vsel %vm2733, %v2614, %v2616
        %v2852 = vsel %vm2733, %v2611, %v2613
        %v2853 = vsel %vm2733, %v2612, %v2614
        %v2854 = vsel %vm2733, %v2609, %v2611
        %v2855 = vsel %vm2733, %v2610, %v2612
        %v2856 = vsel %vm2733, %v2607, %v2609
        %v2857 = vsel %vm2733, %v2608, %v2610
        %v2858 = vsel %vm2733, %v2605, %v2607
        %v2859 = vsel %vm2733, %v2606, %v2608
        %v2860 = vsel %vm2733, %v2603, %v2605
        %v2861 = vsel %vm2733, %v2604, %v2606
        %v2862 = vsel %vm2733, %v2601, %v2603
        %v2863 = vsel %vm2733, %v2602, %v2604
        %v2864 = vsel %vm2733, %v2599, %v2601
        %v2865 = vsel %vm2733, %v2600, %v2602
        %v2866 = vsel %vm2733, %v2597, %v2599
        %v2867 = vsel %vm2733, %v2598, %v2600
        %v2868 = vsel %vm2733, %v2595, %v2597
        %v2869 = vsel %vm2733, %v2596, %v2598
        %v2870 = vsel %vm2733, %v2593, %v2595
        %v2871 = vsel %vm2733, %v2594, %v2596
        %v2872 = vsel %vm2733, %v2591, %v2593
        %v2873 = vsel %vm2733, %v2592, %v2594
        %v2874 = vsel %vm2733, %v2589, %v2591
        %v2875 = vsel %vm2733, %v2590, %v2592
        %v2876 = vsel %vm2733, %v2587, %v2589
        %v2877 = vsel %vm2733, %v2588, %v2590
        %v2878 = vsel %vm2733, %v2585, %v2587
        %v2879 = vsel %vm2733, %v2586, %v2588
        %v2880 = vsel %vm2733, %v2583, %v2585
        %v2881 = vsel %vm2733, %v2584, %v2586
        %v2882 = vsel %vm2733, %v2581, %v2583
        %v2883 = vsel %vm2733, %v2582, %v2584
        %v2884 = vsel %vm2733, %v2579, %v2581
        %v2885 = vsel %vm2733, %v2580, %v2582
        %v2886 = vsel %vm2733, %v2577, %v2579
        %v2887 = vsel %vm2733, %v2578, %v2580
        %v2888 = vsel %vm2733, %v2575, %v2577
        %v2889 = vsel %vm2733, %v2576, %v2578
        %v2890 = vsel %vm2733, %v2573, %v2575
        %v2891 = vsel %vm2733, %v2574, %v2576
        %v2892 = vsel %vm2733, %v2571, %v2573
        %v2893 = vsel %vm2733, %v2572, %v2574
        %v2894 = vsel %vm2733, %v2569, %v2571
        %v2895 = vsel %vm2733, %v2570, %v2572
        %v2896 = vsel %vm2733, %v2567, %v2569
        %v2897 = vsel %vm2733, %v2568, %v2570
        %v2898 = vsel %vm2733, %v2565, %v2567
        %v2899 = vsel %vm2733, %v2566, %v2568
        %v2900 = vsel %vm2733, %v2563, %v2565
        %v2901 = vsel %vm2733, %v2564, %v2566
        %v2902 = vsel %vm2733, %v2561, %v2563
        %v2903 = vsel %vm2733, %v2562, %v2564
        %v2904 = vsel %vm2733, %v2559, %v2561
        %v2905 = vsel %vm2733, %v2560, %v2562
        %v2906 = vsel %vm2733, %v2557, %v2559
        %v2907 = vsel %vm2733, %v2558, %v2560
        %v2908 = vsel %vm2733, %v2555, %v2557
        %v2909 = vsel %vm2733, %v2556, %v2558
        %v2910 = vsel %vm2733, %v2553, %v2555
        %v2911 = vsel %vm2733, %v2554, %v2556
        %v2912 = vsel %vm2733, %v2551, %v2553
        %v2913 = vsel %vm2733, %v2552, %v2554
        %v2914 = vsel %vm2733, %v2549, %v2551
        %v2915 = vsel %vm2733, %v2550, %v2552
        %v2916 = vsel %vm2733, %v2547, %v2549
        %v2917 = vsel %vm2733, %v2548, %v2550
        %v2918 = vsel %vm2733, %v2545, %v2547
        %v2919 = vsel %vm2733, %v2546, %v2548
        %v2920 = vsel %vm2733, %v2543, %v2545
        %v2921 = vsel %vm2733, %v2544, %v2546
        %v2922 = vsel %vm2733, %v2541, %v2543
        %v2923 = vsel %vm2733, %v2542, %v2544
        %v2924 = vsel %vm2733, %v2731, %v2541
        %v2925 = vsel %vm2733, %v2732, %v2542
        %v2927 = vlaneseq
        %v2928 = vshrl.u32 %v2927, 7
        %v2929 = vsub.s32 0, %v2928
        %v2930 = vrot.slane %v2540, %v2929
        %v2931 = vlaneseq
        %v2932 = vshrl.u32 %v2931, 7
        %v2933 = vsub.s32 1, %v2932
        %v2934 = vrot.slane %v2540, %v2933
        %v2937 = vmul.f32 %v2734, %v2930
        %v2938 = vmul.f32 %v2735, %v2934
        %v2939 = vmul.f32 %v2924, %v2930
        %v2940 = vmul.f32 %v2925, %v2934
        %v2941 = vmul.f32 %v2922, %v2930
        %v2942 = vmul.f32 %v2923, %v2934
        %v2943 = vmul.f32 %v2920, %v2930
        %v2944 = vmul.f32 %v2921, %v2934
        %v2945 = vmul.f32 %v2918, %v2930
        %v2946 = vmul.f32 %v2919, %v2934
        %v2947 = vmul.f32 %v2916, %v2930
        %v2948 = vmul.f32 %v2917, %v2934
        %v2949 = vmul.f32 %v2914, %v2930
        %v2950 = vmul.f32 %v2915, %v2934
        %v2951 = vmul.f32 %v2912, %v2930
        %v2952 = vmul.f32 %v2913, %v2934
        %v2953 = vmul.f32 %v2910, %v2930
        %v2954 = vmul.f32 %v2911, %v2934
        %v2955 = vmul.f32 %v2908, %v2930
        %v2956 = vmul.f32 %v2909, %v2934
        %v2957 = vmul.f32 %v2906, %v2930
        %v2958 = vmul.f32 %v2907, %v2934
        %v2959 = vmul.f32 %v2904, %v2930
        %v2960 = vmul.f32 %v2905, %v2934
        %v2961 = vmul.f32 %v2902, %v2930
        %v2962 = vmul.f32 %v2903, %v2934
        %v2963 = vmul.f32 %v2900, %v2930
        %v2964 = vmul.f32 %v2901, %v2934
        %v2965 = vmul.f32 %v2898, %v2930
        %v2966 = vmul.f32 %v2899, %v2934
        %v2967 = vmul.f32 %v2896, %v2930
        %v2968 = vmul.f32 %v2897, %v2934
        %v2969 = vmul.f32 %v2894, %v2930
        %v2970 = vmul.f32 %v2895, %v2934
        %v2971 = vmul.f32 %v2892, %v2930
        %v2972 = vmul.f32 %v2893, %v2934
        %v2973 = vmul.f32 %v2890, %v2930
        %v2974 = vmul.f32 %v2891, %v2934
        %v2975 = vmul.f32 %v2888, %v2930
        %v2976 = vmul.f32 %v2889, %v2934
        %v2977 = vmul.f32 %v2886, %v2930
        %v2978 = vmul.f32 %v2887, %v2934
        %v2979 = vmul.f32 %v2884, %v2930
        %v2980 = vmul.f32 %v2885, %v2934
        %v2981 = vmul.f32 %v2882, %v2930
        %v2982 = vmul.f32 %v2883, %v2934
        %v2983 = vmul.f32 %v2880, %v2930
        %v2984 = vmul.f32 %v2881, %v2934
        %v2985 = vmul.f32 %v2878, %v2930
        %v2986 = vmul.f32 %v2879, %v2934
        %v2987 = vmul.f32 %v2876, %v2930
        %v2988 = vmul.f32 %v2877, %v2934
        %v2989 = vmul.f32 %v2874, %v2930
        %v2990 = vmul.f32 %v2875, %v2934
        %v2991 = vmul.f32 %v2872, %v2930
        %v2992 = vmul.f32 %v2873, %v2934
        %v2993 = vmul.f32 %v2870, %v2930
        %v2994 = vmul.f32 %v2871, %v2934
        %v2995 = vmul.f32 %v2868, %v2930
        %v2996 = vmul.f32 %v2869, %v2934
        %v2997 = vmul.f32 %v2866, %v2930
        %v2998 = vmul.f32 %v2867, %v2934
        %v2999 = vmul.f32 %v2864, %v2930
        %v3000 = vmul.f32 %v2865, %v2934
        %v3001 = vmul.f32 %v2862, %v2930
        %v3002 = vmul.f32 %v2863, %v2934
        %v3003 = vmul.f32 %v2860, %v2930
        %v3004 = vmul.f32 %v2861, %v2934
        %v3005 = vmul.f32 %v2858, %v2930
        %v3006 = vmul.f32 %v2859, %v2934
        %v3007 = vmul.f32 %v2856, %v2930
        %v3008 = vmul.f32 %v2857, %v2934
        %v3009 = vmul.f32 %v2854, %v2930
        %v3010 = vmul.f32 %v2855, %v2934
        %v3011 = vmul.f32 %v2852, %v2930
        %v3012 = vmul.f32 %v2853, %v2934
        %v3013 = vmul.f32 %v2850, %v2930
        %v3014 = vmul.f32 %v2851, %v2934
        %v3015 = vmul.f32 %v2848, %v2930
        %v3016 = vmul.f32 %v2849, %v2934
        %v3017 = vmul.f32 %v2846, %v2930
        %v3018 = vmul.f32 %v2847, %v2934
        %v3019 = vmul.f32 %v2844, %v2930
        %v3020 = vmul.f32 %v2845, %v2934
        %v3021 = vmul.f32 %v2842, %v2930
        %v3022 = vmul.f32 %v2843, %v2934
        %v3023 = vmul.f32 %v2840, %v2930
        %v3024 = vmul.f32 %v2841, %v2934
        %v3025 = vmul.f32 %v2838, %v2930
        %v3026 = vmul.f32 %v2839, %v2934
        %v3027 = vmul.f32 %v2836, %v2930
        %v3028 = vmul.f32 %v2837, %v2934
        %v3029 = vmul.f32 %v2834, %v2930
        %v3030 = vmul.f32 %v2835, %v2934
        %v3031 = vmul.f32 %v2832, %v2930
        %v3032 = vmul.f32 %v2833, %v2934
        %v3033 = vmul.f32 %v2830, %v2930
        %v3034 = vmul.f32 %v2831, %v2934
        %v3035 = vmul.f32 %v2828, %v2930
        %v3036 = vmul.f32 %v2829, %v2934
        %v3037 = vmul.f32 %v2826, %v2930
        %v3038 = vmul.f32 %v2827, %v2934
        %v3039 = vmul.f32 %v2824, %v2930
        %v3040 = vmul.f32 %v2825, %v2934
        %v3041 = vmul.f32 %v2822, %v2930
        %v3042 = vmul.f32 %v2823, %v2934
        %v3043 = vmul.f32 %v2820, %v2930
        %v3044 = vmul.f32 %v2821, %v2934
        %v3045 = vmul.f32 %v2818, %v2930
        %v3046 = vmul.f32 %v2819, %v2934
        %v3047 = vmul.f32 %v2816, %v2930
        %v3048 = vmul.f32 %v2817, %v2934
        %v3049 = vmul.f32 %v2814, %v2930
        %v3050 = vmul.f32 %v2815, %v2934
        %v3051 = vmul.f32 %v2812, %v2930
        %v3052 = vmul.f32 %v2813, %v2934
        %v3053 = vmul.f32 %v2810, %v2930
        %v3054 = vmul.f32 %v2811, %v2934
        %v3055 = vmul.f32 %v2808, %v2930
        %v3056 = vmul.f32 %v2809, %v2934
        %v3057 = vmul.f32 %v2806, %v2930
        %v3058 = vmul.f32 %v2807, %v2934
        %v3059 = vmul.f32 %v2804, %v2930
        %v3060 = vmul.f32 %v2805, %v2934
        %v3061 = vmul.f32 %v2802, %v2930
        %v3062 = vmul.f32 %v2803, %v2934
        %v3063 = vmul.f32 %v2800, %v2930
        %v3064 = vmul.f32 %v2801, %v2934
        %v3065 = vmul.f32 %v2798, %v2930
        %v3066 = vmul.f32 %v2799, %v2934
        %v3067 = vmul.f32 %v2796, %v2930
        %v3068 = vmul.f32 %v2797, %v2934
        %v3069 = vmul.f32 %v2794, %v2930
        %v3070 = vmul.f32 %v2795, %v2934
        %v3071 = vmul.f32 %v2792, %v2930
        %v3072 = vmul.f32 %v2793, %v2934
        %v3073 = vmul.f32 %v2790, %v2930
        %v3074 = vmul.f32 %v2791, %v2934
        %v3075 = vmul.f32 %v2788, %v2930
        %v3076 = vmul.f32 %v2789, %v2934
        %v3077 = vmul.f32 %v2786, %v2930
        %v3078 = vmul.f32 %v2787, %v2934
        %v3079 = vmul.f32 %v2784, %v2930
        %v3080 = vmul.f32 %v2785, %v2934
        %v3081 = vmul.f32 %v2782, %v2930
        %v3082 = vmul.f32 %v2783, %v2934
        %v3083 = vmul.f32 %v2780, %v2930
        %v3084 = vmul.f32 %v2781, %v2934
        %v3085 = vmul.f32 %v2778, %v2930
        %v3086 = vmul.f32 %v2779, %v2934
        %v3087 = vmul.f32 %v2776, %v2930
        %v3088 = vmul.f32 %v2777, %v2934
        %v3089 = vmul.f32 %v2774, %v2930
        %v3090 = vmul.f32 %v2775, %v2934
        %v3091 = vmul.f32 %v2772, %v2930
        %v3092 = vmul.f32 %v2773, %v2934
        %v3093 = vmul.f32 %v2770, %v2930
        %v3094 = vmul.f32 %v2771, %v2934
        %v3095 = vmul.f32 %v2768, %v2930
        %v3096 = vmul.f32 %v2769, %v2934
        %v3097 = vmul.f32 %v2766, %v2930
        %v3098 = vmul.f32 %v2767, %v2934
        %v3099 = vmul.f32 %v2764, %v2930
        %v3100 = vmul.f32 %v2765, %v2934
        %v3101 = vmul.f32 %v2762, %v2930
        %v3102 = vmul.f32 %v2763, %v2934
        %v3103 = vmul.f32 %v2760, %v2930
        %v3104 = vmul.f32 %v2761, %v2934
        %v3105 = vmul.f32 %v2758, %v2930
        %v3106 = vmul.f32 %v2759, %v2934
        %v3107 = vmul.f32 %v2756, %v2930
        %v3108 = vmul.f32 %v2757, %v2934
        %v3109 = vmul.f32 %v2754, %v2930
        %v3110 = vmul.f32 %v2755, %v2934
        %v3111 = vmul.f32 %v2752, %v2930
        %v3112 = vmul.f32 %v2753, %v2934
        %v3113 = vmul.f32 %v2750, %v2930
        %v3114 = vmul.f32 %v2751, %v2934
        %v3115 = vmul.f32 %v2748, %v2930
        %v3116 = vmul.f32 %v2749, %v2934
        %v3117 = vmul.f32 %v2746, %v2930
        %v3118 = vmul.f32 %v2747, %v2934
        %v3119 = vmul.f32 %v2744, %v2930
        %v3120 = vmul.f32 %v2745, %v2934
        %v3121 = vmul.f32 %v2742, %v2930
        %v3122 = vmul.f32 %v2743, %v2934
        %v3123 = vmul.f32 %v2740, %v2930
        %v3124 = vmul.f32 %v2741, %v2934
        %v3125 = vmul.f32 %v2738, %v2930
        %v3126 = vmul.f32 %v2739, %v2934
        %v3127 = vmul.f32 %v2736, %v2930
        %v3128 = vmul.f32 %v2737, %v2934
        %v3129 = vadd.f32 %v2345, %v2937
        %v3130 = vadd.f32 %v2346, %v2938
        %v3131 = vadd.f32 %v2347, %v2939
        %v3132 = vadd.f32 %v2348, %v2940
        %v3133 = vadd.f32 %v2349, %v2941
        %v3134 = vadd.f32 %v2350, %v2942
        %v3135 = vadd.f32 %v2351, %v2943
        %v3136 = vadd.f32 %v2352, %v2944
        %v3137 = vadd.f32 %v2353, %v2945
        %v3138 = vadd.f32 %v2354, %v2946
        %v3139 = vadd.f32 %v2355, %v2947
        %v3140 = vadd.f32 %v2356, %v2948
        %v3141 = vadd.f32 %v2357, %v2949
        %v3142 = vadd.f32 %v2358, %v2950
        %v3143 = vadd.f32 %v2359, %v2951
        %v3144 = vadd.f32 %v2360, %v2952
        %v3145 = vadd.f32 %v2361, %v2953
        %v3146 = vadd.f32 %v2362, %v2954
        %v3147 = vadd.f32 %v2363, %v2955
        %v3148 = vadd.f32 %v2364, %v2956
        %v3149 = vadd.f32 %v2365, %v2957
        %v3150 = vadd.f32 %v2366, %v2958
        %v3151 = vadd.f32 %v2367, %v2959
        %v3152 = vadd.f32 %v2368, %v2960
        %v3153 = vadd.f32 %v2369, %v2961
        %v3154 = vadd.f32 %v2370, %v2962
        %v3155 = vadd.f32 %v2371, %v2963
        %v3156 = vadd.f32 %v2372, %v2964
        %v3157 = vadd.f32 %v2373, %v2965
        %v3158 = vadd.f32 %v2374, %v2966
        %v3159 = vadd.f32 %v2375, %v2967
        %v3160 = vadd.f32 %v2376, %v2968
        %v3161 = vadd.f32 %v2377, %v2969
        %v3162 = vadd.f32 %v2378, %v2970
        %v3163 = vadd.f32 %v2379, %v2971
        %v3164 = vadd.f32 %v2380, %v2972
        %v3165 = vadd.f32 %v2381, %v2973
        %v3166 = vadd.f32 %v2382, %v2974
        %v3167 = vadd.f32 %v2383, %v2975
        %v3168 = vadd.f32 %v2384, %v2976
        %v3169 = vadd.f32 %v2385, %v2977
        %v3170 = vadd.f32 %v2386, %v2978
        %v3171 = vadd.f32 %v2387, %v2979
        %v3172 = vadd.f32 %v2388, %v2980
        %v3173 = vadd.f32 %v2389, %v2981
        %v3174 = vadd.f32 %v2390, %v2982
        %v3175 = vadd.f32 %v2391, %v2983
        %v3176 = vadd.f32 %v2392, %v2984
        %v3177 = vadd.f32 %v2393, %v2985
        %v3178 = vadd.f32 %v2394, %v2986
        %v3179 = vadd.f32 %v2395, %v2987
        %v3180 = vadd.f32 %v2396, %v2988
        %v3181 = vadd.f32 %v2397, %v2989
        %v3182 = vadd.f32 %v2398, %v2990
        %v3183 = vadd.f32 %v2399, %v2991
        %v3184 = vadd.f32 %v2400, %v2992
        %v3185 = vadd.f32 %v2401, %v2993
        %v3186 = vadd.f32 %v2402, %v2994
        %v3187 = vadd.f32 %v2403, %v2995
        %v3188 = vadd.f32 %v2404, %v2996
        %v3189 = vadd.f32 %v2405, %v2997
        %v3190 = vadd.f32 %v2406, %v2998
        %v3191 = vadd.f32 %v2407, %v2999
        %v3192 = vadd.f32 %v2408, %v3000
        %v3193 = vadd.f32 %v2409, %v3001
        %v3194 = vadd.f32 %v2410, %v3002
        %v3195 = vadd.f32 %v2411, %v3003
        %v3196 = vadd.f32 %v2412, %v3004
        %v3197 = vadd.f32 %v2413, %v3005
        %v3198 = vadd.f32 %v2414, %v3006
        %v3199 = vadd.f32 %v2415, %v3007
        %v3200 = vadd.f32 %v2416, %v3008
        %v3201 = vadd.f32 %v2417, %v3009
        %v3202 = vadd.f32 %v2418, %v3010
        %v3203 = vadd.f32 %v2419, %v3011
        %v3204 = vadd.f32 %v2420, %v3012
        %v3205 = vadd.f32 %v2421, %v3013
        %v3206 = vadd.f32 %v2422, %v3014
        %v3207 = vadd.f32 %v2423, %v3015
        %v3208 = vadd.f32 %v2424, %v3016
        %v3209 = vadd.f32 %v2425, %v3017
        %v3210 = vadd.f32 %v2426, %v3018
        %v3211 = vadd.f32 %v2427, %v3019
        %v3212 = vadd.f32 %v2428, %v3020
        %v3213 = vadd.f32 %v2429, %v3021
        %v3214 = vadd.f32 %v2430, %v3022
        %v3215 = vadd.f32 %v2431, %v3023
        %v3216 = vadd.f32 %v2432, %v3024
        %v3217 = vadd.f32 %v2433, %v3025
        %v3218 = vadd.f32 %v2434, %v3026
        %v3219 = vadd.f32 %v2435, %v3027
        %v3220 = vadd.f32 %v2436, %v3028
        %v3221 = vadd.f32 %v2437, %v3029
        %v3222 = vadd.f32 %v2438, %v3030
        %v3223 = vadd.f32 %v2439, %v3031
        %v3224 = vadd.f32 %v2440, %v3032
        %v3225 = vadd.f32 %v2441, %v3033
        %v3226 = vadd.f32 %v2442, %v3034
        %v3227 = vadd.f32 %v2443, %v3035
        %v3228 = vadd.f32 %v2444, %v3036
        %v3229 = vadd.f32 %v2445, %v3037
        %v3230 = vadd.f32 %v2446, %v3038
        %v3231 = vadd.f32 %v2447, %v3039
        %v3232 = vadd.f32 %v2448, %v3040
        %v3233 = vadd.f32 %v2449, %v3041
        %v3234 = vadd.f32 %v2450, %v3042
        %v3235 = vadd.f32 %v2451, %v3043
        %v3236 = vadd.f32 %v2452, %v3044
        %v3237 = vadd.f32 %v2453, %v3045
        %v3238 = vadd.f32 %v2454, %v3046
        %v3239 = vadd.f32 %v2455, %v3047
        %v3240 = vadd.f32 %v2456, %v3048
        %v3241 = vadd.f32 %v2457, %v3049
        %v3242 = vadd.f32 %v2458, %v3050
        %v3243 = vadd.f32 %v2459, %v3051
        %v3244 = vadd.f32 %v2460, %v3052
        %v3245 = vadd.f32 %v2461, %v3053
        %v3246 = vadd.f32 %v2462, %v3054
        %v3247 = vadd.f32 %v2463, %v3055
        %v3248 = vadd.f32 %v2464, %v3056
        %v3249 = vadd.f32 %v2465, %v3057
        %v3250 = vadd.f32 %v2466, %v3058
        %v3251 = vadd.f32 %v2467, %v3059
        %v3252 = vadd.f32 %v2468, %v3060
        %v3253 = vadd.f32 %v2469, %v3061
        %v3254 = vadd.f32 %v2470, %v3062
        %v3255 = vadd.f32 %v2471, %v3063
        %v3256 = vadd.f32 %v2472, %v3064
        %v3257 = vadd.f32 %v2473, %v3065
        %v3258 = vadd.f32 %v2474, %v3066
        %v3259 = vadd.f32 %v2475, %v3067
        %v3260 = vadd.f32 %v2476, %v3068
        %v3261 = vadd.f32 %v2477, %v3069
        %v3262 = vadd.f32 %v2478, %v3070
        %v3263 = vadd.f32 %v2479, %v3071
        %v3264 = vadd.f32 %v2480, %v3072
        %v3265 = vadd.f32 %v2481, %v3073
        %v3266 = vadd.f32 %v2482, %v3074
        %v3267 = vadd.f32 %v2483, %v3075
        %v3268 = vadd.f32 %v2484, %v3076
        %v3269 = vadd.f32 %v2485, %v3077
        %v3270 = vadd.f32 %v2486, %v3078
        %v3271 = vadd.f32 %v2487, %v3079
        %v3272 = vadd.f32 %v2488, %v3080
        %v3273 = vadd.f32 %v2489, %v3081
        %v3274 = vadd.f32 %v2490, %v3082
        %v3275 = vadd.f32 %v2491, %v3083
        %v3276 = vadd.f32 %v2492, %v3084
        %v3277 = vadd.f32 %v2493, %v3085
        %v3278 = vadd.f32 %v2494, %v3086
        %v3279 = vadd.f32 %v2495, %v3087
        %v3280 = vadd.f32 %v2496, %v3088
        %v3281 = vadd.f32 %v2497, %v3089
        %v3282 = vadd.f32 %v2498, %v3090
        %v3283 = vadd.f32 %v2499, %v3091
        %v3284 = vadd.f32 %v2500, %v3092
        %v3285 = vadd.f32 %v2501, %v3093
        %v3286 = vadd.f32 %v2502, %v3094
        %v3287 = vadd.f32 %v2503, %v3095
        %v3288 = vadd.f32 %v2504, %v3096
        %v3289 = vadd.f32 %v2505, %v3097
        %v3290 = vadd.f32 %v2506, %v3098
        %v3291 = vadd.f32 %v2507, %v3099
        %v3292 = vadd.f32 %v2508, %v3100
        %v3293 = vadd.f32 %v2509, %v3101
        %v3294 = vadd.f32 %v2510, %v3102
        %v3295 = vadd.f32 %v2511, %v3103
        %v3296 = vadd.f32 %v2512, %v3104
        %v3297 = vadd.f32 %v2513, %v3105
        %v3298 = vadd.f32 %v2514, %v3106
        %v3299 = vadd.f32 %v2515, %v3107
        %v3300 = vadd.f32 %v2516, %v3108
        %v3301 = vadd.f32 %v2517, %v3109
        %v3302 = vadd.f32 %v2518, %v3110
        %v3303 = vadd.f32 %v2519, %v3111
        %v3304 = vadd.f32 %v2520, %v3112
        %v3305 = vadd.f32 %v2521, %v3113
        %v3306 = vadd.f32 %v2522, %v3114
        %v3307 = vadd.f32 %v2523, %v3115
        %v3308 = vadd.f32 %v2524, %v3116
        %v3309 = vadd.f32 %v2525, %v3117
        %v3310 = vadd.f32 %v2526, %v3118
        %v3311 = vadd.f32 %v2527, %v3119
        %v3312 = vadd.f32 %v2528, %v3120
        %v3313 = vadd.f32 %v2529, %v3121
        %v3314 = vadd.f32 %v2530, %v3122
        %v3315 = vadd.f32 %v2531, %v3123
        %v3316 = vadd.f32 %v2532, %v3124
        %v3317 = vadd.f32 %v2533, %v3125
        %v3318 = vadd.f32 %v2534, %v3126
        %v3319 = vadd.f32 %v2535, %v3127
        %v3320 = vadd.f32 %v2536, %v3128
        %v3321 = vadd.s32 %v435, 1
        %vm3322 = vcmp.ge.s32.totalorder %v3321, 0
        %vm3323 = vcmp.lt.s32.totalorder %v3321, 8
        %vm3324 = vmand %vm3322, %vm3323
        %vm3325 = vmand %vm3324, %vm938
        %vm3326 = vmand %vm3325, %vm940
        %v3327 = vmul.f32 %v432, %v933
        %vm3328 = vmand %vm3326, %vm943
        %vm3329 = vmand %vm3328, %vm945
        %v3330 = vmul.f32 %v3327, %v932
        %v3331 = vsel %vm3329, %v3330, 0.0
        %v3333 = vlaneseq
        %v3334 = vshrl.u32 %v3333, 7
        %v3335 = vsub.s32 0, %v3334
        %v3336 = vrot.slane %v3331, %v3335
        %v3337 = vlaneseq
        %v3338 = vshrl.u32 %v3337, 7
        %v3339 = vsub.s32 1, %v3338
        %v3340 = vrot.slane %v3331, %v3339
        %v3343 = vmul.f32 %v912, %v3336
        %v3344 = vmul.f32 %v913, %v3340
        %v3345 = vmul.f32 %v914, %v3336
        %v3346 = vmul.f32 %v915, %v3340
        %v3347 = vmul.f32 %v916, %v3336
        %v3348 = vmul.f32 %v917, %v3340
        %v3349 = vmul.f32 %v918, %v3336
        %v3350 = vmul.f32 %v919, %v3340
        %v3351 = vmul.f32 %v920, %v3336
        %v3352 = vmul.f32 %v921, %v3340
        %v3353 = vmul.f32 %v922, %v3336
        %v3354 = vmul.f32 %v923, %v3340
        %v3355 = vmul.f32 %v924, %v3336
        %v3356 = vmul.f32 %v925, %v3340
        %v3357 = vmul.f32 %v926, %v3336
        %v3358 = vmul.f32 %v927, %v3340
        %v3359 = vmul.f32 %v928, %v3336
        %v3360 = vmul.f32 %v929, %v3340
        %v3361 = vmul.f32 %v930, %v3336
        %v3362 = vmul.f32 %v931, %v3340
        %v3363 = vmul.f32 %v740, %v3336
        %v3364 = vmul.f32 %v741, %v3340
        %v3365 = vmul.f32 %v742, %v3336
        %v3366 = vmul.f32 %v743, %v3340
        %v3367 = vmul.f32 %v744, %v3336
        %v3368 = vmul.f32 %v745, %v3340
        %v3369 = vmul.f32 %v746, %v3336
        %v3370 = vmul.f32 %v747, %v3340
        %v3371 = vmul.f32 %v748, %v3336
        %v3372 = vmul.f32 %v749, %v3340
        %v3373 = vmul.f32 %v750, %v3336
        %v3374 = vmul.f32 %v751, %v3340
        %v3375 = vmul.f32 %v752, %v3336
        %v3376 = vmul.f32 %v753, %v3340
        %v3377 = vmul.f32 %v754, %v3336
        %v3378 = vmul.f32 %v755, %v3340
        %v3379 = vmul.f32 %v756, %v3336
        %v3380 = vmul.f32 %v757, %v3340
        %v3381 = vmul.f32 %v758, %v3336
        %v3382 = vmul.f32 %v759, %v3340
        %v3383 = vmul.f32 %v760, %v3336
        %v3384 = vmul.f32 %v761, %v3340
        %v3385 = vmul.f32 %v762, %v3336
        %v3386 = vmul.f32 %v763, %v3340
        %v3387 = vmul.f32 %v764, %v3336
        %v3388 = vmul.f32 %v765, %v3340
        %v3389 = vmul.f32 %v766, %v3336
        %v3390 = vmul.f32 %v767, %v3340
        %v3391 = vmul.f32 %v768, %v3336
        %v3392 = vmul.f32 %v769, %v3340
        %v3393 = vmul.f32 %v770, %v3336
        %v3394 = vmul.f32 %v771, %v3340
        %v3395 = vmul.f32 %v772, %v3336
        %v3396 = vmul.f32 %v773, %v3340
        %v3397 = vmul.f32 %v774, %v3336
        %v3398 = vmul.f32 %v775, %v3340
        %v3399 = vmul.f32 %v776, %v3336
        %v3400 = vmul.f32 %v777, %v3340
        %v3401 = vmul.f32 %v778, %v3336
        %v3402 = vmul.f32 %v779, %v3340
        %v3403 = vmul.f32 %v780, %v3336
        %v3404 = vmul.f32 %v781, %v3340
        %v3405 = vmul.f32 %v782, %v3336
        %v3406 = vmul.f32 %v783, %v3340
        %v3407 = vmul.f32 %v784, %v3336
        %v3408 = vmul.f32 %v785, %v3340
        %v3409 = vmul.f32 %v786, %v3336
        %v3410 = vmul.f32 %v787, %v3340
        %v3411 = vmul.f32 %v788, %v3336
        %v3412 = vmul.f32 %v789, %v3340
        %v3413 = vmul.f32 %v790, %v3336
        %v3414 = vmul.f32 %v791, %v3340
        %v3415 = vmul.f32 %v792, %v3336
        %v3416 = vmul.f32 %v793, %v3340
        %v3417 = vmul.f32 %v794, %v3336
        %v3418 = vmul.f32 %v795, %v3340
        %v3419 = vmul.f32 %v796, %v3336
        %v3420 = vmul.f32 %v797, %v3340
        %v3421 = vmul.f32 %v798, %v3336
        %v3422 = vmul.f32 %v799, %v3340
        %v3423 = vmul.f32 %v800, %v3336
        %v3424 = vmul.f32 %v801, %v3340
        %v3425 = vmul.f32 %v802, %v3336
        %v3426 = vmul.f32 %v803, %v3340
        %v3427 = vmul.f32 %v804, %v3336
        %v3428 = vmul.f32 %v805, %v3340
        %v3429 = vmul.f32 %v806, %v3336
        %v3430 = vmul.f32 %v807, %v3340
        %v3431 = vmul.f32 %v808, %v3336
        %v3432 = vmul.f32 %v809, %v3340
        %v3433 = vmul.f32 %v810, %v3336
        %v3434 = vmul.f32 %v811, %v3340
        %v3435 = vmul.f32 %v812, %v3336
        %v3436 = vmul.f32 %v813, %v3340
        %v3437 = vmul.f32 %v814, %v3336
        %v3438 = vmul.f32 %v815, %v3340
        %v3439 = vmul.f32 %v816, %v3336
        %v3440 = vmul.f32 %v817, %v3340
        %v3441 = vmul.f32 %v818, %v3336
        %v3442 = vmul.f32 %v819, %v3340
        %v3443 = vmul.f32 %v820, %v3336
        %v3444 = vmul.f32 %v821, %v3340
        %v3445 = vmul.f32 %v822, %v3336
        %v3446 = vmul.f32 %v823, %v3340
        %v3447 = vmul.f32 %v824, %v3336
        %v3448 = vmul.f32 %v825, %v3340
        %v3449 = vmul.f32 %v826, %v3336
        %v3450 = vmul.f32 %v827, %v3340
        %v3451 = vmul.f32 %v828, %v3336
        %v3452 = vmul.f32 %v829, %v3340
        %v3453 = vmul.f32 %v830, %v3336
        %v3454 = vmul.f32 %v831, %v3340
        %v3455 = vmul.f32 %v832, %v3336
        %v3456 = vmul.f32 %v833, %v3340
        %v3457 = vmul.f32 %v834, %v3336
        %v3458 = vmul.f32 %v835, %v3340
        %v3459 = vmul.f32 %v836, %v3336
        %v3460 = vmul.f32 %v837, %v3340
        %v3461 = vmul.f32 %v838, %v3336
        %v3462 = vmul.f32 %v839, %v3340
        %v3463 = vmul.f32 %v840, %v3336
        %v3464 = vmul.f32 %v841, %v3340
        %v3465 = vmul.f32 %v842, %v3336
        %v3466 = vmul.f32 %v843, %v3340
        %v3467 = vmul.f32 %v844, %v3336
        %v3468 = vmul.f32 %v845, %v3340
        %v3469 = vmul.f32 %v846, %v3336
        %v3470 = vmul.f32 %v847, %v3340
        %v3471 = vmul.f32 %v848, %v3336
        %v3472 = vmul.f32 %v849, %v3340
        %v3473 = vmul.f32 %v850, %v3336
        %v3474 = vmul.f32 %v851, %v3340
        %v3475 = vmul.f32 %v852, %v3336
        %v3476 = vmul.f32 %v853, %v3340
        %v3477 = vmul.f32 %v854, %v3336
        %v3478 = vmul.f32 %v855, %v3340
        %v3479 = vmul.f32 %v856, %v3336
        %v3480 = vmul.f32 %v857, %v3340
        %v3481 = vmul.f32 %v858, %v3336
        %v3482 = vmul.f32 %v859, %v3340
        %v3483 = vmul.f32 %v860, %v3336
        %v3484 = vmul.f32 %v861, %v3340
        %v3485 = vmul.f32 %v862, %v3336
        %v3486 = vmul.f32 %v863, %v3340
        %v3487 = vmul.f32 %v864, %v3336
        %v3488 = vmul.f32 %v865, %v3340
        %v3489 = vmul.f32 %v866, %v3336
        %v3490 = vmul.f32 %v867, %v3340
        %v3491 = vmul.f32 %v868, %v3336
        %v3492 = vmul.f32 %v869, %v3340
        %v3493 = vmul.f32 %v870, %v3336
        %v3494 = vmul.f32 %v871, %v3340
        %v3495 = vmul.f32 %v872, %v3336
        %v3496 = vmul.f32 %v873, %v3340
        %v3497 = vmul.f32 %v874, %v3336
        %v3498 = vmul.f32 %v875, %v3340
        %v3499 = vmul.f32 %v876, %v3336
        %v3500 = vmul.f32 %v877, %v3340
        %v3501 = vmul.f32 %v878, %v3336
        %v3502 = vmul.f32 %v879, %v3340
        %v3503 = vmul.f32 %v880, %v3336
        %v3504 = vmul.f32 %v881, %v3340
        %v3505 = vmul.f32 %v882, %v3336
        %v3506 = vmul.f32 %v883, %v3340
        %v3507 = vmul.f32 %v884, %v3336
        %v3508 = vmul.f32 %v885, %v3340
        %v3509 = vmul.f32 %v886, %v3336
        %v3510 = vmul.f32 %v887, %v3340
        %v3511 = vmul.f32 %v888, %v3336
        %v3512 = vmul.f32 %v889, %v3340
        %v3513 = vmul.f32 %v890, %v3336
        %v3514 = vmul.f32 %v891, %v3340
        %v3515 = vmul.f32 %v892, %v3336
        %v3516 = vmul.f32 %v893, %v3340
        %v3517 = vmul.f32 %v894, %v3336
        %v3518 = vmul.f32 %v895, %v3340
        %v3519 = vmul.f32 %v896, %v3336
        %v3520 = vmul.f32 %v897, %v3340
        %v3521 = vmul.f32 %v898, %v3336
        %v3522 = vmul.f32 %v899, %v3340
        %v3523 = vmul.f32 %v900, %v3336
        %v3524 = vmul.f32 %v901, %v3340
        %v3525 = vmul.f32 %v902, %v3336
        %v3526 = vmul.f32 %v903, %v3340
        %v3527 = vmul.f32 %v904, %v3336
        %v3528 = vmul.f32 %v905, %v3340
        %v3529 = vmul.f32 %v906, %v3336
        %v3530 = vmul.f32 %v907, %v3340
        %v3531 = vmul.f32 %v908, %v3336
        %v3532 = vmul.f32 %v909, %v3340
        %v3533 = vmul.f32 %v910, %v3336
        %v3534 = vmul.f32 %v911, %v3340
        %vm3535 = vmand %vm3326, %vm1153
        %vm3536 = vmand %vm3535, %vm1155
        %v3537 = vmul.f32 %v3327, %v430
        %v3538 = vsel %vm3536, %v3537, 0.0
        %v3540 = vlaneseq
        %v3541 = vshrl.u32 %v3540, 7
        %v3542 = vsub.s32 0, %v3541
        %v3543 = vrot.slane %v3538, %v3542
        %v3544 = vlaneseq
        %v3545 = vshrl.u32 %v3544, 7
        %v3546 = vsub.s32 1, %v3545
        %v3547 = vrot.slane %v3538, %v3546
        %v3550 = vmul.f32 %v1370, %v3543
        %v3551 = vmul.f32 %v1371, %v3547
        %v3552 = vmul.f32 %v1368, %v3543
        %v3553 = vmul.f32 %v1369, %v3547
        %v3554 = vmul.f32 %v1366, %v3543
        %v3555 = vmul.f32 %v1367, %v3547
        %v3556 = vmul.f32 %v1364, %v3543
        %v3557 = vmul.f32 %v1365, %v3547
        %v3558 = vmul.f32 %v1362, %v3543
        %v3559 = vmul.f32 %v1363, %v3547
        %v3560 = vmul.f32 %v1360, %v3543
        %v3561 = vmul.f32 %v1361, %v3547
        %v3562 = vmul.f32 %v1358, %v3543
        %v3563 = vmul.f32 %v1359, %v3547
        %v3564 = vmul.f32 %v1356, %v3543
        %v3565 = vmul.f32 %v1357, %v3547
        %v3566 = vmul.f32 %v1354, %v3543
        %v3567 = vmul.f32 %v1355, %v3547
        %v3568 = vmul.f32 %v1352, %v3543
        %v3569 = vmul.f32 %v1353, %v3547
        %v3570 = vmul.f32 %v1542, %v3543
        %v3571 = vmul.f32 %v1543, %v3547
        %v3572 = vmul.f32 %v1540, %v3543
        %v3573 = vmul.f32 %v1541, %v3547
        %v3574 = vmul.f32 %v1538, %v3543
        %v3575 = vmul.f32 %v1539, %v3547
        %v3576 = vmul.f32 %v1536, %v3543
        %v3577 = vmul.f32 %v1537, %v3547
        %v3578 = vmul.f32 %v1534, %v3543
        %v3579 = vmul.f32 %v1535, %v3547
        %v3580 = vmul.f32 %v1532, %v3543
        %v3581 = vmul.f32 %v1533, %v3547
        %v3582 = vmul.f32 %v1530, %v3543
        %v3583 = vmul.f32 %v1531, %v3547
        %v3584 = vmul.f32 %v1528, %v3543
        %v3585 = vmul.f32 %v1529, %v3547
        %v3586 = vmul.f32 %v1526, %v3543
        %v3587 = vmul.f32 %v1527, %v3547
        %v3588 = vmul.f32 %v1524, %v3543
        %v3589 = vmul.f32 %v1525, %v3547
        %v3590 = vmul.f32 %v1522, %v3543
        %v3591 = vmul.f32 %v1523, %v3547
        %v3592 = vmul.f32 %v1520, %v3543
        %v3593 = vmul.f32 %v1521, %v3547
        %v3594 = vmul.f32 %v1518, %v3543
        %v3595 = vmul.f32 %v1519, %v3547
        %v3596 = vmul.f32 %v1516, %v3543
        %v3597 = vmul.f32 %v1517, %v3547
        %v3598 = vmul.f32 %v1514, %v3543
        %v3599 = vmul.f32 %v1515, %v3547
        %v3600 = vmul.f32 %v1512, %v3543
        %v3601 = vmul.f32 %v1513, %v3547
        %v3602 = vmul.f32 %v1510, %v3543
        %v3603 = vmul.f32 %v1511, %v3547
        %v3604 = vmul.f32 %v1508, %v3543
        %v3605 = vmul.f32 %v1509, %v3547
        %v3606 = vmul.f32 %v1506, %v3543
        %v3607 = vmul.f32 %v1507, %v3547
        %v3608 = vmul.f32 %v1504, %v3543
        %v3609 = vmul.f32 %v1505, %v3547
        %v3610 = vmul.f32 %v1502, %v3543
        %v3611 = vmul.f32 %v1503, %v3547
        %v3612 = vmul.f32 %v1500, %v3543
        %v3613 = vmul.f32 %v1501, %v3547
        %v3614 = vmul.f32 %v1498, %v3543
        %v3615 = vmul.f32 %v1499, %v3547
        %v3616 = vmul.f32 %v1496, %v3543
        %v3617 = vmul.f32 %v1497, %v3547
        %v3618 = vmul.f32 %v1494, %v3543
        %v3619 = vmul.f32 %v1495, %v3547
        %v3620 = vmul.f32 %v1492, %v3543
        %v3621 = vmul.f32 %v1493, %v3547
        %v3622 = vmul.f32 %v1490, %v3543
        %v3623 = vmul.f32 %v1491, %v3547
        %v3624 = vmul.f32 %v1488, %v3543
        %v3625 = vmul.f32 %v1489, %v3547
        %v3626 = vmul.f32 %v1486, %v3543
        %v3627 = vmul.f32 %v1487, %v3547
        %v3628 = vmul.f32 %v1484, %v3543
        %v3629 = vmul.f32 %v1485, %v3547
        %v3630 = vmul.f32 %v1482, %v3543
        %v3631 = vmul.f32 %v1483, %v3547
        %v3632 = vmul.f32 %v1480, %v3543
        %v3633 = vmul.f32 %v1481, %v3547
        %v3634 = vmul.f32 %v1478, %v3543
        %v3635 = vmul.f32 %v1479, %v3547
        %v3636 = vmul.f32 %v1476, %v3543
        %v3637 = vmul.f32 %v1477, %v3547
        %v3638 = vmul.f32 %v1474, %v3543
        %v3639 = vmul.f32 %v1475, %v3547
        %v3640 = vmul.f32 %v1472, %v3543
        %v3641 = vmul.f32 %v1473, %v3547
        %v3642 = vmul.f32 %v1470, %v3543
        %v3643 = vmul.f32 %v1471, %v3547
        %v3644 = vmul.f32 %v1468, %v3543
        %v3645 = vmul.f32 %v1469, %v3547
        %v3646 = vmul.f32 %v1466, %v3543
        %v3647 = vmul.f32 %v1467, %v3547
        %v3648 = vmul.f32 %v1464, %v3543
        %v3649 = vmul.f32 %v1465, %v3547
        %v3650 = vmul.f32 %v1462, %v3543
        %v3651 = vmul.f32 %v1463, %v3547
        %v3652 = vmul.f32 %v1460, %v3543
        %v3653 = vmul.f32 %v1461, %v3547
        %v3654 = vmul.f32 %v1458, %v3543
        %v3655 = vmul.f32 %v1459, %v3547
        %v3656 = vmul.f32 %v1456, %v3543
        %v3657 = vmul.f32 %v1457, %v3547
        %v3658 = vmul.f32 %v1454, %v3543
        %v3659 = vmul.f32 %v1455, %v3547
        %v3660 = vmul.f32 %v1452, %v3543
        %v3661 = vmul.f32 %v1453, %v3547
        %v3662 = vmul.f32 %v1450, %v3543
        %v3663 = vmul.f32 %v1451, %v3547
        %v3664 = vmul.f32 %v1448, %v3543
        %v3665 = vmul.f32 %v1449, %v3547
        %v3666 = vmul.f32 %v1446, %v3543
        %v3667 = vmul.f32 %v1447, %v3547
        %v3668 = vmul.f32 %v1444, %v3543
        %v3669 = vmul.f32 %v1445, %v3547
        %v3670 = vmul.f32 %v1442, %v3543
        %v3671 = vmul.f32 %v1443, %v3547
        %v3672 = vmul.f32 %v1440, %v3543
        %v3673 = vmul.f32 %v1441, %v3547
        %v3674 = vmul.f32 %v1438, %v3543
        %v3675 = vmul.f32 %v1439, %v3547
        %v3676 = vmul.f32 %v1436, %v3543
        %v3677 = vmul.f32 %v1437, %v3547
        %v3678 = vmul.f32 %v1434, %v3543
        %v3679 = vmul.f32 %v1435, %v3547
        %v3680 = vmul.f32 %v1432, %v3543
        %v3681 = vmul.f32 %v1433, %v3547
        %v3682 = vmul.f32 %v1430, %v3543
        %v3683 = vmul.f32 %v1431, %v3547
        %v3684 = vmul.f32 %v1428, %v3543
        %v3685 = vmul.f32 %v1429, %v3547
        %v3686 = vmul.f32 %v1426, %v3543
        %v3687 = vmul.f32 %v1427, %v3547
        %v3688 = vmul.f32 %v1424, %v3543
        %v3689 = vmul.f32 %v1425, %v3547
        %v3690 = vmul.f32 %v1422, %v3543
        %v3691 = vmul.f32 %v1423, %v3547
        %v3692 = vmul.f32 %v1420, %v3543
        %v3693 = vmul.f32 %v1421, %v3547
        %v3694 = vmul.f32 %v1418, %v3543
        %v3695 = vmul.f32 %v1419, %v3547
        %v3696 = vmul.f32 %v1416, %v3543
        %v3697 = vmul.f32 %v1417, %v3547
        %v3698 = vmul.f32 %v1414, %v3543
        %v3699 = vmul.f32 %v1415, %v3547
        %v3700 = vmul.f32 %v1412, %v3543
        %v3701 = vmul.f32 %v1413, %v3547
        %v3702 = vmul.f32 %v1410, %v3543
        %v3703 = vmul.f32 %v1411, %v3547
        %v3704 = vmul.f32 %v1408, %v3543
        %v3705 = vmul.f32 %v1409, %v3547
        %v3706 = vmul.f32 %v1406, %v3543
        %v3707 = vmul.f32 %v1407, %v3547
        %v3708 = vmul.f32 %v1404, %v3543
        %v3709 = vmul.f32 %v1405, %v3547
        %v3710 = vmul.f32 %v1402, %v3543
        %v3711 = vmul.f32 %v1403, %v3547
        %v3712 = vmul.f32 %v1400, %v3543
        %v3713 = vmul.f32 %v1401, %v3547
        %v3714 = vmul.f32 %v1398, %v3543
        %v3715 = vmul.f32 %v1399, %v3547
        %v3716 = vmul.f32 %v1396, %v3543
        %v3717 = vmul.f32 %v1397, %v3547
        %v3718 = vmul.f32 %v1394, %v3543
        %v3719 = vmul.f32 %v1395, %v3547
        %v3720 = vmul.f32 %v1392, %v3543
        %v3721 = vmul.f32 %v1393, %v3547
        %v3722 = vmul.f32 %v1390, %v3543
        %v3723 = vmul.f32 %v1391, %v3547
        %v3724 = vmul.f32 %v1388, %v3543
        %v3725 = vmul.f32 %v1389, %v3547
        %v3726 = vmul.f32 %v1386, %v3543
        %v3727 = vmul.f32 %v1387, %v3547
        %v3728 = vmul.f32 %v1384, %v3543
        %v3729 = vmul.f32 %v1385, %v3547
        %v3730 = vmul.f32 %v1382, %v3543
        %v3731 = vmul.f32 %v1383, %v3547
        %v3732 = vmul.f32 %v1380, %v3543
        %v3733 = vmul.f32 %v1381, %v3547
        %v3734 = vmul.f32 %v1378, %v3543
        %v3735 = vmul.f32 %v1379, %v3547
        %v3736 = vmul.f32 %v1376, %v3543
        %v3737 = vmul.f32 %v1377, %v3547
        %v3738 = vmul.f32 %v1374, %v3543
        %v3739 = vmul.f32 %v1375, %v3547
        %v3740 = vmul.f32 %v1372, %v3543
        %v3741 = vmul.f32 %v1373, %v3547
        %v3742 = vadd.f32 %v3343, %v3550
        %v3743 = vadd.f32 %v3344, %v3551
        %v3744 = vadd.f32 %v3345, %v3552
        %v3745 = vadd.f32 %v3346, %v3553
        %v3746 = vadd.f32 %v3347, %v3554
        %v3747 = vadd.f32 %v3348, %v3555
        %v3748 = vadd.f32 %v3349, %v3556
        %v3749 = vadd.f32 %v3350, %v3557
        %v3750 = vadd.f32 %v3351, %v3558
        %v3751 = vadd.f32 %v3352, %v3559
        %v3752 = vadd.f32 %v3353, %v3560
        %v3753 = vadd.f32 %v3354, %v3561
        %v3754 = vadd.f32 %v3355, %v3562
        %v3755 = vadd.f32 %v3356, %v3563
        %v3756 = vadd.f32 %v3357, %v3564
        %v3757 = vadd.f32 %v3358, %v3565
        %v3758 = vadd.f32 %v3359, %v3566
        %v3759 = vadd.f32 %v3360, %v3567
        %v3760 = vadd.f32 %v3361, %v3568
        %v3761 = vadd.f32 %v3362, %v3569
        %v3762 = vadd.f32 %v3363, %v3570
        %v3763 = vadd.f32 %v3364, %v3571
        %v3764 = vadd.f32 %v3365, %v3572
        %v3765 = vadd.f32 %v3366, %v3573
        %v3766 = vadd.f32 %v3367, %v3574
        %v3767 = vadd.f32 %v3368, %v3575
        %v3768 = vadd.f32 %v3369, %v3576
        %v3769 = vadd.f32 %v3370, %v3577
        %v3770 = vadd.f32 %v3371, %v3578
        %v3771 = vadd.f32 %v3372, %v3579
        %v3772 = vadd.f32 %v3373, %v3580
        %v3773 = vadd.f32 %v3374, %v3581
        %v3774 = vadd.f32 %v3375, %v3582
        %v3775 = vadd.f32 %v3376, %v3583
        %v3776 = vadd.f32 %v3377, %v3584
        %v3777 = vadd.f32 %v3378, %v3585
        %v3778 = vadd.f32 %v3379, %v3586
        %v3779 = vadd.f32 %v3380, %v3587
        %v3780 = vadd.f32 %v3381, %v3588
        %v3781 = vadd.f32 %v3382, %v3589
        %v3782 = vadd.f32 %v3383, %v3590
        %v3783 = vadd.f32 %v3384, %v3591
        %v3784 = vadd.f32 %v3385, %v3592
        %v3785 = vadd.f32 %v3386, %v3593
        %v3786 = vadd.f32 %v3387, %v3594
        %v3787 = vadd.f32 %v3388, %v3595
        %v3788 = vadd.f32 %v3389, %v3596
        %v3789 = vadd.f32 %v3390, %v3597
        %v3790 = vadd.f32 %v3391, %v3598
        %v3791 = vadd.f32 %v3392, %v3599
        %v3792 = vadd.f32 %v3393, %v3600
        %v3793 = vadd.f32 %v3394, %v3601
        %v3794 = vadd.f32 %v3395, %v3602
        %v3795 = vadd.f32 %v3396, %v3603
        %v3796 = vadd.f32 %v3397, %v3604
        %v3797 = vadd.f32 %v3398, %v3605
        %v3798 = vadd.f32 %v3399, %v3606
        %v3799 = vadd.f32 %v3400, %v3607
        %v3800 = vadd.f32 %v3401, %v3608
        %v3801 = vadd.f32 %v3402, %v3609
        %v3802 = vadd.f32 %v3403, %v3610
        %v3803 = vadd.f32 %v3404, %v3611
        %v3804 = vadd.f32 %v3405, %v3612
        %v3805 = vadd.f32 %v3406, %v3613
        %v3806 = vadd.f32 %v3407, %v3614
        %v3807 = vadd.f32 %v3408, %v3615
        %v3808 = vadd.f32 %v3409, %v3616
        %v3809 = vadd.f32 %v3410, %v3617
        %v3810 = vadd.f32 %v3411, %v3618
        %v3811 = vadd.f32 %v3412, %v3619
        %v3812 = vadd.f32 %v3413, %v3620
        %v3813 = vadd.f32 %v3414, %v3621
        %v3814 = vadd.f32 %v3415, %v3622
        %v3815 = vadd.f32 %v3416, %v3623
        %v3816 = vadd.f32 %v3417, %v3624
        %v3817 = vadd.f32 %v3418, %v3625
        %v3818 = vadd.f32 %v3419, %v3626
        %v3819 = vadd.f32 %v3420, %v3627
        %v3820 = vadd.f32 %v3421, %v3628
        %v3821 = vadd.f32 %v3422, %v3629
        %v3822 = vadd.f32 %v3423, %v3630
        %v3823 = vadd.f32 %v3424, %v3631
        %v3824 = vadd.f32 %v3425, %v3632
        %v3825 = vadd.f32 %v3426, %v3633
        %v3826 = vadd.f32 %v3427, %v3634
        %v3827 = vadd.f32 %v3428, %v3635
        %v3828 = vadd.f32 %v3429, %v3636
        %v3829 = vadd.f32 %v3430, %v3637
        %v3830 = vadd.f32 %v3431, %v3638
        %v3831 = vadd.f32 %v3432, %v3639
        %v3832 = vadd.f32 %v3433, %v3640
        %v3833 = vadd.f32 %v3434, %v3641
        %v3834 = vadd.f32 %v3435, %v3642
        %v3835 = vadd.f32 %v3436, %v3643
        %v3836 = vadd.f32 %v3437, %v3644
        %v3837 = vadd.f32 %v3438, %v3645
        %v3838 = vadd.f32 %v3439, %v3646
        %v3839 = vadd.f32 %v3440, %v3647
        %v3840 = vadd.f32 %v3441, %v3648
        %v3841 = vadd.f32 %v3442, %v3649
        %v3842 = vadd.f32 %v3443, %v3650
        %v3843 = vadd.f32 %v3444, %v3651
        %v3844 = vadd.f32 %v3445, %v3652
        %v3845 = vadd.f32 %v3446, %v3653
        %v3846 = vadd.f32 %v3447, %v3654
        %v3847 = vadd.f32 %v3448, %v3655
        %v3848 = vadd.f32 %v3449, %v3656
        %v3849 = vadd.f32 %v3450, %v3657
        %v3850 = vadd.f32 %v3451, %v3658
        %v3851 = vadd.f32 %v3452, %v3659
        %v3852 = vadd.f32 %v3453, %v3660
        %v3853 = vadd.f32 %v3454, %v3661
        %v3854 = vadd.f32 %v3455, %v3662
        %v3855 = vadd.f32 %v3456, %v3663
        %v3856 = vadd.f32 %v3457, %v3664
        %v3857 = vadd.f32 %v3458, %v3665
        %v3858 = vadd.f32 %v3459, %v3666
        %v3859 = vadd.f32 %v3460, %v3667
        %v3860 = vadd.f32 %v3461, %v3668
        %v3861 = vadd.f32 %v3462, %v3669
        %v3862 = vadd.f32 %v3463, %v3670
        %v3863 = vadd.f32 %v3464, %v3671
        %v3864 = vadd.f32 %v3465, %v3672
        %v3865 = vadd.f32 %v3466, %v3673
        %v3866 = vadd.f32 %v3467, %v3674
        %v3867 = vadd.f32 %v3468, %v3675
        %v3868 = vadd.f32 %v3469, %v3676
        %v3869 = vadd.f32 %v3470, %v3677
        %v3870 = vadd.f32 %v3471, %v3678
        %v3871 = vadd.f32 %v3472, %v3679
        %v3872 = vadd.f32 %v3473, %v3680
        %v3873 = vadd.f32 %v3474, %v3681
        %v3874 = vadd.f32 %v3475, %v3682
        %v3875 = vadd.f32 %v3476, %v3683
        %v3876 = vadd.f32 %v3477, %v3684
        %v3877 = vadd.f32 %v3478, %v3685
        %v3878 = vadd.f32 %v3479, %v3686
        %v3879 = vadd.f32 %v3480, %v3687
        %v3880 = vadd.f32 %v3481, %v3688
        %v3881 = vadd.f32 %v3482, %v3689
        %v3882 = vadd.f32 %v3483, %v3690
        %v3883 = vadd.f32 %v3484, %v3691
        %v3884 = vadd.f32 %v3485, %v3692
        %v3885 = vadd.f32 %v3486, %v3693
        %v3886 = vadd.f32 %v3487, %v3694
        %v3887 = vadd.f32 %v3488, %v3695
        %v3888 = vadd.f32 %v3489, %v3696
        %v3889 = vadd.f32 %v3490, %v3697
        %v3890 = vadd.f32 %v3491, %v3698
        %v3891 = vadd.f32 %v3492, %v3699
        %v3892 = vadd.f32 %v3493, %v3700
        %v3893 = vadd.f32 %v3494, %v3701
        %v3894 = vadd.f32 %v3495, %v3702
        %v3895 = vadd.f32 %v3496, %v3703
        %v3896 = vadd.f32 %v3497, %v3704
        %v3897 = vadd.f32 %v3498, %v3705
        %v3898 = vadd.f32 %v3499, %v3706
        %v3899 = vadd.f32 %v3500, %v3707
        %v3900 = vadd.f32 %v3501, %v3708
        %v3901 = vadd.f32 %v3502, %v3709
        %v3902 = vadd.f32 %v3503, %v3710
        %v3903 = vadd.f32 %v3504, %v3711
        %v3904 = vadd.f32 %v3505, %v3712
        %v3905 = vadd.f32 %v3506, %v3713
        %v3906 = vadd.f32 %v3507, %v3714
        %v3907 = vadd.f32 %v3508, %v3715
        %v3908 = vadd.f32 %v3509, %v3716
        %v3909 = vadd.f32 %v3510, %v3717
        %v3910 = vadd.f32 %v3511, %v3718
        %v3911 = vadd.f32 %v3512, %v3719
        %v3912 = vadd.f32 %v3513, %v3720
        %v3913 = vadd.f32 %v3514, %v3721
        %v3914 = vadd.f32 %v3515, %v3722
        %v3915 = vadd.f32 %v3516, %v3723
        %v3916 = vadd.f32 %v3517, %v3724
        %v3917 = vadd.f32 %v3518, %v3725
        %v3918 = vadd.f32 %v3519, %v3726
        %v3919 = vadd.f32 %v3520, %v3727
        %v3920 = vadd.f32 %v3521, %v3728
        %v3921 = vadd.f32 %v3522, %v3729
        %v3922 = vadd.f32 %v3523, %v3730
        %v3923 = vadd.f32 %v3524, %v3731
        %v3924 = vadd.f32 %v3525, %v3732
        %v3925 = vadd.f32 %v3526, %v3733
        %v3926 = vadd.f32 %v3527, %v3734
        %v3927 = vadd.f32 %v3528, %v3735
        %v3928 = vadd.f32 %v3529, %v3736
        %v3929 = vadd.f32 %v3530, %v3737
        %v3930 = vadd.f32 %v3531, %v3738
        %v3931 = vadd.f32 %v3532, %v3739
        %v3932 = vadd.f32 %v3533, %v3740
        %v3933 = vadd.f32 %v3534, %v3741
        %vm3934 = vmand %vm3324, %vm1940
        %vm3935 = vmand %vm3934, %vm1942
        %v3936 = vmul.f32 %v432, %v431
        %vm3937 = vmand %vm3935, %vm943
        %vm3938 = vmand %vm3937, %vm945
        %v3939 = vmul.f32 %v3936, %v932
        %v3940 = vsel %vm3938, %v3939, 0.0
        %v3942 = vlaneseq
        %v3943 = vshrl.u32 %v3942, 7
        %v3944 = vsub.s32 0, %v3943
        %v3945 = vrot.slane %v3940, %v3944
        %v3946 = vlaneseq
        %v3947 = vshrl.u32 %v3946, 7
        %v3948 = vsub.s32 1, %v3947
        %v3949 = vrot.slane %v3940, %v3948
        %v3952 = vmul.f32 %v2162, %v3945
        %v3953 = vmul.f32 %v2163, %v3949
        %v3954 = vmul.f32 %v2160, %v3945
        %v3955 = vmul.f32 %v2161, %v3949
        %v3956 = vmul.f32 %v2158, %v3945
        %v3957 = vmul.f32 %v2159, %v3949
        %v3958 = vmul.f32 %v2156, %v3945
        %v3959 = vmul.f32 %v2157, %v3949
        %v3960 = vmul.f32 %v2154, %v3945
        %v3961 = vmul.f32 %v2155, %v3949
        %v3962 = vmul.f32 %v2152, %v3945
        %v3963 = vmul.f32 %v2153, %v3949
        %v3964 = vmul.f32 %v2150, %v3945
        %v3965 = vmul.f32 %v2151, %v3949
        %v3966 = vmul.f32 %v2148, %v3945
        %v3967 = vmul.f32 %v2149, %v3949
        %v3968 = vmul.f32 %v2146, %v3945
        %v3969 = vmul.f32 %v2147, %v3949
        %v3970 = vmul.f32 %v2144, %v3945
        %v3971 = vmul.f32 %v2145, %v3949
        %v3972 = vmul.f32 %v2142, %v3945
        %v3973 = vmul.f32 %v2143, %v3949
        %v3974 = vmul.f32 %v2332, %v3945
        %v3975 = vmul.f32 %v2333, %v3949
        %v3976 = vmul.f32 %v2330, %v3945
        %v3977 = vmul.f32 %v2331, %v3949
        %v3978 = vmul.f32 %v2328, %v3945
        %v3979 = vmul.f32 %v2329, %v3949
        %v3980 = vmul.f32 %v2326, %v3945
        %v3981 = vmul.f32 %v2327, %v3949
        %v3982 = vmul.f32 %v2324, %v3945
        %v3983 = vmul.f32 %v2325, %v3949
        %v3984 = vmul.f32 %v2322, %v3945
        %v3985 = vmul.f32 %v2323, %v3949
        %v3986 = vmul.f32 %v2320, %v3945
        %v3987 = vmul.f32 %v2321, %v3949
        %v3988 = vmul.f32 %v2318, %v3945
        %v3989 = vmul.f32 %v2319, %v3949
        %v3990 = vmul.f32 %v2316, %v3945
        %v3991 = vmul.f32 %v2317, %v3949
        %v3992 = vmul.f32 %v2314, %v3945
        %v3993 = vmul.f32 %v2315, %v3949
        %v3994 = vmul.f32 %v2312, %v3945
        %v3995 = vmul.f32 %v2313, %v3949
        %v3996 = vmul.f32 %v2310, %v3945
        %v3997 = vmul.f32 %v2311, %v3949
        %v3998 = vmul.f32 %v2308, %v3945
        %v3999 = vmul.f32 %v2309, %v3949
        %v4000 = vmul.f32 %v2306, %v3945
        %v4001 = vmul.f32 %v2307, %v3949
        %v4002 = vmul.f32 %v2304, %v3945
        %v4003 = vmul.f32 %v2305, %v3949
        %v4004 = vmul.f32 %v2302, %v3945
        %v4005 = vmul.f32 %v2303, %v3949
        %v4006 = vmul.f32 %v2300, %v3945
        %v4007 = vmul.f32 %v2301, %v3949
        %v4008 = vmul.f32 %v2298, %v3945
        %v4009 = vmul.f32 %v2299, %v3949
        %v4010 = vmul.f32 %v2296, %v3945
        %v4011 = vmul.f32 %v2297, %v3949
        %v4012 = vmul.f32 %v2294, %v3945
        %v4013 = vmul.f32 %v2295, %v3949
        %v4014 = vmul.f32 %v2292, %v3945
        %v4015 = vmul.f32 %v2293, %v3949
        %v4016 = vmul.f32 %v2290, %v3945
        %v4017 = vmul.f32 %v2291, %v3949
        %v4018 = vmul.f32 %v2288, %v3945
        %v4019 = vmul.f32 %v2289, %v3949
        %v4020 = vmul.f32 %v2286, %v3945
        %v4021 = vmul.f32 %v2287, %v3949
        %v4022 = vmul.f32 %v2284, %v3945
        %v4023 = vmul.f32 %v2285, %v3949
        %v4024 = vmul.f32 %v2282, %v3945
        %v4025 = vmul.f32 %v2283, %v3949
        %v4026 = vmul.f32 %v2280, %v3945
        %v4027 = vmul.f32 %v2281, %v3949
        %v4028 = vmul.f32 %v2278, %v3945
        %v4029 = vmul.f32 %v2279, %v3949
        %v4030 = vmul.f32 %v2276, %v3945
        %v4031 = vmul.f32 %v2277, %v3949
        %v4032 = vmul.f32 %v2274, %v3945
        %v4033 = vmul.f32 %v2275, %v3949
        %v4034 = vmul.f32 %v2272, %v3945
        %v4035 = vmul.f32 %v2273, %v3949
        %v4036 = vmul.f32 %v2270, %v3945
        %v4037 = vmul.f32 %v2271, %v3949
        %v4038 = vmul.f32 %v2268, %v3945
        %v4039 = vmul.f32 %v2269, %v3949
        %v4040 = vmul.f32 %v2266, %v3945
        %v4041 = vmul.f32 %v2267, %v3949
        %v4042 = vmul.f32 %v2264, %v3945
        %v4043 = vmul.f32 %v2265, %v3949
        %v4044 = vmul.f32 %v2262, %v3945
        %v4045 = vmul.f32 %v2263, %v3949
        %v4046 = vmul.f32 %v2260, %v3945
        %v4047 = vmul.f32 %v2261, %v3949
        %v4048 = vmul.f32 %v2258, %v3945
        %v4049 = vmul.f32 %v2259, %v3949
        %v4050 = vmul.f32 %v2256, %v3945
        %v4051 = vmul.f32 %v2257, %v3949
        %v4052 = vmul.f32 %v2254, %v3945
        %v4053 = vmul.f32 %v2255, %v3949
        %v4054 = vmul.f32 %v2252, %v3945
        %v4055 = vmul.f32 %v2253, %v3949
        %v4056 = vmul.f32 %v2250, %v3945
        %v4057 = vmul.f32 %v2251, %v3949
        %v4058 = vmul.f32 %v2248, %v3945
        %v4059 = vmul.f32 %v2249, %v3949
        %v4060 = vmul.f32 %v2246, %v3945
        %v4061 = vmul.f32 %v2247, %v3949
        %v4062 = vmul.f32 %v2244, %v3945
        %v4063 = vmul.f32 %v2245, %v3949
        %v4064 = vmul.f32 %v2242, %v3945
        %v4065 = vmul.f32 %v2243, %v3949
        %v4066 = vmul.f32 %v2240, %v3945
        %v4067 = vmul.f32 %v2241, %v3949
        %v4068 = vmul.f32 %v2238, %v3945
        %v4069 = vmul.f32 %v2239, %v3949
        %v4070 = vmul.f32 %v2236, %v3945
        %v4071 = vmul.f32 %v2237, %v3949
        %v4072 = vmul.f32 %v2234, %v3945
        %v4073 = vmul.f32 %v2235, %v3949
        %v4074 = vmul.f32 %v2232, %v3945
        %v4075 = vmul.f32 %v2233, %v3949
        %v4076 = vmul.f32 %v2230, %v3945
        %v4077 = vmul.f32 %v2231, %v3949
        %v4078 = vmul.f32 %v2228, %v3945
        %v4079 = vmul.f32 %v2229, %v3949
        %v4080 = vmul.f32 %v2226, %v3945
        %v4081 = vmul.f32 %v2227, %v3949
        %v4082 = vmul.f32 %v2224, %v3945
        %v4083 = vmul.f32 %v2225, %v3949
        %v4084 = vmul.f32 %v2222, %v3945
        %v4085 = vmul.f32 %v2223, %v3949
        %v4086 = vmul.f32 %v2220, %v3945
        %v4087 = vmul.f32 %v2221, %v3949
        %v4088 = vmul.f32 %v2218, %v3945
        %v4089 = vmul.f32 %v2219, %v3949
        %v4090 = vmul.f32 %v2216, %v3945
        %v4091 = vmul.f32 %v2217, %v3949
        %v4092 = vmul.f32 %v2214, %v3945
        %v4093 = vmul.f32 %v2215, %v3949
        %v4094 = vmul.f32 %v2212, %v3945
        %v4095 = vmul.f32 %v2213, %v3949
        %v4096 = vmul.f32 %v2210, %v3945
        %v4097 = vmul.f32 %v2211, %v3949
        %v4098 = vmul.f32 %v2208, %v3945
        %v4099 = vmul.f32 %v2209, %v3949
        %v4100 = vmul.f32 %v2206, %v3945
        %v4101 = vmul.f32 %v2207, %v3949
        %v4102 = vmul.f32 %v2204, %v3945
        %v4103 = vmul.f32 %v2205, %v3949
        %v4104 = vmul.f32 %v2202, %v3945
        %v4105 = vmul.f32 %v2203, %v3949
        %v4106 = vmul.f32 %v2200, %v3945
        %v4107 = vmul.f32 %v2201, %v3949
        %v4108 = vmul.f32 %v2198, %v3945
        %v4109 = vmul.f32 %v2199, %v3949
        %v4110 = vmul.f32 %v2196, %v3945
        %v4111 = vmul.f32 %v2197, %v3949
        %v4112 = vmul.f32 %v2194, %v3945
        %v4113 = vmul.f32 %v2195, %v3949
        %v4114 = vmul.f32 %v2192, %v3945
        %v4115 = vmul.f32 %v2193, %v3949
        %v4116 = vmul.f32 %v2190, %v3945
        %v4117 = vmul.f32 %v2191, %v3949
        %v4118 = vmul.f32 %v2188, %v3945
        %v4119 = vmul.f32 %v2189, %v3949
        %v4120 = vmul.f32 %v2186, %v3945
        %v4121 = vmul.f32 %v2187, %v3949
        %v4122 = vmul.f32 %v2184, %v3945
        %v4123 = vmul.f32 %v2185, %v3949
        %v4124 = vmul.f32 %v2182, %v3945
        %v4125 = vmul.f32 %v2183, %v3949
        %v4126 = vmul.f32 %v2180, %v3945
        %v4127 = vmul.f32 %v2181, %v3949
        %v4128 = vmul.f32 %v2178, %v3945
        %v4129 = vmul.f32 %v2179, %v3949
        %v4130 = vmul.f32 %v2176, %v3945
        %v4131 = vmul.f32 %v2177, %v3949
        %v4132 = vmul.f32 %v2174, %v3945
        %v4133 = vmul.f32 %v2175, %v3949
        %v4134 = vmul.f32 %v2172, %v3945
        %v4135 = vmul.f32 %v2173, %v3949
        %v4136 = vmul.f32 %v2170, %v3945
        %v4137 = vmul.f32 %v2171, %v3949
        %v4138 = vmul.f32 %v2168, %v3945
        %v4139 = vmul.f32 %v2169, %v3949
        %v4140 = vmul.f32 %v2166, %v3945
        %v4141 = vmul.f32 %v2167, %v3949
        %v4142 = vmul.f32 %v2164, %v3945
        %v4143 = vmul.f32 %v2165, %v3949
        %vm4144 = vmand %vm3935, %vm1153
        %vm4145 = vmand %vm4144, %vm1155
        %v4146 = vmul.f32 %v3936, %v430
        %v4147 = vsel %vm4145, %v4146, 0.0
        %v4149 = vlaneseq
        %v4150 = vshrl.u32 %v4149, 7
        %v4151 = vsub.s32 0, %v4150
        %v4152 = vrot.slane %v4147, %v4151
        %v4153 = vlaneseq
        %v4154 = vshrl.u32 %v4153, 7
        %v4155 = vsub.s32 1, %v4154
        %v4156 = vrot.slane %v4147, %v4155
        %v4159 = vmul.f32 %v2754, %v4152
        %v4160 = vmul.f32 %v2755, %v4156
        %v4161 = vmul.f32 %v2752, %v4152
        %v4162 = vmul.f32 %v2753, %v4156
        %v4163 = vmul.f32 %v2750, %v4152
        %v4164 = vmul.f32 %v2751, %v4156
        %v4165 = vmul.f32 %v2748, %v4152
        %v4166 = vmul.f32 %v2749, %v4156
        %v4167 = vmul.f32 %v2746, %v4152
        %v4168 = vmul.f32 %v2747, %v4156
        %v4169 = vmul.f32 %v2744, %v4152
        %v4170 = vmul.f32 %v2745, %v4156
        %v4171 = vmul.f32 %v2742, %v4152
        %v4172 = vmul.f32 %v2743, %v4156
        %v4173 = vmul.f32 %v2740, %v4152
        %v4174 = vmul.f32 %v2741, %v4156
        %v4175 = vmul.f32 %v2738, %v4152
        %v4176 = vmul.f32 %v2739, %v4156
        %v4177 = vmul.f32 %v2736, %v4152
        %v4178 = vmul.f32 %v2737, %v4156
        %v4179 = vmul.f32 %v2734, %v4152
        %v4180 = vmul.f32 %v2735, %v4156
        %v4181 = vmul.f32 %v2924, %v4152
        %v4182 = vmul.f32 %v2925, %v4156
        %v4183 = vmul.f32 %v2922, %v4152
        %v4184 = vmul.f32 %v2923, %v4156
        %v4185 = vmul.f32 %v2920, %v4152
        %v4186 = vmul.f32 %v2921, %v4156
        %v4187 = vmul.f32 %v2918, %v4152
        %v4188 = vmul.f32 %v2919, %v4156
        %v4189 = vmul.f32 %v2916, %v4152
        %v4190 = vmul.f32 %v2917, %v4156
        %v4191 = vmul.f32 %v2914, %v4152
        %v4192 = vmul.f32 %v2915, %v4156
        %v4193 = vmul.f32 %v2912, %v4152
        %v4194 = vmul.f32 %v2913, %v4156
        %v4195 = vmul.f32 %v2910, %v4152
        %v4196 = vmul.f32 %v2911, %v4156
        %v4197 = vmul.f32 %v2908, %v4152
        %v4198 = vmul.f32 %v2909, %v4156
        %v4199 = vmul.f32 %v2906, %v4152
        %v4200 = vmul.f32 %v2907, %v4156
        %v4201 = vmul.f32 %v2904, %v4152
        %v4202 = vmul.f32 %v2905, %v4156
        %v4203 = vmul.f32 %v2902, %v4152
        %v4204 = vmul.f32 %v2903, %v4156
        %v4205 = vmul.f32 %v2900, %v4152
        %v4206 = vmul.f32 %v2901, %v4156
        %v4207 = vmul.f32 %v2898, %v4152
        %v4208 = vmul.f32 %v2899, %v4156
        %v4209 = vmul.f32 %v2896, %v4152
        %v4210 = vmul.f32 %v2897, %v4156
        %v4211 = vmul.f32 %v2894, %v4152
        %v4212 = vmul.f32 %v2895, %v4156
        %v4213 = vmul.f32 %v2892, %v4152
        %v4214 = vmul.f32 %v2893, %v4156
        %v4215 = vmul.f32 %v2890, %v4152
        %v4216 = vmul.f32 %v2891, %v4156
        %v4217 = vmul.f32 %v2888, %v4152
        %v4218 = vmul.f32 %v2889, %v4156
        %v4219 = vmul.f32 %v2886, %v4152
        %v4220 = vmul.f32 %v2887, %v4156
        %v4221 = vmul.f32 %v2884, %v4152
        %v4222 = vmul.f32 %v2885, %v4156
        %v4223 = vmul.f32 %v2882, %v4152
        %v4224 = vmul.f32 %v2883, %v4156
        %v4225 = vmul.f32 %v2880, %v4152
        %v4226 = vmul.f32 %v2881, %v4156
        %v4227 = vmul.f32 %v2878, %v4152
        %v4228 = vmul.f32 %v2879, %v4156
        %v4229 = vmul.f32 %v2876, %v4152
        %v4230 = vmul.f32 %v2877, %v4156
        %v4231 = vmul.f32 %v2874, %v4152
        %v4232 = vmul.f32 %v2875, %v4156
        %v4233 = vmul.f32 %v2872, %v4152
        %v4234 = vmul.f32 %v2873, %v4156
        %v4235 = vmul.f32 %v2870, %v4152
        %v4236 = vmul.f32 %v2871, %v4156
        %v4237 = vmul.f32 %v2868, %v4152
        %v4238 = vmul.f32 %v2869, %v4156
        %v4239 = vmul.f32 %v2866, %v4152
        %v4240 = vmul.f32 %v2867, %v4156
        %v4241 = vmul.f32 %v2864, %v4152
        %v4242 = vmul.f32 %v2865, %v4156
        %v4243 = vmul.f32 %v2862, %v4152
        %v4244 = vmul.f32 %v2863, %v4156
        %v4245 = vmul.f32 %v2860, %v4152
        %v4246 = vmul.f32 %v2861, %v4156
        %v4247 = vmul.f32 %v2858, %v4152
        %v4248 = vmul.f32 %v2859, %v4156
        %v4249 = vmul.f32 %v2856, %v4152
        %v4250 = vmul.f32 %v2857, %v4156
        %v4251 = vmul.f32 %v2854, %v4152
        %v4252 = vmul.f32 %v2855, %v4156
        %v4253 = vmul.f32 %v2852, %v4152
        %v4254 = vmul.f32 %v2853, %v4156
        %v4255 = vmul.f32 %v2850, %v4152
        %v4256 = vmul.f32 %v2851, %v4156
        %v4257 = vmul.f32 %v2848, %v4152
        %v4258 = vmul.f32 %v2849, %v4156
        %v4259 = vmul.f32 %v2846, %v4152
        %v4260 = vmul.f32 %v2847, %v4156
        %v4261 = vmul.f32 %v2844, %v4152
        %v4262 = vmul.f32 %v2845, %v4156
        %v4263 = vmul.f32 %v2842, %v4152
        %v4264 = vmul.f32 %v2843, %v4156
        %v4265 = vmul.f32 %v2840, %v4152
        %v4266 = vmul.f32 %v2841, %v4156
        %v4267 = vmul.f32 %v2838, %v4152
        %v4268 = vmul.f32 %v2839, %v4156
        %v4269 = vmul.f32 %v2836, %v4152
        %v4270 = vmul.f32 %v2837, %v4156
        %v4271 = vmul.f32 %v2834, %v4152
        %v4272 = vmul.f32 %v2835, %v4156
        %v4273 = vmul.f32 %v2832, %v4152
        %v4274 = vmul.f32 %v2833, %v4156
        %v4275 = vmul.f32 %v2830, %v4152
        %v4276 = vmul.f32 %v2831, %v4156
        %v4277 = vmul.f32 %v2828, %v4152
        %v4278 = vmul.f32 %v2829, %v4156
        %v4279 = vmul.f32 %v2826, %v4152
        %v4280 = vmul.f32 %v2827, %v4156
        %v4281 = vmul.f32 %v2824, %v4152
        %v4282 = vmul.f32 %v2825, %v4156
        %v4283 = vmul.f32 %v2822, %v4152
        %v4284 = vmul.f32 %v2823, %v4156
        %v4285 = vmul.f32 %v2820, %v4152
        %v4286 = vmul.f32 %v2821, %v4156
        %v4287 = vmul.f32 %v2818, %v4152
        %v4288 = vmul.f32 %v2819, %v4156
        %v4289 = vmul.f32 %v2816, %v4152
        %v4290 = vmul.f32 %v2817, %v4156
        %v4291 = vmul.f32 %v2814, %v4152
        %v4292 = vmul.f32 %v2815, %v4156
        %v4293 = vmul.f32 %v2812, %v4152
        %v4294 = vmul.f32 %v2813, %v4156
        %v4295 = vmul.f32 %v2810, %v4152
        %v4296 = vmul.f32 %v2811, %v4156
        %v4297 = vmul.f32 %v2808, %v4152
        %v4298 = vmul.f32 %v2809, %v4156
        %v4299 = vmul.f32 %v2806, %v4152
        %v4300 = vmul.f32 %v2807, %v4156
        %v4301 = vmul.f32 %v2804, %v4152
        %v4302 = vmul.f32 %v2805, %v4156
        %v4303 = vmul.f32 %v2802, %v4152
        %v4304 = vmul.f32 %v2803, %v4156
        %v4305 = vmul.f32 %v2800, %v4152
        %v4306 = vmul.f32 %v2801, %v4156
        %v4307 = vmul.f32 %v2798, %v4152
        %v4308 = vmul.f32 %v2799, %v4156
        %v4309 = vmul.f32 %v2796, %v4152
        %v4310 = vmul.f32 %v2797, %v4156
        %v4311 = vmul.f32 %v2794, %v4152
        %v4312 = vmul.f32 %v2795, %v4156
        %v4313 = vmul.f32 %v2792, %v4152
        %v4314 = vmul.f32 %v2793, %v4156
        %v4315 = vmul.f32 %v2790, %v4152
        %v4316 = vmul.f32 %v2791, %v4156
        %v4317 = vmul.f32 %v2788, %v4152
        %v4318 = vmul.f32 %v2789, %v4156
        %v4319 = vmul.f32 %v2786, %v4152
        %v4320 = vmul.f32 %v2787, %v4156
        %v4321 = vmul.f32 %v2784, %v4152
        %v4322 = vmul.f32 %v2785, %v4156
        %v4323 = vmul.f32 %v2782, %v4152
        %v4324 = vmul.f32 %v2783, %v4156
        %v4325 = vmul.f32 %v2780, %v4152
        %v4326 = vmul.f32 %v2781, %v4156
        %v4327 = vmul.f32 %v2778, %v4152
        %v4328 = vmul.f32 %v2779, %v4156
        %v4329 = vmul.f32 %v2776, %v4152
        %v4330 = vmul.f32 %v2777, %v4156
        %v4331 = vmul.f32 %v2774, %v4152
        %v4332 = vmul.f32 %v2775, %v4156
        %v4333 = vmul.f32 %v2772, %v4152
        %v4334 = vmul.f32 %v2773, %v4156
        %v4335 = vmul.f32 %v2770, %v4152
        %v4336 = vmul.f32 %v2771, %v4156
        %v4337 = vmul.f32 %v2768, %v4152
        %v4338 = vmul.f32 %v2769, %v4156
        %v4339 = vmul.f32 %v2766, %v4152
        %v4340 = vmul.f32 %v2767, %v4156
        %v4341 = vmul.f32 %v2764, %v4152
        %v4342 = vmul.f32 %v2765, %v4156
        %v4343 = vmul.f32 %v2762, %v4152
        %v4344 = vmul.f32 %v2763, %v4156
        %v4345 = vmul.f32 %v2760, %v4152
        %v4346 = vmul.f32 %v2761, %v4156
        %v4347 = vmul.f32 %v2758, %v4152
        %v4348 = vmul.f32 %v2759, %v4156
        %v4349 = vmul.f32 %v2756, %v4152
        %v4350 = vmul.f32 %v2757, %v4156
        %v4351 = vadd.f32 %v3952, %v4159
        %v4352 = vadd.f32 %v3953, %v4160
        %v4353 = vadd.f32 %v3954, %v4161
        %v4354 = vadd.f32 %v3955, %v4162
        %v4355 = vadd.f32 %v3956, %v4163
        %v4356 = vadd.f32 %v3957, %v4164
        %v4357 = vadd.f32 %v3958, %v4165
        %v4358 = vadd.f32 %v3959, %v4166
        %v4359 = vadd.f32 %v3960, %v4167
        %v4360 = vadd.f32 %v3961, %v4168
        %v4361 = vadd.f32 %v3962, %v4169
        %v4362 = vadd.f32 %v3963, %v4170
        %v4363 = vadd.f32 %v3964, %v4171
        %v4364 = vadd.f32 %v3965, %v4172
        %v4365 = vadd.f32 %v3966, %v4173
        %v4366 = vadd.f32 %v3967, %v4174
        %v4367 = vadd.f32 %v3968, %v4175
        %v4368 = vadd.f32 %v3969, %v4176
        %v4369 = vadd.f32 %v3970, %v4177
        %v4370 = vadd.f32 %v3971, %v4178
        %v4371 = vadd.f32 %v3972, %v4179
        %v4372 = vadd.f32 %v3973, %v4180
        %v4373 = vadd.f32 %v3974, %v4181
        %v4374 = vadd.f32 %v3975, %v4182
        %v4375 = vadd.f32 %v3976, %v4183
        %v4376 = vadd.f32 %v3977, %v4184
        %v4377 = vadd.f32 %v3978, %v4185
        %v4378 = vadd.f32 %v3979, %v4186
        %v4379 = vadd.f32 %v3980, %v4187
        %v4380 = vadd.f32 %v3981, %v4188
        %v4381 = vadd.f32 %v3982, %v4189
        %v4382 = vadd.f32 %v3983, %v4190
        %v4383 = vadd.f32 %v3984, %v4191
        %v4384 = vadd.f32 %v3985, %v4192
        %v4385 = vadd.f32 %v3986, %v4193
        %v4386 = vadd.f32 %v3987, %v4194
        %v4387 = vadd.f32 %v3988, %v4195
        %v4388 = vadd.f32 %v3989, %v4196
        %v4389 = vadd.f32 %v3990, %v4197
        %v4390 = vadd.f32 %v3991, %v4198
        %v4391 = vadd.f32 %v3992, %v4199
        %v4392 = vadd.f32 %v3993, %v4200
        %v4393 = vadd.f32 %v3994, %v4201
        %v4394 = vadd.f32 %v3995, %v4202
        %v4395 = vadd.f32 %v3996, %v4203
        %v4396 = vadd.f32 %v3997, %v4204
        %v4397 = vadd.f32 %v3998, %v4205
        %v4398 = vadd.f32 %v3999, %v4206
        %v4399 = vadd.f32 %v4000, %v4207
        %v4400 = vadd.f32 %v4001, %v4208
        %v4401 = vadd.f32 %v4002, %v4209
        %v4402 = vadd.f32 %v4003, %v4210
        %v4403 = vadd.f32 %v4004, %v4211
        %v4404 = vadd.f32 %v4005, %v4212
        %v4405 = vadd.f32 %v4006, %v4213
        %v4406 = vadd.f32 %v4007, %v4214
        %v4407 = vadd.f32 %v4008, %v4215
        %v4408 = vadd.f32 %v4009, %v4216
        %v4409 = vadd.f32 %v4010, %v4217
        %v4410 = vadd.f32 %v4011, %v4218
        %v4411 = vadd.f32 %v4012, %v4219
        %v4412 = vadd.f32 %v4013, %v4220
        %v4413 = vadd.f32 %v4014, %v4221
        %v4414 = vadd.f32 %v4015, %v4222
        %v4415 = vadd.f32 %v4016, %v4223
        %v4416 = vadd.f32 %v4017, %v4224
        %v4417 = vadd.f32 %v4018, %v4225
        %v4418 = vadd.f32 %v4019, %v4226
        %v4419 = vadd.f32 %v4020, %v4227
        %v4420 = vadd.f32 %v4021, %v4228
        %v4421 = vadd.f32 %v4022, %v4229
        %v4422 = vadd.f32 %v4023, %v4230
        %v4423 = vadd.f32 %v4024, %v4231
        %v4424 = vadd.f32 %v4025, %v4232
        %v4425 = vadd.f32 %v4026, %v4233
        %v4426 = vadd.f32 %v4027, %v4234
        %v4427 = vadd.f32 %v4028, %v4235
        %v4428 = vadd.f32 %v4029, %v4236
        %v4429 = vadd.f32 %v4030, %v4237
        %v4430 = vadd.f32 %v4031, %v4238
        %v4431 = vadd.f32 %v4032, %v4239
        %v4432 = vadd.f32 %v4033, %v4240
        %v4433 = vadd.f32 %v4034, %v4241
        %v4434 = vadd.f32 %v4035, %v4242
        %v4435 = vadd.f32 %v4036, %v4243
        %v4436 = vadd.f32 %v4037, %v4244
        %v4437 = vadd.f32 %v4038, %v4245
        %v4438 = vadd.f32 %v4039, %v4246
        %v4439 = vadd.f32 %v4040, %v4247
        %v4440 = vadd.f32 %v4041, %v4248
        %v4441 = vadd.f32 %v4042, %v4249
        %v4442 = vadd.f32 %v4043, %v4250
        %v4443 = vadd.f32 %v4044, %v4251
        %v4444 = vadd.f32 %v4045, %v4252
        %v4445 = vadd.f32 %v4046, %v4253
        %v4446 = vadd.f32 %v4047, %v4254
        %v4447 = vadd.f32 %v4048, %v4255
        %v4448 = vadd.f32 %v4049, %v4256
        %v4449 = vadd.f32 %v4050, %v4257
        %v4450 = vadd.f32 %v4051, %v4258
        %v4451 = vadd.f32 %v4052, %v4259
        %v4452 = vadd.f32 %v4053, %v4260
        %v4453 = vadd.f32 %v4054, %v4261
        %v4454 = vadd.f32 %v4055, %v4262
        %v4455 = vadd.f32 %v4056, %v4263
        %v4456 = vadd.f32 %v4057, %v4264
        %v4457 = vadd.f32 %v4058, %v4265
        %v4458 = vadd.f32 %v4059, %v4266
        %v4459 = vadd.f32 %v4060, %v4267
        %v4460 = vadd.f32 %v4061, %v4268
        %v4461 = vadd.f32 %v4062, %v4269
        %v4462 = vadd.f32 %v4063, %v4270
        %v4463 = vadd.f32 %v4064, %v4271
        %v4464 = vadd.f32 %v4065, %v4272
        %v4465 = vadd.f32 %v4066, %v4273
        %v4466 = vadd.f32 %v4067, %v4274
        %v4467 = vadd.f32 %v4068, %v4275
        %v4468 = vadd.f32 %v4069, %v4276
        %v4469 = vadd.f32 %v4070, %v4277
        %v4470 = vadd.f32 %v4071, %v4278
        %v4471 = vadd.f32 %v4072, %v4279
        %v4472 = vadd.f32 %v4073, %v4280
        %v4473 = vadd.f32 %v4074, %v4281
        %v4474 = vadd.f32 %v4075, %v4282
        %v4475 = vadd.f32 %v4076, %v4283
        %v4476 = vadd.f32 %v4077, %v4284
        %v4477 = vadd.f32 %v4078, %v4285
        %v4478 = vadd.f32 %v4079, %v4286
        %v4479 = vadd.f32 %v4080, %v4287
        %v4480 = vadd.f32 %v4081, %v4288
        %v4481 = vadd.f32 %v4082, %v4289
        %v4482 = vadd.f32 %v4083, %v4290
        %v4483 = vadd.f32 %v4084, %v4291
        %v4484 = vadd.f32 %v4085, %v4292
        %v4485 = vadd.f32 %v4086, %v4293
        %v4486 = vadd.f32 %v4087, %v4294
        %v4487 = vadd.f32 %v4088, %v4295
        %v4488 = vadd.f32 %v4089, %v4296
        %v4489 = vadd.f32 %v4090, %v4297
        %v4490 = vadd.f32 %v4091, %v4298
        %v4491 = vadd.f32 %v4092, %v4299
        %v4492 = vadd.f32 %v4093, %v4300
        %v4493 = vadd.f32 %v4094, %v4301
        %v4494 = vadd.f32 %v4095, %v4302
        %v4495 = vadd.f32 %v4096, %v4303
        %v4496 = vadd.f32 %v4097, %v4304
        %v4497 = vadd.f32 %v4098, %v4305
        %v4498 = vadd.f32 %v4099, %v4306
        %v4499 = vadd.f32 %v4100, %v4307
        %v4500 = vadd.f32 %v4101, %v4308
        %v4501 = vadd.f32 %v4102, %v4309
        %v4502 = vadd.f32 %v4103, %v4310
        %v4503 = vadd.f32 %v4104, %v4311
        %v4504 = vadd.f32 %v4105, %v4312
        %v4505 = vadd.f32 %v4106, %v4313
        %v4506 = vadd.f32 %v4107, %v4314
        %v4507 = vadd.f32 %v4108, %v4315
        %v4508 = vadd.f32 %v4109, %v4316
        %v4509 = vadd.f32 %v4110, %v4317
        %v4510 = vadd.f32 %v4111, %v4318
        %v4511 = vadd.f32 %v4112, %v4319
        %v4512 = vadd.f32 %v4113, %v4320
        %v4513 = vadd.f32 %v4114, %v4321
        %v4514 = vadd.f32 %v4115, %v4322
        %v4515 = vadd.f32 %v4116, %v4323
        %v4516 = vadd.f32 %v4117, %v4324
        %v4517 = vadd.f32 %v4118, %v4325
        %v4518 = vadd.f32 %v4119, %v4326
        %v4519 = vadd.f32 %v4120, %v4327
        %v4520 = vadd.f32 %v4121, %v4328
        %v4521 = vadd.f32 %v4122, %v4329
        %v4522 = vadd.f32 %v4123, %v4330
        %v4523 = vadd.f32 %v4124, %v4331
        %v4524 = vadd.f32 %v4125, %v4332
        %v4525 = vadd.f32 %v4126, %v4333
        %v4526 = vadd.f32 %v4127, %v4334
        %v4527 = vadd.f32 %v4128, %v4335
        %v4528 = vadd.f32 %v4129, %v4336
        %v4529 = vadd.f32 %v4130, %v4337
        %v4530 = vadd.f32 %v4131, %v4338
        %v4531 = vadd.f32 %v4132, %v4339
        %v4532 = vadd.f32 %v4133, %v4340
        %v4533 = vadd.f32 %v4134, %v4341
        %v4534 = vadd.f32 %v4135, %v4342
        %v4535 = vadd.f32 %v4136, %v4343
        %v4536 = vadd.f32 %v4137, %v4344
        %v4537 = vadd.f32 %v4138, %v4345
        %v4538 = vadd.f32 %v4139, %v4346
        %v4539 = vadd.f32 %v4140, %v4347
        %v4540 = vadd.f32 %v4141, %v4348
        %v4541 = vadd.f32 %v4142, %v4349
        %v4542 = vadd.f32 %v4143, %v4350
        %v4543 = vadd.f32 %v1747, %v3129
        %v4544 = vadd.f32 %v1748, %v3130
        %v4545 = vadd.f32 %v1749, %v3131
        %v4546 = vadd.f32 %v1750, %v3132
        %v4547 = vadd.f32 %v1751, %v3133
        %v4548 = vadd.f32 %v1752, %v3134
        %v4549 = vadd.f32 %v1753, %v3135
        %v4550 = vadd.f32 %v1754, %v3136
        %v4551 = vadd.f32 %v1755, %v3137
        %v4552 = vadd.f32 %v1756, %v3138
        %v4553 = vadd.f32 %v1757, %v3139
        %v4554 = vadd.f32 %v1758, %v3140
        %v4555 = vadd.f32 %v1759, %v3141
        %v4556 = vadd.f32 %v1760, %v3142
        %v4557 = vadd.f32 %v1761, %v3143
        %v4558 = vadd.f32 %v1762, %v3144
        %v4559 = vadd.f32 %v1763, %v3145
        %v4560 = vadd.f32 %v1764, %v3146
        %v4561 = vadd.f32 %v1765, %v3147
        %v4562 = vadd.f32 %v1766, %v3148
        %v4563 = vadd.f32 %v1767, %v3149
        %v4564 = vadd.f32 %v1768, %v3150
        %v4565 = vadd.f32 %v1769, %v3151
        %v4566 = vadd.f32 %v1770, %v3152
        %v4567 = vadd.f32 %v1771, %v3153
        %v4568 = vadd.f32 %v1772, %v3154
        %v4569 = vadd.f32 %v1773, %v3155
        %v4570 = vadd.f32 %v1774, %v3156
        %v4571 = vadd.f32 %v1775, %v3157
        %v4572 = vadd.f32 %v1776, %v3158
        %v4573 = vadd.f32 %v1777, %v3159
        %v4574 = vadd.f32 %v1778, %v3160
        %v4575 = vadd.f32 %v1779, %v3161
        %v4576 = vadd.f32 %v1780, %v3162
        %v4577 = vadd.f32 %v1781, %v3163
        %v4578 = vadd.f32 %v1782, %v3164
        %v4579 = vadd.f32 %v1783, %v3165
        %v4580 = vadd.f32 %v1784, %v3166
        %v4581 = vadd.f32 %v1785, %v3167
        %v4582 = vadd.f32 %v1786, %v3168
        %v4583 = vadd.f32 %v1787, %v3169
        %v4584 = vadd.f32 %v1788, %v3170
        %v4585 = vadd.f32 %v1789, %v3171
        %v4586 = vadd.f32 %v1790, %v3172
        %v4587 = vadd.f32 %v1791, %v3173
        %v4588 = vadd.f32 %v1792, %v3174
        %v4589 = vadd.f32 %v1793, %v3175
        %v4590 = vadd.f32 %v1794, %v3176
        %v4591 = vadd.f32 %v1795, %v3177
        %v4592 = vadd.f32 %v1796, %v3178
        %v4593 = vadd.f32 %v1797, %v3179
        %v4594 = vadd.f32 %v1798, %v3180
        %v4595 = vadd.f32 %v1799, %v3181
        %v4596 = vadd.f32 %v1800, %v3182
        %v4597 = vadd.f32 %v1801, %v3183
        %v4598 = vadd.f32 %v1802, %v3184
        %v4599 = vadd.f32 %v1803, %v3185
        %v4600 = vadd.f32 %v1804, %v3186
        %v4601 = vadd.f32 %v1805, %v3187
        %v4602 = vadd.f32 %v1806, %v3188
        %v4603 = vadd.f32 %v1807, %v3189
        %v4604 = vadd.f32 %v1808, %v3190
        %v4605 = vadd.f32 %v1809, %v3191
        %v4606 = vadd.f32 %v1810, %v3192
        %v4607 = vadd.f32 %v1811, %v3193
        %v4608 = vadd.f32 %v1812, %v3194
        %v4609 = vadd.f32 %v1813, %v3195
        %v4610 = vadd.f32 %v1814, %v3196
        %v4611 = vadd.f32 %v1815, %v3197
        %v4612 = vadd.f32 %v1816, %v3198
        %v4613 = vadd.f32 %v1817, %v3199
        %v4614 = vadd.f32 %v1818, %v3200
        %v4615 = vadd.f32 %v1819, %v3201
        %v4616 = vadd.f32 %v1820, %v3202
        %v4617 = vadd.f32 %v1821, %v3203
        %v4618 = vadd.f32 %v1822, %v3204
        %v4619 = vadd.f32 %v1823, %v3205
        %v4620 = vadd.f32 %v1824, %v3206
        %v4621 = vadd.f32 %v1825, %v3207
        %v4622 = vadd.f32 %v1826, %v3208
        %v4623 = vadd.f32 %v1827, %v3209
        %v4624 = vadd.f32 %v1828, %v3210
        %v4625 = vadd.f32 %v1829, %v3211
        %v4626 = vadd.f32 %v1830, %v3212
        %v4627 = vadd.f32 %v1831, %v3213
        %v4628 = vadd.f32 %v1832, %v3214
        %v4629 = vadd.f32 %v1833, %v3215
        %v4630 = vadd.f32 %v1834, %v3216
        %v4631 = vadd.f32 %v1835, %v3217
        %v4632 = vadd.f32 %v1836, %v3218
        %v4633 = vadd.f32 %v1837, %v3219
        %v4634 = vadd.f32 %v1838, %v3220
        %v4635 = vadd.f32 %v1839, %v3221
        %v4636 = vadd.f32 %v1840, %v3222
        %v4637 = vadd.f32 %v1841, %v3223
        %v4638 = vadd.f32 %v1842, %v3224
        %v4639 = vadd.f32 %v1843, %v3225
        %v4640 = vadd.f32 %v1844, %v3226
        %v4641 = vadd.f32 %v1845, %v3227
        %v4642 = vadd.f32 %v1846, %v3228
        %v4643 = vadd.f32 %v1847, %v3229
        %v4644 = vadd.f32 %v1848, %v3230
        %v4645 = vadd.f32 %v1849, %v3231
        %v4646 = vadd.f32 %v1850, %v3232
        %v4647 = vadd.f32 %v1851, %v3233
        %v4648 = vadd.f32 %v1852, %v3234
        %v4649 = vadd.f32 %v1853, %v3235
        %v4650 = vadd.f32 %v1854, %v3236
        %v4651 = vadd.f32 %v1855, %v3237
        %v4652 = vadd.f32 %v1856, %v3238
        %v4653 = vadd.f32 %v1857, %v3239
        %v4654 = vadd.f32 %v1858, %v3240
        %v4655 = vadd.f32 %v1859, %v3241
        %v4656 = vadd.f32 %v1860, %v3242
        %v4657 = vadd.f32 %v1861, %v3243
        %v4658 = vadd.f32 %v1862, %v3244
        %v4659 = vadd.f32 %v1863, %v3245
        %v4660 = vadd.f32 %v1864, %v3246
        %v4661 = vadd.f32 %v1865, %v3247
        %v4662 = vadd.f32 %v1866, %v3248
        %v4663 = vadd.f32 %v1867, %v3249
        %v4664 = vadd.f32 %v1868, %v3250
        %v4665 = vadd.f32 %v1869, %v3251
        %v4666 = vadd.f32 %v1870, %v3252
        %v4667 = vadd.f32 %v1871, %v3253
        %v4668 = vadd.f32 %v1872, %v3254
        %v4669 = vadd.f32 %v1873, %v3255
        %v4670 = vadd.f32 %v1874, %v3256
        %v4671 = vadd.f32 %v1875, %v3257
        %v4672 = vadd.f32 %v1876, %v3258
        %v4673 = vadd.f32 %v1877, %v3259
        %v4674 = vadd.f32 %v1878, %v3260
        %v4675 = vadd.f32 %v1879, %v3261
        %v4676 = vadd.f32 %v1880, %v3262
        %v4677 = vadd.f32 %v1881, %v3263
        %v4678 = vadd.f32 %v1882, %v3264
        %v4679 = vadd.f32 %v1883, %v3265
        %v4680 = vadd.f32 %v1884, %v3266
        %v4681 = vadd.f32 %v1885, %v3267
        %v4682 = vadd.f32 %v1886, %v3268
        %v4683 = vadd.f32 %v1887, %v3269
        %v4684 = vadd.f32 %v1888, %v3270
        %v4685 = vadd.f32 %v1889, %v3271
        %v4686 = vadd.f32 %v1890, %v3272
        %v4687 = vadd.f32 %v1891, %v3273
        %v4688 = vadd.f32 %v1892, %v3274
        %v4689 = vadd.f32 %v1893, %v3275
        %v4690 = vadd.f32 %v1894, %v3276
        %v4691 = vadd.f32 %v1895, %v3277
        %v4692 = vadd.f32 %v1896, %v3278
        %v4693 = vadd.f32 %v1897, %v3279
        %v4694 = vadd.f32 %v1898, %v3280
        %v4695 = vadd.f32 %v1899, %v3281
        %v4696 = vadd.f32 %v1900, %v3282
        %v4697 = vadd.f32 %v1901, %v3283
        %v4698 = vadd.f32 %v1902, %v3284
        %v4699 = vadd.f32 %v1903, %v3285
        %v4700 = vadd.f32 %v1904, %v3286
        %v4701 = vadd.f32 %v1905, %v3287
        %v4702 = vadd.f32 %v1906, %v3288
        %v4703 = vadd.f32 %v1907, %v3289
        %v4704 = vadd.f32 %v1908, %v3290
        %v4705 = vadd.f32 %v1909, %v3291
        %v4706 = vadd.f32 %v1910, %v3292
        %v4707 = vadd.f32 %v1911, %v3293
        %v4708 = vadd.f32 %v1912, %v3294
        %v4709 = vadd.f32 %v1913, %v3295
        %v4710 = vadd.f32 %v1914, %v3296
        %v4711 = vadd.f32 %v1915, %v3297
        %v4712 = vadd.f32 %v1916, %v3298
        %v4713 = vadd.f32 %v1917, %v3299
        %v4714 = vadd.f32 %v1918, %v3300
        %v4715 = vadd.f32 %v1919, %v3301
        %v4716 = vadd.f32 %v1920, %v3302
        %v4717 = vadd.f32 %v1921, %v3303
        %v4718 = vadd.f32 %v1922, %v3304
        %v4719 = vadd.f32 %v1923, %v3305
        %v4720 = vadd.f32 %v1924, %v3306
        %v4721 = vadd.f32 %v1925, %v3307
        %v4722 = vadd.f32 %v1926, %v3308
        %v4723 = vadd.f32 %v1927, %v3309
        %v4724 = vadd.f32 %v1928, %v3310
        %v4725 = vadd.f32 %v1929, %v3311
        %v4726 = vadd.f32 %v1930, %v3312
        %v4727 = vadd.f32 %v1931, %v3313
        %v4728 = vadd.f32 %v1932, %v3314
        %v4729 = vadd.f32 %v1933, %v3315
        %v4730 = vadd.f32 %v1934, %v3316
        %v4731 = vadd.f32 %v1935, %v3317
        %v4732 = vadd.f32 %v1936, %v3318
        %v4733 = vadd.f32 %v1937, %v3319
        %v4734 = vadd.f32 %v1938, %v3320
        %v4735 = vadd.f32 %v3742, %v4351
        %v4736 = vadd.f32 %v3743, %v4352
        %v4737 = vadd.f32 %v3744, %v4353
        %v4738 = vadd.f32 %v3745, %v4354
        %v4739 = vadd.f32 %v3746, %v4355
        %v4740 = vadd.f32 %v3747, %v4356
        %v4741 = vadd.f32 %v3748, %v4357
        %v4742 = vadd.f32 %v3749, %v4358
        %v4743 = vadd.f32 %v3750, %v4359
        %v4744 = vadd.f32 %v3751, %v4360
        %v4745 = vadd.f32 %v3752, %v4361
        %v4746 = vadd.f32 %v3753, %v4362
        %v4747 = vadd.f32 %v3754, %v4363
        %v4748 = vadd.f32 %v3755, %v4364
        %v4749 = vadd.f32 %v3756, %v4365
        %v4750 = vadd.f32 %v3757, %v4366
        %v4751 = vadd.f32 %v3758, %v4367
        %v4752 = vadd.f32 %v3759, %v4368
        %v4753 = vadd.f32 %v3760, %v4369
        %v4754 = vadd.f32 %v3761, %v4370
        %v4755 = vadd.f32 %v3762, %v4371
        %v4756 = vadd.f32 %v3763, %v4372
        %v4757 = vadd.f32 %v3764, %v4373
        %v4758 = vadd.f32 %v3765, %v4374
        %v4759 = vadd.f32 %v3766, %v4375
        %v4760 = vadd.f32 %v3767, %v4376
        %v4761 = vadd.f32 %v3768, %v4377
        %v4762 = vadd.f32 %v3769, %v4378
        %v4763 = vadd.f32 %v3770, %v4379
        %v4764 = vadd.f32 %v3771, %v4380
        %v4765 = vadd.f32 %v3772, %v4381
        %v4766 = vadd.f32 %v3773, %v4382
        %v4767 = vadd.f32 %v3774, %v4383
        %v4768 = vadd.f32 %v3775, %v4384
        %v4769 = vadd.f32 %v3776, %v4385
        %v4770 = vadd.f32 %v3777, %v4386
        %v4771 = vadd.f32 %v3778, %v4387
        %v4772 = vadd.f32 %v3779, %v4388
        %v4773 = vadd.f32 %v3780, %v4389
        %v4774 = vadd.f32 %v3781, %v4390
        %v4775 = vadd.f32 %v3782, %v4391
        %v4776 = vadd.f32 %v3783, %v4392
        %v4777 = vadd.f32 %v3784, %v4393
        %v4778 = vadd.f32 %v3785, %v4394
        %v4779 = vadd.f32 %v3786, %v4395
        %v4780 = vadd.f32 %v3787, %v4396
        %v4781 = vadd.f32 %v3788, %v4397
        %v4782 = vadd.f32 %v3789, %v4398
        %v4783 = vadd.f32 %v3790, %v4399
        %v4784 = vadd.f32 %v3791, %v4400
        %v4785 = vadd.f32 %v3792, %v4401
        %v4786 = vadd.f32 %v3793, %v4402
        %v4787 = vadd.f32 %v3794, %v4403
        %v4788 = vadd.f32 %v3795, %v4404
        %v4789 = vadd.f32 %v3796, %v4405
        %v4790 = vadd.f32 %v3797, %v4406
        %v4791 = vadd.f32 %v3798, %v4407
        %v4792 = vadd.f32 %v3799, %v4408
        %v4793 = vadd.f32 %v3800, %v4409
        %v4794 = vadd.f32 %v3801, %v4410
        %v4795 = vadd.f32 %v3802, %v4411
        %v4796 = vadd.f32 %v3803, %v4412
        %v4797 = vadd.f32 %v3804, %v4413
        %v4798 = vadd.f32 %v3805, %v4414
        %v4799 = vadd.f32 %v3806, %v4415
        %v4800 = vadd.f32 %v3807, %v4416
        %v4801 = vadd.f32 %v3808, %v4417
        %v4802 = vadd.f32 %v3809, %v4418
        %v4803 = vadd.f32 %v3810, %v4419
        %v4804 = vadd.f32 %v3811, %v4420
        %v4805 = vadd.f32 %v3812, %v4421
        %v4806 = vadd.f32 %v3813, %v4422
        %v4807 = vadd.f32 %v3814, %v4423
        %v4808 = vadd.f32 %v3815, %v4424
        %v4809 = vadd.f32 %v3816, %v4425
        %v4810 = vadd.f32 %v3817, %v4426
        %v4811 = vadd.f32 %v3818, %v4427
        %v4812 = vadd.f32 %v3819, %v4428
        %v4813 = vadd.f32 %v3820, %v4429
        %v4814 = vadd.f32 %v3821, %v4430
        %v4815 = vadd.f32 %v3822, %v4431
        %v4816 = vadd.f32 %v3823, %v4432
        %v4817 = vadd.f32 %v3824, %v4433
        %v4818 = vadd.f32 %v3825, %v4434
        %v4819 = vadd.f32 %v3826, %v4435
        %v4820 = vadd.f32 %v3827, %v4436
        %v4821 = vadd.f32 %v3828, %v4437
        %v4822 = vadd.f32 %v3829, %v4438
        %v4823 = vadd.f32 %v3830, %v4439
        %v4824 = vadd.f32 %v3831, %v4440
        %v4825 = vadd.f32 %v3832, %v4441
        %v4826 = vadd.f32 %v3833, %v4442
        %v4827 = vadd.f32 %v3834, %v4443
        %v4828 = vadd.f32 %v3835, %v4444
        %v4829 = vadd.f32 %v3836, %v4445
        %v4830 = vadd.f32 %v3837, %v4446
        %v4831 = vadd.f32 %v3838, %v4447
        %v4832 = vadd.f32 %v3839, %v4448
        %v4833 = vadd.f32 %v3840, %v4449
        %v4834 = vadd.f32 %v3841, %v4450
        %v4835 = vadd.f32 %v3842, %v4451
        %v4836 = vadd.f32 %v3843, %v4452
        %v4837 = vadd.f32 %v3844, %v4453
        %v4838 = vadd.f32 %v3845, %v4454
        %v4839 = vadd.f32 %v3846, %v4455
        %v4840 = vadd.f32 %v3847, %v4456
        %v4841 = vadd.f32 %v3848, %v4457
        %v4842 = vadd.f32 %v3849, %v4458
        %v4843 = vadd.f32 %v3850, %v4459
        %v4844 = vadd.f32 %v3851, %v4460
        %v4845 = vadd.f32 %v3852, %v4461
        %v4846 = vadd.f32 %v3853, %v4462
        %v4847 = vadd.f32 %v3854, %v4463
        %v4848 = vadd.f32 %v3855, %v4464
        %v4849 = vadd.f32 %v3856, %v4465
        %v4850 = vadd.f32 %v3857, %v4466
        %v4851 = vadd.f32 %v3858, %v4467
        %v4852 = vadd.f32 %v3859, %v4468
        %v4853 = vadd.f32 %v3860, %v4469
        %v4854 = vadd.f32 %v3861, %v4470
        %v4855 = vadd.f32 %v3862, %v4471
        %v4856 = vadd.f32 %v3863, %v4472
        %v4857 = vadd.f32 %v3864, %v4473
        %v4858 = vadd.f32 %v3865, %v4474
        %v4859 = vadd.f32 %v3866, %v4475
        %v4860 = vadd.f32 %v3867, %v4476
        %v4861 = vadd.f32 %v3868, %v4477
        %v4862 = vadd.f32 %v3869, %v4478
        %v4863 = vadd.f32 %v3870, %v4479
        %v4864 = vadd.f32 %v3871, %v4480
        %v4865 = vadd.f32 %v3872, %v4481
        %v4866 = vadd.f32 %v3873, %v4482
        %v4867 = vadd.f32 %v3874, %v4483
        %v4868 = vadd.f32 %v3875, %v4484
        %v4869 = vadd.f32 %v3876, %v4485
        %v4870 = vadd.f32 %v3877, %v4486
        %v4871 = vadd.f32 %v3878, %v4487
        %v4872 = vadd.f32 %v3879, %v4488
        %v4873 = vadd.f32 %v3880, %v4489
        %v4874 = vadd.f32 %v3881, %v4490
        %v4875 = vadd.f32 %v3882, %v4491
        %v4876 = vadd.f32 %v3883, %v4492
        %v4877 = vadd.f32 %v3884, %v4493
        %v4878 = vadd.f32 %v3885, %v4494
        %v4879 = vadd.f32 %v3886, %v4495
        %v4880 = vadd.f32 %v3887, %v4496
        %v4881 = vadd.f32 %v3888, %v4497
        %v4882 = vadd.f32 %v3889, %v4498
        %v4883 = vadd.f32 %v3890, %v4499
        %v4884 = vadd.f32 %v3891, %v4500
        %v4885 = vadd.f32 %v3892, %v4501
        %v4886 = vadd.f32 %v3893, %v4502
        %v4887 = vadd.f32 %v3894, %v4503
        %v4888 = vadd.f32 %v3895, %v4504
        %v4889 = vadd.f32 %v3896, %v4505
        %v4890 = vadd.f32 %v3897, %v4506
        %v4891 = vadd.f32 %v3898, %v4507
        %v4892 = vadd.f32 %v3899, %v4508
        %v4893 = vadd.f32 %v3900, %v4509
        %v4894 = vadd.f32 %v3901, %v4510
        %v4895 = vadd.f32 %v3902, %v4511
        %v4896 = vadd.f32 %v3903, %v4512
        %v4897 = vadd.f32 %v3904, %v4513
        %v4898 = vadd.f32 %v3905, %v4514
        %v4899 = vadd.f32 %v3906, %v4515
        %v4900 = vadd.f32 %v3907, %v4516
        %v4901 = vadd.f32 %v3908, %v4517
        %v4902 = vadd.f32 %v3909, %v4518
        %v4903 = vadd.f32 %v3910, %v4519
        %v4904 = vadd.f32 %v3911, %v4520
        %v4905 = vadd.f32 %v3912, %v4521
        %v4906 = vadd.f32 %v3913, %v4522
        %v4907 = vadd.f32 %v3914, %v4523
        %v4908 = vadd.f32 %v3915, %v4524
        %v4909 = vadd.f32 %v3916, %v4525
        %v4910 = vadd.f32 %v3917, %v4526
        %v4911 = vadd.f32 %v3918, %v4527
        %v4912 = vadd.f32 %v3919, %v4528
        %v4913 = vadd.f32 %v3920, %v4529
        %v4914 = vadd.f32 %v3921, %v4530
        %v4915 = vadd.f32 %v3922, %v4531
        %v4916 = vadd.f32 %v3923, %v4532
        %v4917 = vadd.f32 %v3924, %v4533
        %v4918 = vadd.f32 %v3925, %v4534
        %v4919 = vadd.f32 %v3926, %v4535
        %v4920 = vadd.f32 %v3927, %v4536
        %v4921 = vadd.f32 %v3928, %v4537
        %v4922 = vadd.f32 %v3929, %v4538
        %v4923 = vadd.f32 %v3930, %v4539
        %v4924 = vadd.f32 %v3931, %v4540
        %v4925 = vadd.f32 %v3932, %v4541
        %v4926 = vadd.f32 %v3933, %v4542
        %v4927 = vadd.f32 %v4543, %v4735
        %v4928 = vadd.f32 %v4544, %v4736
        %v4929 = vadd.f32 %v4545, %v4737
        %v4930 = vadd.f32 %v4546, %v4738
        %v4931 = vadd.f32 %v4547, %v4739
        %v4932 = vadd.f32 %v4548, %v4740
        %v4933 = vadd.f32 %v4549, %v4741
        %v4934 = vadd.f32 %v4550, %v4742
        %v4935 = vadd.f32 %v4551, %v4743
        %v4936 = vadd.f32 %v4552, %v4744
        %v4937 = vadd.f32 %v4553, %v4745
        %v4938 = vadd.f32 %v4554, %v4746
        %v4939 = vadd.f32 %v4555, %v4747
        %v4940 = vadd.f32 %v4556, %v4748
        %v4941 = vadd.f32 %v4557, %v4749
        %v4942 = vadd.f32 %v4558, %v4750
        %v4943 = vadd.f32 %v4559, %v4751
        %v4944 = vadd.f32 %v4560, %v4752
        %v4945 = vadd.f32 %v4561, %v4753
        %v4946 = vadd.f32 %v4562, %v4754
        %v4947 = vadd.f32 %v4563, %v4755
        %v4948 = vadd.f32 %v4564, %v4756
        %v4949 = vadd.f32 %v4565, %v4757
        %v4950 = vadd.f32 %v4566, %v4758
        %v4951 = vadd.f32 %v4567, %v4759
        %v4952 = vadd.f32 %v4568, %v4760
        %v4953 = vadd.f32 %v4569, %v4761
        %v4954 = vadd.f32 %v4570, %v4762
        %v4955 = vadd.f32 %v4571, %v4763
        %v4956 = vadd.f32 %v4572, %v4764
        %v4957 = vadd.f32 %v4573, %v4765
        %v4958 = vadd.f32 %v4574, %v4766
        %v4959 = vadd.f32 %v4575, %v4767
        %v4960 = vadd.f32 %v4576, %v4768
        %v4961 = vadd.f32 %v4577, %v4769
        %v4962 = vadd.f32 %v4578, %v4770
        %v4963 = vadd.f32 %v4579, %v4771
        %v4964 = vadd.f32 %v4580, %v4772
        %v4965 = vadd.f32 %v4581, %v4773
        %v4966 = vadd.f32 %v4582, %v4774
        %v4967 = vadd.f32 %v4583, %v4775
        %v4968 = vadd.f32 %v4584, %v4776
        %v4969 = vadd.f32 %v4585, %v4777
        %v4970 = vadd.f32 %v4586, %v4778
        %v4971 = vadd.f32 %v4587, %v4779
        %v4972 = vadd.f32 %v4588, %v4780
        %v4973 = vadd.f32 %v4589, %v4781
        %v4974 = vadd.f32 %v4590, %v4782
        %v4975 = vadd.f32 %v4591, %v4783
        %v4976 = vadd.f32 %v4592, %v4784
        %v4977 = vadd.f32 %v4593, %v4785
        %v4978 = vadd.f32 %v4594, %v4786
        %v4979 = vadd.f32 %v4595, %v4787
        %v4980 = vadd.f32 %v4596, %v4788
        %v4981 = vadd.f32 %v4597, %v4789
        %v4982 = vadd.f32 %v4598, %v4790
        %v4983 = vadd.f32 %v4599, %v4791
        %v4984 = vadd.f32 %v4600, %v4792
        %v4985 = vadd.f32 %v4601, %v4793
        %v4986 = vadd.f32 %v4602, %v4794
        %v4987 = vadd.f32 %v4603, %v4795
        %v4988 = vadd.f32 %v4604, %v4796
        %v4989 = vadd.f32 %v4605, %v4797
        %v4990 = vadd.f32 %v4606, %v4798
        %v4991 = vadd.f32 %v4607, %v4799
        %v4992 = vadd.f32 %v4608, %v4800
        %v4993 = vadd.f32 %v4609, %v4801
        %v4994 = vadd.f32 %v4610, %v4802
        %v4995 = vadd.f32 %v4611, %v4803
        %v4996 = vadd.f32 %v4612, %v4804
        %v4997 = vadd.f32 %v4613, %v4805
        %v4998 = vadd.f32 %v4614, %v4806
        %v4999 = vadd.f32 %v4615, %v4807
        %v5000 = vadd.f32 %v4616, %v4808
        %v5001 = vadd.f32 %v4617, %v4809
        %v5002 = vadd.f32 %v4618, %v4810
        %v5003 = vadd.f32 %v4619, %v4811
        %v5004 = vadd.f32 %v4620, %v4812
        %v5005 = vadd.f32 %v4621, %v4813
        %v5006 = vadd.f32 %v4622, %v4814
        %v5007 = vadd.f32 %v4623, %v4815
        %v5008 = vadd.f32 %v4624, %v4816
        %v5009 = vadd.f32 %v4625, %v4817
        %v5010 = vadd.f32 %v4626, %v4818
        %v5011 = vadd.f32 %v4627, %v4819
        %v5012 = vadd.f32 %v4628, %v4820
        %v5013 = vadd.f32 %v4629, %v4821
        %v5014 = vadd.f32 %v4630, %v4822
        %v5015 = vadd.f32 %v4631, %v4823
        %v5016 = vadd.f32 %v4632, %v4824
        %v5017 = vadd.f32 %v4633, %v4825
        %v5018 = vadd.f32 %v4634, %v4826
        %v5019 = vadd.f32 %v4635, %v4827
        %v5020 = vadd.f32 %v4636, %v4828
        %v5021 = vadd.f32 %v4637, %v4829
        %v5022 = vadd.f32 %v4638, %v4830
        %v5023 = vadd.f32 %v4639, %v4831
        %v5024 = vadd.f32 %v4640, %v4832
        %v5025 = vadd.f32 %v4641, %v4833
        %v5026 = vadd.f32 %v4642, %v4834
        %v5027 = vadd.f32 %v4643, %v4835
        %v5028 = vadd.f32 %v4644, %v4836
        %v5029 = vadd.f32 %v4645, %v4837
        %v5030 = vadd.f32 %v4646, %v4838
        %v5031 = vadd.f32 %v4647, %v4839
        %v5032 = vadd.f32 %v4648, %v4840
        %v5033 = vadd.f32 %v4649, %v4841
        %v5034 = vadd.f32 %v4650, %v4842
        %v5035 = vadd.f32 %v4651, %v4843
        %v5036 = vadd.f32 %v4652, %v4844
        %v5037 = vadd.f32 %v4653, %v4845
        %v5038 = vadd.f32 %v4654, %v4846
        %v5039 = vadd.f32 %v4655, %v4847
        %v5040 = vadd.f32 %v4656, %v4848
        %v5041 = vadd.f32 %v4657, %v4849
        %v5042 = vadd.f32 %v4658, %v4850
        %v5043 = vadd.f32 %v4659, %v4851
        %v5044 = vadd.f32 %v4660, %v4852
        %v5045 = vadd.f32 %v4661, %v4853
        %v5046 = vadd.f32 %v4662, %v4854
        %v5047 = vadd.f32 %v4663, %v4855
        %v5048 = vadd.f32 %v4664, %v4856
        %v5049 = vadd.f32 %v4665, %v4857
        %v5050 = vadd.f32 %v4666, %v4858
        %v5051 = vadd.f32 %v4667, %v4859
        %v5052 = vadd.f32 %v4668, %v4860
        %v5053 = vadd.f32 %v4669, %v4861
        %v5054 = vadd.f32 %v4670, %v4862
        %v5055 = vadd.f32 %v4671, %v4863
        %v5056 = vadd.f32 %v4672, %v4864
        %v5057 = vadd.f32 %v4673, %v4865
        %v5058 = vadd.f32 %v4674, %v4866
        %v5059 = vadd.f32 %v4675, %v4867
        %v5060 = vadd.f32 %v4676, %v4868
        %v5061 = vadd.f32 %v4677, %v4869
        %v5062 = vadd.f32 %v4678, %v4870
        %v5063 = vadd.f32 %v4679, %v4871
        %v5064 = vadd.f32 %v4680, %v4872
        %v5065 = vadd.f32 %v4681, %v4873
        %v5066 = vadd.f32 %v4682, %v4874
        %v5067 = vadd.f32 %v4683, %v4875
        %v5068 = vadd.f32 %v4684, %v4876
        %v5069 = vadd.f32 %v4685, %v4877
        %v5070 = vadd.f32 %v4686, %v4878
        %v5071 = vadd.f32 %v4687, %v4879
        %v5072 = vadd.f32 %v4688, %v4880
        %v5073 = vadd.f32 %v4689, %v4881
        %v5074 = vadd.f32 %v4690, %v4882
        %v5075 = vadd.f32 %v4691, %v4883
        %v5076 = vadd.f32 %v4692, %v4884
        %v5077 = vadd.f32 %v4693, %v4885
        %v5078 = vadd.f32 %v4694, %v4886
        %v5079 = vadd.f32 %v4695, %v4887
        %v5080 = vadd.f32 %v4696, %v4888
        %v5081 = vadd.f32 %v4697, %v4889
        %v5082 = vadd.f32 %v4698, %v4890
        %v5083 = vadd.f32 %v4699, %v4891
        %v5084 = vadd.f32 %v4700, %v4892
        %v5085 = vadd.f32 %v4701, %v4893
        %v5086 = vadd.f32 %v4702, %v4894
        %v5087 = vadd.f32 %v4703, %v4895
        %v5088 = vadd.f32 %v4704, %v4896
        %v5089 = vadd.f32 %v4705, %v4897
        %v5090 = vadd.f32 %v4706, %v4898
        %v5091 = vadd.f32 %v4707, %v4899
        %v5092 = vadd.f32 %v4708, %v4900
        %v5093 = vadd.f32 %v4709, %v4901
        %v5094 = vadd.f32 %v4710, %v4902
        %v5095 = vadd.f32 %v4711, %v4903
        %v5096 = vadd.f32 %v4712, %v4904
        %v5097 = vadd.f32 %v4713, %v4905
        %v5098 = vadd.f32 %v4714, %v4906
        %v5099 = vadd.f32 %v4715, %v4907
        %v5100 = vadd.f32 %v4716, %v4908
        %v5101 = vadd.f32 %v4717, %v4909
        %v5102 = vadd.f32 %v4718, %v4910
        %v5103 = vadd.f32 %v4719, %v4911
        %v5104 = vadd.f32 %v4720, %v4912
        %v5105 = vadd.f32 %v4721, %v4913
        %v5106 = vadd.f32 %v4722, %v4914
        %v5107 = vadd.f32 %v4723, %v4915
        %v5108 = vadd.f32 %v4724, %v4916
        %v5109 = vadd.f32 %v4725, %v4917
        %v5110 = vadd.f32 %v4726, %v4918
        %v5111 = vadd.f32 %v4727, %v4919
        %v5112 = vadd.f32 %v4728, %v4920
        %v5113 = vadd.f32 %v4729, %v4921
        %v5114 = vadd.f32 %v4730, %v4922
        %v5115 = vadd.f32 %v4731, %v4923
        %v5116 = vadd.f32 %v4732, %v4924
        %v5117 = vadd.f32 %v4733, %v4925
        %v5118 = vadd.f32 %v4734, %v4926
        %v5119 = vld [vmem:[%s301] sm:$0xff]
        %v5120 = vld [vmem:[%s301 + $0x8] sm:$0xf]
        %v5123 = vcombine.high %v5119, %v5119
        %v5125 = vunpack.c.l.s4 1983009808
        %v5126 = vunpack.c.0.s8 %v5125
        %v5127 = vlaneseq
        %v5128 = vshrl.u32 %v5127, 7
        %v5129 = vsub.s32 %v5126, %v5128
        %v5130 = vrot.slane %v5119, %v5129
        %v5132 = vunpack.c.l.s4 1983009808
        %v5133 = vunpack.c.0.s8 %v5132
        %v5134 = vlaneseq
        %v5135 = vshrl.u32 %v5134, 7
        %v5136 = vsub.s32 %v5133, %v5135
        %v5137 = vrot.slane %v5123, %v5136
        %v5138 = vcombine.high %v5130, %v5130
        %v5139 = vcombine.high %v5137, %v5137
        %v5141 = vunpack.c.l.s4 1983009808
        %v5142 = vunpack.c.0.s8 %v5141
        %v5143 = vlaneseq
        %v5144 = vshrl.u32 %v5143, 7
        %v5145 = vsub.s32 %v5142, %v5144
        %v5146 = vrot.slane %v5120, %v5145
        %v5147 = vcombine.high %v5146, %v5146
        %5154 = vmatprep.subr.mxu0 %v4928
        %5155 = vmatpush1.msra.mxu0 %v4927
        %5156 = vmatprep.subr.mxu0 %v4930
        %5157 = vmatpush1.msra.mxu0 %v4929
        %5158 = vmatprep.subr.mxu0 %v4932
        %5159 = vmatpush1.msra.mxu0 %v4931
        %5160 = vmatprep.subr.mxu0 %v4934
        %5161 = vmatpush1.msra.mxu0 %v4933
        %5162 = vmatprep.subr.mxu0 %v4936
        %5163 = vmatpush1.msra.mxu0 %v4935
        %5164 = vmatprep.subr.mxu0 %v4938
        %5165 = vmatpush1.msra.mxu0 %v4937
        %5166 = vmatprep.subr.mxu0 %v4940
        %5167 = vmatpush1.msra.mxu0 %v4939
        %5168 = vmatprep.subr.mxu0 %v4942
        %5169 = vmatpush1.msra.mxu0 %v4941
        %5170 = vmatprep.subr.mxu0 %v4944
        %5171 = vmatpush1.msra.mxu0 %v4943
        %5172 = vmatprep.subr.mxu0 %v4946
        %5173 = vmatpush1.msra.mxu0 %v4945
        %5174 = vmatprep.subr.mxu0 %v4948
        %5175 = vmatpush1.msra.mxu0 %v4947
        %5176 = vmatprep.subr.mxu0 %v4950
        %5177 = vmatpush1.msra.mxu0 %v4949
        %5178 = vmatprep.subr.mxu0 %v4952
        %5179 = vmatpush1.msra.mxu0 %v4951
        %5180 = vmatprep.subr.mxu0 %v4954
        %5181 = vmatpush1.msra.mxu0 %v4953
        %5182 = vmatprep.subr.mxu0 %v4956
        %5183 = vmatpush1.msra.mxu0 %v4955
        %5184 = vmatprep.subr.mxu0 %v4958
        %5185 = vmatpush1.msra.mxu0 %v4957
        %5186 = vmatprep.subr.mxu0 %v4960
        %5187 = vmatpush1.msra.mxu0 %v4959
        %5188 = vmatprep.subr.mxu0 %v4962
        %5189 = vmatpush1.msra.mxu0 %v4961
        %5190 = vmatprep.subr.mxu0 %v4964
        %5191 = vmatpush1.msra.mxu0 %v4963
        %5192 = vmatprep.subr.mxu0 %v4966
        %5193 = vmatpush1.msra.mxu0 %v4965
        %5194 = vmatprep.subr.mxu0 %v4968
        %5195 = vmatpush1.msra.mxu0 %v4967
        %5196 = vmatprep.subr.mxu0 %v4970
        %5197 = vmatpush1.msra.mxu0 %v4969
        %5198 = vmatprep.subr.mxu0 %v4972
        %5199 = vmatpush1.msra.mxu0 %v4971
        %5200 = vmatprep.subr.mxu0 %v4974
        %5201 = vmatpush1.msra.mxu0 %v4973
        %5202 = vmatprep.subr.mxu0 %v4976
        %5203 = vmatpush1.msra.mxu0 %v4975
        %5204 = vmatprep.subr.mxu0 %v4978
        %5205 = vmatpush1.msra.mxu0 %v4977
        %5206 = vmatprep.subr.mxu0 %v4980
        %5207 = vmatpush1.msra.mxu0 %v4979
        %5208 = vmatprep.subr.mxu0 %v4982
        %5209 = vmatpush1.msra.mxu0 %v4981
        %5210 = vmatprep.subr.mxu0 %v4984
        %5211 = vmatpush1.msra.mxu0 %v4983
        %5212 = vmatprep.subr.mxu0 %v4986
        %5213 = vmatpush1.msra.mxu0 %v4985
        %5214 = vmatprep.subr.mxu0 %v4988
        %5215 = vmatpush1.msra.mxu0 %v4987
        %5216 = vmatprep.subr.mxu0 %v4990
        %5217 = vmatpush1.msra.mxu0 %v4989
        %5218 = vmatprep.mubr.f32.mxu0 %v5138
        %5219 = vmatmul.mubr.f32.gmra.mrb[0].mxu0 %v5130
        %v5220 = vpop.f32.mrb[0].mxu0
        %v5221 = vadd.f32 0.0, %v5220
        %v5222 = vpop.f32.mrb[0].mxu0
        %v5223 = vadd.f32 0.0, %v5222
        %5224 = vdwg.mxu0
        %5225 = vmatprep.subr.mxu0 %v4992
        %5226 = vmatpush1.msra.mxu0 %v4991
        %5227 = vmatprep.subr.mxu0 %v4994
        %5228 = vmatpush1.msra.mxu0 %v4993
        %5229 = vmatprep.subr.mxu0 %v4996
        %5230 = vmatpush1.msra.mxu0 %v4995
        %5231 = vmatprep.subr.mxu0 %v4998
        %5232 = vmatpush1.msra.mxu0 %v4997
        %5233 = vmatprep.subr.mxu0 %v5000
        %5234 = vmatpush1.msra.mxu0 %v4999
        %5235 = vmatprep.subr.mxu0 %v5002
        %5236 = vmatpush1.msra.mxu0 %v5001
        %5237 = vmatprep.subr.mxu0 %v5004
        %5238 = vmatpush1.msra.mxu0 %v5003
        %5239 = vmatprep.subr.mxu0 %v5006
        %5240 = vmatpush1.msra.mxu0 %v5005
        %5241 = vmatprep.subr.mxu0 %v5008
        %5242 = vmatpush1.msra.mxu0 %v5007
        %5243 = vmatprep.subr.mxu0 %v5010
        %5244 = vmatpush1.msra.mxu0 %v5009
        %5245 = vmatprep.subr.mxu0 %v5012
        %5246 = vmatpush1.msra.mxu0 %v5011
        %5247 = vmatprep.subr.mxu0 %v5014
        %5248 = vmatpush1.msra.mxu0 %v5013
        %5249 = vmatprep.subr.mxu0 %v5016
        %5250 = vmatpush1.msra.mxu0 %v5015
        %5251 = vmatprep.subr.mxu0 %v5018
        %5252 = vmatpush1.msra.mxu0 %v5017
        %5253 = vmatprep.subr.mxu0 %v5020
        %5254 = vmatpush1.msra.mxu0 %v5019
        %5255 = vmatprep.subr.mxu0 %v5022
        %5256 = vmatpush1.msra.mxu0 %v5021
        %5257 = vmatprep.subr.mxu0 %v5024
        %5258 = vmatpush1.msra.mxu0 %v5023
        %5259 = vmatprep.subr.mxu0 %v5026
        %5260 = vmatpush1.msra.mxu0 %v5025
        %5261 = vmatprep.subr.mxu0 %v5028
        %5262 = vmatpush1.msra.mxu0 %v5027
        %5263 = vmatprep.subr.mxu0 %v5030
        %5264 = vmatpush1.msra.mxu0 %v5029
        %5265 = vmatprep.subr.mxu0 %v5032
        %5266 = vmatpush1.msra.mxu0 %v5031
        %5267 = vmatprep.subr.mxu0 %v5034
        %5268 = vmatpush1.msra.mxu0 %v5033
        %5269 = vmatprep.subr.mxu0 %v5036
        %5270 = vmatpush1.msra.mxu0 %v5035
        %5271 = vmatprep.subr.mxu0 %v5038
        %5272 = vmatpush1.msra.mxu0 %v5037
        %5273 = vmatprep.subr.mxu0 %v5040
        %5274 = vmatpush1.msra.mxu0 %v5039
        %5275 = vmatprep.subr.mxu0 %v5042
        %5276 = vmatpush1.msra.mxu0 %v5041
        %5277 = vmatprep.subr.mxu0 %v5044
        %5278 = vmatpush1.msra.mxu0 %v5043
        %5279 = vmatprep.subr.mxu0 %v5046
        %5280 = vmatpush1.msra.mxu0 %v5045
        %5281 = vmatprep.subr.mxu0 %v5048
        %5282 = vmatpush1.msra.mxu0 %v5047
        %5283 = vmatprep.subr.mxu0 %v5050
        %5284 = vmatpush1.msra.mxu0 %v5049
        %5285 = vmatprep.subr.mxu0 %v5052
        %5286 = vmatpush1.msra.mxu0 %v5051
        %5287 = vmatprep.subr.mxu0 %v5054
        %5288 = vmatpush1.msra.mxu0 %v5053
        %5289 = vmatprep.mubr.f32.mxu0 %v5139
        %5290 = vmatmul.mubr.f32.gmra.mrb[0].mxu0 %v5137
        %v5291 = vpop.f32.mrb[0].mxu0
        %v5292 = vadd.f32 %v5221, %v5291
        %v5293 = vpop.f32.mrb[0].mxu0
        %v5294 = vadd.f32 %v5223, %v5293
        %5295 = vdwg.mxu0
        %5296 = vmatprep.subr.mxu0 %v5056
        %5297 = vmatpush1.msra.mxu0 %v5055
        %5298 = vmatprep.subr.mxu0 %v5058
        %5299 = vmatpush1.msra.mxu0 %v5057
        %5300 = vmatprep.subr.mxu0 %v5060
        %5301 = vmatpush1.msra.mxu0 %v5059
        %5302 = vmatprep.subr.mxu0 %v5062
        %5303 = vmatpush1.msra.mxu0 %v5061
        %5304 = vmatprep.subr.mxu0 %v5064
        %5305 = vmatpush1.msra.mxu0 %v5063
        %5306 = vmatprep.subr.mxu0 %v5066
        %5307 = vmatpush1.msra.mxu0 %v5065
        %5308 = vmatprep.subr.mxu0 %v5068
        %5309 = vmatpush1.msra.mxu0 %v5067
        %5310 = vmatprep.subr.mxu0 %v5070
        %5311 = vmatpush1.msra.mxu0 %v5069
        %5312 = vmatprep.subr.mxu0 %v5072
        %5313 = vmatpush1.msra.mxu0 %v5071
        %5314 = vmatprep.subr.mxu0 %v5074
        %5315 = vmatpush1.msra.mxu0 %v5073
        %5316 = vmatprep.subr.mxu0 %v5076
        %5317 = vmatpush1.msra.mxu0 %v5075
        %5318 = vmatprep.subr.mxu0 %v5078
        %5319 = vmatpush1.msra.mxu0 %v5077
        %5320 = vmatprep.subr.mxu0 %v5080
        %5321 = vmatpush1.msra.mxu0 %v5079
        %5322 = vmatprep.subr.mxu0 %v5082
        %5323 = vmatpush1.msra.mxu0 %v5081
        %5324 = vmatprep.subr.mxu0 %v5084
        %5325 = vmatpush1.msra.mxu0 %v5083
        %5326 = vmatprep.subr.mxu0 %v5086
        %5327 = vmatpush1.msra.mxu0 %v5085
        %5328 = vmatprep.subr.mxu0 %v5088
        %5329 = vmatpush1.msra.mxu0 %v5087
        %5330 = vmatprep.subr.mxu0 %v5090
        %5331 = vmatpush1.msra.mxu0 %v5089
        %5332 = vmatprep.subr.mxu0 %v5092
        %5333 = vmatpush1.msra.mxu0 %v5091
        %5334 = vmatprep.subr.mxu0 %v5094
        %5335 = vmatpush1.msra.mxu0 %v5093
        %5336 = vmatprep.subr.mxu0 %v5096
        %5337 = vmatpush1.msra.mxu0 %v5095
        %5338 = vmatprep.subr.mxu0 %v5098
        %5339 = vmatpush1.msra.mxu0 %v5097
        %5340 = vmatprep.subr.mxu0 %v5100
        %5341 = vmatpush1.msra.mxu0 %v5099
        %5342 = vmatprep.subr.mxu0 %v5102
        %5343 = vmatpush1.msra.mxu0 %v5101
        %5344 = vmatprep.subr.mxu0 %v5104
        %5345 = vmatpush1.msra.mxu0 %v5103
        %5346 = vmatprep.subr.mxu0 %v5106
        %5347 = vmatpush1.msra.mxu0 %v5105
        %5348 = vmatprep.subr.mxu0 %v5108
        %5349 = vmatpush1.msra.mxu0 %v5107
        %5350 = vmatprep.subr.mxu0 %v5110
        %5351 = vmatpush1.msra.mxu0 %v5109
        %5352 = vmatprep.subr.mxu0 %v5112
        %5353 = vmatpush1.msra.mxu0 %v5111
        %5354 = vmatprep.subr.mxu0 %v5114
        %5355 = vmatpush1.msra.mxu0 %v5113
        %5356 = vmatprep.subr.mxu0 %v5116
        %5357 = vmatpush1.msra.mxu0 %v5115
        %5358 = vmatprep.subr.mxu0 %v5118
        %5359 = vmatpush1.msra.mxu0 %v5117
        %5360 = vmatprep.mubr.f32.mxu0 %v5147
        %5361 = vmatmul.mubr.f32.gmra.mrb[0].mxu0 %v5146
        %v5362 = vpop.f32.mrb[0].mxu0
        %v5363 = vadd.f32 %v5292, %v5362
        %v5364 = vpop.f32.mrb[0].mxu0
        %v5365 = vadd.f32 %v5294, %v5364
        %5366 = vdwg.mxu0
        %v5369 = vcombine.low %v5363, %v5365
        %v5371 = vunpack.c.l.s4 1983009808
        %v5372 = vunpack.c.0.s8 %v5371
        %v5373 = vlaneseq
        %v5374 = vshrl.u32 %v5373, 7
        %v5375 = vsub.s32 %v5372, %v5374
        %v5376 = vrot.slane %v5369, %v5375
        %5378 = vst [vmem:[%s345] sm:$0xf] %v5376
        %v5379 = vcvt.f32.s32.ties.to.even %v422
        %v5380 = vcvt.f32.s32.ties.to.even %v424
        %v5381 = vcvt.f32.s32.ties.to.even %v426
        %vm5382 = vcmp.ge.s32.totalorder %v5381, 0
        %vm5383 = vcmp.lt.s32.totalorder %v5381, 8
        %vm5384 = vmand %vm5382, %vm5383
        %vm5385 = vcmp.ge.s32.totalorder %v5380, 0
        %vm5386 = vmand %vm5384, %vm5385
        %vm5387 = vcmp.lt.s32.totalorder %v5380, 8
        %vm5388 = vmand %vm5386, %vm5387
        %vm5389 = vcmp.ge.s32.totalorder %v5379, 0
        %vm5390 = vmand %vm5388, %vm5389
        %vm5391 = vcmp.lt.s32.totalorder %v5379, 10
        %vm5392 = vmand %vm5390, %vm5391
        %v5393 = vmul.u32 %v5381, 80
        %v5394 = vmul.u32 %v5380, 10
        %v5395 = vadd.s32 %v5393, %v5394
        %v5396 = vadd.s32 %v5395, %v5379
        %v5397 = vlaneseq
        %v5398 = vshrl.u32 %v5397, 7
        %v5399 = vsub.s32 0, %v5398
        %v5400 = vrot.slane %v5396, %v5399
        %v5401 = vlaneseq
        %v5402 = vshrl.u32 %v5401, 7
        %v5403 = vsub.s32 1, %v5402
        %v5404 = vrot.slane %v5396, %v5403
        %vm5405 = vcmp.eq.s32.totalorder %v437, %v5400
        %vm5406 = vcmp.eq.s32.totalorder %v437, %v5404
        %vm5407 = vcmp.eq.s32.totalorder %v438, %v5400
        %vm5408 = vcmp.eq.s32.totalorder %v438, %v5404
        %vm5409 = vcmp.eq.s32.totalorder %v439, %v5400
        %vm5410 = vcmp.eq.s32.totalorder %v439, %v5404
        %vm5411 = vcmp.eq.s32.totalorder %v440, %v5400
        %vm5412 = vcmp.eq.s32.totalorder %v440, %v5404
        %vm5413 = vcmp.eq.s32.totalorder %v441, %v5400
        %vm5414 = vcmp.eq.s32.totalorder %v441, %v5404
        %vm5415 = vcmp.eq.s32.totalorder %v442, %v5400
        %vm5416 = vcmp.eq.s32.totalorder %v442, %v5404
        %vm5417 = vcmp.eq.s32.totalorder %v443, %v5400
        %vm5418 = vcmp.eq.s32.totalorder %v443, %v5404
        %vm5419 = vcmp.eq.s32.totalorder %v444, %v5400
        %vm5420 = vcmp.eq.s32.totalorder %v444, %v5404
        %vm5421 = vcmp.eq.s32.totalorder %v445, %v5400
        %vm5422 = vcmp.eq.s32.totalorder %v445, %v5404
        %vm5423 = vcmp.eq.s32.totalorder %v446, %v5400
        %vm5424 = vcmp.eq.s32.totalorder %v446, %v5404
        %vm5425 = vcmp.eq.s32.totalorder %v447, %v5400
        %vm5426 = vcmp.eq.s32.totalorder %v447, %v5404
        %vm5427 = vcmp.eq.s32.totalorder %v448, %v5400
        %vm5428 = vcmp.eq.s32.totalorder %v448, %v5404
        %vm5429 = vcmp.eq.s32.totalorder %v449, %v5400
        %vm5430 = vcmp.eq.s32.totalorder %v449, %v5404
        %vm5431 = vcmp.eq.s32.totalorder %v450, %v5400
        %vm5432 = vcmp.eq.s32.totalorder %v450, %v5404
        %vm5433 = vcmp.eq.s32.totalorder %v451, %v5400
        %vm5434 = vcmp.eq.s32.totalorder %v451, %v5404
        %vm5435 = vcmp.eq.s32.totalorder %v452, %v5400
        %vm5436 = vcmp.eq.s32.totalorder %v452, %v5404
        %vm5437 = vcmp.eq.s32.totalorder %v453, %v5400
        %vm5438 = vcmp.eq.s32.totalorder %v453, %v5404
        %vm5439 = vcmp.eq.s32.totalorder %v454, %v5400
        %vm5440 = vcmp.eq.s32.totalorder %v454, %v5404
        %vm5441 = vcmp.eq.s32.totalorder %v455, %v5400
        %vm5442 = vcmp.eq.s32.totalorder %v455, %v5404
        %vm5443 = vcmp.eq.s32.totalorder %v456, %v5400
        %vm5444 = vcmp.eq.s32.totalorder %v456, %v5404
        %vm5445 = vcmp.eq.s32.totalorder %v457, %v5400
        %vm5446 = vcmp.eq.s32.totalorder %v457, %v5404
        %vm5447 = vcmp.eq.s32.totalorder %v458, %v5400
        %vm5448 = vcmp.eq.s32.totalorder %v458, %v5404
        %vm5449 = vcmp.eq.s32.totalorder %v459, %v5400
        %vm5450 = vcmp.eq.s32.totalorder %v459, %v5404
        %vm5451 = vcmp.eq.s32.totalorder %v460, %v5400
        %vm5452 = vcmp.eq.s32.totalorder %v460, %v5404
        %vm5453 = vcmp.eq.s32.totalorder %v461, %v5400
        %vm5454 = vcmp.eq.s32.totalorder %v461, %v5404
        %vm5455 = vcmp.eq.s32.totalorder %v462, %v5400
        %vm5456 = vcmp.eq.s32.totalorder %v462, %v5404
        %vm5457 = vcmp.eq.s32.totalorder %v463, %v5400
        %vm5458 = vcmp.eq.s32.totalorder %v463, %v5404
        %vm5459 = vcmp.eq.s32.totalorder %v464, %v5400
        %vm5460 = vcmp.eq.s32.totalorder %v464, %v5404
        %vm5461 = vcmp.eq.s32.totalorder %v465, %v5400
        %vm5462 = vcmp.eq.s32.totalorder %v465, %v5404
        %vm5463 = vcmp.eq.s32.totalorder %v466, %v5400
        %vm5464 = vcmp.eq.s32.totalorder %v466, %v5404
        %vm5465 = vcmp.eq.s32.totalorder %v467, %v5400
        %vm5466 = vcmp.eq.s32.totalorder %v467, %v5404
        %vm5467 = vcmp.eq.s32.totalorder %v468, %v5400
        %vm5468 = vcmp.eq.s32.totalorder %v468, %v5404
        %vm5469 = vcmp.eq.s32.totalorder %v469, %v5400
        %vm5470 = vcmp.eq.s32.totalorder %v469, %v5404
        %vm5471 = vcmp.eq.s32.totalorder %v470, %v5400
        %vm5472 = vcmp.eq.s32.totalorder %v470, %v5404
        %vm5473 = vcmp.eq.s32.totalorder %v471, %v5400
        %vm5474 = vcmp.eq.s32.totalorder %v471, %v5404
        %vm5475 = vcmp.eq.s32.totalorder %v472, %v5400
        %vm5476 = vcmp.eq.s32.totalorder %v472, %v5404
        %vm5477 = vcmp.eq.s32.totalorder %v473, %v5400
        %vm5478 = vcmp.eq.s32.totalorder %v473, %v5404
        %vm5479 = vcmp.eq.s32.totalorder %v474, %v5400
        %vm5480 = vcmp.eq.s32.totalorder %v474, %v5404
        %vm5481 = vcmp.eq.s32.totalorder %v475, %v5400
        %vm5482 = vcmp.eq.s32.totalorder %v475, %v5404
        %vm5483 = vcmp.eq.s32.totalorder %v476, %v5400
        %vm5484 = vcmp.eq.s32.totalorder %v476, %v5404
        %vm5485 = vcmp.eq.s32.totalorder %v477, %v5400
        %vm5486 = vcmp.eq.s32.totalorder %v477, %v5404
        %vm5487 = vcmp.eq.s32.totalorder %v478, %v5400
        %vm5488 = vcmp.eq.s32.totalorder %v478, %v5404
        %vm5489 = vcmp.eq.s32.totalorder %v479, %v5400
        %vm5490 = vcmp.eq.s32.totalorder %v479, %v5404
        %vm5491 = vcmp.eq.s32.totalorder %v480, %v5400
        %vm5492 = vcmp.eq.s32.totalorder %v480, %v5404
        %vm5493 = vcmp.eq.s32.totalorder %v481, %v5400
        %vm5494 = vcmp.eq.s32.totalorder %v481, %v5404
        %vm5495 = vcmp.eq.s32.totalorder %v482, %v5400
        %vm5496 = vcmp.eq.s32.totalorder %v482, %v5404
        %vm5497 = vcmp.eq.s32.totalorder %v483, %v5400
        %vm5498 = vcmp.eq.s32.totalorder %v483, %v5404
        %vm5499 = vcmp.eq.s32.totalorder %v484, %v5400
        %vm5500 = vcmp.eq.s32.totalorder %v484, %v5404
        %vm5501 = vcmp.eq.s32.totalorder %v485, %v5400
        %vm5502 = vcmp.eq.s32.totalorder %v485, %v5404
        %vm5503 = vcmp.eq.s32.totalorder %v486, %v5400
        %vm5504 = vcmp.eq.s32.totalorder %v486, %v5404
        %vm5505 = vcmp.eq.s32.totalorder %v487, %v5400
        %vm5506 = vcmp.eq.s32.totalorder %v487, %v5404
        %vm5507 = vcmp.eq.s32.totalorder %v488, %v5400
        %vm5508 = vcmp.eq.s32.totalorder %v488, %v5404
        %vm5509 = vcmp.eq.s32.totalorder %v489, %v5400
        %vm5510 = vcmp.eq.s32.totalorder %v489, %v5404
        %vm5511 = vcmp.eq.s32.totalorder %v490, %v5400
        %vm5512 = vcmp.eq.s32.totalorder %v490, %v5404
        %vm5513 = vcmp.eq.s32.totalorder %v491, %v5400
        %vm5514 = vcmp.eq.s32.totalorder %v491, %v5404
        %vm5515 = vcmp.eq.s32.totalorder %v492, %v5400
        %vm5516 = vcmp.eq.s32.totalorder %v492, %v5404
        %vm5517 = vcmp.eq.s32.totalorder %v493, %v5400
        %vm5518 = vcmp.eq.s32.totalorder %v493, %v5404
        %vm5519 = vcmp.eq.s32.totalorder %v494, %v5400
        %vm5520 = vcmp.eq.s32.totalorder %v494, %v5404
        %vm5521 = vcmp.eq.s32.totalorder %v495, %v5400
        %vm5522 = vcmp.eq.s32.totalorder %v495, %v5404
        %vm5523 = vcmp.eq.s32.totalorder %v496, %v5400
        %vm5524 = vcmp.eq.s32.totalorder %v496, %v5404
        %vm5525 = vcmp.eq.s32.totalorder %v497, %v5400
        %vm5526 = vcmp.eq.s32.totalorder %v497, %v5404
        %vm5527 = vcmp.eq.s32.totalorder %v498, %v5400
        %vm5528 = vcmp.eq.s32.totalorder %v498, %v5404
        %vm5529 = vcmp.eq.s32.totalorder %v499, %v5400
        %vm5530 = vcmp.eq.s32.totalorder %v499, %v5404
        %vm5531 = vcmp.eq.s32.totalorder %v500, %v5400
        %vm5532 = vcmp.eq.s32.totalorder %v500, %v5404
        %vm5533 = vcmp.eq.s32.totalorder %v501, %v5400
        %vm5534 = vcmp.eq.s32.totalorder %v501, %v5404
        %vm5535 = vcmp.eq.s32.totalorder %v502, %v5400
        %vm5536 = vcmp.eq.s32.totalorder %v502, %v5404
        %vm5537 = vcmp.eq.s32.totalorder %v503, %v5400
        %vm5538 = vcmp.eq.s32.totalorder %v503, %v5404
        %vm5539 = vcmp.eq.s32.totalorder %v504, %v5400
        %vm5540 = vcmp.eq.s32.totalorder %v504, %v5404
        %vm5541 = vcmp.eq.s32.totalorder %v505, %v5400
        %vm5542 = vcmp.eq.s32.totalorder %v505, %v5404
        %vm5543 = vcmp.eq.s32.totalorder %v506, %v5400
        %vm5544 = vcmp.eq.s32.totalorder %v506, %v5404
        %vm5545 = vcmp.eq.s32.totalorder %v507, %v5400
        %vm5546 = vcmp.eq.s32.totalorder %v507, %v5404
        %vm5547 = vcmp.eq.s32.totalorder %v508, %v5400
        %vm5548 = vcmp.eq.s32.totalorder %v508, %v5404
        %vm5549 = vcmp.eq.s32.totalorder %v509, %v5400
        %vm5550 = vcmp.eq.s32.totalorder %v509, %v5404
        %vm5551 = vcmp.eq.s32.totalorder %v510, %v5400
        %vm5552 = vcmp.eq.s32.totalorder %v510, %v5404
        %vm5553 = vcmp.eq.s32.totalorder %v511, %v5400
        %vm5554 = vcmp.eq.s32.totalorder %v511, %v5404
        %vm5555 = vcmp.eq.s32.totalorder %v512, %v5400
        %vm5556 = vcmp.eq.s32.totalorder %v512, %v5404
        %vm5557 = vcmp.eq.s32.totalorder %v513, %v5400
        %vm5558 = vcmp.eq.s32.totalorder %v513, %v5404
        %vm5559 = vcmp.eq.s32.totalorder %v514, %v5400
        %vm5560 = vcmp.eq.s32.totalorder %v514, %v5404
        %vm5561 = vcmp.eq.s32.totalorder %v515, %v5400
        %vm5562 = vcmp.eq.s32.totalorder %v515, %v5404
        %vm5563 = vcmp.eq.s32.totalorder %v516, %v5400
        %vm5564 = vcmp.eq.s32.totalorder %v516, %v5404
        %vm5565 = vcmp.eq.s32.totalorder %v517, %v5400
        %vm5566 = vcmp.eq.s32.totalorder %v517, %v5404
        %vm5567 = vcmp.eq.s32.totalorder %v518, %v5400
        %vm5568 = vcmp.eq.s32.totalorder %v518, %v5404
        %vm5569 = vcmp.eq.s32.totalorder %v519, %v5400
        %vm5570 = vcmp.eq.s32.totalorder %v519, %v5404
        %vm5571 = vcmp.eq.s32.totalorder %v520, %v5400
        %vm5572 = vcmp.eq.s32.totalorder %v520, %v5404
        %vm5573 = vcmp.eq.s32.totalorder %v521, %v5400
        %vm5574 = vcmp.eq.s32.totalorder %v521, %v5404
        %vm5575 = vcmp.eq.s32.totalorder %v522, %v5400
        %vm5576 = vcmp.eq.s32.totalorder %v522, %v5404
        %vm5577 = vcmp.eq.s32.totalorder %v523, %v5400
        %vm5578 = vcmp.eq.s32.totalorder %v523, %v5404
        %vm5579 = vcmp.eq.s32.totalorder %v524, %v5400
        %vm5580 = vcmp.eq.s32.totalorder %v524, %v5404
        %vm5581 = vcmp.eq.s32.totalorder %v525, %v5400
        %vm5582 = vcmp.eq.s32.totalorder %v525, %v5404
        %vm5583 = vcmp.eq.s32.totalorder %v526, %v5400
        %vm5584 = vcmp.eq.s32.totalorder %v526, %v5404
        %vm5585 = vcmp.eq.s32.totalorder %v527, %v5400
        %vm5586 = vcmp.eq.s32.totalorder %v527, %v5404
        %vm5587 = vcmp.eq.s32.totalorder %v528, %v5400
        %vm5588 = vcmp.eq.s32.totalorder %v528, %v5404
        %vm5589 = vcmp.eq.s32.totalorder %v529, %v5400
        %vm5590 = vcmp.eq.s32.totalorder %v529, %v5404
        %vm5591 = vcmp.eq.s32.totalorder %v530, %v5400
        %vm5592 = vcmp.eq.s32.totalorder %v530, %v5404
        %vm5593 = vcmp.eq.s32.totalorder %v531, %v5400
        %vm5594 = vcmp.eq.s32.totalorder %v531, %v5404
        %vm5595 = vcmp.eq.s32.totalorder %v532, %v5400
        %vm5596 = vcmp.eq.s32.totalorder %v532, %v5404
        %v5597 = vsel %vm5392, 1, 0
        %v5598 = vlaneseq
        %v5599 = vshrl.u32 %v5598, 7
        %v5600 = vsub.s32 0, %v5599
        %v5601 = vrot.slane %v5597, %v5600
        %v5602 = vlaneseq
        %v5603 = vshrl.u32 %v5602, 7
        %v5604 = vsub.s32 1, %v5603
        %v5605 = vrot.slane %v5597, %v5604
        %vm5606 = vcmp.eq.s32.totalorder %v5601, 1
        %vm5607 = vcmp.eq.s32.totalorder %v5605, 1
        %vm5608 = vmand %vm5405, %vm5606
        %vm5609 = vmand %vm5406, %vm5607
        %vm5610 = vmand %vm5407, %vm5606
        %vm5611 = vmand %vm5408, %vm5607
        %vm5612 = vmand %vm5409, %vm5606
        %vm5613 = vmand %vm5410, %vm5607
        %vm5614 = vmand %vm5411, %vm5606
        %vm5615 = vmand %vm5412, %vm5607
        %vm5616 = vmand %vm5413, %vm5606
        %vm5617 = vmand %vm5414, %vm5607
        %vm5618 = vmand %vm5415, %vm5606
        %vm5619 = vmand %vm5416, %vm5607
        %vm5620 = vmand %vm5417, %vm5606
        %vm5621 = vmand %vm5418, %vm5607
        %vm5622 = vmand %vm5419, %vm5606
        %vm5623 = vmand %vm5420, %vm5607
        %vm5624 = vmand %vm5421, %vm5606
        %vm5625 = vmand %vm5422, %vm5607
        %vm5626 = vmand %vm5423, %vm5606
        %vm5627 = vmand %vm5424, %vm5607
        %vm5628 = vmand %vm5425, %vm5606
        %vm5629 = vmand %vm5426, %vm5607
        %vm5630 = vmand %vm5427, %vm5606
        %vm5631 = vmand %vm5428, %vm5607
        %vm5632 = vmand %vm5429, %vm5606
        %vm5633 = vmand %vm5430, %vm5607
        %vm5634 = vmand %vm5431, %vm5606
        %vm5635 = vmand %vm5432, %vm5607
        %vm5636 = vmand %vm5433, %vm5606
        %vm5637 = vmand %vm5434, %vm5607
        %vm5638 = vmand %vm5435, %vm5606
        %vm5639 = vmand %vm5436, %vm5607
        %vm5640 = vmand %vm5437, %vm5606
        %vm5641 = vmand %vm5438, %vm5607
        %vm5642 = vmand %vm5439, %vm5606
        %vm5643 = vmand %vm5440, %vm5607
        %vm5644 = vmand %vm5441, %vm5606
        %vm5645 = vmand %vm5442, %vm5607
        %vm5646 = vmand %vm5443, %vm5606
        %vm5647 = vmand %vm5444, %vm5607
        %vm5648 = vmand %vm5445, %vm5606
        %vm5649 = vmand %vm5446, %vm5607
        %vm5650 = vmand %vm5447, %vm5606
        %vm5651 = vmand %vm5448, %vm5607
        %vm5652 = vmand %vm5449, %vm5606
        %vm5653 = vmand %vm5450, %vm5607
        %vm5654 = vmand %vm5451, %vm5606
        %vm5655 = vmand %vm5452, %vm5607
        %vm5656 = vmand %vm5453, %vm5606
        %vm5657 = vmand %vm5454, %vm5607
        %vm5658 = vmand %vm5455, %vm5606
        %vm5659 = vmand %vm5456, %vm5607
        %vm5660 = vmand %vm5457, %vm5606
        %vm5661 = vmand %vm5458, %vm5607
        %vm5662 = vmand %vm5459, %vm5606
        %vm5663 = vmand %vm5460, %vm5607
        %vm5664 = vmand %vm5461, %vm5606
        %vm5665 = vmand %vm5462, %vm5607
        %vm5666 = vmand %vm5463, %vm5606
        %vm5667 = vmand %vm5464, %vm5607
        %vm5668 = vmand %vm5465, %vm5606
        %vm5669 = vmand %vm5466, %vm5607
        %vm5670 = vmand %vm5467, %vm5606
        %vm5671 = vmand %vm5468, %vm5607
        %vm5672 = vmand %vm5469, %vm5606
        %vm5673 = vmand %vm5470, %vm5607
        %vm5674 = vmand %vm5471, %vm5606
        %vm5675 = vmand %vm5472, %vm5607
        %vm5676 = vmand %vm5473, %vm5606
        %vm5677 = vmand %vm5474, %vm5607
        %vm5678 = vmand %vm5475, %vm5606
        %vm5679 = vmand %vm5476, %vm5607
        %vm5680 = vmand %vm5477, %vm5606
        %vm5681 = vmand %vm5478, %vm5607
        %vm5682 = vmand %vm5479, %vm5606
        %vm5683 = vmand %vm5480, %vm5607
        %vm5684 = vmand %vm5481, %vm5606
        %vm5685 = vmand %vm5482, %vm5607
        %vm5686 = vmand %vm5483, %vm5606
        %vm5687 = vmand %vm5484, %vm5607
        %vm5688 = vmand %vm5485, %vm5606
        %vm5689 = vmand %vm5486, %vm5607
        %vm5690 = vmand %vm5487, %vm5606
        %vm5691 = vmand %vm5488, %vm5607
        %vm5692 = vmand %vm5489, %vm5606
        %vm5693 = vmand %vm5490, %vm5607
        %vm5694 = vmand %vm5491, %vm5606
        %vm5695 = vmand %vm5492, %vm5607
        %vm5696 = vmand %vm5493, %vm5606
        %vm5697 = vmand %vm5494, %vm5607
        %vm5698 = vmand %vm5495, %vm5606
        %vm5699 = vmand %vm5496, %vm5607
        %vm5700 = vmand %vm5497, %vm5606
        %vm5701 = vmand %vm5498, %vm5607
        %vm5702 = vmand %vm5499, %vm5606
        %vm5703 = vmand %vm5500, %vm5607
        %vm5704 = vmand %vm5501, %vm5606
        %vm5705 = vmand %vm5502, %vm5607
        %vm5706 = vmand %vm5503, %vm5606
        %vm5707 = vmand %vm5504, %vm5607
        %vm5708 = vmand %vm5505, %vm5606
        %vm5709 = vmand %vm5506, %vm5607
        %vm5710 = vmand %vm5507, %vm5606
        %vm5711 = vmand %vm5508, %vm5607
        %vm5712 = vmand %vm5509, %vm5606
        %vm5713 = vmand %vm5510, %vm5607
        %vm5714 = vmand %vm5511, %vm5606
        %vm5715 = vmand %vm5512, %vm5607
        %vm5716 = vmand %vm5513, %vm5606
        %vm5717 = vmand %vm5514, %vm5607
        %vm5718 = vmand %vm5515, %vm5606
        %vm5719 = vmand %vm5516, %vm5607
        %vm5720 = vmand %vm5517, %vm5606
        %vm5721 = vmand %vm5518, %vm5607
        %vm5722 = vmand %vm5519, %vm5606
        %vm5723 = vmand %vm5520, %vm5607
        %vm5724 = vmand %vm5521, %vm5606
        %vm5725 = vmand %vm5522, %vm5607
        %vm5726 = vmand %vm5523, %vm5606
        %vm5727 = vmand %vm5524, %vm5607
        %vm5728 = vmand %vm5525, %vm5606
        %vm5729 = vmand %vm5526, %vm5607
        %vm5730 = vmand %vm5527, %vm5606
        %vm5731 = vmand %vm5528, %vm5607
        %vm5732 = vmand %vm5529, %vm5606
        %vm5733 = vmand %vm5530, %vm5607
        %vm5734 = vmand %vm5531, %vm5606
        %vm5735 = vmand %vm5532, %vm5607
        %vm5736 = vmand %vm5533, %vm5606
        %vm5737 = vmand %vm5534, %vm5607
        %vm5738 = vmand %vm5535, %vm5606
        %vm5739 = vmand %vm5536, %vm5607
        %vm5740 = vmand %vm5537, %vm5606
        %vm5741 = vmand %vm5538, %vm5607
        %vm5742 = vmand %vm5539, %vm5606
        %vm5743 = vmand %vm5540, %vm5607
        %vm5744 = vmand %vm5541, %vm5606
        %vm5745 = vmand %vm5542, %vm5607
        %vm5746 = vmand %vm5543, %vm5606
        %vm5747 = vmand %vm5544, %vm5607
        %vm5748 = vmand %vm5545, %vm5606
        %vm5749 = vmand %vm5546, %vm5607
        %vm5750 = vmand %vm5547, %vm5606
        %vm5751 = vmand %vm5548, %vm5607
        %vm5752 = vmand %vm5549, %vm5606
        %vm5753 = vmand %vm5550, %vm5607
        %vm5754 = vmand %vm5551, %vm5606
        %vm5755 = vmand %vm5552, %vm5607
        %vm5756 = vmand %vm5553, %vm5606
        %vm5757 = vmand %vm5554, %vm5607
        %vm5758 = vmand %vm5555, %vm5606
        %vm5759 = vmand %vm5556, %vm5607
        %vm5760 = vmand %vm5557, %vm5606
        %vm5761 = vmand %vm5558, %vm5607
        %vm5762 = vmand %vm5559, %vm5606
        %vm5763 = vmand %vm5560, %vm5607
        %vm5764 = vmand %vm5561, %vm5606
        %vm5765 = vmand %vm5562, %vm5607
        %vm5766 = vmand %vm5563, %vm5606
        %vm5767 = vmand %vm5564, %vm5607
        %vm5768 = vmand %vm5565, %vm5606
        %vm5769 = vmand %vm5566, %vm5607
        %vm5770 = vmand %vm5567, %vm5606
        %vm5771 = vmand %vm5568, %vm5607
        %vm5772 = vmand %vm5569, %vm5606
        %vm5773 = vmand %vm5570, %vm5607
        %vm5774 = vmand %vm5571, %vm5606
        %vm5775 = vmand %vm5572, %vm5607
        %vm5776 = vmand %vm5573, %vm5606
        %vm5777 = vmand %vm5574, %vm5607
        %vm5778 = vmand %vm5575, %vm5606
        %vm5779 = vmand %vm5576, %vm5607
        %vm5780 = vmand %vm5577, %vm5606
        %vm5781 = vmand %vm5578, %vm5607
        %vm5782 = vmand %vm5579, %vm5606
        %vm5783 = vmand %vm5580, %vm5607
        %vm5784 = vmand %vm5581, %vm5606
        %vm5785 = vmand %vm5582, %vm5607
        %vm5786 = vmand %vm5583, %vm5606
        %vm5787 = vmand %vm5584, %vm5607
        %vm5788 = vmand %vm5585, %vm5606
        %vm5789 = vmand %vm5586, %vm5607
        %vm5790 = vmand %vm5587, %vm5606
        %vm5791 = vmand %vm5588, %vm5607
        %vm5792 = vmand %vm5589, %vm5606
        %vm5793 = vmand %vm5590, %vm5607
        %vm5794 = vmand %vm5591, %vm5606
        %vm5795 = vmand %vm5592, %vm5607
        %vm5796 = vmand %vm5593, %vm5606
        %vm5797 = vmand %vm5594, %vm5607
        %vm5798 = vmand %vm5595, %vm5606
        %vm5799 = vmand %vm5596, %vm5607
        %v5800 = vsel %vm5608, 1.0, 0.0
        %v5801 = vsel %vm5609, 1.0, 0.0
        %v5802 = vsel %vm5610, 1.0, 0.0
        %v5803 = vsel %vm5611, 1.0, 0.0
        %v5804 = vsel %vm5612, 1.0, 0.0
        %v5805 = vsel %vm5613, 1.0, 0.0
        %v5806 = vsel %vm5614, 1.0, 0.0
        %v5807 = vsel %vm5615, 1.0, 0.0
        %v5808 = vsel %vm5616, 1.0, 0.0
        %v5809 = vsel %vm5617, 1.0, 0.0
        %v5810 = vsel %vm5618, 1.0, 0.0
        %v5811 = vsel %vm5619, 1.0, 0.0
        %v5812 = vsel %vm5620, 1.0, 0.0
        %v5813 = vsel %vm5621, 1.0, 0.0
        %v5814 = vsel %vm5622, 1.0, 0.0
        %v5815 = vsel %vm5623, 1.0, 0.0
        %v5816 = vsel %vm5624, 1.0, 0.0
        %v5817 = vsel %vm5625, 1.0, 0.0
        %v5818 = vsel %vm5626, 1.0, 0.0
        %v5819 = vsel %vm5627, 1.0, 0.0
        %v5820 = vsel %vm5628, 1.0, 0.0
        %v5821 = vsel %vm5629, 1.0, 0.0
        %v5822 = vsel %vm5630, 1.0, 0.0
        %v5823 = vsel %vm5631, 1.0, 0.0
        %v5824 = vsel %vm5632, 1.0, 0.0
        %v5825 = vsel %vm5633, 1.0, 0.0
        %v5826 = vsel %vm5634, 1.0, 0.0
        %v5827 = vsel %vm5635, 1.0, 0.0
        %v5828 = vsel %vm5636, 1.0, 0.0
        %v5829 = vsel %vm5637, 1.0, 0.0
        %v5830 = vsel %vm5638, 1.0, 0.0
        %v5831 = vsel %vm5639, 1.0, 0.0
        %v5832 = vsel %vm5640, 1.0, 0.0
        %v5833 = vsel %vm5641, 1.0, 0.0
        %v5834 = vsel %vm5642, 1.0, 0.0
        %v5835 = vsel %vm5643, 1.0, 0.0
        %v5836 = vsel %vm5644, 1.0, 0.0
        %v5837 = vsel %vm5645, 1.0, 0.0
        %v5838 = vsel %vm5646, 1.0, 0.0
        %v5839 = vsel %vm5647, 1.0, 0.0
        %v5840 = vsel %vm5648, 1.0, 0.0
        %v5841 = vsel %vm5649, 1.0, 0.0
        %v5842 = vsel %vm5650, 1.0, 0.0
        %v5843 = vsel %vm5651, 1.0, 0.0
        %v5844 = vsel %vm5652, 1.0, 0.0
        %v5845 = vsel %vm5653, 1.0, 0.0
        %v5846 = vsel %vm5654, 1.0, 0.0
        %v5847 = vsel %vm5655, 1.0, 0.0
        %v5848 = vsel %vm5656, 1.0, 0.0
        %v5849 = vsel %vm5657, 1.0, 0.0
        %v5850 = vsel %vm5658, 1.0, 0.0
        %v5851 = vsel %vm5659, 1.0, 0.0
        %v5852 = vsel %vm5660, 1.0, 0.0
        %v5853 = vsel %vm5661, 1.0, 0.0
        %v5854 = vsel %vm5662, 1.0, 0.0
        %v5855 = vsel %vm5663, 1.0, 0.0
        %v5856 = vsel %vm5664, 1.0, 0.0
        %v5857 = vsel %vm5665, 1.0, 0.0
        %v5858 = vsel %vm5666, 1.0, 0.0
        %v5859 = vsel %vm5667, 1.0, 0.0
        %v5860 = vsel %vm5668, 1.0, 0.0
        %v5861 = vsel %vm5669, 1.0, 0.0
        %v5862 = vsel %vm5670, 1.0, 0.0
        %v5863 = vsel %vm5671, 1.0, 0.0
        %v5864 = vsel %vm5672, 1.0, 0.0
        %v5865 = vsel %vm5673, 1.0, 0.0
        %v5866 = vsel %vm5674, 1.0, 0.0
        %v5867 = vsel %vm5675, 1.0, 0.0
        %v5868 = vsel %vm5676, 1.0, 0.0
        %v5869 = vsel %vm5677, 1.0, 0.0
        %v5870 = vsel %vm5678, 1.0, 0.0
        %v5871 = vsel %vm5679, 1.0, 0.0
        %v5872 = vsel %vm5680, 1.0, 0.0
        %v5873 = vsel %vm5681, 1.0, 0.0
        %v5874 = vsel %vm5682, 1.0, 0.0
        %v5875 = vsel %vm5683, 1.0, 0.0
        %v5876 = vsel %vm5684, 1.0, 0.0
        %v5877 = vsel %vm5685, 1.0, 0.0
        %v5878 = vsel %vm5686, 1.0, 0.0
        %v5879 = vsel %vm5687, 1.0, 0.0
        %v5880 = vsel %vm5688, 1.0, 0.0
        %v5881 = vsel %vm5689, 1.0, 0.0
        %v5882 = vsel %vm5690, 1.0, 0.0
        %v5883 = vsel %vm5691, 1.0, 0.0
        %v5884 = vsel %vm5692, 1.0, 0.0
        %v5885 = vsel %vm5693, 1.0, 0.0
        %v5886 = vsel %vm5694, 1.0, 0.0
        %v5887 = vsel %vm5695, 1.0, 0.0
        %v5888 = vsel %vm5696, 1.0, 0.0
        %v5889 = vsel %vm5697, 1.0, 0.0
        %v5890 = vsel %vm5698, 1.0, 0.0
        %v5891 = vsel %vm5699, 1.0, 0.0
        %v5892 = vsel %vm5700, 1.0, 0.0
        %v5893 = vsel %vm5701, 1.0, 0.0
        %v5894 = vsel %vm5702, 1.0, 0.0
        %v5895 = vsel %vm5703, 1.0, 0.0
        %v5896 = vsel %vm5704, 1.0, 0.0
        %v5897 = vsel %vm5705, 1.0, 0.0
        %v5898 = vsel %vm5706, 1.0, 0.0
        %v5899 = vsel %vm5707, 1.0, 0.0
        %v5900 = vsel %vm5708, 1.0, 0.0
        %v5901 = vsel %vm5709, 1.0, 0.0
        %v5902 = vsel %vm5710, 1.0, 0.0
        %v5903 = vsel %vm5711, 1.0, 0.0
        %v5904 = vsel %vm5712, 1.0, 0.0
        %v5905 = vsel %vm5713, 1.0, 0.0
        %v5906 = vsel %vm5714, 1.0, 0.0
        %v5907 = vsel %vm5715, 1.0, 0.0
        %v5908 = vsel %vm5716, 1.0, 0.0
        %v5909 = vsel %vm5717, 1.0, 0.0
        %v5910 = vsel %vm5718, 1.0, 0.0
        %v5911 = vsel %vm5719, 1.0, 0.0
        %v5912 = vsel %vm5720, 1.0, 0.0
        %v5913 = vsel %vm5721, 1.0, 0.0
        %v5914 = vsel %vm5722, 1.0, 0.0
        %v5915 = vsel %vm5723, 1.0, 0.0
        %v5916 = vsel %vm5724, 1.0, 0.0
        %v5917 = vsel %vm5725, 1.0, 0.0
        %v5918 = vsel %vm5726, 1.0, 0.0
        %v5919 = vsel %vm5727, 1.0, 0.0
        %v5920 = vsel %vm5728, 1.0, 0.0
        %v5921 = vsel %vm5729, 1.0, 0.0
        %v5922 = vsel %vm5730, 1.0, 0.0
        %v5923 = vsel %vm5731, 1.0, 0.0
        %v5924 = vsel %vm5732, 1.0, 0.0
        %v5925 = vsel %vm5733, 1.0, 0.0
        %v5926 = vsel %vm5734, 1.0, 0.0
        %v5927 = vsel %vm5735, 1.0, 0.0
        %v5928 = vsel %vm5736, 1.0, 0.0
        %v5929 = vsel %vm5737, 1.0, 0.0
        %v5930 = vsel %vm5738, 1.0, 0.0
        %v5931 = vsel %vm5739, 1.0, 0.0
        %v5932 = vsel %vm5740, 1.0, 0.0
        %v5933 = vsel %vm5741, 1.0, 0.0
        %v5934 = vsel %vm5742, 1.0, 0.0
        %v5935 = vsel %vm5743, 1.0, 0.0
        %v5936 = vsel %vm5744, 1.0, 0.0
        %v5937 = vsel %vm5745, 1.0, 0.0
        %v5938 = vsel %vm5746, 1.0, 0.0
        %v5939 = vsel %vm5747, 1.0, 0.0
        %v5940 = vsel %vm5748, 1.0, 0.0
        %v5941 = vsel %vm5749, 1.0, 0.0
        %v5942 = vsel %vm5750, 1.0, 0.0
        %v5943 = vsel %vm5751, 1.0, 0.0
        %v5944 = vsel %vm5752, 1.0, 0.0
        %v5945 = vsel %vm5753, 1.0, 0.0
        %v5946 = vsel %vm5754, 1.0, 0.0
        %v5947 = vsel %vm5755, 1.0, 0.0
        %v5948 = vsel %vm5756, 1.0, 0.0
        %v5949 = vsel %vm5757, 1.0, 0.0
        %v5950 = vsel %vm5758, 1.0, 0.0
        %v5951 = vsel %vm5759, 1.0, 0.0
        %v5952 = vsel %vm5760, 1.0, 0.0
        %v5953 = vsel %vm5761, 1.0, 0.0
        %v5954 = vsel %vm5762, 1.0, 0.0
        %v5955 = vsel %vm5763, 1.0, 0.0
        %v5956 = vsel %vm5764, 1.0, 0.0
        %v5957 = vsel %vm5765, 1.0, 0.0
        %v5958 = vsel %vm5766, 1.0, 0.0
        %v5959 = vsel %vm5767, 1.0, 0.0
        %v5960 = vsel %vm5768, 1.0, 0.0
        %v5961 = vsel %vm5769, 1.0, 0.0
        %v5962 = vsel %vm5770, 1.0, 0.0
        %v5963 = vsel %vm5771, 1.0, 0.0
        %v5964 = vsel %vm5772, 1.0, 0.0
        %v5965 = vsel %vm5773, 1.0, 0.0
        %v5966 = vsel %vm5774, 1.0, 0.0
        %v5967 = vsel %vm5775, 1.0, 0.0
        %v5968 = vsel %vm5776, 1.0, 0.0
        %v5969 = vsel %vm5777, 1.0, 0.0
        %v5970 = vsel %vm5778, 1.0, 0.0
        %v5971 = vsel %vm5779, 1.0, 0.0
        %v5972 = vsel %vm5780, 1.0, 0.0
        %v5973 = vsel %vm5781, 1.0, 0.0
        %v5974 = vsel %vm5782, 1.0, 0.0
        %v5975 = vsel %vm5783, 1.0, 0.0
        %v5976 = vsel %vm5784, 1.0, 0.0
        %v5977 = vsel %vm5785, 1.0, 0.0
        %v5978 = vsel %vm5786, 1.0, 0.0
        %v5979 = vsel %vm5787, 1.0, 0.0
        %v5980 = vsel %vm5788, 1.0, 0.0
        %v5981 = vsel %vm5789, 1.0, 0.0
        %v5982 = vsel %vm5790, 1.0, 0.0
        %v5983 = vsel %vm5791, 1.0, 0.0
        %v5984 = vsel %vm5792, 1.0, 0.0
        %v5985 = vsel %vm5793, 1.0, 0.0
        %v5986 = vsel %vm5794, 1.0, 0.0
        %v5987 = vsel %vm5795, 1.0, 0.0
        %v5988 = vsel %vm5796, 1.0, 0.0
        %v5989 = vsel %vm5797, 1.0, 0.0
        %v5990 = vsel %vm5798, 1.0, 0.0
        %v5991 = vsel %vm5799, 1.0, 0.0
        %v5992 = vld [vmem:[%s310] sm:$0x3f]
        %v5994 = vlaneseq
        %v5995 = vshrl.u32 %v5994, 7
        %v5996 = vsub.s32 0, %v5995
        %v5997 = vrot.slane %v5992, %v5996
        %v5998 = vlaneseq
        %v5999 = vshrl.u32 %v5998, 7
        %v6000 = vsub.s32 1, %v5999
        %v6001 = vrot.slane %v5992, %v6000
        %v6002 = vlaneseq
        %v6003 = vshrl.u32 %v6002, 7
        %v6004 = vsub.s32 2, %v6003
        %v6005 = vrot.slane %v5992, %v6004
        %v6006 = vlaneseq
        %v6007 = vshrl.u32 %v6006, 7
        %v6008 = vsub.s32 3, %v6007
        %v6009 = vrot.slane %v5992, %v6008
        %v6010 = vlaneseq
        %v6011 = vshrl.u32 %v6010, 7
        %v6012 = vsub.s32 4, %v6011
        %v6013 = vrot.slane %v5992, %v6012
        %v6014 = vlaneseq
        %v6015 = vshrl.u32 %v6014, 7
        %v6016 = vsub.s32 5, %v6015
        %v6017 = vrot.slane %v5992, %v6016
        %6024 = vmatprep.subr.mxu0 %v5801
        %6025 = vmatpush1.msra.mxu0 %v5800
        %6026 = vmatprep.subr.mxu0 %v5803
        %6027 = vmatpush1.msra.mxu0 %v5802
        %6028 = vmatprep.subr.mxu0 %v5805
        %6029 = vmatpush1.msra.mxu0 %v5804
        %6030 = vmatprep.subr.mxu0 %v5807
        %6031 = vmatpush1.msra.mxu0 %v5806
        %6032 = vmatprep.subr.mxu0 %v5809
        %6033 = vmatpush1.msra.mxu0 %v5808
        %6034 = vmatprep.subr.mxu0 %v5811
        %6035 = vmatpush1.msra.mxu0 %v5810
        %6036 = vmatprep.subr.mxu0 %v5813
        %6037 = vmatpush1.msra.mxu0 %v5812
        %6038 = vmatprep.subr.mxu0 %v5815
        %6039 = vmatpush1.msra.mxu0 %v5814
        %6040 = vmatprep.subr.mxu0 %v5817
        %6041 = vmatpush1.msra.mxu0 %v5816
        %6042 = vmatprep.subr.mxu0 %v5819
        %6043 = vmatpush1.msra.mxu0 %v5818
        %6044 = vmatprep.subr.mxu0 %v5821
        %6045 = vmatpush1.msra.mxu0 %v5820
        %6046 = vmatprep.subr.mxu0 %v5823
        %6047 = vmatpush1.msra.mxu0 %v5822
        %6048 = vmatprep.subr.mxu0 %v5825
        %6049 = vmatpush1.msra.mxu0 %v5824
        %6050 = vmatprep.subr.mxu0 %v5827
        %6051 = vmatpush1.msra.mxu0 %v5826
        %6052 = vmatprep.subr.mxu0 %v5829
        %6053 = vmatpush1.msra.mxu0 %v5828
        %6054 = vmatprep.subr.mxu0 %v5831
        %6055 = vmatpush1.msra.mxu0 %v5830
        %6056 = vmatprep.subr.mxu0 %v5833
        %6057 = vmatpush1.msra.mxu0 %v5832
        %6058 = vmatprep.subr.mxu0 %v5835
        %6059 = vmatpush1.msra.mxu0 %v5834
        %6060 = vmatprep.subr.mxu0 %v5837
        %6061 = vmatpush1.msra.mxu0 %v5836
        %6062 = vmatprep.subr.mxu0 %v5839
        %6063 = vmatpush1.msra.mxu0 %v5838
        %6064 = vmatprep.subr.mxu0 %v5841
        %6065 = vmatpush1.msra.mxu0 %v5840
        %6066 = vmatprep.subr.mxu0 %v5843
        %6067 = vmatpush1.msra.mxu0 %v5842
        %6068 = vmatprep.subr.mxu0 %v5845
        %6069 = vmatpush1.msra.mxu0 %v5844
        %6070 = vmatprep.subr.mxu0 %v5847
        %6071 = vmatpush1.msra.mxu0 %v5846
        %6072 = vmatprep.subr.mxu0 %v5849
        %6073 = vmatpush1.msra.mxu0 %v5848
        %6074 = vmatprep.subr.mxu0 %v5851
        %6075 = vmatpush1.msra.mxu0 %v5850
        %6076 = vmatprep.subr.mxu0 %v5853
        %6077 = vmatpush1.msra.mxu0 %v5852
        %6078 = vmatprep.subr.mxu0 %v5855
        %6079 = vmatpush1.msra.mxu0 %v5854
        %6080 = vmatprep.subr.mxu0 %v5857
        %6081 = vmatpush1.msra.mxu0 %v5856
        %6082 = vmatprep.subr.mxu0 %v5859
        %6083 = vmatpush1.msra.mxu0 %v5858
        %6084 = vmatprep.subr.mxu0 %v5861
        %6085 = vmatpush1.msra.mxu0 %v5860
        %6086 = vmatprep.subr.mxu0 %v5863
        %6087 = vmatpush1.msra.mxu0 %v5862
        %6088 = vmatprep.mubr.f32.mxu0 %v6001
        %6089 = vmatmul.mubr.f32.gmra.mrb[0].mxu0 %v5997
        %v6090 = vpop.f32.mrb[0].mxu0
        %v6091 = vadd.f32 0.0, %v6090
        %v6092 = vpop.f32.mrb[0].mxu0
        %v6093 = vadd.f32 0.0, %v6092
        %6094 = vdwg.mxu0
        %6095 = vmatprep.subr.mxu0 %v5865
        %6096 = vmatpush1.msra.mxu0 %v5864
        %6097 = vmatprep.subr.mxu0 %v5867
        %6098 = vmatpush1.msra.mxu0 %v5866
        %6099 = vmatprep.subr.mxu0 %v5869
        %6100 = vmatpush1.msra.mxu0 %v5868
        %6101 = vmatprep.subr.mxu0 %v5871
        %6102 = vmatpush1.msra.mxu0 %v5870
        %6103 = vmatprep.subr.mxu0 %v5873
        %6104 = vmatpush1.msra.mxu0 %v5872
        %6105 = vmatprep.subr.mxu0 %v5875
        %6106 = vmatpush1.msra.mxu0 %v5874
        %6107 = vmatprep.subr.mxu0 %v5877
        %6108 = vmatpush1.msra.mxu0 %v5876
        %6109 = vmatprep.subr.mxu0 %v5879
        %6110 = vmatpush1.msra.mxu0 %v5878
        %6111 = vmatprep.subr.mxu0 %v5881
        %6112 = vmatpush1.msra.mxu0 %v5880
        %6113 = vmatprep.subr.mxu0 %v5883
        %6114 = vmatpush1.msra.mxu0 %v5882
        %6115 = vmatprep.subr.mxu0 %v5885
        %6116 = vmatpush1.msra.mxu0 %v5884
        %6117 = vmatprep.subr.mxu0 %v5887
        %6118 = vmatpush1.msra.mxu0 %v5886
        %6119 = vmatprep.subr.mxu0 %v5889
        %6120 = vmatpush1.msra.mxu0 %v5888
        %6121 = vmatprep.subr.mxu0 %v5891
        %6122 = vmatpush1.msra.mxu0 %v5890
        %6123 = vmatprep.subr.mxu0 %v5893
        %6124 = vmatpush1.msra.mxu0 %v5892
        %6125 = vmatprep.subr.mxu0 %v5895
        %6126 = vmatpush1.msra.mxu0 %v5894
        %6127 = vmatprep.subr.mxu0 %v5897
        %6128 = vmatpush1.msra.mxu0 %v5896
        %6129 = vmatprep.subr.mxu0 %v5899
        %6130 = vmatpush1.msra.mxu0 %v5898
        %6131 = vmatprep.subr.mxu0 %v5901
        %6132 = vmatpush1.msra.mxu0 %v5900
        %6133 = vmatprep.subr.mxu0 %v5903
        %6134 = vmatpush1.msra.mxu0 %v5902
        %6135 = vmatprep.subr.mxu0 %v5905
        %6136 = vmatpush1.msra.mxu0 %v5904
        %6137 = vmatprep.subr.mxu0 %v5907
        %6138 = vmatpush1.msra.mxu0 %v5906
        %6139 = vmatprep.subr.mxu0 %v5909
        %6140 = vmatpush1.msra.mxu0 %v5908
        %6141 = vmatprep.subr.mxu0 %v5911
        %6142 = vmatpush1.msra.mxu0 %v5910
        %6143 = vmatprep.subr.mxu0 %v5913
        %6144 = vmatpush1.msra.mxu0 %v5912
        %6145 = vmatprep.subr.mxu0 %v5915
        %6146 = vmatpush1.msra.mxu0 %v5914
        %6147 = vmatprep.subr.mxu0 %v5917
        %6148 = vmatpush1.msra.mxu0 %v5916
        %6149 = vmatprep.subr.mxu0 %v5919
        %6150 = vmatpush1.msra.mxu0 %v5918
        %6151 = vmatprep.subr.mxu0 %v5921
        %6152 = vmatpush1.msra.mxu0 %v5920
        %6153 = vmatprep.subr.mxu0 %v5923
        %6154 = vmatpush1.msra.mxu0 %v5922
        %6155 = vmatprep.subr.mxu0 %v5925
        %6156 = vmatpush1.msra.mxu0 %v5924
        %6157 = vmatprep.subr.mxu0 %v5927
        %6158 = vmatpush1.msra.mxu0 %v5926
        %6159 = vmatprep.mubr.f32.mxu0 %v6009
        %6160 = vmatmul.mubr.f32.gmra.mrb[0].mxu0 %v6005
        %v6161 = vpop.f32.mrb[0].mxu0
        %v6162 = vadd.f32 %v6091, %v6161
        %v6163 = vpop.f32.mrb[0].mxu0
        %v6164 = vadd.f32 %v6093, %v6163
        %6165 = vdwg.mxu0
        %6166 = vmatprep.subr.mxu0 %v5929
        %6167 = vmatpush1.msra.mxu0 %v5928
        %6168 = vmatprep.subr.mxu0 %v5931
        %6169 = vmatpush1.msra.mxu0 %v5930
        %6170 = vmatprep.subr.mxu0 %v5933
        %6171 = vmatpush1.msra.mxu0 %v5932
        %6172 = vmatprep.subr.mxu0 %v5935
        %6173 = vmatpush1.msra.mxu0 %v5934
        %6174 = vmatprep.subr.mxu0 %v5937
        %6175 = vmatpush1.msra.mxu0 %v5936
        %6176 = vmatprep.subr.mxu0 %v5939
        %6177 = vmatpush1.msra.mxu0 %v5938
        %6178 = vmatprep.subr.mxu0 %v5941
        %6179 = vmatpush1.msra.mxu0 %v5940
        %6180 = vmatprep.subr.mxu0 %v5943
        %6181 = vmatpush1.msra.mxu0 %v5942
        %6182 = vmatprep.subr.mxu0 %v5945
        %6183 = vmatpush1.msra.mxu0 %v5944
        %6184 = vmatprep.subr.mxu0 %v5947
        %6185 = vmatpush1.msra.mxu0 %v5946
        %6186 = vmatprep.subr.mxu0 %v5949
        %6187 = vmatpush1.msra.mxu0 %v5948
        %6188 = vmatprep.subr.mxu0 %v5951
        %6189 = vmatpush1.msra.mxu0 %v5950
        %6190 = vmatprep.subr.mxu0 %v5953
        %6191 = vmatpush1.msra.mxu0 %v5952
        %6192 = vmatprep.subr.mxu0 %v5955
        %6193 = vmatpush1.msra.mxu0 %v5954
        %6194 = vmatprep.subr.mxu0 %v5957
        %6195 = vmatpush1.msra.mxu0 %v5956
        %6196 = vmatprep.subr.mxu0 %v5959
        %6197 = vmatpush1.msra.mxu0 %v5958
        %6198 = vmatprep.subr.mxu0 %v5961
        %6199 = vmatpush1.msra.mxu0 %v5960
        %6200 = vmatprep.subr.mxu0 %v5963
        %6201 = vmatpush1.msra.mxu0 %v5962
        %6202 = vmatprep.subr.mxu0 %v5965
        %6203 = vmatpush1.msra.mxu0 %v5964
        %6204 = vmatprep.subr.mxu0 %v5967
        %6205 = vmatpush1.msra.mxu0 %v5966
        %6206 = vmatprep.subr.mxu0 %v5969
        %6207 = vmatpush1.msra.mxu0 %v5968
        %6208 = vmatprep.subr.mxu0 %v5971
        %6209 = vmatpush1.msra.mxu0 %v5970
        %6210 = vmatprep.subr.mxu0 %v5973
        %6211 = vmatpush1.msra.mxu0 %v5972
        %6212 = vmatprep.subr.mxu0 %v5975
        %6213 = vmatpush1.msra.mxu0 %v5974
        %6214 = vmatprep.subr.mxu0 %v5977
        %6215 = vmatpush1.msra.mxu0 %v5976
        %6216 = vmatprep.subr.mxu0 %v5979
        %6217 = vmatpush1.msra.mxu0 %v5978
        %6218 = vmatprep.subr.mxu0 %v5981
        %6219 = vmatpush1.msra.mxu0 %v5980
        %6220 = vmatprep.subr.mxu0 %v5983
        %6221 = vmatpush1.msra.mxu0 %v5982
        %6222 = vmatprep.subr.mxu0 %v5985
        %6223 = vmatpush1.msra.mxu0 %v5984
        %6224 = vmatprep.subr.mxu0 %v5987
        %6225 = vmatpush1.msra.mxu0 %v5986
        %6226 = vmatprep.subr.mxu0 %v5989
        %6227 = vmatpush1.msra.mxu0 %v5988
        %6228 = vmatprep.subr.mxu0 %v5991
        %6229 = vmatpush1.msra.mxu0 %v5990
        %6230 = vmatprep.mubr.f32.mxu0 %v6017
        %6231 = vmatmul.mubr.f32.gmra.mrb[0].mxu0 %v6013
        %v6232 = vpop.f32.mrb[0].mxu0
        %v6233 = vadd.f32 %v6162, %v6232
        %v6234 = vpop.f32.mrb[0].mxu0
        %v6235 = vadd.f32 %v6164, %v6234
        %6236 = vdwg.mxu0
        %v6239 = vcombine.low %v6233, %v6235
        %v6241 = vunpack.c.l.s4 1966171168
        %v6242 = vunpack.c.0.s8 %v6241
        %v6243 = vlaneseq
        %v6244 = vshrl.u32 %v6243, 7
        %v6245 = vsub.s32 %v6242, %v6244
        %v6246 = vrot.slane %v6239, %v6245
        %v6248 = vunpack.c.l.s4 1966171168
        %v6249 = vunpack.c.0.s8 %v6248
        %v6250 = vlaneseq
        %v6251 = vshrl.u32 %v6250, 7
        %v6252 = vsub.s32 %v6249, %v6251
        %v6253 = vrot.slane %v6246, %v6252
        %v6255 = vlaneseq
        %vm6256 = vcmp.ge.s32.totalorder %v6255, 0
        %vm6257 = vcmp.lt.s32.totalorder %v6255, 256
        %vm6258 = vmand %vm6256, %vm6257
        %6259 = vst.msk [vmem:[%s352] sm:$0x3] %vm6258, %v6253
        %s6260 = sand.u32 %s151, 1
        %s6261 = scalar_lea.sflag [#allocation4], %s6260
        %s6262 = sand.u32 %s151, 1
        %s6263 = smul.addr %s6262, 4
        %s6264 = scalar_lea.vmem [#allocation10], %s6263
        %s6265 = sand.u32 %s179, 1
        %s6266 = scalar_lea.sflag [#allocation12], %s6265
        %s6267 = sand.u32 %s179, 1
        %s6268 = smul.addr %s6267, 2
        %s6269 = scalar_lea.vmem [#allocation11], %s6268
        // Predicated region
        $region53: #{tpu_custom_call.1} parent=35 // pred_check
          %p6270 = pneg %p161
        $region54: #{tpu_custom_call.1} parent=35 // pred_check_branch
          %6272 = sbr.rel (%p6270) target = $region56
        $region55: #{tpu_custom_call.1} parent=35 // pred_region
          %s6273 = smul.u32 2, %s35
          %s6275 = ssub.s32 64, 64
          %6276 = vsyncadd %s6261, %s6275
          %s6277 = smul.addr %s34, 6
          %s6278 = sadd.s32 %s6273, %s6277
          %s6279 = smul.addr %s6278, 32
          %s6280 = scalar_lea.hbm %s4, %s6279
          %s6282 = sshll.u32 %s6264, 4
          %s6283 = int_to_ptr.vmem [resolvable:$true] %s6282
          %6285 = dma.vmem_to_hbm [thread:$0]  %s6283, 64, %s6280, %s6261
        $region56: #{tpu_custom_call.1} parent=35 // pred_fallthru
          _
        // Predicated region
        $region57: #{tpu_custom_call.1} parent=35 // pred_check
          %p6286 = pneg %p189
        $region58: #{tpu_custom_call.1} parent=35 // pred_check_branch
          %6288 = sbr.rel (%p6286) target = $region60
        $region59: #{tpu_custom_call.1} parent=35 // pred_region
          %s6289 = smul.u32 2, %s35
          %s6291 = ssub.s32 32, 32
          %6292 = vsyncadd %s6266, %s6291
          %s6293 = smul.addr %s34, 6
          %s6294 = sadd.s32 %s6289, %s6293
          %s6295 = smul.addr %s6294, 16
          %s6296 = scalar_lea.hbm %s5, %s6295
          %s6298 = sshll.u32 %s6269, 4
          %s6299 = int_to_ptr.vmem [resolvable:$true] %s6298
          %6301 = dma.vmem_to_hbm [thread:$0]  %s6299, 32, %s6296, %s6266
        $region60: #{tpu_custom_call.1} parent=35 // pred_fallthru
          _
      $region36: #{tpu_custom_call.1} parent=5 // pred_fallthru
        _
      %p6302 = scmp.le.s32.totalorder 2, %s25
      // Predicated region
      $region61: #{tpu_custom_call.1} parent=5 // pred_check
        %p6303 = pneg %p6302
      $region62: #{tpu_custom_call.1} parent=5 // pred_check_branch
        %6305 = sbr.rel (%p6303) target = $region64
      $region63: #{tpu_custom_call.1} parent=5 // pred_region
        %s6306 = ssub.s32 %s25, 2
        // Predicated region
        $region65: #{tpu_custom_call.1} parent=63 // pred_check
          %p6307 = pneg %p167
        $region66: #{tpu_custom_call.1} parent=63 // pred_check_branch
          %6309 = sbr.rel (%p6307) target = $region68
        $region67: #{tpu_custom_call.1} parent=63 // pred_region
          %s6310 = sand.u32 %s152, 1
          %s6311 = scalar_lea.sflag [#allocation4], %s6310
          %s6312 = sand.u32 %s152, 1
          %s6313 = smul.addr %s6312, 4
          %s6314 = scalar_lea.vmem [#allocation10], %s6313
          %6315 = dma.done %s6311, 64
        $region68: #{tpu_custom_call.1} parent=63 // pred_fallthru
          _
        // Predicated region
        $region69: #{tpu_custom_call.1} parent=63 // pred_check
          %p6316 = pneg %p195
        $region70: #{tpu_custom_call.1} parent=63 // pred_check_branch
          %6318 = sbr.rel (%p6316) target = $region72
        $region71: #{tpu_custom_call.1} parent=63 // pred_region
          %s6319 = sand.u32 %s180, 1
          %s6320 = scalar_lea.sflag [#allocation12], %s6319
          %s6321 = sand.u32 %s180, 1
          %s6322 = smul.addr %s6321, 2
          %s6323 = scalar_lea.vmem [#allocation11], %s6322
          %6324 = dma.done %s6320, 32
        $region72: #{tpu_custom_call.1} parent=63 // pred_fallthru
          _
      $region64: #{tpu_custom_call.1} parent=5 // pred_fallthru
        _
    $region6: #{tpu_custom_call.1} parent=1 // loop_footer
      %s29 = sadd.s32 1, %s25
    $region7: #{tpu_custom_call.1} parent=1 // loop_footer_branch
      %24 = sbr.rel target = $region3
    $region8: #{tpu_custom_call.1} parent=1 // loop_exit
      _
    %6325 = vsyncpa [#allocation3], 1
    %s6326 = scalar_lea.sflag [#allocation3], 1
    %6327 = vsyncpa %s6326, 1
    %6328 = vsyncpa [#allocation8], 1
    %s6329 = scalar_lea.sflag [#allocation8], 1
    %6330 = vsyncpa %s6329, 1
    %6331 = vsyncpa [#allocation4], 1
    %s6332 = scalar_lea.sflag [#allocation4], 1
    %6333 = vsyncpa %s6332, 1
    %6334 = vsyncpa [#allocation12], 1
    %s6335 = scalar_lea.sflag [#allocation12], 1
    %6336 = vsyncpa %s6335, 1
    %6337 = vsyncpa [#allocation5], 1
    %s6338 = scalar_lea.sflag [#allocation5], 1
    %6339 = vsyncpa %s6338, 1

</llo_original>
